<compile_context>
chip_gen: v7x
topology: tpu7x:2x2x1
jax: 0.10.0
libtpu: 0.0.40
codegen_flags: <defaults>
</compile_context>

<pallas_src>
import jax
import jax.numpy as jnp
from jax import lax
from jax.experimental import pallas as pl
from jax.experimental.pallas import tpu as pltpu


# ---------------------------------------------------------------------------
# Pallas kernel: embedding gather + fused 2-layer LSTM recurrence + Linear head.
#   ids_ref   : (T*B, 1)   int32 token ids, time-major (row n = t*B + b)
#   emb_ref   : (V, E)     embedding table
#   w_in_ref  : (E, 8H)    layer-0 input weights in permuted gate layout; layer-1 cols = 0
#   b_in_ref  : (1, 8H)    [b0 | b1] interleaved per gate in the permuted layout
#   w_rec_ref : (2H, 8H)   block matrix [[W_hh0, W_ih1], [0, W_hh1]] in permuted layout
#   w_mlp_ref : (2H, C), b_mlp_ref : (1, C)
#   out_ref   : (B, C)
#   proj_ref  : (T*B, 8H)  VMEM scratch holding the whole-sequence input projection
# Gate column layout (each block H wide): [i0 | i1 | f0 | f1 | o0 | o1 | g0 | g1]
# ---------------------------------------------------------------------------
def lstm_fused_kernel(ids_ref, emb_ref, w_in_ref, b_in_ref, w_rec_ref,
                      w_mlp_ref, b_mlp_ref, out_ref, proj_ref):
    TB = ids_ref.shape[0]
    V = emb_ref.shape[0]
    H2 = w_rec_ref.shape[0]
    H = H2 // 2
    H4, H6 = 4 * H, 6 * H
    B = out_ref.shape[0]
    T = TB // B

    HIGH = lax.Precision.HIGHEST   # pinned: full-f32 MXU passes, deterministic accuracy

    # --- fused embedding gather: one-hot(ids) @ emb_table (exact: one nonzero term/row).
    onehot = jnp.where(
        ids_ref[...] == lax.broadcasted_iota(jnp.int32, (TB, V), 1), 1.0, 0.0)
    x = jnp.dot(onehot, emb_ref[...],
                preferred_element_type=jnp.float32, precision=HIGH)       # (T*B, E)

    # --- one big input-projection matmul for the whole sequence, bias folded in.
    #     Layer-0 gate columns hold x_t @ W_ih0 + b0; layer-1 columns just carry b1.
    #     Parked in VMEM scratch so only one (B,8H) slice is live per unrolled step.
    # TODO(synk): the zero layer-1 columns of w_in double this matmul's width; dropping
    #             them would need per-step strided adds on the serial chain — skip at E=16.
    proj_ref[...] = (jnp.dot(x, w_in_ref[...],
                             preferred_element_type=jnp.float32, precision=HIGH)
                     + b_in_ref[...])                                      # (T*B, 8H)

    lane = lax.broadcasted_iota(jnp.int32, (B, H2), 1)
    is_l0 = lane < H                                    # lanes [0,H) = layer-0 half

    def sig(z):
        # sigmoid(x) = 0.5*tanh(x/2) + 0.5 : one EUP push, no divide.
        return 0.5 * jnp.tanh(0.5 * z) + 0.5

    def fused_update(gates, ccat):
        # Both layers' activations: 3 tanh EUP pushes total.
        s = sig(gates[:, :H6])                          # [i0|i1|f0|f1|o0|o1]
        gct = jnp.tanh(gates[:, H6:])                   # [g0|g1]
        icat = s[:, :H2]
        fcat = s[:, H2:H4]
        ocat = s[:, H4:H6]
        c_new = fcat * ccat + icat * gct                # [c0 | c1]
        h_new = ocat * jnp.tanh(c_new)                  # [h0 | h1]
        return h_new, c_new

    zero = jnp.zeros((B, H2), jnp.float32)

    # --- prologue (t = 0): layer-0 step 0 only (recurrent term is zero);
    #     mask the phantom layer-1 half back to its zero initial state.
    h_new, c_new = fused_update(proj_ref[0:B, :], zero)
    hcat = jnp.where(is_l0, h_new, 0.0)                 # [h0_0 | 0]
    ccat = jnp.where(is_l0, c_new, 0.0)                 # [c0_0 | 0]

    # --- main loop, fully unrolled: iteration t = layer-0 step t + layer-1 step t-1,
    #     both driven by ONE block-diagonal recurrent matmul per step. w_rec is read
    #     from its ref each step (no long-lived hoisted value).
    for t in range(1, T):
        rec = jnp.dot(hcat, w_rec_ref[...],
                      preferred_element_type=jnp.float32, precision=HIGH)  # (B, 8H)
        gates = rec + proj_ref[t * B:(t + 1) * B, :]
        hcat, ccat = fused_update(gates, ccat)
    # here: hcat = [h0_{T-1} | h1_{T-2}], ccat = [c0_{T-1} | c1_{T-2}]

    # --- epilogue: layer-1 step T-1 (the layer-0 half of this step is discarded).
    rec = jnp.dot(hcat, w_rec_ref[...],
                  preferred_element_type=jnp.float32, precision=HIGH)
    gates = rec + proj_ref[(T - 1) * B:T * B, :]        # layer-1 cols are just b1
    h_new, _ = fused_update(gates, ccat)

    # --- head: hidden = cat([h0_last, h1_last], dim=1) via a lane select, one matmul.
    # TODO(synk): at C=4 the (B, C) store is one masked vst; pad C to 128 lanes if it grows.
    hidden = jnp.where(is_l0, hcat, h_new)              # [h0_{T-1} | h1_{T-1}]
    out_ref[...] = (jnp.dot(hidden, w_mlp_ref[...],
                            preferred_element_type=jnp.float32, precision=HIGH)
                    + b_mlp_ref[...])


# ---------------------------------------------------------------------------
# One-time parameter prep (OUTSIDE the per-call forward): gate permutation and the
# block/zero-padded fused weights are built once and reused for every forward call.
# ---------------------------------------------------------------------------
def prepare_params(params):
    H = params["whh0"].shape[0]
    E = params["wih0"].shape[0]

    # Split PyTorch gate order [i, f, g, o] into blocks returned as (i, f, o, g).
    def gate_blocks(w):
        return w[:, 0:H], w[:, H:2 * H], w[:, 3 * H:4 * H], w[:, 2 * H:3 * H]

    # Input-projection weight (layer-1 columns are zero) and combined bias.
    i0x, f0x, o0x, g0x = gate_blocks(params["wih0"])            # (E, H) each
    zE = jnp.zeros((E, H), jnp.float32)
    w_in = jnp.concatenate([i0x, zE, f0x, zE, o0x, zE, g0x, zE], axis=1)       # (E, 8H)

    bi0, bf0, bo0, bg0 = gate_blocks(params["b0"])
    bi1, bf1, bo1, bg1 = gate_blocks(params["b1"])
    b_in = jnp.concatenate([bi0, bi1, bf0, bf1, bo0, bo1, bg0, bg1], axis=1)   # (1, 8H)

    # Block recurrent weight: rows 0..H-1 multiply h0 (-> W_hh0 / W_ih1),
    # rows H..2H-1 multiply h1 (-> 0 / W_hh1).
    i0h, f0h, o0h, g0h = gate_blocks(params["whh0"])            # (H, H)
    i1x, f1x, o1x, g1x = gate_blocks(params["wih1"])
    i1h, f1h, o1h, g1h = gate_blocks(params["whh1"])
    zH = jnp.zeros((H, H), jnp.float32)
    w_rec = jnp.concatenate([
        jnp.concatenate([i0h, i1x, f0h, f1x, o0h, o1x, g0h, g1x], axis=1),
        jnp.concatenate([zH, i1h, zH, f1h, zH, o1h, zH, g1h], axis=1),
    ], axis=0)                                                                 # (2H, 8H)

    return {
        "embedding": params["embedding"],
        "w_in": w_in, "b_in": b_in, "w_rec": w_rec,
        "w_mlp": params["w_mlp"], "b_mlp": params["b_mlp"],
    }


# ---------------------------------------------------------------------------
# Per-call forward: one tiny int32 transpose + the fused pallas_call.
# ---------------------------------------------------------------------------
@jax.jit
def lstm_model_forward(text, prepped):
    B, T = text.shape
    H2 = prepped["w_rec"].shape[0]
    C = prepped["w_mlp"].shape[1]

    # Time-major token ids (row n = t*B + b). 256 bytes of int glue; the float gather,
    # transpose and weight re-layout all happen in-kernel / at prep time now.
    ids_tm = text.T.reshape(T * B, 1).astype(jnp.int32)

    vmem = pl.BlockSpec(memory_space=pltpu.MemorySpace.VMEM)
    out = pl.pallas_call(
        lstm_fused_kernel,
        out_shape=jax.ShapeDtypeStruct((B, C), jnp.float32),
        in_specs=[vmem] * 7,
        out_specs=vmem,
        scratch_shapes=[pltpu.VMEM((T * B, 4 * H2), jnp.float32)],   # proj scratch (T*B, 8H)
    )(ids_tm, prepped["embedding"], prepped["w_in"], prepped["b_in"],
      prepped["w_rec"], prepped["w_mlp"], prepped["b_mlp"])
    return out


# ---------------------------------------------------------------------------
# Deterministic parameter init (mirrors nn.Embedding / nn.LSTM / nn.Linear shapes).
# Weights are stored pre-transposed, gates in PyTorch order [i, f, g, o].
# ---------------------------------------------------------------------------
def init_params(key, vocab_size, embedding_dim, hidden_dim, num_class, n_layers, pad_idx):
    assert n_layers == 2, "kernel fuses exactly 2 LSTM layers"
    ks = jax.random.split(key, 16)
    H, E, C = hidden_dim, embedding_dim, num_class
    scale = 1.0 / jnp.sqrt(H)

    def u(k, shape):
        return jax.random.uniform(k, shape, jnp.float32, -scale, scale)

    emb = jax.random.normal(ks[0], (vocab_size, E), jnp.float32)
    emb = emb.at[pad_idx].set(0.0)  # padding_idx row is zero

    params = {
        "embedding": emb,
        # layer 0: W_ih (4H, E) -> stored transposed (E, 4H); W_hh (4H, H) -> (H, 4H)
        "wih0": u(ks[1], (E, 4 * H)),
        "whh0": u(ks[2], (H, 4 * H)),
        "b0":   (u(ks[3], (1, 4 * H)) + u(ks[4], (1, 4 * H))),   # b_ih + b_hh
        # layer 1: input dim = H
        "wih1": u(ks[5], (H, 4 * H)),
        "whh1": u(ks[6], (H, 4 * H)),
        "b1":   (u(ks[7], (1, 4 * H)) + u(ks[8], (1, 4 * H))),
        # Linear(hidden_dim * n_layers, num_class): weight (C, 2H) -> stored transposed (2H, C)
        "w_mlp": u(ks[9], (2 * H, C)),
        "b_mlp": u(ks[10], (1, C)),
    }
    return params


# ---------------------------------------------------------------------------
# Pure-JAX reference (same math, PyTorch layout, pinned precision) for correctness.
# ---------------------------------------------------------------------------
def reference_forward(text, params):
    emb = params["embedding"][text]            # (B, T, E)
    B, T, _ = emb.shape
    H = params["whh0"].shape[0]
    HIGH = lax.Precision.HIGHEST

    def run_layer(x_seq, wih, whh, b):
        def step(carry, x_t):
            h, c = carry
            gates = (jnp.dot(x_t, wih, precision=HIGH)
                     + jnp.dot(h, whh, precision=HIGH) + b)
            i_g = jax.nn.sigmoid(gates[:, 0 * H:1 * H])
            f_g = jax.nn.sigmoid(gates[:, 1 * H:2 * H])
            g_g = jnp.tanh(gates[:, 2 * H:3 * H])
            o_g = jax.nn.sigmoid(gates[:, 3 * H:4 * H])
            c_new = f_g * c + i_g * g_g
            h_new = o_g * jnp.tanh(c_new)
            return (h_new, c_new), h_new
        init = (jnp.zeros((B, H), jnp.float32), jnp.zeros((B, H), jnp.float32))
        (h_last, _), outs = lax.scan(step, init, jnp.transpose(x_seq, (1, 0, 2)))
        return jnp.transpose(outs, (1, 0, 2)), h_last

    seq0, h0 = run_layer(emb, params["wih0"], params["whh0"], params["b0"])
    _, h1 = run_layer(seq0, params["wih1"], params["whh1"], params["b1"])
    hidden = jnp.concatenate([h0, h1], axis=1)   # matches torch.cat over hidden[i]
    return jnp.dot(hidden, params["w_mlp"], precision=HIGH) + params["b_mlp"]


if __name__ == "__main__":
    # Small config consistent with the module's forward.
    vocab_size, embedding_dim, hidden_dim, num_class = 50, 16, 32, 4
    n_layers, bidirectional, dropout, pad_idx = 2, False, 0.0, 0
    # TODO(synk): nn.LSTM inter-layer dropout only applies in training mode; inference path has none.
    batch, seq_len = 8, 8

    key = jax.random.PRNGKey(0)
    k_param, k_text = jax.random.split(key)
    params = init_params(k_param, vocab_size, embedding_dim, hidden_dim,
                         num_class, n_layers, pad_idx)
    text = jax.random.randint(k_text, (batch, seq_len), 0, vocab_size, dtype=jnp.int32)

    prepped = prepare_params(params)    # one-time weight re-layout, off the per-call path

    out = lstm_model_forward(text, prepped)
    out = jax.block_until_ready(out)
    assert out.shape == (batch, num_class), out.shape

    ref = reference_forward(text, params)
    assert jnp.allclose(out, ref, rtol=2e-4, atol=2e-4), \
        f"max abs err {jnp.max(jnp.abs(out - ref))}"

    print("KERNEL_OK")
</pallas_src>

<mosaic_0001>
module attributes {stable_mosaic.version = 11 : i64} {
  func.func @lstm_fused_kernel(%arg0: memref<64x1xi32, #tpu.memory_space<vmem>>, %arg1: memref<50x16xf32, #tpu.memory_space<vmem>>, %arg2: memref<16x256xf32, #tpu.memory_space<vmem>>, %arg3: memref<1x256xf32, #tpu.memory_space<vmem>>, %arg4: memref<64x256xf32, #tpu.memory_space<vmem>>, %arg5: memref<64x4xf32, #tpu.memory_space<vmem>>, %arg6: memref<1x4xf32, #tpu.memory_space<vmem>>, %arg7: memref<8x4xf32, #tpu.memory_space<vmem>>, %arg8: memref<64x256xf32, #tpu.memory_space<vmem>>) attributes {dimension_semantics = [], scalar_prefetch = 0 : i64, scratch_operands = 1 : i64, tpu.core_type = #tpu.core_type<tc>} {
    %c0 = arith.constant 0 : index
    %c0_0 = arith.constant 0 : index
    %0 = vector.load %arg0[%c0, %c0_0] : memref<64x1xi32, #tpu.memory_space<vmem>>, vector<64x1xi32>
    %1 = tpu.iota {dimensions = array<i32: 1>} : vector<64x50xi32>
    %2 = vector.broadcast %0 : vector<64x1xi32> to vector<64x50xi32>
    %3 = arith.cmpi eq, %2, %1 : vector<64x50xi32>
    %cst = arith.constant 1.000000e+00 : f32
    %cst_1 = arith.constant 0.000000e+00 : f32
    %4 = vector.broadcast %cst : f32 to vector<64x50xf32>
    %5 = vector.broadcast %cst_1 : f32 to vector<64x50xf32>
    %6 = arith.select %3, %4, %5 : vector<64x50xi1>, vector<64x50xf32>
    %c0_2 = arith.constant 0 : index
    %c0_3 = arith.constant 0 : index
    %7 = vector.load %arg1[%c0_2, %c0_3] : memref<50x16xf32, #tpu.memory_space<vmem>>, vector<50x16xf32>
    %cst_4 = arith.constant dense<0.000000e+00> : vector<64x16xf32>
    %8 = tpu.matmul %6, %7, %cst_4 {dimension_numbers = #tpu.dot_dimension_numbers<[1], [0], [0], [1], [0, 0, 1, 1], [], []>, precision = #tpu.contract_precision<fp32>} : vector<64x50xf32>, vector<50x16xf32>, vector<64x16xf32> -> vector<64x16xf32>
    %c0_5 = arith.constant 0 : index
    %c0_6 = arith.constant 0 : index
    %9 = vector.load %arg2[%c0_5, %c0_6] : memref<16x256xf32, #tpu.memory_space<vmem>>, vector<16x256xf32>
    %cst_7 = arith.constant dense<0.000000e+00> : vector<64x256xf32>
    %10 = tpu.matmul %8, %9, %cst_7 {dimension_numbers = #tpu.dot_dimension_numbers<[1], [0], [0], [1], [0, 0, 1, 1], [], []>, precision = #tpu.contract_precision<fp32>} : vector<64x16xf32>, vector<16x256xf32>, vector<64x256xf32> -> vector<64x256xf32>
    %c0_8 = arith.constant 0 : index
    %c0_9 = arith.constant 0 : index
    %11 = vector.load %arg3[%c0_8, %c0_9] : memref<1x256xf32, #tpu.memory_space<vmem>>, vector<1x256xf32>
    %12 = vector.broadcast %11 : vector<1x256xf32> to vector<64x256xf32>
    %13 = arith.addf %10, %12 : vector<64x256xf32>
    %c0_10 = arith.constant 0 : index
    %c0_11 = arith.constant 0 : index
    %14 = vector.load %arg8[%c0_10, %c0_11] : memref<64x256xf32, #tpu.memory_space<vmem>>, vector<64x256xf32>
    tpu.vector_store %arg8[%c0_10, %c0_11], %13 {strides = array<i32>} : memref<64x256xf32, #tpu.memory_space<vmem>>, vector<64x256xf32>,
    %15 = tpu.iota {dimensions = array<i32: 1>} : vector<8x64xi32>
    %c32_i32 = arith.constant 32 : i32
    %16 = vector.broadcast %c32_i32 : i32 to vector<8x64xi32>
    %17 = arith.cmpi slt, %15, %16 : vector<8x64xi32>
    %cst_12 = arith.constant 0.000000e+00 : f32
    %18 = vector.broadcast %cst_12 : f32 to vector<8x64xf32>
    %c0_13 = arith.constant 0 : index
    %c0_14 = arith.constant 0 : index
    %19 = vector.load %arg8[%c0_13, %c0_14] : memref<64x256xf32, #tpu.memory_space<vmem>>, vector<8x256xf32>
    %20 = vector.extract_strided_slice %19 {offsets = [0, 0], sizes = [8, 192], strides = [1, 1]} : vector<8x256xf32> to vector<8x192xf32>
    %cst_15 = arith.constant 5.000000e-01 : f32
    %21 = vector.broadcast %cst_15 : f32 to vector<8x192xf32>
    %22 = arith.mulf %21, %20 : vector<8x192xf32>
    %23 = math.tanh %22 : vector<8x192xf32>
    %cst_16 = arith.constant 5.000000e-01 : f32
    %24 = vector.broadcast %cst_16 : f32 to vector<8x192xf32>
    %25 = arith.mulf %24, %23 : vector<8x192xf32>
    %cst_17 = arith.constant 5.000000e-01 : f32
    %26 = vector.broadcast %cst_17 : f32 to vector<8x192xf32>
    %27 = arith.addf %25, %26 : vector<8x192xf32>
    %28 = vector.extract_strided_slice %19 {offsets = [0, 192], sizes = [8, 64], strides = [1, 1]} : vector<8x256xf32> to vector<8x64xf32>
    %29 = math.tanh %28 : vector<8x64xf32>
    %30 = vector.extract_strided_slice %27 {offsets = [0, 0], sizes = [8, 64], strides = [1, 1]} : vector<8x192xf32> to vector<8x64xf32>
    %31 = vector.extract_strided_slice %27 {offsets = [0, 64], sizes = [8, 64], strides = [1, 1]} : vector<8x192xf32> to vector<8x64xf32>
    %32 = vector.extract_strided_slice %27 {offsets = [0, 128], sizes = [8, 64], strides = [1, 1]} : vector<8x192xf32> to vector<8x64xf32>
    %33 = arith.mulf %31, %18 : vector<8x64xf32>
    %34 = arith.mulf %30, %29 : vector<8x64xf32>
    %35 = arith.addf %33, %34 : vector<8x64xf32>
    %36 = math.tanh %35 : vector<8x64xf32>
    %37 = arith.mulf %32, %36 : vector<8x64xf32>
    %cst_18 = arith.constant 0.000000e+00 : f32
    %38 = vector.broadcast %cst_18 : f32 to vector<8x64xf32>
    %39 = arith.select %17, %37, %38 : vector<8x64xi1>, vector<8x64xf32>
    %cst_19 = arith.constant 0.000000e+00 : f32
    %40 = vector.broadcast %cst_19 : f32 to vector<8x64xf32>
    %41 = arith.select %17, %35, %40 : vector<8x64xi1>, vector<8x64xf32>
    %c0_20 = arith.constant 0 : index
    %c0_21 = arith.constant 0 : index
    %42 = vector.load %arg4[%c0_20, %c0_21] : memref<64x256xf32, #tpu.memory_space<vmem>>, vector<64x256xf32>
    %cst_22 = arith.constant dense<0.000000e+00> : vector<8x256xf32>
    %43 = tpu.matmul %39, %42, %cst_22 {dimension_numbers = #tpu.dot_dimension_numbers<[1], [0], [0], [1], [0, 0, 1, 1], [], []>, precision = #tpu.contract_precision<fp32>} : vector<8x64xf32>, vector<64x256xf32>, vector<8x256xf32> -> vector<8x256xf32>
    %c8 = arith.constant 8 : index
    %c0_23 = arith.constant 0 : index
    %44 = vector.load %arg8[%c8, %c0_23] : memref<64x256xf32, #tpu.memory_space<vmem>>, vector<8x256xf32>
    %45 = arith.addf %43, %44 : vector<8x256xf32>
    %46 = vector.extract_strided_slice %45 {offsets = [0, 0], sizes = [8, 192], strides = [1, 1]} : vector<8x256xf32> to vector<8x192xf32>
    %cst_24 = arith.constant 5.000000e-01 : f32
    %47 = vector.broadcast %cst_24 : f32 to vector<8x192xf32>
    %48 = arith.mulf %47, %46 : vector<8x192xf32>
    %49 = math.tanh %48 : vector<8x192xf32>
    %cst_25 = arith.constant 5.000000e-01 : f32
    %50 = vector.broadcast %cst_25 : f32 to vector<8x192xf32>
    %51 = arith.mulf %50, %49 : vector<8x192xf32>
    %cst_26 = arith.constant 5.000000e-01 : f32
    %52 = vector.broadcast %cst_26 : f32 to vector<8x192xf32>
    %53 = arith.addf %51, %52 : vector<8x192xf32>
    %54 = vector.extract_strided_slice %45 {offsets = [0, 192], sizes = [8, 64], strides = [1, 1]} : vector<8x256xf32> to vector<8x64xf32>
    %55 = math.tanh %54 : vector<8x64xf32>
    %56 = vector.extract_strided_slice %53 {offsets = [0, 0], sizes = [8, 64], strides = [1, 1]} : vector<8x192xf32> to vector<8x64xf32>
    %57 = vector.extract_strided_slice %53 {offsets = [0, 64], sizes = [8, 64], strides = [1, 1]} : vector<8x192xf32> to vector<8x64xf32>
    %58 = vector.extract_strided_slice %53 {offsets = [0, 128], sizes = [8, 64], strides = [1, 1]} : vector<8x192xf32> to vector<8x64xf32>
    %59 = arith.mulf %57, %41 : vector<8x64xf32>
    %60 = arith.mulf %56, %55 : vector<8x64xf32>
    %61 = arith.addf %59, %60 : vector<8x64xf32>
    %62 = math.tanh %61 : vector<8x64xf32>
    %63 = arith.mulf %58, %62 : vector<8x64xf32>
    %c0_27 = arith.constant 0 : index
    %c0_28 = arith.constant 0 : index
    %64 = vector.load %arg4[%c0_27, %c0_28] : memref<64x256xf32, #tpu.memory_space<vmem>>, vector<64x256xf32>
    %cst_29 = arith.constant dense<0.000000e+00> : vector<8x256xf32>
    %65 = tpu.matmul %63, %64, %cst_29 {dimension_numbers = #tpu.dot_dimension_numbers<[1], [0], [0], [1], [0, 0, 1, 1], [], []>, precision = #tpu.contract_precision<fp32>} : vector<8x64xf32>, vector<64x256xf32>, vector<8x256xf32> -> vector<8x256xf32>
    %c16 = arith.constant 16 : index
    %c0_30 = arith.constant 0 : index
    %66 = vector.load %arg8[%c16, %c0_30] : memref<64x256xf32, #tpu.memory_space<vmem>>, vector<8x256xf32>
    %67 = arith.addf %65, %66 : vector<8x256xf32>
    %68 = vector.extract_strided_slice %67 {offsets = [0, 0], sizes = [8, 192], strides = [1, 1]} : vector<8x256xf32> to vector<8x192xf32>
    %cst_31 = arith.constant 5.000000e-01 : f32
    %69 = vector.broadcast %cst_31 : f32 to vector<8x192xf32>
    %70 = arith.mulf %69, %68 : vector<8x192xf32>
    %71 = math.tanh %70 : vector<8x192xf32>
    %cst_32 = arith.constant 5.000000e-01 : f32
    %72 = vector.broadcast %cst_32 : f32 to vector<8x192xf32>
    %73 = arith.mulf %72, %71 : vector<8x192xf32>
    %cst_33 = arith.constant 5.000000e-01 : f32
    %74 = vector.broadcast %cst_33 : f32 to vector<8x192xf32>
    %75 = arith.addf %73, %74 : vector<8x192xf32>
    %76 = vector.extract_strided_slice %67 {offsets = [0, 192], sizes = [8, 64], strides = [1, 1]} : vector<8x256xf32> to vector<8x64xf32>
    %77 = math.tanh %76 : vector<8x64xf32>
    %78 = vector.extract_strided_slice %75 {offsets = [0, 0], sizes = [8, 64], strides = [1, 1]} : vector<8x192xf32> to vector<8x64xf32>
    %79 = vector.extract_strided_slice %75 {offsets = [0, 64], sizes = [8, 64], strides = [1, 1]} : vector<8x192xf32> to vector<8x64xf32>
    %80 = vector.extract_strided_slice %75 {offsets = [0, 128], sizes = [8, 64], strides = [1, 1]} : vector<8x192xf32> to vector<8x64xf32>
    %81 = arith.mulf %79, %61 : vector<8x64xf32>
    %82 = arith.mulf %78, %77 : vector<8x64xf32>
    %83 = arith.addf %81, %82 : vector<8x64xf32>
    %84 = math.tanh %83 : vector<8x64xf32>
    %85 = arith.mulf %80, %84 : vector<8x64xf32>
    %c0_34 = arith.constant 0 : index
    %c0_35 = arith.constant 0 : index
    %86 = vector.load %arg4[%c0_34, %c0_35] : memref<64x256xf32, #tpu.memory_space<vmem>>, vector<64x256xf32>
    %cst_36 = arith.constant dense<0.000000e+00> : vector<8x256xf32>
    %87 = tpu.matmul %85, %86, %cst_36 {dimension_numbers = #tpu.dot_dimension_numbers<[1], [0], [0], [1], [0, 0, 1, 1], [], []>, precision = #tpu.contract_precision<fp32>} : vector<8x64xf32>, vector<64x256xf32>, vector<8x256xf32> -> vector<8x256xf32>
    %c24 = arith.constant 24 : index
    %c0_37 = arith.constant 0 : index
    %88 = vector.load %arg8[%c24, %c0_37] : memref<64x256xf32, #tpu.memory_space<vmem>>, vector<8x256xf32>
    %89 = arith.addf %87, %88 : vector<8x256xf32>
    %90 = vector.extract_strided_slice %89 {offsets = [0, 0], sizes = [8, 192], strides = [1, 1]} : vector<8x256xf32> to vector<8x192xf32>
    %cst_38 = arith.constant 5.000000e-01 : f32
    %91 = vector.broadcast %cst_38 : f32 to vector<8x192xf32>
    %92 = arith.mulf %91, %90 : vector<8x192xf32>
    %93 = math.tanh %92 : vector<8x192xf32>
    %cst_39 = arith.constant 5.000000e-01 : f32
    %94 = vector.broadcast %cst_39 : f32 to vector<8x192xf32>
    %95 = arith.mulf %94, %93 : vector<8x192xf32>
    %cst_40 = arith.constant 5.000000e-01 : f32
    %96 = vector.broadcast %cst_40 : f32 to vector<8x192xf32>
    %97 = arith.addf %95, %96 : vector<8x192xf32>
    %98 = vector.extract_strided_slice %89 {offsets = [0, 192], sizes = [8, 64], strides = [1, 1]} : vector<8x256xf32> to vector<8x64xf32>
    %99 = math.tanh %98 : vector<8x64xf32>
    %100 = vector.extract_strided_slice %97 {offsets = [0, 0], sizes = [8, 64], strides = [1, 1]} : vector<8x192xf32> to vector<8x64xf32>
    %101 = vector.extract_strided_slice %97 {offsets = [0, 64], sizes = [8, 64], strides = [1, 1]} : vector<8x192xf32> to vector<8x64xf32>
    %102 = vector.extract_strided_slice %97 {offsets = [0, 128], sizes = [8, 64], strides = [1, 1]} : vector<8x192xf32> to vector<8x64xf32>
    %103 = arith.mulf %101, %83 : vector<8x64xf32>
    %104 = arith.mulf %100, %99 : vector<8x64xf32>
    %105 = arith.addf %103, %104 : vector<8x64xf32>
    %106 = math.tanh %105 : vector<8x64xf32>
    %107 = arith.mulf %102, %106 : vector<8x64xf32>
    %c0_41 = arith.constant 0 : index
    %c0_42 = arith.constant 0 : index
    %108 = vector.load %arg4[%c0_41, %c0_42] : memref<64x256xf32, #tpu.memory_space<vmem>>, vector<64x256xf32>
    %cst_43 = arith.constant dense<0.000000e+00> : vector<8x256xf32>
    %109 = tpu.matmul %107, %108, %cst_43 {dimension_numbers = #tpu.dot_dimension_numbers<[1], [0], [0], [1], [0, 0, 1, 1], [], []>, precision = #tpu.contract_precision<fp32>} : vector<8x64xf32>, vector<64x256xf32>, vector<8x256xf32> -> vector<8x256xf32>
    %c32 = arith.constant 32 : index
    %c0_44 = arith.constant 0 : index
    %110 = vector.load %arg8[%c32, %c0_44] : memref<64x256xf32, #tpu.memory_space<vmem>>, vector<8x256xf32>
    %111 = arith.addf %109, %110 : vector<8x256xf32>
    %112 = vector.extract_strided_slice %111 {offsets = [0, 0], sizes = [8, 192], strides = [1, 1]} : vector<8x256xf32> to vector<8x192xf32>
    %cst_45 = arith.constant 5.000000e-01 : f32
    %113 = vector.broadcast %cst_45 : f32 to vector<8x192xf32>
    %114 = arith.mulf %113, %112 : vector<8x192xf32>
    %115 = math.tanh %114 : vector<8x192xf32>
    %cst_46 = arith.constant 5.000000e-01 : f32
    %116 = vector.broadcast %cst_46 : f32 to vector<8x192xf32>
    %117 = arith.mulf %116, %115 : vector<8x192xf32>
    %cst_47 = arith.constant 5.000000e-01 : f32
    %118 = vector.broadcast %cst_47 : f32 to vector<8x192xf32>
    %119 = arith.addf %117, %118 : vector<8x192xf32>
    %120 = vector.extract_strided_slice %111 {offsets = [0, 192], sizes = [8, 64], strides = [1, 1]} : vector<8x256xf32> to vector<8x64xf32>
    %121 = math.tanh %120 : vector<8x64xf32>
    %122 = vector.extract_strided_slice %119 {offsets = [0, 0], sizes = [8, 64], strides = [1, 1]} : vector<8x192xf32> to vector<8x64xf32>
    %123 = vector.extract_strided_slice %119 {offsets = [0, 64], sizes = [8, 64], strides = [1, 1]} : vector<8x192xf32> to vector<8x64xf32>
    %124 = vector.extract_strided_slice %119 {offsets = [0, 128], sizes = [8, 64], strides = [1, 1]} : vector<8x192xf32> to vector<8x64xf32>
    %125 = arith.mulf %123, %105 : vector<8x64xf32>
    %126 = arith.mulf %122, %121 : vector<8x64xf32>
    %127 = arith.addf %125, %126 : vector<8x64xf32>
    %128 = math.tanh %127 : vector<8x64xf32>
    %129 = arith.mulf %124, %128 : vector<8x64xf32>
    %c0_48 = arith.constant 0 : index
    %c0_49 = arith.constant 0 : index
    %130 = vector.load %arg4[%c0_48, %c0_49] : memref<64x256xf32, #tpu.memory_space<vmem>>, vector<64x256xf32>
    %cst_50 = arith.constant dense<0.000000e+00> : vector<8x256xf32>
    %131 = tpu.matmul %129, %130, %cst_50 {dimension_numbers = #tpu.dot_dimension_numbers<[1], [0], [0], [1], [0, 0, 1, 1], [], []>, precision = #tpu.contract_precision<fp32>} : vector<8x64xf32>, vector<64x256xf32>, vector<8x256xf32> -> vector<8x256xf32>
    %c40 = arith.constant 40 : index
    %c0_51 = arith.constant 0 : index
    %132 = vector.load %arg8[%c40, %c0_51] : memref<64x256xf32, #tpu.memory_space<vmem>>, vector<8x256xf32>
    %133 = arith.addf %131, %132 : vector<8x256xf32>
    %134 = vector.extract_strided_slice %133 {offsets = [0, 0], sizes = [8, 192], strides = [1, 1]} : vector<8x256xf32> to vector<8x192xf32>
    %cst_52 = arith.constant 5.000000e-01 : f32
    %135 = vector.broadcast %cst_52 : f32 to vector<8x192xf32>
    %136 = arith.mulf %135, %134 : vector<8x192xf32>
    %137 = math.tanh %136 : vector<8x192xf32>
    %cst_53 = arith.constant 5.000000e-01 : f32
    %138 = vector.broadcast %cst_53 : f32 to vector<8x192xf32>
    %139 = arith.mulf %138, %137 : vector<8x192xf32>
    %cst_54 = arith.constant 5.000000e-01 : f32
    %140 = vector.broadcast %cst_54 : f32 to vector<8x192xf32>
    %141 = arith.addf %139, %140 : vector<8x192xf32>
    %142 = vector.extract_strided_slice %133 {offsets = [0, 192], sizes = [8, 64], strides = [1, 1]} : vector<8x256xf32> to vector<8x64xf32>
    %143 = math.tanh %142 : vector<8x64xf32>
    %144 = vector.extract_strided_slice %141 {offsets = [0, 0], sizes = [8, 64], strides = [1, 1]} : vector<8x192xf32> to vector<8x64xf32>
    %145 = vector.extract_strided_slice %141 {offsets = [0, 64], sizes = [8, 64], strides = [1, 1]} : vector<8x192xf32> to vector<8x64xf32>
    %146 = vector.extract_strided_slice %141 {offsets = [0, 128], sizes = [8, 64], strides = [1, 1]} : vector<8x192xf32> to vector<8x64xf32>
    %147 = arith.mulf %145, %127 : vector<8x64xf32>
    %148 = arith.mulf %144, %143 : vector<8x64xf32>
    %149 = arith.addf %147, %148 : vector<8x64xf32>
    %150 = math.tanh %149 : vector<8x64xf32>
    %151 = arith.mulf %146, %150 : vector<8x64xf32>
    %c0_55 = arith.constant 0 : index
    %c0_56 = arith.constant 0 : index
    %152 = vector.load %arg4[%c0_55, %c0_56] : memref<64x256xf32, #tpu.memory_space<vmem>>, vector<64x256xf32>
    %cst_57 = arith.constant dense<0.000000e+00> : vector<8x256xf32>
    %153 = tpu.matmul %151, %152, %cst_57 {dimension_numbers = #tpu.dot_dimension_numbers<[1], [0], [0], [1], [0, 0, 1, 1], [], []>, precision = #tpu.contract_precision<fp32>} : vector<8x64xf32>, vector<64x256xf32>, vector<8x256xf32> -> vector<8x256xf32>
    %c48 = arith.constant 48 : index
    %c0_58 = arith.constant 0 : index
    %154 = vector.load %arg8[%c48, %c0_58] : memref<64x256xf32, #tpu.memory_space<vmem>>, vector<8x256xf32>
    %155 = arith.addf %153, %154 : vector<8x256xf32>
    %156 = vector.extract_strided_slice %155 {offsets = [0, 0], sizes = [8, 192], strides = [1, 1]} : vector<8x256xf32> to vector<8x192xf32>
    %cst_59 = arith.constant 5.000000e-01 : f32
    %157 = vector.broadcast %cst_59 : f32 to vector<8x192xf32>
    %158 = arith.mulf %157, %156 : vector<8x192xf32>
    %159 = math.tanh %158 : vector<8x192xf32>
    %cst_60 = arith.constant 5.000000e-01 : f32
    %160 = vector.broadcast %cst_60 : f32 to vector<8x192xf32>
    %161 = arith.mulf %160, %159 : vector<8x192xf32>
    %cst_61 = arith.constant 5.000000e-01 : f32
    %162 = vector.broadcast %cst_61 : f32 to vector<8x192xf32>
    %163 = arith.addf %161, %162 : vector<8x192xf32>
    %164 = vector.extract_strided_slice %155 {offsets = [0, 192], sizes = [8, 64], strides = [1, 1]} : vector<8x256xf32> to vector<8x64xf32>
    %165 = math.tanh %164 : vector<8x64xf32>
    %166 = vector.extract_strided_slice %163 {offsets = [0, 0], sizes = [8, 64], strides = [1, 1]} : vector<8x192xf32> to vector<8x64xf32>
    %167 = vector.extract_strided_slice %163 {offsets = [0, 64], sizes = [8, 64], strides = [1, 1]} : vector<8x192xf32> to vector<8x64xf32>
    %168 = vector.extract_strided_slice %163 {offsets = [0, 128], sizes = [8, 64], strides = [1, 1]} : vector<8x192xf32> to vector<8x64xf32>
    %169 = arith.mulf %167, %149 : vector<8x64xf32>
    %170 = arith.mulf %166, %165 : vector<8x64xf32>
    %171 = arith.addf %169, %170 : vector<8x64xf32>
    %172 = math.tanh %171 : vector<8x64xf32>
    %173 = arith.mulf %168, %172 : vector<8x64xf32>
    %c0_62 = arith.constant 0 : index
    %c0_63 = arith.constant 0 : index
    %174 = vector.load %arg4[%c0_62, %c0_63] : memref<64x256xf32, #tpu.memory_space<vmem>>, vector<64x256xf32>
    %cst_64 = arith.constant dense<0.000000e+00> : vector<8x256xf32>
    %175 = tpu.matmul %173, %174, %cst_64 {dimension_numbers = #tpu.dot_dimension_numbers<[1], [0], [0], [1], [0, 0, 1, 1], [], []>, precision = #tpu.contract_precision<fp32>} : vector<8x64xf32>, vector<64x256xf32>, vector<8x256xf32> -> vector<8x256xf32>
    %c56 = arith.constant 56 : index
    %c0_65 = arith.constant 0 : index
    %176 = vector.load %arg8[%c56, %c0_65] : memref<64x256xf32, #tpu.memory_space<vmem>>, vector<8x256xf32>
    %177 = arith.addf %175, %176 : vector<8x256xf32>
    %178 = vector.extract_strided_slice %177 {offsets = [0, 0], sizes = [8, 192], strides = [1, 1]} : vector<8x256xf32> to vector<8x192xf32>
    %cst_66 = arith.constant 5.000000e-01 : f32
    %179 = vector.broadcast %cst_66 : f32 to vector<8x192xf32>
    %180 = arith.mulf %179, %178 : vector<8x192xf32>
    %181 = math.tanh %180 : vector<8x192xf32>
    %cst_67 = arith.constant 5.000000e-01 : f32
    %182 = vector.broadcast %cst_67 : f32 to vector<8x192xf32>
    %183 = arith.mulf %182, %181 : vector<8x192xf32>
    %cst_68 = arith.constant 5.000000e-01 : f32
    %184 = vector.broadcast %cst_68 : f32 to vector<8x192xf32>
    %185 = arith.addf %183, %184 : vector<8x192xf32>
    %186 = vector.extract_strided_slice %177 {offsets = [0, 192], sizes = [8, 64], strides = [1, 1]} : vector<8x256xf32> to vector<8x64xf32>
    %187 = math.tanh %186 : vector<8x64xf32>
    %188 = vector.extract_strided_slice %185 {offsets = [0, 0], sizes = [8, 64], strides = [1, 1]} : vector<8x192xf32> to vector<8x64xf32>
    %189 = vector.extract_strided_slice %185 {offsets = [0, 64], sizes = [8, 64], strides = [1, 1]} : vector<8x192xf32> to vector<8x64xf32>
    %190 = vector.extract_strided_slice %185 {offsets = [0, 128], sizes = [8, 64], strides = [1, 1]} : vector<8x192xf32> to vector<8x64xf32>
    %191 = arith.mulf %189, %171 : vector<8x64xf32>
    %192 = arith.mulf %188, %187 : vector<8x64xf32>
    %193 = arith.addf %191, %192 : vector<8x64xf32>
    %194 = math.tanh %193 : vector<8x64xf32>
    %195 = arith.mulf %190, %194 : vector<8x64xf32>
    %c0_69 = arith.constant 0 : index
    %c0_70 = arith.constant 0 : index
    %196 = vector.load %arg4[%c0_69, %c0_70] : memref<64x256xf32, #tpu.memory_space<vmem>>, vector<64x256xf32>
    %cst_71 = arith.constant dense<0.000000e+00> : vector<8x256xf32>
    %197 = tpu.matmul %195, %196, %cst_71 {dimension_numbers = #tpu.dot_dimension_numbers<[1], [0], [0], [1], [0, 0, 1, 1], [], []>, precision = #tpu.contract_precision<fp32>} : vector<8x64xf32>, vector<64x256xf32>, vector<8x256xf32> -> vector<8x256xf32>
    %c56_72 = arith.constant 56 : index
    %c0_73 = arith.constant 0 : index
    %198 = vector.load %arg8[%c56_72, %c0_73] : memref<64x256xf32, #tpu.memory_space<vmem>>, vector<8x256xf32>
    %199 = arith.addf %197, %198 : vector<8x256xf32>
    %200 = vector.extract_strided_slice %199 {offsets = [0, 0], sizes = [8, 192], strides = [1, 1]} : vector<8x256xf32> to vector<8x192xf32>
    %cst_74 = arith.constant 5.000000e-01 : f32
    %201 = vector.broadcast %cst_74 : f32 to vector<8x192xf32>
    %202 = arith.mulf %201, %200 : vector<8x192xf32>
    %203 = math.tanh %202 : vector<8x192xf32>
    %cst_75 = arith.constant 5.000000e-01 : f32
    %204 = vector.broadcast %cst_75 : f32 to vector<8x192xf32>
    %205 = arith.mulf %204, %203 : vector<8x192xf32>
    %cst_76 = arith.constant 5.000000e-01 : f32
    %206 = vector.broadcast %cst_76 : f32 to vector<8x192xf32>
    %207 = arith.addf %205, %206 : vector<8x192xf32>
    %208 = vector.extract_strided_slice %199 {offsets = [0, 192], sizes = [8, 64], strides = [1, 1]} : vector<8x256xf32> to vector<8x64xf32>
    %209 = math.tanh %208 : vector<8x64xf32>
    %210 = vector.extract_strided_slice %207 {offsets = [0, 0], sizes = [8, 64], strides = [1, 1]} : vector<8x192xf32> to vector<8x64xf32>
    %211 = vector.extract_strided_slice %207 {offsets = [0, 64], sizes = [8, 64], strides = [1, 1]} : vector<8x192xf32> to vector<8x64xf32>
    %212 = vector.extract_strided_slice %207 {offsets = [0, 128], sizes = [8, 64], strides = [1, 1]} : vector<8x192xf32> to vector<8x64xf32>
    %213 = arith.mulf %211, %193 : vector<8x64xf32>
    %214 = arith.mulf %210, %209 : vector<8x64xf32>
    %215 = arith.addf %213, %214 : vector<8x64xf32>
    %216 = math.tanh %215 : vector<8x64xf32>
    %217 = arith.mulf %212, %216 : vector<8x64xf32>
    %218 = arith.select %17, %195, %217 : vector<8x64xi1>, vector<8x64xf32>
    %c0_77 = arith.constant 0 : index
    %c0_78 = arith.constant 0 : index
    %219 = vector.load %arg5[%c0_77, %c0_78] : memref<64x4xf32, #tpu.memory_space<vmem>>, vector<64x4xf32>
    %cst_79 = arith.constant dense<0.000000e+00> : vector<8x4xf32>
    %220 = tpu.matmul %218, %219, %cst_79 {dimension_numbers = #tpu.dot_dimension_numbers<[1], [0], [0], [1], [0, 0, 1, 1], [], []>, precision = #tpu.contract_precision<fp32>} : vector<8x64xf32>, vector<64x4xf32>, vector<8x4xf32> -> vector<8x4xf32>
    %c0_80 = arith.constant 0 : index
    %c0_81 = arith.constant 0 : index
    %221 = vector.load %arg6[%c0_80, %c0_81] : memref<1x4xf32, #tpu.memory_space<vmem>>, vector<1x4xf32>
    %222 = vector.broadcast %221 : vector<1x4xf32> to vector<8x4xf32>
    %223 = arith.addf %220, %222 : vector<8x4xf32>
    %c0_82 = arith.constant 0 : index
    %c0_83 = arith.constant 0 : index
    %224 = vector.load %arg7[%c0_82, %c0_83] : memref<8x4xf32, #tpu.memory_space<vmem>>, vector<8x4xf32>
    tpu.vector_store %arg7[%c0_82, %c0_83], %223 {strides = array<i32>} : memref<8x4xf32, #tpu.memory_space<vmem>>, vector<8x4xf32>,
    return
  }
}

</mosaic_0001>

<llo_original>
// kernel: lstm_model_forward.1
$region0: #{lstm_model_forward.1}
  #allocation0 [shape = 'u32[]', space=smem, size = 0x4, offset = 0x4, fixed_abs, tag = 'smem constant byte address 0x4 - core index']
  #allocation1 [shape = 'u32[144,128]{1,0:T(1,128)}', space=vmem, size = 0x12000, scoped, tag = 'internal scratch']
  #allocation2 [shape = 'f32[64,256]{1,0:T(8,128)}', space=vmem, size = 0x10000, scoped, tag = 'scratch operand']
  %s0 = inlined_call_operand.vmem [shape: s32[64,1], index: 0, kind: input, shape index: {}]
  %s1 = inlined_call_operand.vmem [shape: f32[50,16], index: 1, kind: input, shape index: {}]
  %s2 = inlined_call_operand.vmem [shape: f32[16,256], index: 2, kind: input, shape index: {}]
  %s3 = inlined_call_operand.vmem [shape: f32[1,256], index: 3, kind: input, shape index: {}]
  %s4 = inlined_call_operand.vmem [shape: f32[64,256], index: 4, kind: input, shape index: {}]
  %s5 = inlined_call_operand.vmem [shape: f32[64,4], index: 5, kind: input, shape index: {}]
  %s6 = inlined_call_operand.vmem [shape: f32[1,4], index: 6, kind: input, shape index: {}]
  %s7 = inlined_call_operand.vmem [shape: f32[8,4], index: 7, kind: output, shape index: {}]
  %s8 = sld [smem:[#allocation0]]
  $region38: #{lstm_model_forward.1} parent=0
    _
  %s10 = ssub.s32 1, %s8
  %s11 = scalar_select 0, %s10, %s8
  // Predicated region
  $region2: #{lstm_model_forward.1} parent=0 // pred_check
    _
  $region3: #{lstm_model_forward.1} parent=0 // pred_check_branch
    %13 = sbr.rel (0) target = $region5
  $region4: #{lstm_model_forward.1} parent=0 // pred_region
    _
  $region5: #{lstm_model_forward.1} parent=0 // pred_fallthru
    _
  // Predicated region
  $region6: #{lstm_model_forward.1} parent=0 // pred_check
    _
  $region7: #{lstm_model_forward.1} parent=0 // pred_check_branch
    %15 = sbr.rel (0) target = $region9
  $region8: #{lstm_model_forward.1} parent=0 // pred_region
    _
  $region9: #{lstm_model_forward.1} parent=0 // pred_fallthru
    _
  // Predicated region
  $region10: #{lstm_model_forward.1} parent=0 // pred_check
    _
  $region11: #{lstm_model_forward.1} parent=0 // pred_check_branch
    %17 = sbr.rel (0) target = $region13
  $region12: #{lstm_model_forward.1} parent=0 // pred_region
    _
  $region13: #{lstm_model_forward.1} parent=0 // pred_fallthru
    _
  // Predicated region
  $region14: #{lstm_model_forward.1} parent=0 // pred_check
    _
  $region15: #{lstm_model_forward.1} parent=0 // pred_check_branch
    %19 = sbr.rel (0) target = $region17
  $region16: #{lstm_model_forward.1} parent=0 // pred_region
    _
  $region17: #{lstm_model_forward.1} parent=0 // pred_fallthru
    _
  // Predicated region
  $region18: #{lstm_model_forward.1} parent=0 // pred_check
    _
  $region19: #{lstm_model_forward.1} parent=0 // pred_check_branch
    %21 = sbr.rel (0) target = $region21
  $region20: #{lstm_model_forward.1} parent=0 // pred_region
    _
  $region21: #{lstm_model_forward.1} parent=0 // pred_fallthru
    _
  // Predicated region
  $region22: #{lstm_model_forward.1} parent=0 // pred_check
    _
  $region23: #{lstm_model_forward.1} parent=0 // pred_check_branch
    %23 = sbr.rel (0) target = $region25
  $region24: #{lstm_model_forward.1} parent=0 // pred_region
    _
  $region25: #{lstm_model_forward.1} parent=0 // pred_fallthru
    _
  // Predicated region
  $region26: #{lstm_model_forward.1} parent=0 // pred_check
    _
  $region27: #{lstm_model_forward.1} parent=0 // pred_check_branch
    %25 = sbr.rel (0) target = $region29
  $region28: #{lstm_model_forward.1} parent=0 // pred_region
    _
  $region29: #{lstm_model_forward.1} parent=0 // pred_fallthru
    _
  %v26 = vld [vmem:[%s0] sm:$0xff]
  %v27 = vld [vmem:[%s0 + $0x8] sm:$0xff]
  %v28 = vld [vmem:[%s0 + $0x10] sm:$0xff]
  %v29 = vld [vmem:[%s0 + $0x18] sm:$0xff]
  %v30 = vld [vmem:[%s0 + $0x20] sm:$0xff]
  %v31 = vld [vmem:[%s0 + $0x28] sm:$0xff]
  %v32 = vld [vmem:[%s0 + $0x30] sm:$0xff]
  %v33 = vld [vmem:[%s0 + $0x38] sm:$0xff]
  %v34 = vlaneseq
  %v35 = vand.u32 %v34, 127
  %36 = vset.pattern.permute.xlu0 0
  %37 = vperm.xlu0 %36, %v26
  %v38 = vpop.permute.xlu0 %37
  %39 = vset.pattern.permute.xlu0 0
  %40 = vperm.xlu0 %39, %v27
  %v41 = vpop.permute.xlu0 %40
  %42 = vset.pattern.permute.xlu0 0
  %43 = vperm.xlu0 %42, %v28
  %v44 = vpop.permute.xlu0 %43
  %45 = vset.pattern.permute.xlu0 0
  %46 = vperm.xlu0 %45, %v29
  %v47 = vpop.permute.xlu0 %46
  %48 = vset.pattern.permute.xlu0 0
  %49 = vperm.xlu0 %48, %v30
  %v50 = vpop.permute.xlu0 %49
  %51 = vset.pattern.permute.xlu0 0
  %52 = vperm.xlu0 %51, %v31
  %v53 = vpop.permute.xlu0 %52
  %54 = vset.pattern.permute.xlu0 0
  %55 = vperm.xlu0 %54, %v32
  %v56 = vpop.permute.xlu0 %55
  %57 = vset.pattern.permute.xlu0 0
  %58 = vperm.xlu0 %57, %v33
  %v59 = vpop.permute.xlu0 %58
  %vm60 = vcmp.eq.s32.totalorder %v38, %v35
  %vm61 = vcmp.eq.s32.totalorder %v41, %v35
  %vm62 = vcmp.eq.s32.totalorder %v44, %v35
  %vm63 = vcmp.eq.s32.totalorder %v47, %v35
  %vm64 = vcmp.eq.s32.totalorder %v50, %v35
  %vm65 = vcmp.eq.s32.totalorder %v53, %v35
  %vm66 = vcmp.eq.s32.totalorder %v56, %v35
  %vm67 = vcmp.eq.s32.totalorder %v59, %v35
  %v68 = vsel %vm60, 1.0, 0.0
  %v69 = vsel %vm61, 1.0, 0.0
  %v70 = vsel %vm62, 1.0, 0.0
  %v71 = vsel %vm63, 1.0, 0.0
  %v72 = vsel %vm64, 1.0, 0.0
  %v73 = vsel %vm65, 1.0, 0.0
  %v74 = vsel %vm66, 1.0, 0.0
  %v75 = vsel %vm67, 1.0, 0.0
  %v76 = vld [vmem:[%s1] sm:$0xff]
  %v77 = vld [vmem:[%s1 + $0x8] sm:$0xff]
  %v78 = vld [vmem:[%s1 + $0x10] sm:$0xff]
  %v79 = vld [vmem:[%s1 + $0x18] sm:$0xff]
  %v80 = vld [vmem:[%s1 + $0x20] sm:$0xff]
  %v81 = vld [vmem:[%s1 + $0x28] sm:$0xff]
  %v82 = vld [vmem:[%s1 + $0x30] sm:$0x3]
  %vm83 = vcmask 408576
  %v85 = vsel %vm83, %v68, 0
  %v88 = vsel %vm83, %v69, 0
  %v91 = vsel %vm83, %v70, 0
  %v94 = vsel %vm83, %v71, 0
  %v97 = vsel %vm83, %v72, 0
  %v100 = vsel %vm83, %v73, 0
  %v103 = vsel %vm83, %v74, 0
  %v106 = vsel %vm83, %v75, 0
  %vm108 = vcmask 1041408
  %v110 = vsel %vm108, %v82, 0
  %112 = vmatprep.subr.mxu0 0.0
  %v113 = vand.u32 %v76, 4294901760
  %114 = vmatpush1.msra.mxu0 %v113
  %115 = vmatprep.subr.mxu0 0.0
  %v116 = vand.u32 %v77, 4294901760
  %117 = vmatpush1.msra.mxu0 %v116
  %118 = vmatprep.subr.mxu0 0.0
  %v119 = vand.u32 %v78, 4294901760
  %120 = vmatpush1.msra.mxu0 %v119
  %121 = vmatprep.subr.mxu0 0.0
  %v122 = vand.u32 %v79, 4294901760
  %123 = vmatpush1.msra.mxu0 %v122
  %124 = vmatprep.subr.mxu0 0.0
  %v125 = vand.u32 %v80, 4294901760
  %126 = vmatpush1.msra.mxu0 %v125
  %127 = vmatprep.subr.mxu0 0.0
  %v128 = vand.u32 %v81, 4294901760
  %129 = vmatpush1.msra.mxu0 %v128
  %130 = vmatprep.subr.mxu0 0.0
  %v131 = vand.u32 %v110, 4294901760
  %132 = vmatpush1.msra.mxu0 %v131
  %133 = vmatprep.subr.mxu0 0.0
  %134 = vmatpush1.msra.mxu0 0.0
  %135 = vmatprep.subr.mxu0 0.0
  %136 = vmatpush1.msra.mxu0 0.0
  %137 = vmatprep.subr.mxu0 0.0
  %138 = vmatpush1.msra.mxu0 0.0
  %139 = vmatprep.subr.mxu0 0.0
  %140 = vmatpush1.msra.mxu0 0.0
  %141 = vmatprep.subr.mxu0 0.0
  %142 = vmatpush1.msra.mxu0 0.0
  %143 = vmatprep.subr.mxu0 0.0
  %144 = vmatpush1.msra.mxu0 0.0
  %145 = vmatprep.subr.mxu0 0.0
  %146 = vmatpush1.msra.mxu0 0.0
  %147 = vmatprep.subr.mxu0 0.0
  %148 = vmatpush1.msra.mxu0 0.0
  %149 = vmatprep.subr.mxu0 0.0
  %150 = vmatpush1.msra.mxu0 0.0
  %151 = vmatprep.subr.mxu0 0.0
  %152 = vmatpush1.msra.mxu0 0.0
  %153 = vmatprep.subr.mxu0 0.0
  %154 = vmatpush1.msra.mxu0 0.0
  %155 = vmatprep.subr.mxu0 0.0
  %156 = vmatpush1.msra.mxu0 0.0
  %157 = vmatprep.subr.mxu0 0.0
  %158 = vmatpush1.msra.mxu0 0.0
  %159 = vmatprep.subr.mxu0 0.0
  %160 = vmatpush1.msra.mxu0 0.0
  %161 = vmatprep.subr.mxu0 0.0
  %162 = vmatpush1.msra.mxu0 0.0
  %163 = vmatprep.subr.mxu0 0.0
  %164 = vmatpush1.msra.mxu0 0.0
  %165 = vmatprep.subr.mxu0 0.0
  %166 = vmatpush1.msra.mxu0 0.0
  %167 = vmatprep.subr.mxu0 0.0
  %168 = vmatpush1.msra.mxu0 0.0
  %169 = vmatprep.subr.mxu0 0.0
  %170 = vmatpush1.msra.mxu0 0.0
  %171 = vmatprep.subr.mxu0 0.0
  %172 = vmatpush1.msra.mxu0 0.0
  %173 = vmatprep.subr.mxu0 0.0
  %174 = vmatpush1.msra.mxu0 0.0
  %175 = vmatprep.subr.mxu0 0.0
  %176 = vmatpush1.msra.mxu0 0.0
  %177 = vmatprep.subr.mxu0 0.0
  %178 = vmatpush1.msra.mxu0 0.0
  %179 = vmatprep.subr.mxu0 0.0
  %180 = vmatpush1.msra.mxu0 0.0
  %181 = vmatprep.subr.mxu0 0.0
  %182 = vmatpush1.msra.mxu0 0.0
  %183 = vmatprep.mubr.f32.mxu0 0.0
  %v184 = vand.u32 %v85, 4294901760
  %v185 = vsub.f32 %v85, %v184
  %v186 = vand.u32 %v185, 4294901760
  %v187 = vsub.f32 %v185, %v186
  %v188 = vand.u32 %v187, 4294901760
  %189 = vmatmul.mubr.f32.gmra.mrb[0].mxu0 %v188
  %v190 = vpop.f32.mrb[0].mxu0
  %v191 = vadd.f32 0.0, %v190
  %v192 = vpop.f32.mrb[0].mxu0
  %193 = vmatprep.mubr.f32.mxu0 0.0
  %v194 = vand.u32 %v88, 4294901760
  %v195 = vsub.f32 %v88, %v194
  %v196 = vand.u32 %v195, 4294901760
  %v197 = vsub.f32 %v195, %v196
  %v198 = vand.u32 %v197, 4294901760
  %199 = vmatmul.mubr.f32.gmra.mrb[0].mxu0 %v198
  %v200 = vpop.f32.mrb[0].mxu0
  %v201 = vadd.f32 0.0, %v200
  %v202 = vpop.f32.mrb[0].mxu0
  %203 = vmatprep.mubr.f32.mxu0 0.0
  %v204 = vand.u32 %v91, 4294901760
  %v205 = vsub.f32 %v91, %v204
  %v206 = vand.u32 %v205, 4294901760
  %v207 = vsub.f32 %v205, %v206
  %v208 = vand.u32 %v207, 4294901760
  %209 = vmatmul.mubr.f32.gmra.mrb[0].mxu0 %v208
  %v210 = vpop.f32.mrb[0].mxu0
  %v211 = vadd.f32 0.0, %v210
  %v212 = vpop.f32.mrb[0].mxu0
  %213 = vmatprep.mubr.f32.mxu0 0.0
  %v214 = vand.u32 %v94, 4294901760
  %v215 = vsub.f32 %v94, %v214
  %v216 = vand.u32 %v215, 4294901760
  %v217 = vsub.f32 %v215, %v216
  %v218 = vand.u32 %v217, 4294901760
  %219 = vmatmul.mubr.f32.gmra.mrb[0].mxu0 %v218
  %v220 = vpop.f32.mrb[0].mxu0
  %v221 = vadd.f32 0.0, %v220
  %v222 = vpop.f32.mrb[0].mxu0
  %223 = vmatprep.mubr.f32.mxu0 0.0
  %v224 = vand.u32 %v97, 4294901760
  %v225 = vsub.f32 %v97, %v224
  %v226 = vand.u32 %v225, 4294901760
  %v227 = vsub.f32 %v225, %v226
  %v228 = vand.u32 %v227, 4294901760
  %229 = vmatmul.mubr.f32.gmra.mrb[0].mxu0 %v228
  %v230 = vpop.f32.mrb[0].mxu0
  %v231 = vadd.f32 0.0, %v230
  %v232 = vpop.f32.mrb[0].mxu0
  %233 = vmatprep.mubr.f32.mxu0 0.0
  %v234 = vand.u32 %v100, 4294901760
  %v235 = vsub.f32 %v100, %v234
  %v236 = vand.u32 %v235, 4294901760
  %v237 = vsub.f32 %v235, %v236
  %v238 = vand.u32 %v237, 4294901760
  %239 = vmatmul.mubr.f32.gmra.mrb[0].mxu0 %v238
  %v240 = vpop.f32.mrb[0].mxu0
  %v241 = vadd.f32 0.0, %v240
  %v242 = vpop.f32.mrb[0].mxu0
  %243 = vmatprep.mubr.f32.mxu0 0.0
  %v244 = vand.u32 %v103, 4294901760
  %v245 = vsub.f32 %v103, %v244
  %v246 = vand.u32 %v245, 4294901760
  %v247 = vsub.f32 %v245, %v246
  %v248 = vand.u32 %v247, 4294901760
  %249 = vmatmul.mubr.f32.gmra.mrb[0].mxu0 %v248
  %v250 = vpop.f32.mrb[0].mxu0
  %v251 = vadd.f32 0.0, %v250
  %v252 = vpop.f32.mrb[0].mxu0
  %253 = vmatprep.mubr.f32.mxu0 0.0
  %v254 = vand.u32 %v106, 4294901760
  %v255 = vsub.f32 %v106, %v254
  %v256 = vand.u32 %v255, 4294901760
  %v257 = vsub.f32 %v255, %v256
  %v258 = vand.u32 %v257, 4294901760
  %259 = vmatmul.mubr.f32.gmra.mrb[0].mxu0 %v258
  %v260 = vpop.f32.mrb[0].mxu0
  %v261 = vadd.f32 0.0, %v260
  %v262 = vpop.f32.mrb[0].mxu0
  %263 = vdwg.mxu0
  %264 = vmatprep.subr.mxu0 0.0
  %v265 = vand.u32 %v76, 4294901760
  %v266 = vsub.f32 %v76, %v265
  %v267 = vand.u32 %v266, 4294901760
  %v268 = vsub.f32 %v266, %v267
  %v269 = vand.u32 %v268, 4294901760
  %270 = vmatpush1.msra.mxu0 %v269
  %271 = vmatprep.subr.mxu0 0.0
  %v272 = vand.u32 %v77, 4294901760
  %v273 = vsub.f32 %v77, %v272
  %v274 = vand.u32 %v273, 4294901760
  %v275 = vsub.f32 %v273, %v274
  %v276 = vand.u32 %v275, 4294901760
  %277 = vmatpush1.msra.mxu0 %v276
  %278 = vmatprep.subr.mxu0 0.0
  %v279 = vand.u32 %v78, 4294901760
  %v280 = vsub.f32 %v78, %v279
  %v281 = vand.u32 %v280, 4294901760
  %v282 = vsub.f32 %v280, %v281
  %v283 = vand.u32 %v282, 4294901760
  %284 = vmatpush1.msra.mxu0 %v283
  %285 = vmatprep.subr.mxu0 0.0
  %v286 = vand.u32 %v79, 4294901760
  %v287 = vsub.f32 %v79, %v286
  %v288 = vand.u32 %v287, 4294901760
  %v289 = vsub.f32 %v287, %v288
  %v290 = vand.u32 %v289, 4294901760
  %291 = vmatpush1.msra.mxu0 %v290
  %292 = vmatprep.subr.mxu0 0.0
  %v293 = vand.u32 %v80, 4294901760
  %v294 = vsub.f32 %v80, %v293
  %v295 = vand.u32 %v294, 4294901760
  %v296 = vsub.f32 %v294, %v295
  %v297 = vand.u32 %v296, 4294901760
  %298 = vmatpush1.msra.mxu0 %v297
  %299 = vmatprep.subr.mxu0 0.0
  %v300 = vand.u32 %v81, 4294901760
  %v301 = vsub.f32 %v81, %v300
  %v302 = vand.u32 %v301, 4294901760
  %v303 = vsub.f32 %v301, %v302
  %v304 = vand.u32 %v303, 4294901760
  %305 = vmatpush1.msra.mxu0 %v304
  %306 = vmatprep.subr.mxu0 0.0
  %v307 = vand.u32 %v110, 4294901760
  %v308 = vsub.f32 %v110, %v307
  %v309 = vand.u32 %v308, 4294901760
  %v310 = vsub.f32 %v308, %v309
  %v311 = vand.u32 %v310, 4294901760
  %312 = vmatpush1.msra.mxu0 %v311
  %313 = vmatprep.subr.mxu0 0.0
  %314 = vmatpush1.msra.mxu0 0.0
  %315 = vmatprep.subr.mxu0 0.0
  %316 = vmatpush1.msra.mxu0 0.0
  %317 = vmatprep.subr.mxu0 0.0
  %318 = vmatpush1.msra.mxu0 0.0
  %319 = vmatprep.subr.mxu0 0.0
  %320 = vmatpush1.msra.mxu0 0.0
  %321 = vmatprep.subr.mxu0 0.0
  %322 = vmatpush1.msra.mxu0 0.0
  %323 = vmatprep.subr.mxu0 0.0
  %324 = vmatpush1.msra.mxu0 0.0
  %325 = vmatprep.subr.mxu0 0.0
  %326 = vmatpush1.msra.mxu0 0.0
  %327 = vmatprep.subr.mxu0 0.0
  %328 = vmatpush1.msra.mxu0 0.0
  %329 = vmatprep.subr.mxu0 0.0
  %330 = vmatpush1.msra.mxu0 0.0
  %331 = vmatprep.subr.mxu0 0.0
  %332 = vmatpush1.msra.mxu0 0.0
  %333 = vmatprep.subr.mxu0 0.0
  %334 = vmatpush1.msra.mxu0 0.0
  %335 = vmatprep.subr.mxu0 0.0
  %336 = vmatpush1.msra.mxu0 0.0
  %337 = vmatprep.subr.mxu0 0.0
  %338 = vmatpush1.msra.mxu0 0.0
  %339 = vmatprep.subr.mxu0 0.0
  %340 = vmatpush1.msra.mxu0 0.0
  %341 = vmatprep.subr.mxu0 0.0
  %342 = vmatpush1.msra.mxu0 0.0
  %343 = vmatprep.subr.mxu0 0.0
  %344 = vmatpush1.msra.mxu0 0.0
  %345 = vmatprep.subr.mxu0 0.0
  %346 = vmatpush1.msra.mxu0 0.0
  %347 = vmatprep.subr.mxu0 0.0
  %348 = vmatpush1.msra.mxu0 0.0
  %349 = vmatprep.subr.mxu0 0.0
  %350 = vmatpush1.msra.mxu0 0.0
  %351 = vmatprep.subr.mxu0 0.0
  %352 = vmatpush1.msra.mxu0 0.0
  %353 = vmatprep.subr.mxu0 0.0
  %354 = vmatpush1.msra.mxu0 0.0
  %355 = vmatprep.subr.mxu0 0.0
  %356 = vmatpush1.msra.mxu0 0.0
  %357 = vmatprep.subr.mxu0 0.0
  %358 = vmatpush1.msra.mxu0 0.0
  %359 = vmatprep.subr.mxu0 0.0
  %360 = vmatpush1.msra.mxu0 0.0
  %361 = vmatprep.subr.mxu0 0.0
  %362 = vmatpush1.msra.mxu0 0.0
  %363 = vmatprep.mubr.f32.mxu0 0.0
  %v364 = vand.u32 %v85, 4294901760
  %365 = vmatmul.mubr.f32.gmra.mrb[0].mxu0 %v364
  %v366 = vpop.f32.mrb[0].mxu0
  %v367 = vadd.f32 %v191, %v366
  %v368 = vpop.f32.mrb[0].mxu0
  %369 = vmatprep.mubr.f32.mxu0 0.0
  %v370 = vand.u32 %v88, 4294901760
  %371 = vmatmul.mubr.f32.gmra.mrb[0].mxu0 %v370
  %v372 = vpop.f32.mrb[0].mxu0
  %v373 = vadd.f32 %v201, %v372
  %v374 = vpop.f32.mrb[0].mxu0
  %375 = vmatprep.mubr.f32.mxu0 0.0
  %v376 = vand.u32 %v91, 4294901760
  %377 = vmatmul.mubr.f32.gmra.mrb[0].mxu0 %v376
  %v378 = vpop.f32.mrb[0].mxu0
  %v379 = vadd.f32 %v211, %v378
  %v380 = vpop.f32.mrb[0].mxu0
  %381 = vmatprep.mubr.f32.mxu0 0.0
  %v382 = vand.u32 %v94, 4294901760
  %383 = vmatmul.mubr.f32.gmra.mrb[0].mxu0 %v382
  %v384 = vpop.f32.mrb[0].mxu0
  %v385 = vadd.f32 %v221, %v384
  %v386 = vpop.f32.mrb[0].mxu0
  %387 = vmatprep.mubr.f32.mxu0 0.0
  %v388 = vand.u32 %v97, 4294901760
  %389 = vmatmul.mubr.f32.gmra.mrb[0].mxu0 %v388
  %v390 = vpop.f32.mrb[0].mxu0
  %v391 = vadd.f32 %v231, %v390
  %v392 = vpop.f32.mrb[0].mxu0
  %393 = vmatprep.mubr.f32.mxu0 0.0
  %v394 = vand.u32 %v100, 4294901760
  %395 = vmatmul.mubr.f32.gmra.mrb[0].mxu0 %v394
  %v396 = vpop.f32.mrb[0].mxu0
  %v397 = vadd.f32 %v241, %v396
  %v398 = vpop.f32.mrb[0].mxu0
  %399 = vmatprep.mubr.f32.mxu0 0.0
  %v400 = vand.u32 %v103, 4294901760
  %401 = vmatmul.mubr.f32.gmra.mrb[0].mxu0 %v400
  %v402 = vpop.f32.mrb[0].mxu0
  %v403 = vadd.f32 %v251, %v402
  %v404 = vpop.f32.mrb[0].mxu0
  %405 = vmatprep.mubr.f32.mxu0 0.0
  %v406 = vand.u32 %v106, 4294901760
  %407 = vmatmul.mubr.f32.gmra.mrb[0].mxu0 %v406
  %v408 = vpop.f32.mrb[0].mxu0
  %v409 = vadd.f32 %v261, %v408
  %v410 = vpop.f32.mrb[0].mxu0
  %411 = vdwg.mxu0
  %412 = vmatprep.subr.mxu0 0.0
  %v413 = vand.u32 %v76, 4294901760
  %v414 = vsub.f32 %v76, %v413
  %415 = vmatpush1.msra.mxu0 %v414
  %416 = vmatprep.subr.mxu0 0.0
  %v417 = vand.u32 %v77, 4294901760
  %v418 = vsub.f32 %v77, %v417
  %419 = vmatpush1.msra.mxu0 %v418
  %420 = vmatprep.subr.mxu0 0.0
  %v421 = vand.u32 %v78, 4294901760
  %v422 = vsub.f32 %v78, %v421
  %423 = vmatpush1.msra.mxu0 %v422
  %424 = vmatprep.subr.mxu0 0.0
  %v425 = vand.u32 %v79, 4294901760
  %v426 = vsub.f32 %v79, %v425
  %427 = vmatpush1.msra.mxu0 %v426
  %428 = vmatprep.subr.mxu0 0.0
  %v429 = vand.u32 %v80, 4294901760
  %v430 = vsub.f32 %v80, %v429
  %431 = vmatpush1.msra.mxu0 %v430
  %432 = vmatprep.subr.mxu0 0.0
  %v433 = vand.u32 %v81, 4294901760
  %v434 = vsub.f32 %v81, %v433
  %435 = vmatpush1.msra.mxu0 %v434
  %436 = vmatprep.subr.mxu0 0.0
  %v437 = vand.u32 %v110, 4294901760
  %v438 = vsub.f32 %v110, %v437
  %439 = vmatpush1.msra.mxu0 %v438
  %440 = vmatprep.subr.mxu0 0.0
  %441 = vmatpush1.msra.mxu0 0.0
  %442 = vmatprep.subr.mxu0 0.0
  %443 = vmatpush1.msra.mxu0 0.0
  %444 = vmatprep.subr.mxu0 0.0
  %445 = vmatpush1.msra.mxu0 0.0
  %446 = vmatprep.subr.mxu0 0.0
  %447 = vmatpush1.msra.mxu0 0.0
  %448 = vmatprep.subr.mxu0 0.0
  %449 = vmatpush1.msra.mxu0 0.0
  %450 = vmatprep.subr.mxu0 0.0
  %451 = vmatpush1.msra.mxu0 0.0
  %452 = vmatprep.subr.mxu0 0.0
  %453 = vmatpush1.msra.mxu0 0.0
  %454 = vmatprep.subr.mxu0 0.0
  %455 = vmatpush1.msra.mxu0 0.0
  %456 = vmatprep.subr.mxu0 0.0
  %457 = vmatpush1.msra.mxu0 0.0
  %458 = vmatprep.subr.mxu0 0.0
  %459 = vmatpush1.msra.mxu0 0.0
  %460 = vmatprep.subr.mxu0 0.0
  %461 = vmatpush1.msra.mxu0 0.0
  %462 = vmatprep.subr.mxu0 0.0
  %463 = vmatpush1.msra.mxu0 0.0
  %464 = vmatprep.subr.mxu0 0.0
  %465 = vmatpush1.msra.mxu0 0.0
  %466 = vmatprep.subr.mxu0 0.0
  %467 = vmatpush1.msra.mxu0 0.0
  %468 = vmatprep.subr.mxu0 0.0
  %469 = vmatpush1.msra.mxu0 0.0
  %470 = vmatprep.subr.mxu0 0.0
  %471 = vmatpush1.msra.mxu0 0.0
  %472 = vmatprep.subr.mxu0 0.0
  %473 = vmatpush1.msra.mxu0 0.0
  %474 = vmatprep.subr.mxu0 0.0
  %475 = vmatpush1.msra.mxu0 0.0
  %476 = vmatprep.subr.mxu0 0.0
  %477 = vmatpush1.msra.mxu0 0.0
  %478 = vmatprep.subr.mxu0 0.0
  %479 = vmatpush1.msra.mxu0 0.0
  %480 = vmatprep.subr.mxu0 0.0
  %481 = vmatpush1.msra.mxu0 0.0
  %482 = vmatprep.subr.mxu0 0.0
  %483 = vmatpush1.msra.mxu0 0.0
  %484 = vmatprep.subr.mxu0 0.0
  %485 = vmatpush1.msra.mxu0 0.0
  %486 = vmatprep.subr.mxu0 0.0
  %487 = vmatpush1.msra.mxu0 0.0
  %488 = vmatprep.subr.mxu0 0.0
  %489 = vmatpush1.msra.mxu0 0.0
  %490 = vmatprep.mubr.f32.mxu0 0.0
  %v491 = vand.u32 %v85, 4294901760
  %v492 = vsub.f32 %v85, %v491
  %493 = vmatmul.mubr.f32.gmra.mrb[0].mxu0 %v492
  %v494 = vpop.f32.mrb[0].mxu0
  %v495 = vadd.f32 %v367, %v494
  %v496 = vpop.f32.mrb[0].mxu0
  %497 = vmatprep.mubr.f32.mxu0 0.0
  %v498 = vand.u32 %v88, 4294901760
  %v499 = vsub.f32 %v88, %v498
  %500 = vmatmul.mubr.f32.gmra.mrb[0].mxu0 %v499
  %v501 = vpop.f32.mrb[0].mxu0
  %v502 = vadd.f32 %v373, %v501
  %v503 = vpop.f32.mrb[0].mxu0
  %504 = vmatprep.mubr.f32.mxu0 0.0
  %v505 = vand.u32 %v91, 4294901760
  %v506 = vsub.f32 %v91, %v505
  %507 = vmatmul.mubr.f32.gmra.mrb[0].mxu0 %v506
  %v508 = vpop.f32.mrb[0].mxu0
  %v509 = vadd.f32 %v379, %v508
  %v510 = vpop.f32.mrb[0].mxu0
  %511 = vmatprep.mubr.f32.mxu0 0.0
  %v512 = vand.u32 %v94, 4294901760
  %v513 = vsub.f32 %v94, %v512
  %514 = vmatmul.mubr.f32.gmra.mrb[0].mxu0 %v513
  %v515 = vpop.f32.mrb[0].mxu0
  %v516 = vadd.f32 %v385, %v515
  %v517 = vpop.f32.mrb[0].mxu0
  %518 = vmatprep.mubr.f32.mxu0 0.0
  %v519 = vand.u32 %v97, 4294901760
  %v520 = vsub.f32 %v97, %v519
  %521 = vmatmul.mubr.f32.gmra.mrb[0].mxu0 %v520
  %v522 = vpop.f32.mrb[0].mxu0
  %v523 = vadd.f32 %v391, %v522
  %v524 = vpop.f32.mrb[0].mxu0
  %525 = vmatprep.mubr.f32.mxu0 0.0
  %v526 = vand.u32 %v100, 4294901760
  %v527 = vsub.f32 %v100, %v526
  %528 = vmatmul.mubr.f32.gmra.mrb[0].mxu0 %v527
  %v529 = vpop.f32.mrb[0].mxu0
  %v530 = vadd.f32 %v397, %v529
  %v531 = vpop.f32.mrb[0].mxu0
  %532 = vmatprep.mubr.f32.mxu0 0.0
  %v533 = vand.u32 %v103, 4294901760
  %v534 = vsub.f32 %v103, %v533
  %535 = vmatmul.mubr.f32.gmra.mrb[0].mxu0 %v534
  %v536 = vpop.f32.mrb[0].mxu0
  %v537 = vadd.f32 %v403, %v536
  %v538 = vpop.f32.mrb[0].mxu0
  %539 = vmatprep.mubr.f32.mxu0 0.0
  %v540 = vand.u32 %v106, 4294901760
  %v541 = vsub.f32 %v106, %v540
  %542 = vmatmul.mubr.f32.gmra.mrb[0].mxu0 %v541
  %v543 = vpop.f32.mrb[0].mxu0
  %v544 = vadd.f32 %v409, %v543
  %v545 = vpop.f32.mrb[0].mxu0
  %546 = vdwg.mxu0
  %547 = vmatprep.subr.mxu0 0.0
  %v548 = vand.u32 %v76, 4294901760
  %549 = vmatpush1.msra.mxu0 %v548
  %550 = vmatprep.subr.mxu0 0.0
  %v551 = vand.u32 %v77, 4294901760
  %552 = vmatpush1.msra.mxu0 %v551
  %553 = vmatprep.subr.mxu0 0.0
  %v554 = vand.u32 %v78, 4294901760
  %555 = vmatpush1.msra.mxu0 %v554
  %556 = vmatprep.subr.mxu0 0.0
  %v557 = vand.u32 %v79, 4294901760
  %558 = vmatpush1.msra.mxu0 %v557
  %559 = vmatprep.subr.mxu0 0.0
  %v560 = vand.u32 %v80, 4294901760
  %561 = vmatpush1.msra.mxu0 %v560
  %562 = vmatprep.subr.mxu0 0.0
  %v563 = vand.u32 %v81, 4294901760
  %564 = vmatpush1.msra.mxu0 %v563
  %565 = vmatprep.subr.mxu0 0.0
  %v566 = vand.u32 %v110, 4294901760
  %567 = vmatpush1.msra.mxu0 %v566
  %568 = vmatprep.subr.mxu0 0.0
  %569 = vmatpush1.msra.mxu0 0.0
  %570 = vmatprep.subr.mxu0 0.0
  %571 = vmatpush1.msra.mxu0 0.0
  %572 = vmatprep.subr.mxu0 0.0
  %573 = vmatpush1.msra.mxu0 0.0
  %574 = vmatprep.subr.mxu0 0.0
  %575 = vmatpush1.msra.mxu0 0.0
  %576 = vmatprep.subr.mxu0 0.0
  %577 = vmatpush1.msra.mxu0 0.0
  %578 = vmatprep.subr.mxu0 0.0
  %579 = vmatpush1.msra.mxu0 0.0
  %580 = vmatprep.subr.mxu0 0.0
  %581 = vmatpush1.msra.mxu0 0.0
  %582 = vmatprep.subr.mxu0 0.0
  %583 = vmatpush1.msra.mxu0 0.0
  %584 = vmatprep.subr.mxu0 0.0
  %585 = vmatpush1.msra.mxu0 0.0
  %586 = vmatprep.subr.mxu0 0.0
  %587 = vmatpush1.msra.mxu0 0.0
  %588 = vmatprep.subr.mxu0 0.0
  %589 = vmatpush1.msra.mxu0 0.0
  %590 = vmatprep.subr.mxu0 0.0
  %591 = vmatpush1.msra.mxu0 0.0
  %592 = vmatprep.subr.mxu0 0.0
  %593 = vmatpush1.msra.mxu0 0.0
  %594 = vmatprep.subr.mxu0 0.0
  %595 = vmatpush1.msra.mxu0 0.0
  %596 = vmatprep.subr.mxu0 0.0
  %597 = vmatpush1.msra.mxu0 0.0
  %598 = vmatprep.subr.mxu0 0.0
  %599 = vmatpush1.msra.mxu0 0.0
  %600 = vmatprep.subr.mxu0 0.0
  %601 = vmatpush1.msra.mxu0 0.0
  %602 = vmatprep.subr.mxu0 0.0
  %603 = vmatpush1.msra.mxu0 0.0
  %604 = vmatprep.subr.mxu0 0.0
  %605 = vmatpush1.msra.mxu0 0.0
  %606 = vmatprep.subr.mxu0 0.0
  %607 = vmatpush1.msra.mxu0 0.0
  %608 = vmatprep.subr.mxu0 0.0
  %609 = vmatpush1.msra.mxu0 0.0
  %610 = vmatprep.subr.mxu0 0.0
  %611 = vmatpush1.msra.mxu0 0.0
  %612 = vmatprep.subr.mxu0 0.0
  %613 = vmatpush1.msra.mxu0 0.0
  %614 = vmatprep.subr.mxu0 0.0
  %615 = vmatpush1.msra.mxu0 0.0
  %616 = vmatprep.subr.mxu0 0.0
  %617 = vmatpush1.msra.mxu0 0.0
  %618 = vmatprep.mubr.f32.mxu0 0.0
  %v619 = vand.u32 %v85, 4294901760
  %v620 = vsub.f32 %v85, %v619
  %v621 = vand.u32 %v620, 4294901760
  %622 = vmatmul.mubr.f32.gmra.mrb[0].mxu0 %v621
  %v623 = vpop.f32.mrb[0].mxu0
  %v624 = vadd.f32 %v495, %v623
  %v625 = vpop.f32.mrb[0].mxu0
  %626 = vmatprep.mubr.f32.mxu0 0.0
  %v627 = vand.u32 %v88, 4294901760
  %v628 = vsub.f32 %v88, %v627
  %v629 = vand.u32 %v628, 4294901760
  %630 = vmatmul.mubr.f32.gmra.mrb[0].mxu0 %v629
  %v631 = vpop.f32.mrb[0].mxu0
  %v632 = vadd.f32 %v502, %v631
  %v633 = vpop.f32.mrb[0].mxu0
  %634 = vmatprep.mubr.f32.mxu0 0.0
  %v635 = vand.u32 %v91, 4294901760
  %v636 = vsub.f32 %v91, %v635
  %v637 = vand.u32 %v636, 4294901760
  %638 = vmatmul.mubr.f32.gmra.mrb[0].mxu0 %v637
  %v639 = vpop.f32.mrb[0].mxu0
  %v640 = vadd.f32 %v509, %v639
  %v641 = vpop.f32.mrb[0].mxu0
  %642 = vmatprep.mubr.f32.mxu0 0.0
  %v643 = vand.u32 %v94, 4294901760
  %v644 = vsub.f32 %v94, %v643
  %v645 = vand.u32 %v644, 4294901760
  %646 = vmatmul.mubr.f32.gmra.mrb[0].mxu0 %v645
  %v647 = vpop.f32.mrb[0].mxu0
  %v648 = vadd.f32 %v516, %v647
  %v649 = vpop.f32.mrb[0].mxu0
  %650 = vmatprep.mubr.f32.mxu0 0.0
  %v651 = vand.u32 %v97, 4294901760
  %v652 = vsub.f32 %v97, %v651
  %v653 = vand.u32 %v652, 4294901760
  %654 = vmatmul.mubr.f32.gmra.mrb[0].mxu0 %v653
  %v655 = vpop.f32.mrb[0].mxu0
  %v656 = vadd.f32 %v523, %v655
  %v657 = vpop.f32.mrb[0].mxu0
  %658 = vmatprep.mubr.f32.mxu0 0.0
  %v659 = vand.u32 %v100, 4294901760
  %v660 = vsub.f32 %v100, %v659
  %v661 = vand.u32 %v660, 4294901760
  %662 = vmatmul.mubr.f32.gmra.mrb[0].mxu0 %v661
  %v663 = vpop.f32.mrb[0].mxu0
  %v664 = vadd.f32 %v530, %v663
  %v665 = vpop.f32.mrb[0].mxu0
  %666 = vmatprep.mubr.f32.mxu0 0.0
  %v667 = vand.u32 %v103, 4294901760
  %v668 = vsub.f32 %v103, %v667
  %v669 = vand.u32 %v668, 4294901760
  %670 = vmatmul.mubr.f32.gmra.mrb[0].mxu0 %v669
  %v671 = vpop.f32.mrb[0].mxu0
  %v672 = vadd.f32 %v537, %v671
  %v673 = vpop.f32.mrb[0].mxu0
  %674 = vmatprep.mubr.f32.mxu0 0.0
  %v675 = vand.u32 %v106, 4294901760
  %v676 = vsub.f32 %v106, %v675
  %v677 = vand.u32 %v676, 4294901760
  %678 = vmatmul.mubr.f32.gmra.mrb[0].mxu0 %v677
  %v679 = vpop.f32.mrb[0].mxu0
  %v680 = vadd.f32 %v544, %v679
  %v681 = vpop.f32.mrb[0].mxu0
  %682 = vdwg.mxu0
  %683 = vmatprep.subr.mxu0 0.0
  %v684 = vand.u32 %v76, 4294901760
  %v685 = vsub.f32 %v76, %v684
  %v686 = vand.u32 %v685, 4294901760
  %687 = vmatpush1.msra.mxu0 %v686
  %688 = vmatprep.subr.mxu0 0.0
  %v689 = vand.u32 %v77, 4294901760
  %v690 = vsub.f32 %v77, %v689
  %v691 = vand.u32 %v690, 4294901760
  %692 = vmatpush1.msra.mxu0 %v691
  %693 = vmatprep.subr.mxu0 0.0
  %v694 = vand.u32 %v78, 4294901760
  %v695 = vsub.f32 %v78, %v694
  %v696 = vand.u32 %v695, 4294901760
  %697 = vmatpush1.msra.mxu0 %v696
  %698 = vmatprep.subr.mxu0 0.0
  %v699 = vand.u32 %v79, 4294901760
  %v700 = vsub.f32 %v79, %v699
  %v701 = vand.u32 %v700, 4294901760
  %702 = vmatpush1.msra.mxu0 %v701
  %703 = vmatprep.subr.mxu0 0.0
  %v704 = vand.u32 %v80, 4294901760
  %v705 = vsub.f32 %v80, %v704
  %v706 = vand.u32 %v705, 4294901760
  %707 = vmatpush1.msra.mxu0 %v706
  %708 = vmatprep.subr.mxu0 0.0
  %v709 = vand.u32 %v81, 4294901760
  %v710 = vsub.f32 %v81, %v709
  %v711 = vand.u32 %v710, 4294901760
  %712 = vmatpush1.msra.mxu0 %v711
  %713 = vmatprep.subr.mxu0 0.0
  %v714 = vand.u32 %v110, 4294901760
  %v715 = vsub.f32 %v110, %v714
  %v716 = vand.u32 %v715, 4294901760
  %717 = vmatpush1.msra.mxu0 %v716
  %718 = vmatprep.subr.mxu0 0.0
  %719 = vmatpush1.msra.mxu0 0.0
  %720 = vmatprep.subr.mxu0 0.0
  %721 = vmatpush1.msra.mxu0 0.0
  %722 = vmatprep.subr.mxu0 0.0
  %723 = vmatpush1.msra.mxu0 0.0
  %724 = vmatprep.subr.mxu0 0.0
  %725 = vmatpush1.msra.mxu0 0.0
  %726 = vmatprep.subr.mxu0 0.0
  %727 = vmatpush1.msra.mxu0 0.0
  %728 = vmatprep.subr.mxu0 0.0
  %729 = vmatpush1.msra.mxu0 0.0
  %730 = vmatprep.subr.mxu0 0.0
  %731 = vmatpush1.msra.mxu0 0.0
  %732 = vmatprep.subr.mxu0 0.0
  %733 = vmatpush1.msra.mxu0 0.0
  %734 = vmatprep.subr.mxu0 0.0
  %735 = vmatpush1.msra.mxu0 0.0
  %736 = vmatprep.subr.mxu0 0.0
  %737 = vmatpush1.msra.mxu0 0.0
  %738 = vmatprep.subr.mxu0 0.0
  %739 = vmatpush1.msra.mxu0 0.0
  %740 = vmatprep.subr.mxu0 0.0
  %741 = vmatpush1.msra.mxu0 0.0
  %742 = vmatprep.subr.mxu0 0.0
  %743 = vmatpush1.msra.mxu0 0.0
  %744 = vmatprep.subr.mxu0 0.0
  %745 = vmatpush1.msra.mxu0 0.0
  %746 = vmatprep.subr.mxu0 0.0
  %747 = vmatpush1.msra.mxu0 0.0
  %748 = vmatprep.subr.mxu0 0.0
  %749 = vmatpush1.msra.mxu0 0.0
  %750 = vmatprep.subr.mxu0 0.0
  %751 = vmatpush1.msra.mxu0 0.0
  %752 = vmatprep.subr.mxu0 0.0
  %753 = vmatpush1.msra.mxu0 0.0
  %754 = vmatprep.subr.mxu0 0.0
  %755 = vmatpush1.msra.mxu0 0.0
  %756 = vmatprep.subr.mxu0 0.0
  %757 = vmatpush1.msra.mxu0 0.0
  %758 = vmatprep.subr.mxu0 0.0
  %759 = vmatpush1.msra.mxu0 0.0
  %760 = vmatprep.subr.mxu0 0.0
  %761 = vmatpush1.msra.mxu0 0.0
  %762 = vmatprep.subr.mxu0 0.0
  %763 = vmatpush1.msra.mxu0 0.0
  %764 = vmatprep.subr.mxu0 0.0
  %765 = vmatpush1.msra.mxu0 0.0
  %766 = vmatprep.subr.mxu0 0.0
  %767 = vmatpush1.msra.mxu0 0.0
  %768 = vmatprep.mubr.f32.mxu0 0.0
  %v769 = vand.u32 %v85, 4294901760
  %770 = vmatmul.mubr.f32.gmra.mrb[0].mxu0 %v769
  %v771 = vpop.f32.mrb[0].mxu0
  %v772 = vadd.f32 %v624, %v771
  %v773 = vpop.f32.mrb[0].mxu0
  %774 = vmatprep.mubr.f32.mxu0 0.0
  %v775 = vand.u32 %v88, 4294901760
  %776 = vmatmul.mubr.f32.gmra.mrb[0].mxu0 %v775
  %v777 = vpop.f32.mrb[0].mxu0
  %v778 = vadd.f32 %v632, %v777
  %v779 = vpop.f32.mrb[0].mxu0
  %780 = vmatprep.mubr.f32.mxu0 0.0
  %v781 = vand.u32 %v91, 4294901760
  %782 = vmatmul.mubr.f32.gmra.mrb[0].mxu0 %v781
  %v783 = vpop.f32.mrb[0].mxu0
  %v784 = vadd.f32 %v640, %v783
  %v785 = vpop.f32.mrb[0].mxu0
  %786 = vmatprep.mubr.f32.mxu0 0.0
  %v787 = vand.u32 %v94, 4294901760
  %788 = vmatmul.mubr.f32.gmra.mrb[0].mxu0 %v787
  %v789 = vpop.f32.mrb[0].mxu0
  %v790 = vadd.f32 %v648, %v789
  %v791 = vpop.f32.mrb[0].mxu0
  %792 = vmatprep.mubr.f32.mxu0 0.0
  %v793 = vand.u32 %v97, 4294901760
  %794 = vmatmul.mubr.f32.gmra.mrb[0].mxu0 %v793
  %v795 = vpop.f32.mrb[0].mxu0
  %v796 = vadd.f32 %v656, %v795
  %v797 = vpop.f32.mrb[0].mxu0
  %798 = vmatprep.mubr.f32.mxu0 0.0
  %v799 = vand.u32 %v100, 4294901760
  %800 = vmatmul.mubr.f32.gmra.mrb[0].mxu0 %v799
  %v801 = vpop.f32.mrb[0].mxu0
  %v802 = vadd.f32 %v664, %v801
  %v803 = vpop.f32.mrb[0].mxu0
  %804 = vmatprep.mubr.f32.mxu0 0.0
  %v805 = vand.u32 %v103, 4294901760
  %806 = vmatmul.mubr.f32.gmra.mrb[0].mxu0 %v805
  %v807 = vpop.f32.mrb[0].mxu0
  %v808 = vadd.f32 %v672, %v807
  %v809 = vpop.f32.mrb[0].mxu0
  %810 = vmatprep.mubr.f32.mxu0 0.0
  %v811 = vand.u32 %v106, 4294901760
  %812 = vmatmul.mubr.f32.gmra.mrb[0].mxu0 %v811
  %v813 = vpop.f32.mrb[0].mxu0
  %v814 = vadd.f32 %v680, %v813
  %v815 = vpop.f32.mrb[0].mxu0
  %816 = vdwg.mxu0
  %817 = vmatprep.subr.mxu0 0.0
  %v818 = vand.u32 %v76, 4294901760
  %819 = vmatpush1.msra.mxu0 %v818
  %820 = vmatprep.subr.mxu0 0.0
  %v821 = vand.u32 %v77, 4294901760
  %822 = vmatpush1.msra.mxu0 %v821
  %823 = vmatprep.subr.mxu0 0.0
  %v824 = vand.u32 %v78, 4294901760
  %825 = vmatpush1.msra.mxu0 %v824
  %826 = vmatprep.subr.mxu0 0.0
  %v827 = vand.u32 %v79, 4294901760
  %828 = vmatpush1.msra.mxu0 %v827
  %829 = vmatprep.subr.mxu0 0.0
  %v830 = vand.u32 %v80, 4294901760
  %831 = vmatpush1.msra.mxu0 %v830
  %832 = vmatprep.subr.mxu0 0.0
  %v833 = vand.u32 %v81, 4294901760
  %834 = vmatpush1.msra.mxu0 %v833
  %835 = vmatprep.subr.mxu0 0.0
  %v836 = vand.u32 %v110, 4294901760
  %837 = vmatpush1.msra.mxu0 %v836
  %838 = vmatprep.subr.mxu0 0.0
  %839 = vmatpush1.msra.mxu0 0.0
  %840 = vmatprep.subr.mxu0 0.0
  %841 = vmatpush1.msra.mxu0 0.0
  %842 = vmatprep.subr.mxu0 0.0
  %843 = vmatpush1.msra.mxu0 0.0
  %844 = vmatprep.subr.mxu0 0.0
  %845 = vmatpush1.msra.mxu0 0.0
  %846 = vmatprep.subr.mxu0 0.0
  %847 = vmatpush1.msra.mxu0 0.0
  %848 = vmatprep.subr.mxu0 0.0
  %849 = vmatpush1.msra.mxu0 0.0
  %850 = vmatprep.subr.mxu0 0.0
  %851 = vmatpush1.msra.mxu0 0.0
  %852 = vmatprep.subr.mxu0 0.0
  %853 = vmatpush1.msra.mxu0 0.0
  %854 = vmatprep.subr.mxu0 0.0
  %855 = vmatpush1.msra.mxu0 0.0
  %856 = vmatprep.subr.mxu0 0.0
  %857 = vmatpush1.msra.mxu0 0.0
  %858 = vmatprep.subr.mxu0 0.0
  %859 = vmatpush1.msra.mxu0 0.0
  %860 = vmatprep.subr.mxu0 0.0
  %861 = vmatpush1.msra.mxu0 0.0
  %862 = vmatprep.subr.mxu0 0.0
  %863 = vmatpush1.msra.mxu0 0.0
  %864 = vmatprep.subr.mxu0 0.0
  %865 = vmatpush1.msra.mxu0 0.0
  %866 = vmatprep.subr.mxu0 0.0
  %867 = vmatpush1.msra.mxu0 0.0
  %868 = vmatprep.subr.mxu0 0.0
  %869 = vmatpush1.msra.mxu0 0.0
  %870 = vmatprep.subr.mxu0 0.0
  %871 = vmatpush1.msra.mxu0 0.0
  %872 = vmatprep.subr.mxu0 0.0
  %873 = vmatpush1.msra.mxu0 0.0
  %874 = vmatprep.subr.mxu0 0.0
  %875 = vmatpush1.msra.mxu0 0.0
  %876 = vmatprep.subr.mxu0 0.0
  %877 = vmatpush1.msra.mxu0 0.0
  %878 = vmatprep.subr.mxu0 0.0
  %879 = vmatpush1.msra.mxu0 0.0
  %880 = vmatprep.subr.mxu0 0.0
  %881 = vmatpush1.msra.mxu0 0.0
  %882 = vmatprep.subr.mxu0 0.0
  %883 = vmatpush1.msra.mxu0 0.0
  %884 = vmatprep.subr.mxu0 0.0
  %885 = vmatpush1.msra.mxu0 0.0
  %886 = vmatprep.subr.mxu0 0.0
  %887 = vmatpush1.msra.mxu0 0.0
  %888 = vmatprep.mubr.f32.mxu0 0.0
  %v889 = vand.u32 %v85, 4294901760
  %890 = vmatmul.mubr.f32.gmra.mrb[0].mxu0 %v889
  %v891 = vpop.f32.mrb[0].mxu0
  %v892 = vadd.f32 %v772, %v891
  %v893 = vpop.f32.mrb[0].mxu0
  %894 = vmatprep.mubr.f32.mxu0 0.0
  %v895 = vand.u32 %v88, 4294901760
  %896 = vmatmul.mubr.f32.gmra.mrb[0].mxu0 %v895
  %v897 = vpop.f32.mrb[0].mxu0
  %v898 = vadd.f32 %v778, %v897
  %v899 = vpop.f32.mrb[0].mxu0
  %900 = vmatprep.mubr.f32.mxu0 0.0
  %v901 = vand.u32 %v91, 4294901760
  %902 = vmatmul.mubr.f32.gmra.mrb[0].mxu0 %v901
  %v903 = vpop.f32.mrb[0].mxu0
  %v904 = vadd.f32 %v784, %v903
  %v905 = vpop.f32.mrb[0].mxu0
  %906 = vmatprep.mubr.f32.mxu0 0.0
  %v907 = vand.u32 %v94, 4294901760
  %908 = vmatmul.mubr.f32.gmra.mrb[0].mxu0 %v907
  %v909 = vpop.f32.mrb[0].mxu0
  %v910 = vadd.f32 %v790, %v909
  %v911 = vpop.f32.mrb[0].mxu0
  %912 = vmatprep.mubr.f32.mxu0 0.0
  %v913 = vand.u32 %v97, 4294901760
  %914 = vmatmul.mubr.f32.gmra.mrb[0].mxu0 %v913
  %v915 = vpop.f32.mrb[0].mxu0
  %v916 = vadd.f32 %v796, %v915
  %v917 = vpop.f32.mrb[0].mxu0
  %918 = vmatprep.mubr.f32.mxu0 0.0
  %v919 = vand.u32 %v100, 4294901760
  %920 = vmatmul.mubr.f32.gmra.mrb[0].mxu0 %v919
  %v921 = vpop.f32.mrb[0].mxu0
  %v922 = vadd.f32 %v802, %v921
  %v923 = vpop.f32.mrb[0].mxu0
  %924 = vmatprep.mubr.f32.mxu0 0.0
  %v925 = vand.u32 %v103, 4294901760
  %926 = vmatmul.mubr.f32.gmra.mrb[0].mxu0 %v925
  %v927 = vpop.f32.mrb[0].mxu0
  %v928 = vadd.f32 %v808, %v927
  %v929 = vpop.f32.mrb[0].mxu0
  %930 = vmatprep.mubr.f32.mxu0 0.0
  %v931 = vand.u32 %v106, 4294901760
  %932 = vmatmul.mubr.f32.gmra.mrb[0].mxu0 %v931
  %v933 = vpop.f32.mrb[0].mxu0
  %v934 = vadd.f32 %v814, %v933
  %v935 = vpop.f32.mrb[0].mxu0
  %936 = vdwg.mxu0
  %v937 = vld [vmem:[%s2] sm:$0xff]
  %v938 = vld [vmem:[%s2 + $0x8] sm:$0xff]
  %v939 = vld [vmem:[%s2 + $0x10] sm:$0xff]
  %v940 = vld [vmem:[%s2 + $0x18] sm:$0xff]
  %v941 = vld [vmem:[%s3] sm:$0x3]
  %v943 = vlaneseq
  %v944 = vshrl.u32 %v943, 7
  %v945 = vsub.s32 0, %v944
  %v946 = vrot.slane %v941, %v945
  %v947 = vlaneseq
  %v948 = vshrl.u32 %v947, 7
  %v949 = vsub.s32 1, %v948
  %v950 = vrot.slane %v941, %v949
  %vm953 = vcmask 130048
  %v955 = vsel %vm953, %v892, 0
  %v958 = vsel %vm953, %v898, 0
  %v961 = vsel %vm953, %v904, 0
  %v964 = vsel %vm953, %v910, 0
  %v967 = vsel %vm953, %v916, 0
  %v970 = vsel %vm953, %v922, 0
  %v973 = vsel %vm953, %v928, 0
  %v976 = vsel %vm953, %v934, 0
  %v978 = vand.u32 %v938, 4294901760
  %979 = vmatprep.subr.mxu0 %v978
  %v980 = vand.u32 %v937, 4294901760
  %981 = vmatpush1.msra.mxu0 %v980
  %v982 = vand.u32 %v940, 4294901760
  %983 = vmatprep.subr.mxu0 %v982
  %v984 = vand.u32 %v939, 4294901760
  %985 = vmatpush1.msra.mxu0 %v984
  %986 = vmatprep.subr.mxu0 0.0
  %987 = vmatpush1.msra.mxu0 0.0
  %988 = vmatprep.subr.mxu0 0.0
  %989 = vmatpush1.msra.mxu0 0.0
  %990 = vmatprep.subr.mxu0 0.0
  %991 = vmatpush1.msra.mxu0 0.0
  %992 = vmatprep.subr.mxu0 0.0
  %993 = vmatpush1.msra.mxu0 0.0
  %994 = vmatprep.subr.mxu0 0.0
  %995 = vmatpush1.msra.mxu0 0.0
  %996 = vmatprep.subr.mxu0 0.0
  %997 = vmatpush1.msra.mxu0 0.0
  %998 = vmatprep.subr.mxu0 0.0
  %999 = vmatpush1.msra.mxu0 0.0
  %1000 = vmatprep.subr.mxu0 0.0
  %1001 = vmatpush1.msra.mxu0 0.0
  %1002 = vmatprep.subr.mxu0 0.0
  %1003 = vmatpush1.msra.mxu0 0.0
  %1004 = vmatprep.subr.mxu0 0.0
  %1005 = vmatpush1.msra.mxu0 0.0
  %1006 = vmatprep.subr.mxu0 0.0
  %1007 = vmatpush1.msra.mxu0 0.0
  %1008 = vmatprep.subr.mxu0 0.0
  %1009 = vmatpush1.msra.mxu0 0.0
  %1010 = vmatprep.subr.mxu0 0.0
  %1011 = vmatpush1.msra.mxu0 0.0
  %1012 = vmatprep.subr.mxu0 0.0
  %1013 = vmatpush1.msra.mxu0 0.0
  %1014 = vmatprep.subr.mxu0 0.0
  %1015 = vmatpush1.msra.mxu0 0.0
  %1016 = vmatprep.subr.mxu0 0.0
  %1017 = vmatpush1.msra.mxu0 0.0
  %1018 = vmatprep.subr.mxu0 0.0
  %1019 = vmatpush1.msra.mxu0 0.0
  %1020 = vmatprep.subr.mxu0 0.0
  %1021 = vmatpush1.msra.mxu0 0.0
  %1022 = vmatprep.subr.mxu0 0.0
  %1023 = vmatpush1.msra.mxu0 0.0
  %1024 = vmatprep.subr.mxu0 0.0
  %1025 = vmatpush1.msra.mxu0 0.0
  %1026 = vmatprep.subr.mxu0 0.0
  %1027 = vmatpush1.msra.mxu0 0.0
  %1028 = vmatprep.subr.mxu0 0.0
  %1029 = vmatpush1.msra.mxu0 0.0
  %1030 = vmatprep.subr.mxu0 0.0
  %1031 = vmatpush1.msra.mxu0 0.0
  %1032 = vmatprep.subr.mxu0 0.0
  %1033 = vmatpush1.msra.mxu0 0.0
  %1034 = vmatprep.subr.mxu0 0.0
  %1035 = vmatpush1.msra.mxu0 0.0
  %1036 = vmatprep.subr.mxu0 0.0
  %1037 = vmatpush1.msra.mxu0 0.0
  %1038 = vmatprep.subr.mxu0 0.0
  %1039 = vmatpush1.msra.mxu0 0.0
  %1040 = vmatprep.subr.mxu0 0.0
  %1041 = vmatpush1.msra.mxu0 0.0
  %1042 = vmatprep.subr.mxu0 0.0
  %1043 = vmatpush1.msra.mxu0 0.0
  %1044 = vmatprep.subr.mxu0 0.0
  %1045 = vmatpush1.msra.mxu0 0.0
  %1046 = vmatprep.mubr.f32.mxu0 0.0
  %v1047 = vand.u32 %v955, 4294901760
  %v1048 = vsub.f32 %v955, %v1047
  %v1049 = vand.u32 %v1048, 4294901760
  %v1050 = vsub.f32 %v1048, %v1049
  %v1051 = vand.u32 %v1050, 4294901760
  %1052 = vmatmul.mubr.f32.gmra.mrb[0].mxu0 %v1051
  %v1053 = vpop.f32.mrb[0].mxu0
  %v1054 = vadd.f32 %v946, %v1053
  %v1055 = vpop.f32.mrb[0].mxu0
  %v1056 = vadd.f32 %v950, %v1055
  %1057 = vmatprep.mubr.f32.mxu0 0.0
  %v1058 = vand.u32 %v958, 4294901760
  %v1059 = vsub.f32 %v958, %v1058
  %v1060 = vand.u32 %v1059, 4294901760
  %v1061 = vsub.f32 %v1059, %v1060
  %v1062 = vand.u32 %v1061, 4294901760
  %1063 = vmatmul.mubr.f32.gmra.mrb[0].mxu0 %v1062
  %v1064 = vpop.f32.mrb[0].mxu0
  %v1065 = vadd.f32 %v946, %v1064
  %v1066 = vpop.f32.mrb[0].mxu0
  %v1067 = vadd.f32 %v950, %v1066
  %1068 = vmatprep.mubr.f32.mxu0 0.0
  %v1069 = vand.u32 %v961, 4294901760
  %v1070 = vsub.f32 %v961, %v1069
  %v1071 = vand.u32 %v1070, 4294901760
  %v1072 = vsub.f32 %v1070, %v1071
  %v1073 = vand.u32 %v1072, 4294901760
  %1074 = vmatmul.mubr.f32.gmra.mrb[0].mxu0 %v1073
  %v1075 = vpop.f32.mrb[0].mxu0
  %v1076 = vadd.f32 %v946, %v1075
  %v1077 = vpop.f32.mrb[0].mxu0
  %v1078 = vadd.f32 %v950, %v1077
  %1079 = vmatprep.mubr.f32.mxu0 0.0
  %v1080 = vand.u32 %v964, 4294901760
  %v1081 = vsub.f32 %v964, %v1080
  %v1082 = vand.u32 %v1081, 4294901760
  %v1083 = vsub.f32 %v1081, %v1082
  %v1084 = vand.u32 %v1083, 4294901760
  %1085 = vmatmul.mubr.f32.gmra.mrb[0].mxu0 %v1084
  %v1086 = vpop.f32.mrb[0].mxu0
  %v1087 = vadd.f32 %v946, %v1086
  %v1088 = vpop.f32.mrb[0].mxu0
  %v1089 = vadd.f32 %v950, %v1088
  %1090 = vmatprep.mubr.f32.mxu0 0.0
  %v1091 = vand.u32 %v967, 4294901760
  %v1092 = vsub.f32 %v967, %v1091
  %v1093 = vand.u32 %v1092, 4294901760
  %v1094 = vsub.f32 %v1092, %v1093
  %v1095 = vand.u32 %v1094, 4294901760
  %1096 = vmatmul.mubr.f32.gmra.mrb[0].mxu0 %v1095
  %v1097 = vpop.f32.mrb[0].mxu0
  %v1098 = vadd.f32 %v946, %v1097
  %v1099 = vpop.f32.mrb[0].mxu0
  %v1100 = vadd.f32 %v950, %v1099
  %1101 = vmatprep.mubr.f32.mxu0 0.0
  %v1102 = vand.u32 %v970, 4294901760
  %v1103 = vsub.f32 %v970, %v1102
  %v1104 = vand.u32 %v1103, 4294901760
  %v1105 = vsub.f32 %v1103, %v1104
  %v1106 = vand.u32 %v1105, 4294901760
  %1107 = vmatmul.mubr.f32.gmra.mrb[0].mxu0 %v1106
  %v1108 = vpop.f32.mrb[0].mxu0
  %v1109 = vadd.f32 %v946, %v1108
  %v1110 = vpop.f32.mrb[0].mxu0
  %v1111 = vadd.f32 %v950, %v1110
  %1112 = vmatprep.mubr.f32.mxu0 0.0
  %v1113 = vand.u32 %v973, 4294901760
  %v1114 = vsub.f32 %v973, %v1113
  %v1115 = vand.u32 %v1114, 4294901760
  %v1116 = vsub.f32 %v1114, %v1115
  %v1117 = vand.u32 %v1116, 4294901760
  %1118 = vmatmul.mubr.f32.gmra.mrb[0].mxu0 %v1117
  %v1119 = vpop.f32.mrb[0].mxu0
  %v1120 = vadd.f32 %v946, %v1119
  %v1121 = vpop.f32.mrb[0].mxu0
  %v1122 = vadd.f32 %v950, %v1121
  %1123 = vmatprep.mubr.f32.mxu0 0.0
  %v1124 = vand.u32 %v976, 4294901760
  %v1125 = vsub.f32 %v976, %v1124
  %v1126 = vand.u32 %v1125, 4294901760
  %v1127 = vsub.f32 %v1125, %v1126
  %v1128 = vand.u32 %v1127, 4294901760
  %1129 = vmatmul.mubr.f32.gmra.mrb[0].mxu0 %v1128
  %v1130 = vpop.f32.mrb[0].mxu0
  %v1131 = vadd.f32 %v946, %v1130
  %v1132 = vpop.f32.mrb[0].mxu0
  %v1133 = vadd.f32 %v950, %v1132
  %1134 = vdwg.mxu0
  %v1135 = vand.u32 %v938, 4294901760
  %v1136 = vsub.f32 %v938, %v1135
  %v1137 = vand.u32 %v1136, 4294901760
  %v1138 = vsub.f32 %v1136, %v1137
  %v1139 = vand.u32 %v1138, 4294901760
  %1140 = vmatprep.subr.mxu0 %v1139
  %v1141 = vand.u32 %v937, 4294901760
  %v1142 = vsub.f32 %v937, %v1141
  %v1143 = vand.u32 %v1142, 4294901760
  %v1144 = vsub.f32 %v1142, %v1143
  %v1145 = vand.u32 %v1144, 4294901760
  %1146 = vmatpush1.msra.mxu0 %v1145
  %v1147 = vand.u32 %v940, 4294901760
  %v1148 = vsub.f32 %v940, %v1147
  %v1149 = vand.u32 %v1148, 4294901760
  %v1150 = vsub.f32 %v1148, %v1149
  %v1151 = vand.u32 %v1150, 4294901760
  %1152 = vmatprep.subr.mxu0 %v1151
  %v1153 = vand.u32 %v939, 4294901760
  %v1154 = vsub.f32 %v939, %v1153
  %v1155 = vand.u32 %v1154, 4294901760
  %v1156 = vsub.f32 %v1154, %v1155
  %v1157 = vand.u32 %v1156, 4294901760
  %1158 = vmatpush1.msra.mxu0 %v1157
  %1159 = vmatprep.subr.mxu0 0.0
  %1160 = vmatpush1.msra.mxu0 0.0
  %1161 = vmatprep.subr.mxu0 0.0
  %1162 = vmatpush1.msra.mxu0 0.0
  %1163 = vmatprep.subr.mxu0 0.0
  %1164 = vmatpush1.msra.mxu0 0.0
  %1165 = vmatprep.subr.mxu0 0.0
  %1166 = vmatpush1.msra.mxu0 0.0
  %1167 = vmatprep.subr.mxu0 0.0
  %1168 = vmatpush1.msra.mxu0 0.0
  %1169 = vmatprep.subr.mxu0 0.0
  %1170 = vmatpush1.msra.mxu0 0.0
  %1171 = vmatprep.subr.mxu0 0.0
  %1172 = vmatpush1.msra.mxu0 0.0
  %1173 = vmatprep.subr.mxu0 0.0
  %1174 = vmatpush1.msra.mxu0 0.0
  %1175 = vmatprep.subr.mxu0 0.0
  %1176 = vmatpush1.msra.mxu0 0.0
  %1177 = vmatprep.subr.mxu0 0.0
  %1178 = vmatpush1.msra.mxu0 0.0
  %1179 = vmatprep.subr.mxu0 0.0
  %1180 = vmatpush1.msra.mxu0 0.0
  %1181 = vmatprep.subr.mxu0 0.0
  %1182 = vmatpush1.msra.mxu0 0.0
  %1183 = vmatprep.subr.mxu0 0.0
  %1184 = vmatpush1.msra.mxu0 0.0
  %1185 = vmatprep.subr.mxu0 0.0
  %1186 = vmatpush1.msra.mxu0 0.0
  %1187 = vmatprep.subr.mxu0 0.0
  %1188 = vmatpush1.msra.mxu0 0.0
  %1189 = vmatprep.subr.mxu0 0.0
  %1190 = vmatpush1.msra.mxu0 0.0
  %1191 = vmatprep.subr.mxu0 0.0
  %1192 = vmatpush1.msra.mxu0 0.0
  %1193 = vmatprep.subr.mxu0 0.0
  %1194 = vmatpush1.msra.mxu0 0.0
  %1195 = vmatprep.subr.mxu0 0.0
  %1196 = vmatpush1.msra.mxu0 0.0
  %1197 = vmatprep.subr.mxu0 0.0
  %1198 = vmatpush1.msra.mxu0 0.0
  %1199 = vmatprep.subr.mxu0 0.0
  %1200 = vmatpush1.msra.mxu0 0.0
  %1201 = vmatprep.subr.mxu0 0.0
  %1202 = vmatpush1.msra.mxu0 0.0
  %1203 = vmatprep.subr.mxu0 0.0
  %1204 = vmatpush1.msra.mxu0 0.0
  %1205 = vmatprep.subr.mxu0 0.0
  %1206 = vmatpush1.msra.mxu0 0.0
  %1207 = vmatprep.subr.mxu0 0.0
  %1208 = vmatpush1.msra.mxu0 0.0
  %1209 = vmatprep.subr.mxu0 0.0
  %1210 = vmatpush1.msra.mxu0 0.0
  %1211 = vmatprep.subr.mxu0 0.0
  %1212 = vmatpush1.msra.mxu0 0.0
  %1213 = vmatprep.subr.mxu0 0.0
  %1214 = vmatpush1.msra.mxu0 0.0
  %1215 = vmatprep.subr.mxu0 0.0
  %1216 = vmatpush1.msra.mxu0 0.0
  %1217 = vmatprep.subr.mxu0 0.0
  %1218 = vmatpush1.msra.mxu0 0.0
  %1219 = vmatprep.mubr.f32.mxu0 0.0
  %v1220 = vand.u32 %v955, 4294901760
  %1221 = vmatmul.mubr.f32.gmra.mrb[0].mxu0 %v1220
  %v1222 = vpop.f32.mrb[0].mxu0
  %v1223 = vadd.f32 %v1054, %v1222
  %v1224 = vpop.f32.mrb[0].mxu0
  %v1225 = vadd.f32 %v1056, %v1224
  %1226 = vmatprep.mubr.f32.mxu0 0.0
  %v1227 = vand.u32 %v958, 4294901760
  %1228 = vmatmul.mubr.f32.gmra.mrb[0].mxu0 %v1227
  %v1229 = vpop.f32.mrb[0].mxu0
  %v1230 = vadd.f32 %v1065, %v1229
  %v1231 = vpop.f32.mrb[0].mxu0
  %v1232 = vadd.f32 %v1067, %v1231
  %1233 = vmatprep.mubr.f32.mxu0 0.0
  %v1234 = vand.u32 %v961, 4294901760
  %1235 = vmatmul.mubr.f32.gmra.mrb[0].mxu0 %v1234
  %v1236 = vpop.f32.mrb[0].mxu0
  %v1237 = vadd.f32 %v1076, %v1236
  %v1238 = vpop.f32.mrb[0].mxu0
  %v1239 = vadd.f32 %v1078, %v1238
  %1240 = vmatprep.mubr.f32.mxu0 0.0
  %v1241 = vand.u32 %v964, 4294901760
  %1242 = vmatmul.mubr.f32.gmra.mrb[0].mxu0 %v1241
  %v1243 = vpop.f32.mrb[0].mxu0
  %v1244 = vadd.f32 %v1087, %v1243
  %v1245 = vpop.f32.mrb[0].mxu0
  %v1246 = vadd.f32 %v1089, %v1245
  %1247 = vmatprep.mubr.f32.mxu0 0.0
  %v1248 = vand.u32 %v967, 4294901760
  %1249 = vmatmul.mubr.f32.gmra.mrb[0].mxu0 %v1248
  %v1250 = vpop.f32.mrb[0].mxu0
  %v1251 = vadd.f32 %v1098, %v1250
  %v1252 = vpop.f32.mrb[0].mxu0
  %v1253 = vadd.f32 %v1100, %v1252
  %1254 = vmatprep.mubr.f32.mxu0 0.0
  %v1255 = vand.u32 %v970, 4294901760
  %1256 = vmatmul.mubr.f32.gmra.mrb[0].mxu0 %v1255
  %v1257 = vpop.f32.mrb[0].mxu0
  %v1258 = vadd.f32 %v1109, %v1257
  %v1259 = vpop.f32.mrb[0].mxu0
  %v1260 = vadd.f32 %v1111, %v1259
  %1261 = vmatprep.mubr.f32.mxu0 0.0
  %v1262 = vand.u32 %v973, 4294901760
  %1263 = vmatmul.mubr.f32.gmra.mrb[0].mxu0 %v1262
  %v1264 = vpop.f32.mrb[0].mxu0
  %v1265 = vadd.f32 %v1120, %v1264
  %v1266 = vpop.f32.mrb[0].mxu0
  %v1267 = vadd.f32 %v1122, %v1266
  %1268 = vmatprep.mubr.f32.mxu0 0.0
  %v1269 = vand.u32 %v976, 4294901760
  %1270 = vmatmul.mubr.f32.gmra.mrb[0].mxu0 %v1269
  %v1271 = vpop.f32.mrb[0].mxu0
  %v1272 = vadd.f32 %v1131, %v1271
  %v1273 = vpop.f32.mrb[0].mxu0
  %v1274 = vadd.f32 %v1133, %v1273
  %1275 = vdwg.mxu0
  %v1276 = vand.u32 %v938, 4294901760
  %v1277 = vsub.f32 %v938, %v1276
  %1278 = vmatprep.subr.mxu0 %v1277
  %v1279 = vand.u32 %v937, 4294901760
  %v1280 = vsub.f32 %v937, %v1279
  %1281 = vmatpush1.msra.mxu0 %v1280
  %v1282 = vand.u32 %v940, 4294901760
  %v1283 = vsub.f32 %v940, %v1282
  %1284 = vmatprep.subr.mxu0 %v1283
  %v1285 = vand.u32 %v939, 4294901760
  %v1286 = vsub.f32 %v939, %v1285
  %1287 = vmatpush1.msra.mxu0 %v1286
  %1288 = vmatprep.subr.mxu0 0.0
  %1289 = vmatpush1.msra.mxu0 0.0
  %1290 = vmatprep.subr.mxu0 0.0
  %1291 = vmatpush1.msra.mxu0 0.0
  %1292 = vmatprep.subr.mxu0 0.0
  %1293 = vmatpush1.msra.mxu0 0.0
  %1294 = vmatprep.subr.mxu0 0.0
  %1295 = vmatpush1.msra.mxu0 0.0
  %1296 = vmatprep.subr.mxu0 0.0
  %1297 = vmatpush1.msra.mxu0 0.0
  %1298 = vmatprep.subr.mxu0 0.0
  %1299 = vmatpush1.msra.mxu0 0.0
  %1300 = vmatprep.subr.mxu0 0.0
  %1301 = vmatpush1.msra.mxu0 0.0
  %1302 = vmatprep.subr.mxu0 0.0
  %1303 = vmatpush1.msra.mxu0 0.0
  %1304 = vmatprep.subr.mxu0 0.0
  %1305 = vmatpush1.msra.mxu0 0.0
  %1306 = vmatprep.subr.mxu0 0.0
  %1307 = vmatpush1.msra.mxu0 0.0
  %1308 = vmatprep.subr.mxu0 0.0
  %1309 = vmatpush1.msra.mxu0 0.0
  %1310 = vmatprep.subr.mxu0 0.0
  %1311 = vmatpush1.msra.mxu0 0.0
  %1312 = vmatprep.subr.mxu0 0.0
  %1313 = vmatpush1.msra.mxu0 0.0
  %1314 = vmatprep.subr.mxu0 0.0
  %1315 = vmatpush1.msra.mxu0 0.0
  %1316 = vmatprep.subr.mxu0 0.0
  %1317 = vmatpush1.msra.mxu0 0.0
  %1318 = vmatprep.subr.mxu0 0.0
  %1319 = vmatpush1.msra.mxu0 0.0
  %1320 = vmatprep.subr.mxu0 0.0
  %1321 = vmatpush1.msra.mxu0 0.0
  %1322 = vmatprep.subr.mxu0 0.0
  %1323 = vmatpush1.msra.mxu0 0.0
  %1324 = vmatprep.subr.mxu0 0.0
  %1325 = vmatpush1.msra.mxu0 0.0
  %1326 = vmatprep.subr.mxu0 0.0
  %1327 = vmatpush1.msra.mxu0 0.0
  %1328 = vmatprep.subr.mxu0 0.0
  %1329 = vmatpush1.msra.mxu0 0.0
  %1330 = vmatprep.subr.mxu0 0.0
  %1331 = vmatpush1.msra.mxu0 0.0
  %1332 = vmatprep.subr.mxu0 0.0
  %1333 = vmatpush1.msra.mxu0 0.0
  %1334 = vmatprep.subr.mxu0 0.0
  %1335 = vmatpush1.msra.mxu0 0.0
  %1336 = vmatprep.subr.mxu0 0.0
  %1337 = vmatpush1.msra.mxu0 0.0
  %1338 = vmatprep.subr.mxu0 0.0
  %1339 = vmatpush1.msra.mxu0 0.0
  %1340 = vmatprep.subr.mxu0 0.0
  %1341 = vmatpush1.msra.mxu0 0.0
  %1342 = vmatprep.subr.mxu0 0.0
  %1343 = vmatpush1.msra.mxu0 0.0
  %1344 = vmatprep.subr.mxu0 0.0
  %1345 = vmatpush1.msra.mxu0 0.0
  %1346 = vmatprep.subr.mxu0 0.0
  %1347 = vmatpush1.msra.mxu0 0.0
  %1348 = vmatprep.mubr.f32.mxu0 0.0
  %v1349 = vand.u32 %v955, 4294901760
  %v1350 = vsub.f32 %v955, %v1349
  %1351 = vmatmul.mubr.f32.gmra.mrb[0].mxu0 %v1350
  %v1352 = vpop.f32.mrb[0].mxu0
  %v1353 = vadd.f32 %v1223, %v1352
  %v1354 = vpop.f32.mrb[0].mxu0
  %v1355 = vadd.f32 %v1225, %v1354
  %1356 = vmatprep.mubr.f32.mxu0 0.0
  %v1357 = vand.u32 %v958, 4294901760
  %v1358 = vsub.f32 %v958, %v1357
  %1359 = vmatmul.mubr.f32.gmra.mrb[0].mxu0 %v1358
  %v1360 = vpop.f32.mrb[0].mxu0
  %v1361 = vadd.f32 %v1230, %v1360
  %v1362 = vpop.f32.mrb[0].mxu0
  %v1363 = vadd.f32 %v1232, %v1362
  %1364 = vmatprep.mubr.f32.mxu0 0.0
  %v1365 = vand.u32 %v961, 4294901760
  %v1366 = vsub.f32 %v961, %v1365
  %1367 = vmatmul.mubr.f32.gmra.mrb[0].mxu0 %v1366
  %v1368 = vpop.f32.mrb[0].mxu0
  %v1369 = vadd.f32 %v1237, %v1368
  %v1370 = vpop.f32.mrb[0].mxu0
  %v1371 = vadd.f32 %v1239, %v1370
  %1372 = vmatprep.mubr.f32.mxu0 0.0
  %v1373 = vand.u32 %v964, 4294901760
  %v1374 = vsub.f32 %v964, %v1373
  %1375 = vmatmul.mubr.f32.gmra.mrb[0].mxu0 %v1374
  %v1376 = vpop.f32.mrb[0].mxu0
  %v1377 = vadd.f32 %v1244, %v1376
  %v1378 = vpop.f32.mrb[0].mxu0
  %v1379 = vadd.f32 %v1246, %v1378
  %1380 = vmatprep.mubr.f32.mxu0 0.0
  %v1381 = vand.u32 %v967, 4294901760
  %v1382 = vsub.f32 %v967, %v1381
  %1383 = vmatmul.mubr.f32.gmra.mrb[0].mxu0 %v1382
  %v1384 = vpop.f32.mrb[0].mxu0
  %v1385 = vadd.f32 %v1251, %v1384
  %v1386 = vpop.f32.mrb[0].mxu0
  %v1387 = vadd.f32 %v1253, %v1386
  %1388 = vmatprep.mubr.f32.mxu0 0.0
  %v1389 = vand.u32 %v970, 4294901760
  %v1390 = vsub.f32 %v970, %v1389
  %1391 = vmatmul.mubr.f32.gmra.mrb[0].mxu0 %v1390
  %v1392 = vpop.f32.mrb[0].mxu0
  %v1393 = vadd.f32 %v1258, %v1392
  %v1394 = vpop.f32.mrb[0].mxu0
  %v1395 = vadd.f32 %v1260, %v1394
  %1396 = vmatprep.mubr.f32.mxu0 0.0
  %v1397 = vand.u32 %v973, 4294901760
  %v1398 = vsub.f32 %v973, %v1397
  %1399 = vmatmul.mubr.f32.gmra.mrb[0].mxu0 %v1398
  %v1400 = vpop.f32.mrb[0].mxu0
  %v1401 = vadd.f32 %v1265, %v1400
  %v1402 = vpop.f32.mrb[0].mxu0
  %v1403 = vadd.f32 %v1267, %v1402
  %1404 = vmatprep.mubr.f32.mxu0 0.0
  %v1405 = vand.u32 %v976, 4294901760
  %v1406 = vsub.f32 %v976, %v1405
  %1407 = vmatmul.mubr.f32.gmra.mrb[0].mxu0 %v1406
  %v1408 = vpop.f32.mrb[0].mxu0
  %v1409 = vadd.f32 %v1272, %v1408
  %v1410 = vpop.f32.mrb[0].mxu0
  %v1411 = vadd.f32 %v1274, %v1410
  %1412 = vdwg.mxu0
  %v1413 = vand.u32 %v938, 4294901760
  %1414 = vmatprep.subr.mxu0 %v1413
  %v1415 = vand.u32 %v937, 4294901760
  %1416 = vmatpush1.msra.mxu0 %v1415
  %v1417 = vand.u32 %v940, 4294901760
  %1418 = vmatprep.subr.mxu0 %v1417
  %v1419 = vand.u32 %v939, 4294901760
  %1420 = vmatpush1.msra.mxu0 %v1419
  %1421 = vmatprep.subr.mxu0 0.0
  %1422 = vmatpush1.msra.mxu0 0.0
  %1423 = vmatprep.subr.mxu0 0.0
  %1424 = vmatpush1.msra.mxu0 0.0
  %1425 = vmatprep.subr.mxu0 0.0
  %1426 = vmatpush1.msra.mxu0 0.0
  %1427 = vmatprep.subr.mxu0 0.0
  %1428 = vmatpush1.msra.mxu0 0.0
  %1429 = vmatprep.subr.mxu0 0.0
  %1430 = vmatpush1.msra.mxu0 0.0
  %1431 = vmatprep.subr.mxu0 0.0
  %1432 = vmatpush1.msra.mxu0 0.0
  %1433 = vmatprep.subr.mxu0 0.0
  %1434 = vmatpush1.msra.mxu0 0.0
  %1435 = vmatprep.subr.mxu0 0.0
  %1436 = vmatpush1.msra.mxu0 0.0
  %1437 = vmatprep.subr.mxu0 0.0
  %1438 = vmatpush1.msra.mxu0 0.0
  %1439 = vmatprep.subr.mxu0 0.0
  %1440 = vmatpush1.msra.mxu0 0.0
  %1441 = vmatprep.subr.mxu0 0.0
  %1442 = vmatpush1.msra.mxu0 0.0
  %1443 = vmatprep.subr.mxu0 0.0
  %1444 = vmatpush1.msra.mxu0 0.0
  %1445 = vmatprep.subr.mxu0 0.0
  %1446 = vmatpush1.msra.mxu0 0.0
  %1447 = vmatprep.subr.mxu0 0.0
  %1448 = vmatpush1.msra.mxu0 0.0
  %1449 = vmatprep.subr.mxu0 0.0
  %1450 = vmatpush1.msra.mxu0 0.0
  %1451 = vmatprep.subr.mxu0 0.0
  %1452 = vmatpush1.msra.mxu0 0.0
  %1453 = vmatprep.subr.mxu0 0.0
  %1454 = vmatpush1.msra.mxu0 0.0
  %1455 = vmatprep.subr.mxu0 0.0
  %1456 = vmatpush1.msra.mxu0 0.0
  %1457 = vmatprep.subr.mxu0 0.0
  %1458 = vmatpush1.msra.mxu0 0.0
  %1459 = vmatprep.subr.mxu0 0.0
  %1460 = vmatpush1.msra.mxu0 0.0
  %1461 = vmatprep.subr.mxu0 0.0
  %1462 = vmatpush1.msra.mxu0 0.0
  %1463 = vmatprep.subr.mxu0 0.0
  %1464 = vmatpush1.msra.mxu0 0.0
  %1465 = vmatprep.subr.mxu0 0.0
  %1466 = vmatpush1.msra.mxu0 0.0
  %1467 = vmatprep.subr.mxu0 0.0
  %1468 = vmatpush1.msra.mxu0 0.0
  %1469 = vmatprep.subr.mxu0 0.0
  %1470 = vmatpush1.msra.mxu0 0.0
  %1471 = vmatprep.subr.mxu0 0.0
  %1472 = vmatpush1.msra.mxu0 0.0
  %1473 = vmatprep.subr.mxu0 0.0
  %1474 = vmatpush1.msra.mxu0 0.0
  %1475 = vmatprep.subr.mxu0 0.0
  %1476 = vmatpush1.msra.mxu0 0.0
  %1477 = vmatprep.subr.mxu0 0.0
  %1478 = vmatpush1.msra.mxu0 0.0
  %1479 = vmatprep.subr.mxu0 0.0
  %1480 = vmatpush1.msra.mxu0 0.0
  %1481 = vmatprep.mubr.f32.mxu0 0.0
  %v1482 = vand.u32 %v955, 4294901760
  %v1483 = vsub.f32 %v955, %v1482
  %v1484 = vand.u32 %v1483, 4294901760
  %1485 = vmatmul.mubr.f32.gmra.mrb[0].mxu0 %v1484
  %v1486 = vpop.f32.mrb[0].mxu0
  %v1487 = vadd.f32 %v1353, %v1486
  %v1488 = vpop.f32.mrb[0].mxu0
  %v1489 = vadd.f32 %v1355, %v1488
  %1490 = vmatprep.mubr.f32.mxu0 0.0
  %v1491 = vand.u32 %v958, 4294901760
  %v1492 = vsub.f32 %v958, %v1491
  %v1493 = vand.u32 %v1492, 4294901760
  %1494 = vmatmul.mubr.f32.gmra.mrb[0].mxu0 %v1493
  %v1495 = vpop.f32.mrb[0].mxu0
  %v1496 = vadd.f32 %v1361, %v1495
  %v1497 = vpop.f32.mrb[0].mxu0
  %v1498 = vadd.f32 %v1363, %v1497
  %1499 = vmatprep.mubr.f32.mxu0 0.0
  %v1500 = vand.u32 %v961, 4294901760
  %v1501 = vsub.f32 %v961, %v1500
  %v1502 = vand.u32 %v1501, 4294901760
  %1503 = vmatmul.mubr.f32.gmra.mrb[0].mxu0 %v1502
  %v1504 = vpop.f32.mrb[0].mxu0
  %v1505 = vadd.f32 %v1369, %v1504
  %v1506 = vpop.f32.mrb[0].mxu0
  %v1507 = vadd.f32 %v1371, %v1506
  %1508 = vmatprep.mubr.f32.mxu0 0.0
  %v1509 = vand.u32 %v964, 4294901760
  %v1510 = vsub.f32 %v964, %v1509
  %v1511 = vand.u32 %v1510, 4294901760
  %1512 = vmatmul.mubr.f32.gmra.mrb[0].mxu0 %v1511
  %v1513 = vpop.f32.mrb[0].mxu0
  %v1514 = vadd.f32 %v1377, %v1513
  %v1515 = vpop.f32.mrb[0].mxu0
  %v1516 = vadd.f32 %v1379, %v1515
  %1517 = vmatprep.mubr.f32.mxu0 0.0
  %v1518 = vand.u32 %v967, 4294901760
  %v1519 = vsub.f32 %v967, %v1518
  %v1520 = vand.u32 %v1519, 4294901760
  %1521 = vmatmul.mubr.f32.gmra.mrb[0].mxu0 %v1520
  %v1522 = vpop.f32.mrb[0].mxu0
  %v1523 = vadd.f32 %v1385, %v1522
  %v1524 = vpop.f32.mrb[0].mxu0
  %v1525 = vadd.f32 %v1387, %v1524
  %1526 = vmatprep.mubr.f32.mxu0 0.0
  %v1527 = vand.u32 %v970, 4294901760
  %v1528 = vsub.f32 %v970, %v1527
  %v1529 = vand.u32 %v1528, 4294901760
  %1530 = vmatmul.mubr.f32.gmra.mrb[0].mxu0 %v1529
  %v1531 = vpop.f32.mrb[0].mxu0
  %v1532 = vadd.f32 %v1393, %v1531
  %v1533 = vpop.f32.mrb[0].mxu0
  %v1534 = vadd.f32 %v1395, %v1533
  %1535 = vmatprep.mubr.f32.mxu0 0.0
  %v1536 = vand.u32 %v973, 4294901760
  %v1537 = vsub.f32 %v973, %v1536
  %v1538 = vand.u32 %v1537, 4294901760
  %1539 = vmatmul.mubr.f32.gmra.mrb[0].mxu0 %v1538
  %v1540 = vpop.f32.mrb[0].mxu0
  %v1541 = vadd.f32 %v1401, %v1540
  %v1542 = vpop.f32.mrb[0].mxu0
  %v1543 = vadd.f32 %v1403, %v1542
  %1544 = vmatprep.mubr.f32.mxu0 0.0
  %v1545 = vand.u32 %v976, 4294901760
  %v1546 = vsub.f32 %v976, %v1545
  %v1547 = vand.u32 %v1546, 4294901760
  %1548 = vmatmul.mubr.f32.gmra.mrb[0].mxu0 %v1547
  %v1549 = vpop.f32.mrb[0].mxu0
  %v1550 = vadd.f32 %v1409, %v1549
  %v1551 = vpop.f32.mrb[0].mxu0
  %v1552 = vadd.f32 %v1411, %v1551
  %1553 = vdwg.mxu0
  %v1554 = vand.u32 %v938, 4294901760
  %v1555 = vsub.f32 %v938, %v1554
  %v1556 = vand.u32 %v1555, 4294901760
  %1557 = vmatprep.subr.mxu0 %v1556
  %v1558 = vand.u32 %v937, 4294901760
  %v1559 = vsub.f32 %v937, %v1558
  %v1560 = vand.u32 %v1559, 4294901760
  %1561 = vmatpush1.msra.mxu0 %v1560
  %v1562 = vand.u32 %v940, 4294901760
  %v1563 = vsub.f32 %v940, %v1562
  %v1564 = vand.u32 %v1563, 4294901760
  %1565 = vmatprep.subr.mxu0 %v1564
  %v1566 = vand.u32 %v939, 4294901760
  %v1567 = vsub.f32 %v939, %v1566
  %v1568 = vand.u32 %v1567, 4294901760
  %1569 = vmatpush1.msra.mxu0 %v1568
  %1570 = vmatprep.subr.mxu0 0.0
  %1571 = vmatpush1.msra.mxu0 0.0
  %1572 = vmatprep.subr.mxu0 0.0
  %1573 = vmatpush1.msra.mxu0 0.0
  %1574 = vmatprep.subr.mxu0 0.0
  %1575 = vmatpush1.msra.mxu0 0.0
  %1576 = vmatprep.subr.mxu0 0.0
  %1577 = vmatpush1.msra.mxu0 0.0
  %1578 = vmatprep.subr.mxu0 0.0
  %1579 = vmatpush1.msra.mxu0 0.0
  %1580 = vmatprep.subr.mxu0 0.0
  %1581 = vmatpush1.msra.mxu0 0.0
  %1582 = vmatprep.subr.mxu0 0.0
  %1583 = vmatpush1.msra.mxu0 0.0
  %1584 = vmatprep.subr.mxu0 0.0
  %1585 = vmatpush1.msra.mxu0 0.0
  %1586 = vmatprep.subr.mxu0 0.0
  %1587 = vmatpush1.msra.mxu0 0.0
  %1588 = vmatprep.subr.mxu0 0.0
  %1589 = vmatpush1.msra.mxu0 0.0
  %1590 = vmatprep.subr.mxu0 0.0
  %1591 = vmatpush1.msra.mxu0 0.0
  %1592 = vmatprep.subr.mxu0 0.0
  %1593 = vmatpush1.msra.mxu0 0.0
  %1594 = vmatprep.subr.mxu0 0.0
  %1595 = vmatpush1.msra.mxu0 0.0
  %1596 = vmatprep.subr.mxu0 0.0
  %1597 = vmatpush1.msra.mxu0 0.0
  %1598 = vmatprep.subr.mxu0 0.0
  %1599 = vmatpush1.msra.mxu0 0.0
  %1600 = vmatprep.subr.mxu0 0.0
  %1601 = vmatpush1.msra.mxu0 0.0
  %1602 = vmatprep.subr.mxu0 0.0
  %1603 = vmatpush1.msra.mxu0 0.0
  %1604 = vmatprep.subr.mxu0 0.0
  %1605 = vmatpush1.msra.mxu0 0.0
  %1606 = vmatprep.subr.mxu0 0.0
  %1607 = vmatpush1.msra.mxu0 0.0
  %1608 = vmatprep.subr.mxu0 0.0
  %1609 = vmatpush1.msra.mxu0 0.0
  %1610 = vmatprep.subr.mxu0 0.0
  %1611 = vmatpush1.msra.mxu0 0.0
  %1612 = vmatprep.subr.mxu0 0.0
  %1613 = vmatpush1.msra.mxu0 0.0
  %1614 = vmatprep.subr.mxu0 0.0
  %1615 = vmatpush1.msra.mxu0 0.0
  %1616 = vmatprep.subr.mxu0 0.0
  %1617 = vmatpush1.msra.mxu0 0.0
  %1618 = vmatprep.subr.mxu0 0.0
  %1619 = vmatpush1.msra.mxu0 0.0
  %1620 = vmatprep.subr.mxu0 0.0
  %1621 = vmatpush1.msra.mxu0 0.0
  %1622 = vmatprep.subr.mxu0 0.0
  %1623 = vmatpush1.msra.mxu0 0.0
  %1624 = vmatprep.subr.mxu0 0.0
  %1625 = vmatpush1.msra.mxu0 0.0
  %1626 = vmatprep.subr.mxu0 0.0
  %1627 = vmatpush1.msra.mxu0 0.0
  %1628 = vmatprep.subr.mxu0 0.0
  %1629 = vmatpush1.msra.mxu0 0.0
  %1630 = vmatprep.mubr.f32.mxu0 0.0
  %v1631 = vand.u32 %v955, 4294901760
  %1632 = vmatmul.mubr.f32.gmra.mrb[0].mxu0 %v1631
  %v1633 = vpop.f32.mrb[0].mxu0
  %v1634 = vadd.f32 %v1487, %v1633
  %v1635 = vpop.f32.mrb[0].mxu0
  %v1636 = vadd.f32 %v1489, %v1635
  %1637 = vmatprep.mubr.f32.mxu0 0.0
  %v1638 = vand.u32 %v958, 4294901760
  %1639 = vmatmul.mubr.f32.gmra.mrb[0].mxu0 %v1638
  %v1640 = vpop.f32.mrb[0].mxu0
  %v1641 = vadd.f32 %v1496, %v1640
  %v1642 = vpop.f32.mrb[0].mxu0
  %v1643 = vadd.f32 %v1498, %v1642
  %1644 = vmatprep.mubr.f32.mxu0 0.0
  %v1645 = vand.u32 %v961, 4294901760
  %1646 = vmatmul.mubr.f32.gmra.mrb[0].mxu0 %v1645
  %v1647 = vpop.f32.mrb[0].mxu0
  %v1648 = vadd.f32 %v1505, %v1647
  %v1649 = vpop.f32.mrb[0].mxu0
  %v1650 = vadd.f32 %v1507, %v1649
  %1651 = vmatprep.mubr.f32.mxu0 0.0
  %v1652 = vand.u32 %v964, 4294901760
  %1653 = vmatmul.mubr.f32.gmra.mrb[0].mxu0 %v1652
  %v1654 = vpop.f32.mrb[0].mxu0
  %v1655 = vadd.f32 %v1514, %v1654
  %v1656 = vpop.f32.mrb[0].mxu0
  %v1657 = vadd.f32 %v1516, %v1656
  %1658 = vmatprep.mubr.f32.mxu0 0.0
  %v1659 = vand.u32 %v967, 4294901760
  %1660 = vmatmul.mubr.f32.gmra.mrb[0].mxu0 %v1659
  %v1661 = vpop.f32.mrb[0].mxu0
  %v1662 = vadd.f32 %v1523, %v1661
  %v1663 = vpop.f32.mrb[0].mxu0
  %v1664 = vadd.f32 %v1525, %v1663
  %1665 = vmatprep.mubr.f32.mxu0 0.0
  %v1666 = vand.u32 %v970, 4294901760
  %1667 = vmatmul.mubr.f32.gmra.mrb[0].mxu0 %v1666
  %v1668 = vpop.f32.mrb[0].mxu0
  %v1669 = vadd.f32 %v1532, %v1668
  %v1670 = vpop.f32.mrb[0].mxu0
  %v1671 = vadd.f32 %v1534, %v1670
  %1672 = vmatprep.mubr.f32.mxu0 0.0
  %v1673 = vand.u32 %v973, 4294901760
  %1674 = vmatmul.mubr.f32.gmra.mrb[0].mxu0 %v1673
  %v1675 = vpop.f32.mrb[0].mxu0
  %v1676 = vadd.f32 %v1541, %v1675
  %v1677 = vpop.f32.mrb[0].mxu0
  %v1678 = vadd.f32 %v1543, %v1677
  %1679 = vmatprep.mubr.f32.mxu0 0.0
  %v1680 = vand.u32 %v976, 4294901760
  %1681 = vmatmul.mubr.f32.gmra.mrb[0].mxu0 %v1680
  %v1682 = vpop.f32.mrb[0].mxu0
  %v1683 = vadd.f32 %v1550, %v1682
  %v1684 = vpop.f32.mrb[0].mxu0
  %v1685 = vadd.f32 %v1552, %v1684
  %1686 = vdwg.mxu0
  %v1687 = vand.u32 %v938, 4294901760
  %1688 = vmatprep.subr.mxu0 %v1687
  %v1689 = vand.u32 %v937, 4294901760
  %1690 = vmatpush1.msra.mxu0 %v1689
  %v1691 = vand.u32 %v940, 4294901760
  %1692 = vmatprep.subr.mxu0 %v1691
  %v1693 = vand.u32 %v939, 4294901760
  %1694 = vmatpush1.msra.mxu0 %v1693
  %1695 = vmatprep.subr.mxu0 0.0
  %1696 = vmatpush1.msra.mxu0 0.0
  %1697 = vmatprep.subr.mxu0 0.0
  %1698 = vmatpush1.msra.mxu0 0.0
  %1699 = vmatprep.subr.mxu0 0.0
  %1700 = vmatpush1.msra.mxu0 0.0
  %1701 = vmatprep.subr.mxu0 0.0
  %1702 = vmatpush1.msra.mxu0 0.0
  %1703 = vmatprep.subr.mxu0 0.0
  %1704 = vmatpush1.msra.mxu0 0.0
  %1705 = vmatprep.subr.mxu0 0.0
  %1706 = vmatpush1.msra.mxu0 0.0
  %1707 = vmatprep.subr.mxu0 0.0
  %1708 = vmatpush1.msra.mxu0 0.0
  %1709 = vmatprep.subr.mxu0 0.0
  %1710 = vmatpush1.msra.mxu0 0.0
  %1711 = vmatprep.subr.mxu0 0.0
  %1712 = vmatpush1.msra.mxu0 0.0
  %1713 = vmatprep.subr.mxu0 0.0
  %1714 = vmatpush1.msra.mxu0 0.0
  %1715 = vmatprep.subr.mxu0 0.0
  %1716 = vmatpush1.msra.mxu0 0.0
  %1717 = vmatprep.subr.mxu0 0.0
  %1718 = vmatpush1.msra.mxu0 0.0
  %1719 = vmatprep.subr.mxu0 0.0
  %1720 = vmatpush1.msra.mxu0 0.0
  %1721 = vmatprep.subr.mxu0 0.0
  %1722 = vmatpush1.msra.mxu0 0.0
  %1723 = vmatprep.subr.mxu0 0.0
  %1724 = vmatpush1.msra.mxu0 0.0
  %1725 = vmatprep.subr.mxu0 0.0
  %1726 = vmatpush1.msra.mxu0 0.0
  %1727 = vmatprep.subr.mxu0 0.0
  %1728 = vmatpush1.msra.mxu0 0.0
  %1729 = vmatprep.subr.mxu0 0.0
  %1730 = vmatpush1.msra.mxu0 0.0
  %1731 = vmatprep.subr.mxu0 0.0
  %1732 = vmatpush1.msra.mxu0 0.0
  %1733 = vmatprep.subr.mxu0 0.0
  %1734 = vmatpush1.msra.mxu0 0.0
  %1735 = vmatprep.subr.mxu0 0.0
  %1736 = vmatpush1.msra.mxu0 0.0
  %1737 = vmatprep.subr.mxu0 0.0
  %1738 = vmatpush1.msra.mxu0 0.0
  %1739 = vmatprep.subr.mxu0 0.0
  %1740 = vmatpush1.msra.mxu0 0.0
  %1741 = vmatprep.subr.mxu0 0.0
  %1742 = vmatpush1.msra.mxu0 0.0
  %1743 = vmatprep.subr.mxu0 0.0
  %1744 = vmatpush1.msra.mxu0 0.0
  %1745 = vmatprep.subr.mxu0 0.0
  %1746 = vmatpush1.msra.mxu0 0.0
  %1747 = vmatprep.subr.mxu0 0.0
  %1748 = vmatpush1.msra.mxu0 0.0
  %1749 = vmatprep.subr.mxu0 0.0
  %1750 = vmatpush1.msra.mxu0 0.0
  %1751 = vmatprep.subr.mxu0 0.0
  %1752 = vmatpush1.msra.mxu0 0.0
  %1753 = vmatprep.subr.mxu0 0.0
  %1754 = vmatpush1.msra.mxu0 0.0
  %1755 = vmatprep.mubr.f32.mxu0 0.0
  %v1756 = vand.u32 %v955, 4294901760
  %1757 = vmatmul.mubr.f32.gmra.mrb[0].mxu0 %v1756
  %v1758 = vpop.f32.mrb[0].mxu0
  %v1759 = vadd.f32 %v1634, %v1758
  %v1760 = vpop.f32.mrb[0].mxu0
  %v1761 = vadd.f32 %v1636, %v1760
  %1762 = vmatprep.mubr.f32.mxu0 0.0
  %v1763 = vand.u32 %v958, 4294901760
  %1764 = vmatmul.mubr.f32.gmra.mrb[0].mxu0 %v1763
  %v1765 = vpop.f32.mrb[0].mxu0
  %v1766 = vadd.f32 %v1641, %v1765
  %v1767 = vpop.f32.mrb[0].mxu0
  %v1768 = vadd.f32 %v1643, %v1767
  %1769 = vmatprep.mubr.f32.mxu0 0.0
  %v1770 = vand.u32 %v961, 4294901760
  %1771 = vmatmul.mubr.f32.gmra.mrb[0].mxu0 %v1770
  %v1772 = vpop.f32.mrb[0].mxu0
  %v1773 = vadd.f32 %v1648, %v1772
  %v1774 = vpop.f32.mrb[0].mxu0
  %v1775 = vadd.f32 %v1650, %v1774
  %1776 = vmatprep.mubr.f32.mxu0 0.0
  %v1777 = vand.u32 %v964, 4294901760
  %1778 = vmatmul.mubr.f32.gmra.mrb[0].mxu0 %v1777
  %v1779 = vpop.f32.mrb[0].mxu0
  %v1780 = vadd.f32 %v1655, %v1779
  %v1781 = vpop.f32.mrb[0].mxu0
  %v1782 = vadd.f32 %v1657, %v1781
  %1783 = vmatprep.mubr.f32.mxu0 0.0
  %v1784 = vand.u32 %v967, 4294901760
  %1785 = vmatmul.mubr.f32.gmra.mrb[0].mxu0 %v1784
  %v1786 = vpop.f32.mrb[0].mxu0
  %v1787 = vadd.f32 %v1662, %v1786
  %v1788 = vpop.f32.mrb[0].mxu0
  %v1789 = vadd.f32 %v1664, %v1788
  %1790 = vmatprep.mubr.f32.mxu0 0.0
  %v1791 = vand.u32 %v970, 4294901760
  %1792 = vmatmul.mubr.f32.gmra.mrb[0].mxu0 %v1791
  %v1793 = vpop.f32.mrb[0].mxu0
  %v1794 = vadd.f32 %v1669, %v1793
  %v1795 = vpop.f32.mrb[0].mxu0
  %v1796 = vadd.f32 %v1671, %v1795
  %1797 = vmatprep.mubr.f32.mxu0 0.0
  %v1798 = vand.u32 %v973, 4294901760
  %1799 = vmatmul.mubr.f32.gmra.mrb[0].mxu0 %v1798
  %v1800 = vpop.f32.mrb[0].mxu0
  %v1801 = vadd.f32 %v1676, %v1800
  %v1802 = vpop.f32.mrb[0].mxu0
  %v1803 = vadd.f32 %v1678, %v1802
  %1804 = vmatprep.mubr.f32.mxu0 0.0
  %v1805 = vand.u32 %v976, 4294901760
  %1806 = vmatmul.mubr.f32.gmra.mrb[0].mxu0 %v1805
  %v1807 = vpop.f32.mrb[0].mxu0
  %v1808 = vadd.f32 %v1683, %v1807
  %v1809 = vpop.f32.mrb[0].mxu0
  %v1810 = vadd.f32 %v1685, %v1809
  %1811 = vdwg.mxu0
  %1812 = vst [vmem:[#allocation2] sm:$0xff] %v1759
  %1813 = vst [vmem:[#allocation2 + $0x8] sm:$0xff] %v1761
  %1814 = vst [vmem:[#allocation2 + $0x10] sm:$0xff] %v1766
  %1815 = vst [vmem:[#allocation2 + $0x18] sm:$0xff] %v1768
  %1816 = vst [vmem:[#allocation2 + $0x20] sm:$0xff] %v1773
  %1817 = vst [vmem:[#allocation2 + $0x28] sm:$0xff] %v1775
  %1818 = vst [vmem:[#allocation2 + $0x30] sm:$0xff] %v1780
  %1819 = vst [vmem:[#allocation2 + $0x38] sm:$0xff] %v1782
  %1820 = vst [vmem:[#allocation2 + $0x40] sm:$0xff] %v1787
  %1821 = vst [vmem:[#allocation2 + $0x48] sm:$0xff] %v1789
  %1822 = vst [vmem:[#allocation2 + $0x50] sm:$0xff] %v1794
  %1823 = vst [vmem:[#allocation2 + $0x58] sm:$0xff] %v1796
  %1824 = vst [vmem:[#allocation2 + $0x60] sm:$0xff] %v1801
  %1825 = vst [vmem:[#allocation2 + $0x68] sm:$0xff] %v1803
  %1826 = vst [vmem:[#allocation2 + $0x70] sm:$0xff] %v1808
  %1827 = vst [vmem:[#allocation2 + $0x78] sm:$0xff] %v1810
  %vm1828 = vcmp.lt.s32.totalorder %v35, 32
  %v1829 = vld [vmem:[#allocation2] sm:$0xff]
  %v1830 = vld [vmem:[#allocation2 + $0x8] sm:$0xff]
  %v1831 = vmul.f32 %v1829, 0.5
  %v1832 = vmul.f32 %v1830, 0.5
  %v1833 = vtanh.pop %v1831
  %v1834 = vtanh.pop %v1832
  %v1835 = vmul.f32 %v1833, 0.5
  %v1836 = vmul.f32 %v1834, 0.5
  %v1837 = vadd.f32 %v1835, 0.5
  %v1838 = vadd.f32 %v1836, 0.5
  %v1839 = vtanh.pop %v1830
  %v1840 = vmul.f32 %v1837, 0.0
  %1842 = vrot.lane.b32.xlu0 %v1839, 64
  %v1843 = vpop.permute.xlu0 %1842
  %v1845 = vmul.f32 %v1837, %v1843
  %1847 = vrot.lane.b32.xlu0 %v1845, 64
  %v1848 = vpop.permute.xlu0 %1847
  %v1850 = vadd.f32 %v1840, %v1848
  %v1851 = vtanh.pop %v1850
  %1853 = vrot.lane.b32.xlu0 %v1851, 64
  %v1854 = vpop.permute.xlu0 %1853
  %v1856 = vmul.f32 %v1838, %v1854
  %v1857 = vsel %vm1828, %v1856, 0.0
  %1859 = vrot.lane.b32.xlu0 %v1850, 64
  %v1860 = vpop.permute.xlu0 %1859
  %v1862 = vsel %vm1828, %v1860, 0.0
  %v1863 = vld [vmem:[%s4] sm:$0xff]
  %v1864 = vld [vmem:[%s4 + $0x8] sm:$0xff]
  %v1865 = vld [vmem:[%s4 + $0x10] sm:$0xff]
  %v1866 = vld [vmem:[%s4 + $0x18] sm:$0xff]
  %v1867 = vld [vmem:[%s4 + $0x20] sm:$0xff]
  %v1868 = vld [vmem:[%s4 + $0x28] sm:$0xff]
  %v1869 = vld [vmem:[%s4 + $0x30] sm:$0xff]
  %v1870 = vld [vmem:[%s4 + $0x38] sm:$0xff]
  %v1871 = vld [vmem:[%s4 + $0x40] sm:$0xff]
  %v1872 = vld [vmem:[%s4 + $0x48] sm:$0xff]
  %v1873 = vld [vmem:[%s4 + $0x50] sm:$0xff]
  %v1874 = vld [vmem:[%s4 + $0x58] sm:$0xff]
  %v1875 = vld [vmem:[%s4 + $0x60] sm:$0xff]
  %v1876 = vld [vmem:[%s4 + $0x68] sm:$0xff]
  %v1877 = vld [vmem:[%s4 + $0x70] sm:$0xff]
  %v1878 = vld [vmem:[%s4 + $0x78] sm:$0xff]
  %v1879 = vld [vmem:[#allocation2 + $0x10] sm:$0xff]
  %v1880 = vld [vmem:[#allocation2 + $0x18] sm:$0xff]
  %vm1881 = vcmask 523264
  %v1883 = vsel %vm1881, %v1857, 0
  %v1885 = vand.u32 %v1864, 4294901760
  %1886 = vmatprep.subr.mxu0 %v1885
  %v1887 = vand.u32 %v1863, 4294901760
  %1888 = vmatpush1.msra.mxu0 %v1887
  %v1889 = vand.u32 %v1866, 4294901760
  %1890 = vmatprep.subr.mxu0 %v1889
  %v1891 = vand.u32 %v1865, 4294901760
  %1892 = vmatpush1.msra.mxu0 %v1891
  %v1893 = vand.u32 %v1868, 4294901760
  %1894 = vmatprep.subr.mxu0 %v1893
  %v1895 = vand.u32 %v1867, 4294901760
  %1896 = vmatpush1.msra.mxu0 %v1895
  %v1897 = vand.u32 %v1870, 4294901760
  %1898 = vmatprep.subr.mxu0 %v1897
  %v1899 = vand.u32 %v1869, 4294901760
  %1900 = vmatpush1.msra.mxu0 %v1899
  %v1901 = vand.u32 %v1872, 4294901760
  %1902 = vmatprep.subr.mxu0 %v1901
  %v1903 = vand.u32 %v1871, 4294901760
  %1904 = vmatpush1.msra.mxu0 %v1903
  %v1905 = vand.u32 %v1874, 4294901760
  %1906 = vmatprep.subr.mxu0 %v1905
  %v1907 = vand.u32 %v1873, 4294901760
  %1908 = vmatpush1.msra.mxu0 %v1907
  %v1909 = vand.u32 %v1876, 4294901760
  %1910 = vmatprep.subr.mxu0 %v1909
  %v1911 = vand.u32 %v1875, 4294901760
  %1912 = vmatpush1.msra.mxu0 %v1911
  %v1913 = vand.u32 %v1878, 4294901760
  %1914 = vmatprep.subr.mxu0 %v1913
  %v1915 = vand.u32 %v1877, 4294901760
  %1916 = vmatpush1.msra.mxu0 %v1915
  %1917 = vmatprep.subr.mxu0 0.0
  %1918 = vmatpush1.msra.mxu0 0.0
  %1919 = vmatprep.subr.mxu0 0.0
  %1920 = vmatpush1.msra.mxu0 0.0
  %1921 = vmatprep.subr.mxu0 0.0
  %1922 = vmatpush1.msra.mxu0 0.0
  %1923 = vmatprep.subr.mxu0 0.0
  %1924 = vmatpush1.msra.mxu0 0.0
  %1925 = vmatprep.subr.mxu0 0.0
  %1926 = vmatpush1.msra.mxu0 0.0
  %1927 = vmatprep.subr.mxu0 0.0
  %1928 = vmatpush1.msra.mxu0 0.0
  %1929 = vmatprep.subr.mxu0 0.0
  %1930 = vmatpush1.msra.mxu0 0.0
  %1931 = vmatprep.subr.mxu0 0.0
  %1932 = vmatpush1.msra.mxu0 0.0
  %1933 = vmatprep.subr.mxu0 0.0
  %1934 = vmatpush1.msra.mxu0 0.0
  %1935 = vmatprep.subr.mxu0 0.0
  %1936 = vmatpush1.msra.mxu0 0.0
  %1937 = vmatprep.subr.mxu0 0.0
  %1938 = vmatpush1.msra.mxu0 0.0
  %1939 = vmatprep.subr.mxu0 0.0
  %1940 = vmatpush1.msra.mxu0 0.0
  %1941 = vmatprep.subr.mxu0 0.0
  %1942 = vmatpush1.msra.mxu0 0.0
  %1943 = vmatprep.subr.mxu0 0.0
  %1944 = vmatpush1.msra.mxu0 0.0
  %1945 = vmatprep.subr.mxu0 0.0
  %1946 = vmatpush1.msra.mxu0 0.0
  %1947 = vmatprep.subr.mxu0 0.0
  %1948 = vmatpush1.msra.mxu0 0.0
  %1949 = vmatprep.subr.mxu0 0.0
  %1950 = vmatpush1.msra.mxu0 0.0
  %1951 = vmatprep.subr.mxu0 0.0
  %1952 = vmatpush1.msra.mxu0 0.0
  %1953 = vmatprep.subr.mxu0 0.0
  %1954 = vmatpush1.msra.mxu0 0.0
  %1955 = vmatprep.subr.mxu0 0.0
  %1956 = vmatpush1.msra.mxu0 0.0
  %1957 = vmatprep.subr.mxu0 0.0
  %1958 = vmatpush1.msra.mxu0 0.0
  %1959 = vmatprep.subr.mxu0 0.0
  %1960 = vmatpush1.msra.mxu0 0.0
  %1961 = vmatprep.subr.mxu0 0.0
  %1962 = vmatpush1.msra.mxu0 0.0
  %1963 = vmatprep.subr.mxu0 0.0
  %1964 = vmatpush1.msra.mxu0 0.0
  %1965 = vmatprep.mubr.f32.mxu0 0.0
  %v1966 = vand.u32 %v1883, 4294901760
  %v1967 = vsub.f32 %v1883, %v1966
  %v1968 = vand.u32 %v1967, 4294901760
  %v1969 = vsub.f32 %v1967, %v1968
  %v1970 = vand.u32 %v1969, 4294901760
  %1971 = vmatmul.mubr.f32.gmra.mrb[0].mxu0 %v1970
  %v1972 = vpop.f32.mrb[0].mxu0
  %v1973 = vadd.f32 %v1879, %v1972
  %v1974 = vpop.f32.mrb[0].mxu0
  %v1975 = vadd.f32 %v1880, %v1974
  %1976 = vdwg.mxu0
  %v1977 = vand.u32 %v1864, 4294901760
  %v1978 = vsub.f32 %v1864, %v1977
  %v1979 = vand.u32 %v1978, 4294901760
  %v1980 = vsub.f32 %v1978, %v1979
  %v1981 = vand.u32 %v1980, 4294901760
  %1982 = vmatprep.subr.mxu0 %v1981
  %v1983 = vand.u32 %v1863, 4294901760
  %v1984 = vsub.f32 %v1863, %v1983
  %v1985 = vand.u32 %v1984, 4294901760
  %v1986 = vsub.f32 %v1984, %v1985
  %v1987 = vand.u32 %v1986, 4294901760
  %1988 = vmatpush1.msra.mxu0 %v1987
  %v1989 = vand.u32 %v1866, 4294901760
  %v1990 = vsub.f32 %v1866, %v1989
  %v1991 = vand.u32 %v1990, 4294901760
  %v1992 = vsub.f32 %v1990, %v1991
  %v1993 = vand.u32 %v1992, 4294901760
  %1994 = vmatprep.subr.mxu0 %v1993
  %v1995 = vand.u32 %v1865, 4294901760
  %v1996 = vsub.f32 %v1865, %v1995
  %v1997 = vand.u32 %v1996, 4294901760
  %v1998 = vsub.f32 %v1996, %v1997
  %v1999 = vand.u32 %v1998, 4294901760
  %2000 = vmatpush1.msra.mxu0 %v1999
  %v2001 = vand.u32 %v1868, 4294901760
  %v2002 = vsub.f32 %v1868, %v2001
  %v2003 = vand.u32 %v2002, 4294901760
  %v2004 = vsub.f32 %v2002, %v2003
  %v2005 = vand.u32 %v2004, 4294901760
  %2006 = vmatprep.subr.mxu0 %v2005
  %v2007 = vand.u32 %v1867, 4294901760
  %v2008 = vsub.f32 %v1867, %v2007
  %v2009 = vand.u32 %v2008, 4294901760
  %v2010 = vsub.f32 %v2008, %v2009
  %v2011 = vand.u32 %v2010, 4294901760
  %2012 = vmatpush1.msra.mxu0 %v2011
  %v2013 = vand.u32 %v1870, 4294901760
  %v2014 = vsub.f32 %v1870, %v2013
  %v2015 = vand.u32 %v2014, 4294901760
  %v2016 = vsub.f32 %v2014, %v2015
  %v2017 = vand.u32 %v2016, 4294901760
  %2018 = vmatprep.subr.mxu0 %v2017
  %v2019 = vand.u32 %v1869, 4294901760
  %v2020 = vsub.f32 %v1869, %v2019
  %v2021 = vand.u32 %v2020, 4294901760
  %v2022 = vsub.f32 %v2020, %v2021
  %v2023 = vand.u32 %v2022, 4294901760
  %2024 = vmatpush1.msra.mxu0 %v2023
  %v2025 = vand.u32 %v1872, 4294901760
  %v2026 = vsub.f32 %v1872, %v2025
  %v2027 = vand.u32 %v2026, 4294901760
  %v2028 = vsub.f32 %v2026, %v2027
  %v2029 = vand.u32 %v2028, 4294901760
  %2030 = vmatprep.subr.mxu0 %v2029
  %v2031 = vand.u32 %v1871, 4294901760
  %v2032 = vsub.f32 %v1871, %v2031
  %v2033 = vand.u32 %v2032, 4294901760
  %v2034 = vsub.f32 %v2032, %v2033
  %v2035 = vand.u32 %v2034, 4294901760
  %2036 = vmatpush1.msra.mxu0 %v2035
  %v2037 = vand.u32 %v1874, 4294901760
  %v2038 = vsub.f32 %v1874, %v2037
  %v2039 = vand.u32 %v2038, 4294901760
  %v2040 = vsub.f32 %v2038, %v2039
  %v2041 = vand.u32 %v2040, 4294901760
  %2042 = vmatprep.subr.mxu0 %v2041
  %v2043 = vand.u32 %v1873, 4294901760
  %v2044 = vsub.f32 %v1873, %v2043
  %v2045 = vand.u32 %v2044, 4294901760
  %v2046 = vsub.f32 %v2044, %v2045
  %v2047 = vand.u32 %v2046, 4294901760
  %2048 = vmatpush1.msra.mxu0 %v2047
  %v2049 = vand.u32 %v1876, 4294901760
  %v2050 = vsub.f32 %v1876, %v2049
  %v2051 = vand.u32 %v2050, 4294901760
  %v2052 = vsub.f32 %v2050, %v2051
  %v2053 = vand.u32 %v2052, 4294901760
  %2054 = vmatprep.subr.mxu0 %v2053
  %v2055 = vand.u32 %v1875, 4294901760
  %v2056 = vsub.f32 %v1875, %v2055
  %v2057 = vand.u32 %v2056, 4294901760
  %v2058 = vsub.f32 %v2056, %v2057
  %v2059 = vand.u32 %v2058, 4294901760
  %2060 = vmatpush1.msra.mxu0 %v2059
  %v2061 = vand.u32 %v1878, 4294901760
  %v2062 = vsub.f32 %v1878, %v2061
  %v2063 = vand.u32 %v2062, 4294901760
  %v2064 = vsub.f32 %v2062, %v2063
  %v2065 = vand.u32 %v2064, 4294901760
  %2066 = vmatprep.subr.mxu0 %v2065
  %v2067 = vand.u32 %v1877, 4294901760
  %v2068 = vsub.f32 %v1877, %v2067
  %v2069 = vand.u32 %v2068, 4294901760
  %v2070 = vsub.f32 %v2068, %v2069
  %v2071 = vand.u32 %v2070, 4294901760
  %2072 = vmatpush1.msra.mxu0 %v2071
  %2073 = vmatprep.subr.mxu0 0.0
  %2074 = vmatpush1.msra.mxu0 0.0
  %2075 = vmatprep.subr.mxu0 0.0
  %2076 = vmatpush1.msra.mxu0 0.0
  %2077 = vmatprep.subr.mxu0 0.0
  %2078 = vmatpush1.msra.mxu0 0.0
  %2079 = vmatprep.subr.mxu0 0.0
  %2080 = vmatpush1.msra.mxu0 0.0
  %2081 = vmatprep.subr.mxu0 0.0
  %2082 = vmatpush1.msra.mxu0 0.0
  %2083 = vmatprep.subr.mxu0 0.0
  %2084 = vmatpush1.msra.mxu0 0.0
  %2085 = vmatprep.subr.mxu0 0.0
  %2086 = vmatpush1.msra.mxu0 0.0
  %2087 = vmatprep.subr.mxu0 0.0
  %2088 = vmatpush1.msra.mxu0 0.0
  %2089 = vmatprep.subr.mxu0 0.0
  %2090 = vmatpush1.msra.mxu0 0.0
  %2091 = vmatprep.subr.mxu0 0.0
  %2092 = vmatpush1.msra.mxu0 0.0
  %2093 = vmatprep.subr.mxu0 0.0
  %2094 = vmatpush1.msra.mxu0 0.0
  %2095 = vmatprep.subr.mxu0 0.0
  %2096 = vmatpush1.msra.mxu0 0.0
  %2097 = vmatprep.subr.mxu0 0.0
  %2098 = vmatpush1.msra.mxu0 0.0
  %2099 = vmatprep.subr.mxu0 0.0
  %2100 = vmatpush1.msra.mxu0 0.0
  %2101 = vmatprep.subr.mxu0 0.0
  %2102 = vmatpush1.msra.mxu0 0.0
  %2103 = vmatprep.subr.mxu0 0.0
  %2104 = vmatpush1.msra.mxu0 0.0
  %2105 = vmatprep.subr.mxu0 0.0
  %2106 = vmatpush1.msra.mxu0 0.0
  %2107 = vmatprep.subr.mxu0 0.0
  %2108 = vmatpush1.msra.mxu0 0.0
  %2109 = vmatprep.subr.mxu0 0.0
  %2110 = vmatpush1.msra.mxu0 0.0
  %2111 = vmatprep.subr.mxu0 0.0
  %2112 = vmatpush1.msra.mxu0 0.0
  %2113 = vmatprep.subr.mxu0 0.0
  %2114 = vmatpush1.msra.mxu0 0.0
  %2115 = vmatprep.subr.mxu0 0.0
  %2116 = vmatpush1.msra.mxu0 0.0
  %2117 = vmatprep.subr.mxu0 0.0
  %2118 = vmatpush1.msra.mxu0 0.0
  %2119 = vmatprep.subr.mxu0 0.0
  %2120 = vmatpush1.msra.mxu0 0.0
  %2121 = vmatprep.mubr.f32.mxu0 0.0
  %v2122 = vand.u32 %v1883, 4294901760
  %2123 = vmatmul.mubr.f32.gmra.mrb[0].mxu0 %v2122
  %v2124 = vpop.f32.mrb[0].mxu0
  %v2125 = vadd.f32 %v1973, %v2124
  %v2126 = vpop.f32.mrb[0].mxu0
  %v2127 = vadd.f32 %v1975, %v2126
  %2128 = vdwg.mxu0
  %v2129 = vand.u32 %v1864, 4294901760
  %v2130 = vsub.f32 %v1864, %v2129
  %2131 = vmatprep.subr.mxu0 %v2130
  %v2132 = vand.u32 %v1863, 4294901760
  %v2133 = vsub.f32 %v1863, %v2132
  %2134 = vmatpush1.msra.mxu0 %v2133
  %v2135 = vand.u32 %v1866, 4294901760
  %v2136 = vsub.f32 %v1866, %v2135
  %2137 = vmatprep.subr.mxu0 %v2136
  %v2138 = vand.u32 %v1865, 4294901760
  %v2139 = vsub.f32 %v1865, %v2138
  %2140 = vmatpush1.msra.mxu0 %v2139
  %v2141 = vand.u32 %v1868, 4294901760
  %v2142 = vsub.f32 %v1868, %v2141
  %2143 = vmatprep.subr.mxu0 %v2142
  %v2144 = vand.u32 %v1867, 4294901760
  %v2145 = vsub.f32 %v1867, %v2144
  %2146 = vmatpush1.msra.mxu0 %v2145
  %v2147 = vand.u32 %v1870, 4294901760
  %v2148 = vsub.f32 %v1870, %v2147
  %2149 = vmatprep.subr.mxu0 %v2148
  %v2150 = vand.u32 %v1869, 4294901760
  %v2151 = vsub.f32 %v1869, %v2150
  %2152 = vmatpush1.msra.mxu0 %v2151
  %v2153 = vand.u32 %v1872, 4294901760
  %v2154 = vsub.f32 %v1872, %v2153
  %2155 = vmatprep.subr.mxu0 %v2154
  %v2156 = vand.u32 %v1871, 4294901760
  %v2157 = vsub.f32 %v1871, %v2156
  %2158 = vmatpush1.msra.mxu0 %v2157
  %v2159 = vand.u32 %v1874, 4294901760
  %v2160 = vsub.f32 %v1874, %v2159
  %2161 = vmatprep.subr.mxu0 %v2160
  %v2162 = vand.u32 %v1873, 4294901760
  %v2163 = vsub.f32 %v1873, %v2162
  %2164 = vmatpush1.msra.mxu0 %v2163
  %v2165 = vand.u32 %v1876, 4294901760
  %v2166 = vsub.f32 %v1876, %v2165
  %2167 = vmatprep.subr.mxu0 %v2166
  %v2168 = vand.u32 %v1875, 4294901760
  %v2169 = vsub.f32 %v1875, %v2168
  %2170 = vmatpush1.msra.mxu0 %v2169
  %v2171 = vand.u32 %v1878, 4294901760
  %v2172 = vsub.f32 %v1878, %v2171
  %2173 = vmatprep.subr.mxu0 %v2172
  %v2174 = vand.u32 %v1877, 4294901760
  %v2175 = vsub.f32 %v1877, %v2174
  %2176 = vmatpush1.msra.mxu0 %v2175
  %2177 = vmatprep.subr.mxu0 0.0
  %2178 = vmatpush1.msra.mxu0 0.0
  %2179 = vmatprep.subr.mxu0 0.0
  %2180 = vmatpush1.msra.mxu0 0.0
  %2181 = vmatprep.subr.mxu0 0.0
  %2182 = vmatpush1.msra.mxu0 0.0
  %2183 = vmatprep.subr.mxu0 0.0
  %2184 = vmatpush1.msra.mxu0 0.0
  %2185 = vmatprep.subr.mxu0 0.0
  %2186 = vmatpush1.msra.mxu0 0.0
  %2187 = vmatprep.subr.mxu0 0.0
  %2188 = vmatpush1.msra.mxu0 0.0
  %2189 = vmatprep.subr.mxu0 0.0
  %2190 = vmatpush1.msra.mxu0 0.0
  %2191 = vmatprep.subr.mxu0 0.0
  %2192 = vmatpush1.msra.mxu0 0.0
  %2193 = vmatprep.subr.mxu0 0.0
  %2194 = vmatpush1.msra.mxu0 0.0
  %2195 = vmatprep.subr.mxu0 0.0
  %2196 = vmatpush1.msra.mxu0 0.0
  %2197 = vmatprep.subr.mxu0 0.0
  %2198 = vmatpush1.msra.mxu0 0.0
  %2199 = vmatprep.subr.mxu0 0.0
  %2200 = vmatpush1.msra.mxu0 0.0
  %2201 = vmatprep.subr.mxu0 0.0
  %2202 = vmatpush1.msra.mxu0 0.0
  %2203 = vmatprep.subr.mxu0 0.0
  %2204 = vmatpush1.msra.mxu0 0.0
  %2205 = vmatprep.subr.mxu0 0.0
  %2206 = vmatpush1.msra.mxu0 0.0
  %2207 = vmatprep.subr.mxu0 0.0
  %2208 = vmatpush1.msra.mxu0 0.0
  %2209 = vmatprep.subr.mxu0 0.0
  %2210 = vmatpush1.msra.mxu0 0.0
  %2211 = vmatprep.subr.mxu0 0.0
  %2212 = vmatpush1.msra.mxu0 0.0
  %2213 = vmatprep.subr.mxu0 0.0
  %2214 = vmatpush1.msra.mxu0 0.0
  %2215 = vmatprep.subr.mxu0 0.0
  %2216 = vmatpush1.msra.mxu0 0.0
  %2217 = vmatprep.subr.mxu0 0.0
  %2218 = vmatpush1.msra.mxu0 0.0
  %2219 = vmatprep.subr.mxu0 0.0
  %2220 = vmatpush1.msra.mxu0 0.0
  %2221 = vmatprep.subr.mxu0 0.0
  %2222 = vmatpush1.msra.mxu0 0.0
  %2223 = vmatprep.subr.mxu0 0.0
  %2224 = vmatpush1.msra.mxu0 0.0
  %2225 = vmatprep.mubr.f32.mxu0 0.0
  %v2226 = vand.u32 %v1883, 4294901760
  %v2227 = vsub.f32 %v1883, %v2226
  %2228 = vmatmul.mubr.f32.gmra.mrb[0].mxu0 %v2227
  %v2229 = vpop.f32.mrb[0].mxu0
  %v2230 = vadd.f32 %v2125, %v2229
  %v2231 = vpop.f32.mrb[0].mxu0
  %v2232 = vadd.f32 %v2127, %v2231
  %2233 = vdwg.mxu0
  %v2234 = vand.u32 %v1864, 4294901760
  %2235 = vmatprep.subr.mxu0 %v2234
  %v2236 = vand.u32 %v1863, 4294901760
  %2237 = vmatpush1.msra.mxu0 %v2236
  %v2238 = vand.u32 %v1866, 4294901760
  %2239 = vmatprep.subr.mxu0 %v2238
  %v2240 = vand.u32 %v1865, 4294901760
  %2241 = vmatpush1.msra.mxu0 %v2240
  %v2242 = vand.u32 %v1868, 4294901760
  %2243 = vmatprep.subr.mxu0 %v2242
  %v2244 = vand.u32 %v1867, 4294901760
  %2245 = vmatpush1.msra.mxu0 %v2244
  %v2246 = vand.u32 %v1870, 4294901760
  %2247 = vmatprep.subr.mxu0 %v2246
  %v2248 = vand.u32 %v1869, 4294901760
  %2249 = vmatpush1.msra.mxu0 %v2248
  %v2250 = vand.u32 %v1872, 4294901760
  %2251 = vmatprep.subr.mxu0 %v2250
  %v2252 = vand.u32 %v1871, 4294901760
  %2253 = vmatpush1.msra.mxu0 %v2252
  %v2254 = vand.u32 %v1874, 4294901760
  %2255 = vmatprep.subr.mxu0 %v2254
  %v2256 = vand.u32 %v1873, 4294901760
  %2257 = vmatpush1.msra.mxu0 %v2256
  %v2258 = vand.u32 %v1876, 4294901760
  %2259 = vmatprep.subr.mxu0 %v2258
  %v2260 = vand.u32 %v1875, 4294901760
  %2261 = vmatpush1.msra.mxu0 %v2260
  %v2262 = vand.u32 %v1878, 4294901760
  %2263 = vmatprep.subr.mxu0 %v2262
  %v2264 = vand.u32 %v1877, 4294901760
  %2265 = vmatpush1.msra.mxu0 %v2264
  %2266 = vmatprep.subr.mxu0 0.0
  %2267 = vmatpush1.msra.mxu0 0.0
  %2268 = vmatprep.subr.mxu0 0.0
  %2269 = vmatpush1.msra.mxu0 0.0
  %2270 = vmatprep.subr.mxu0 0.0
  %2271 = vmatpush1.msra.mxu0 0.0
  %2272 = vmatprep.subr.mxu0 0.0
  %2273 = vmatpush1.msra.mxu0 0.0
  %2274 = vmatprep.subr.mxu0 0.0
  %2275 = vmatpush1.msra.mxu0 0.0
  %2276 = vmatprep.subr.mxu0 0.0
  %2277 = vmatpush1.msra.mxu0 0.0
  %2278 = vmatprep.subr.mxu0 0.0
  %2279 = vmatpush1.msra.mxu0 0.0
  %2280 = vmatprep.subr.mxu0 0.0
  %2281 = vmatpush1.msra.mxu0 0.0
  %2282 = vmatprep.subr.mxu0 0.0
  %2283 = vmatpush1.msra.mxu0 0.0
  %2284 = vmatprep.subr.mxu0 0.0
  %2285 = vmatpush1.msra.mxu0 0.0
  %2286 = vmatprep.subr.mxu0 0.0
  %2287 = vmatpush1.msra.mxu0 0.0
  %2288 = vmatprep.subr.mxu0 0.0
  %2289 = vmatpush1.msra.mxu0 0.0
  %2290 = vmatprep.subr.mxu0 0.0
  %2291 = vmatpush1.msra.mxu0 0.0
  %2292 = vmatprep.subr.mxu0 0.0
  %2293 = vmatpush1.msra.mxu0 0.0
  %2294 = vmatprep.subr.mxu0 0.0
  %2295 = vmatpush1.msra.mxu0 0.0
  %2296 = vmatprep.subr.mxu0 0.0
  %2297 = vmatpush1.msra.mxu0 0.0
  %2298 = vmatprep.subr.mxu0 0.0
  %2299 = vmatpush1.msra.mxu0 0.0
  %2300 = vmatprep.subr.mxu0 0.0
  %2301 = vmatpush1.msra.mxu0 0.0
  %2302 = vmatprep.subr.mxu0 0.0
  %2303 = vmatpush1.msra.mxu0 0.0
  %2304 = vmatprep.subr.mxu0 0.0
  %2305 = vmatpush1.msra.mxu0 0.0
  %2306 = vmatprep.subr.mxu0 0.0
  %2307 = vmatpush1.msra.mxu0 0.0
  %2308 = vmatprep.subr.mxu0 0.0
  %2309 = vmatpush1.msra.mxu0 0.0
  %2310 = vmatprep.subr.mxu0 0.0
  %2311 = vmatpush1.msra.mxu0 0.0
  %2312 = vmatprep.subr.mxu0 0.0
  %2313 = vmatpush1.msra.mxu0 0.0
  %2314 = vmatprep.mubr.f32.mxu0 0.0
  %v2315 = vand.u32 %v1883, 4294901760
  %v2316 = vsub.f32 %v1883, %v2315
  %v2317 = vand.u32 %v2316, 4294901760
  %2318 = vmatmul.mubr.f32.gmra.mrb[0].mxu0 %v2317
  %v2319 = vpop.f32.mrb[0].mxu0
  %v2320 = vadd.f32 %v2230, %v2319
  %v2321 = vpop.f32.mrb[0].mxu0
  %v2322 = vadd.f32 %v2232, %v2321
  %2323 = vdwg.mxu0
  %v2324 = vand.u32 %v1864, 4294901760
  %v2325 = vsub.f32 %v1864, %v2324
  %v2326 = vand.u32 %v2325, 4294901760
  %2327 = vmatprep.subr.mxu0 %v2326
  %v2328 = vand.u32 %v1863, 4294901760
  %v2329 = vsub.f32 %v1863, %v2328
  %v2330 = vand.u32 %v2329, 4294901760
  %2331 = vmatpush1.msra.mxu0 %v2330
  %v2332 = vand.u32 %v1866, 4294901760
  %v2333 = vsub.f32 %v1866, %v2332
  %v2334 = vand.u32 %v2333, 4294901760
  %2335 = vmatprep.subr.mxu0 %v2334
  %v2336 = vand.u32 %v1865, 4294901760
  %v2337 = vsub.f32 %v1865, %v2336
  %v2338 = vand.u32 %v2337, 4294901760
  %2339 = vmatpush1.msra.mxu0 %v2338
  %v2340 = vand.u32 %v1868, 4294901760
  %v2341 = vsub.f32 %v1868, %v2340
  %v2342 = vand.u32 %v2341, 4294901760
  %2343 = vmatprep.subr.mxu0 %v2342
  %v2344 = vand.u32 %v1867, 4294901760
  %v2345 = vsub.f32 %v1867, %v2344
  %v2346 = vand.u32 %v2345, 4294901760
  %2347 = vmatpush1.msra.mxu0 %v2346
  %v2348 = vand.u32 %v1870, 4294901760
  %v2349 = vsub.f32 %v1870, %v2348
  %v2350 = vand.u32 %v2349, 4294901760
  %2351 = vmatprep.subr.mxu0 %v2350
  %v2352 = vand.u32 %v1869, 4294901760
  %v2353 = vsub.f32 %v1869, %v2352
  %v2354 = vand.u32 %v2353, 4294901760
  %2355 = vmatpush1.msra.mxu0 %v2354
  %v2356 = vand.u32 %v1872, 4294901760
  %v2357 = vsub.f32 %v1872, %v2356
  %v2358 = vand.u32 %v2357, 4294901760
  %2359 = vmatprep.subr.mxu0 %v2358
  %v2360 = vand.u32 %v1871, 4294901760
  %v2361 = vsub.f32 %v1871, %v2360
  %v2362 = vand.u32 %v2361, 4294901760
  %2363 = vmatpush1.msra.mxu0 %v2362
  %v2364 = vand.u32 %v1874, 4294901760
  %v2365 = vsub.f32 %v1874, %v2364
  %v2366 = vand.u32 %v2365, 4294901760
  %2367 = vmatprep.subr.mxu0 %v2366
  %v2368 = vand.u32 %v1873, 4294901760
  %v2369 = vsub.f32 %v1873, %v2368
  %v2370 = vand.u32 %v2369, 4294901760
  %2371 = vmatpush1.msra.mxu0 %v2370
  %v2372 = vand.u32 %v1876, 4294901760
  %v2373 = vsub.f32 %v1876, %v2372
  %v2374 = vand.u32 %v2373, 4294901760
  %2375 = vmatprep.subr.mxu0 %v2374
  %v2376 = vand.u32 %v1875, 4294901760
  %v2377 = vsub.f32 %v1875, %v2376
  %v2378 = vand.u32 %v2377, 4294901760
  %2379 = vmatpush1.msra.mxu0 %v2378
  %v2380 = vand.u32 %v1878, 4294901760
  %v2381 = vsub.f32 %v1878, %v2380
  %v2382 = vand.u32 %v2381, 4294901760
  %2383 = vmatprep.subr.mxu0 %v2382
  %v2384 = vand.u32 %v1877, 4294901760
  %v2385 = vsub.f32 %v1877, %v2384
  %v2386 = vand.u32 %v2385, 4294901760
  %2387 = vmatpush1.msra.mxu0 %v2386
  %2388 = vmatprep.subr.mxu0 0.0
  %2389 = vmatpush1.msra.mxu0 0.0
  %2390 = vmatprep.subr.mxu0 0.0
  %2391 = vmatpush1.msra.mxu0 0.0
  %2392 = vmatprep.subr.mxu0 0.0
  %2393 = vmatpush1.msra.mxu0 0.0
  %2394 = vmatprep.subr.mxu0 0.0
  %2395 = vmatpush1.msra.mxu0 0.0
  %2396 = vmatprep.subr.mxu0 0.0
  %2397 = vmatpush1.msra.mxu0 0.0
  %2398 = vmatprep.subr.mxu0 0.0
  %2399 = vmatpush1.msra.mxu0 0.0
  %2400 = vmatprep.subr.mxu0 0.0
  %2401 = vmatpush1.msra.mxu0 0.0
  %2402 = vmatprep.subr.mxu0 0.0
  %2403 = vmatpush1.msra.mxu0 0.0
  %2404 = vmatprep.subr.mxu0 0.0
  %2405 = vmatpush1.msra.mxu0 0.0
  %2406 = vmatprep.subr.mxu0 0.0
  %2407 = vmatpush1.msra.mxu0 0.0
  %2408 = vmatprep.subr.mxu0 0.0
  %2409 = vmatpush1.msra.mxu0 0.0
  %2410 = vmatprep.subr.mxu0 0.0
  %2411 = vmatpush1.msra.mxu0 0.0
  %2412 = vmatprep.subr.mxu0 0.0
  %2413 = vmatpush1.msra.mxu0 0.0
  %2414 = vmatprep.subr.mxu0 0.0
  %2415 = vmatpush1.msra.mxu0 0.0
  %2416 = vmatprep.subr.mxu0 0.0
  %2417 = vmatpush1.msra.mxu0 0.0
  %2418 = vmatprep.subr.mxu0 0.0
  %2419 = vmatpush1.msra.mxu0 0.0
  %2420 = vmatprep.subr.mxu0 0.0
  %2421 = vmatpush1.msra.mxu0 0.0
  %2422 = vmatprep.subr.mxu0 0.0
  %2423 = vmatpush1.msra.mxu0 0.0
  %2424 = vmatprep.subr.mxu0 0.0
  %2425 = vmatpush1.msra.mxu0 0.0
  %2426 = vmatprep.subr.mxu0 0.0
  %2427 = vmatpush1.msra.mxu0 0.0
  %2428 = vmatprep.subr.mxu0 0.0
  %2429 = vmatpush1.msra.mxu0 0.0
  %2430 = vmatprep.subr.mxu0 0.0
  %2431 = vmatpush1.msra.mxu0 0.0
  %2432 = vmatprep.subr.mxu0 0.0
  %2433 = vmatpush1.msra.mxu0 0.0
  %2434 = vmatprep.subr.mxu0 0.0
  %2435 = vmatpush1.msra.mxu0 0.0
  %2436 = vmatprep.mubr.f32.mxu0 0.0
  %v2437 = vand.u32 %v1883, 4294901760
  %2438 = vmatmul.mubr.f32.gmra.mrb[0].mxu0 %v2437
  %v2439 = vpop.f32.mrb[0].mxu0
  %v2440 = vadd.f32 %v2320, %v2439
  %v2441 = vpop.f32.mrb[0].mxu0
  %v2442 = vadd.f32 %v2322, %v2441
  %2443 = vdwg.mxu0
  %v2444 = vand.u32 %v1864, 4294901760
  %2445 = vmatprep.subr.mxu0 %v2444
  %v2446 = vand.u32 %v1863, 4294901760
  %2447 = vmatpush1.msra.mxu0 %v2446
  %v2448 = vand.u32 %v1866, 4294901760
  %2449 = vmatprep.subr.mxu0 %v2448
  %v2450 = vand.u32 %v1865, 4294901760
  %2451 = vmatpush1.msra.mxu0 %v2450
  %v2452 = vand.u32 %v1868, 4294901760
  %2453 = vmatprep.subr.mxu0 %v2452
  %v2454 = vand.u32 %v1867, 4294901760
  %2455 = vmatpush1.msra.mxu0 %v2454
  %v2456 = vand.u32 %v1870, 4294901760
  %2457 = vmatprep.subr.mxu0 %v2456
  %v2458 = vand.u32 %v1869, 4294901760
  %2459 = vmatpush1.msra.mxu0 %v2458
  %v2460 = vand.u32 %v1872, 4294901760
  %2461 = vmatprep.subr.mxu0 %v2460
  %v2462 = vand.u32 %v1871, 4294901760
  %2463 = vmatpush1.msra.mxu0 %v2462
  %v2464 = vand.u32 %v1874, 4294901760
  %2465 = vmatprep.subr.mxu0 %v2464
  %v2466 = vand.u32 %v1873, 4294901760
  %2467 = vmatpush1.msra.mxu0 %v2466
  %v2468 = vand.u32 %v1876, 4294901760
  %2469 = vmatprep.subr.mxu0 %v2468
  %v2470 = vand.u32 %v1875, 4294901760
  %2471 = vmatpush1.msra.mxu0 %v2470
  %v2472 = vand.u32 %v1878, 4294901760
  %2473 = vmatprep.subr.mxu0 %v2472
  %v2474 = vand.u32 %v1877, 4294901760
  %2475 = vmatpush1.msra.mxu0 %v2474
  %2476 = vmatprep.subr.mxu0 0.0
  %2477 = vmatpush1.msra.mxu0 0.0
  %2478 = vmatprep.subr.mxu0 0.0
  %2479 = vmatpush1.msra.mxu0 0.0
  %2480 = vmatprep.subr.mxu0 0.0
  %2481 = vmatpush1.msra.mxu0 0.0
  %2482 = vmatprep.subr.mxu0 0.0
  %2483 = vmatpush1.msra.mxu0 0.0
  %2484 = vmatprep.subr.mxu0 0.0
  %2485 = vmatpush1.msra.mxu0 0.0
  %2486 = vmatprep.subr.mxu0 0.0
  %2487 = vmatpush1.msra.mxu0 0.0
  %2488 = vmatprep.subr.mxu0 0.0
  %2489 = vmatpush1.msra.mxu0 0.0
  %2490 = vmatprep.subr.mxu0 0.0
  %2491 = vmatpush1.msra.mxu0 0.0
  %2492 = vmatprep.subr.mxu0 0.0
  %2493 = vmatpush1.msra.mxu0 0.0
  %2494 = vmatprep.subr.mxu0 0.0
  %2495 = vmatpush1.msra.mxu0 0.0
  %2496 = vmatprep.subr.mxu0 0.0
  %2497 = vmatpush1.msra.mxu0 0.0
  %2498 = vmatprep.subr.mxu0 0.0
  %2499 = vmatpush1.msra.mxu0 0.0
  %2500 = vmatprep.subr.mxu0 0.0
  %2501 = vmatpush1.msra.mxu0 0.0
  %2502 = vmatprep.subr.mxu0 0.0
  %2503 = vmatpush1.msra.mxu0 0.0
  %2504 = vmatprep.subr.mxu0 0.0
  %2505 = vmatpush1.msra.mxu0 0.0
  %2506 = vmatprep.subr.mxu0 0.0
  %2507 = vmatpush1.msra.mxu0 0.0
  %2508 = vmatprep.subr.mxu0 0.0
  %2509 = vmatpush1.msra.mxu0 0.0
  %2510 = vmatprep.subr.mxu0 0.0
  %2511 = vmatpush1.msra.mxu0 0.0
  %2512 = vmatprep.subr.mxu0 0.0
  %2513 = vmatpush1.msra.mxu0 0.0
  %2514 = vmatprep.subr.mxu0 0.0
  %2515 = vmatpush1.msra.mxu0 0.0
  %2516 = vmatprep.subr.mxu0 0.0
  %2517 = vmatpush1.msra.mxu0 0.0
  %2518 = vmatprep.subr.mxu0 0.0
  %2519 = vmatpush1.msra.mxu0 0.0
  %2520 = vmatprep.subr.mxu0 0.0
  %2521 = vmatpush1.msra.mxu0 0.0
  %2522 = vmatprep.subr.mxu0 0.0
  %2523 = vmatpush1.msra.mxu0 0.0
  %2524 = vmatprep.mubr.f32.mxu0 0.0
  %v2525 = vand.u32 %v1883, 4294901760
  %2526 = vmatmul.mubr.f32.gmra.mrb[0].mxu0 %v2525
  %v2527 = vpop.f32.mrb[0].mxu0
  %v2528 = vadd.f32 %v2440, %v2527
  %v2529 = vpop.f32.mrb[0].mxu0
  %v2530 = vadd.f32 %v2442, %v2529
  %2531 = vdwg.mxu0
  %v2532 = vmul.f32 %v2528, 0.5
  %v2533 = vmul.f32 %v2530, 0.5
  %v2534 = vtanh.pop %v2532
  %v2535 = vtanh.pop %v2533
  %v2536 = vmul.f32 %v2534, 0.5
  %v2537 = vmul.f32 %v2535, 0.5
  %v2538 = vadd.f32 %v2536, 0.5
  %v2539 = vadd.f32 %v2537, 0.5
  %v2540 = vtanh.pop %v2530
  %2542 = vrot.lane.b32.xlu0 %v1862, 64
  %v2543 = vpop.permute.xlu0 %2542
  %v2545 = vmul.f32 %v2538, %v2543
  %2547 = vrot.lane.b32.xlu0 %v2540, 64
  %v2548 = vpop.permute.xlu0 %2547
  %v2550 = vmul.f32 %v2538, %v2548
  %2552 = vrot.lane.b32.xlu0 %v2550, 64
  %v2553 = vpop.permute.xlu0 %2552
  %v2555 = vadd.f32 %v2545, %v2553
  %v2556 = vtanh.pop %v2555
  %2558 = vrot.lane.b32.xlu0 %v2556, 64
  %v2559 = vpop.permute.xlu0 %2558
  %v2561 = vmul.f32 %v2539, %v2559
  %v2562 = vld [vmem:[#allocation2 + $0x20] sm:$0xff]
  %v2563 = vld [vmem:[#allocation2 + $0x28] sm:$0xff]
  %v2565 = vsel %vm1881, %v2561, 0
  %v2567 = vand.u32 %v1864, 4294901760
  %2568 = vmatprep.subr.mxu0 %v2567
  %v2569 = vand.u32 %v1863, 4294901760
  %2570 = vmatpush1.msra.mxu0 %v2569
  %v2571 = vand.u32 %v1866, 4294901760
  %2572 = vmatprep.subr.mxu0 %v2571
  %v2573 = vand.u32 %v1865, 4294901760
  %2574 = vmatpush1.msra.mxu0 %v2573
  %v2575 = vand.u32 %v1868, 4294901760
  %2576 = vmatprep.subr.mxu0 %v2575
  %v2577 = vand.u32 %v1867, 4294901760
  %2578 = vmatpush1.msra.mxu0 %v2577
  %v2579 = vand.u32 %v1870, 4294901760
  %2580 = vmatprep.subr.mxu0 %v2579
  %v2581 = vand.u32 %v1869, 4294901760
  %2582 = vmatpush1.msra.mxu0 %v2581
  %v2583 = vand.u32 %v1872, 4294901760
  %2584 = vmatprep.subr.mxu0 %v2583
  %v2585 = vand.u32 %v1871, 4294901760
  %2586 = vmatpush1.msra.mxu0 %v2585
  %v2587 = vand.u32 %v1874, 4294901760
  %2588 = vmatprep.subr.mxu0 %v2587
  %v2589 = vand.u32 %v1873, 4294901760
  %2590 = vmatpush1.msra.mxu0 %v2589
  %v2591 = vand.u32 %v1876, 4294901760
  %2592 = vmatprep.subr.mxu0 %v2591
  %v2593 = vand.u32 %v1875, 4294901760
  %2594 = vmatpush1.msra.mxu0 %v2593
  %v2595 = vand.u32 %v1878, 4294901760
  %2596 = vmatprep.subr.mxu0 %v2595
  %v2597 = vand.u32 %v1877, 4294901760
  %2598 = vmatpush1.msra.mxu0 %v2597
  %2599 = vmatprep.subr.mxu0 0.0
  %2600 = vmatpush1.msra.mxu0 0.0
  %2601 = vmatprep.subr.mxu0 0.0
  %2602 = vmatpush1.msra.mxu0 0.0
  %2603 = vmatprep.subr.mxu0 0.0
  %2604 = vmatpush1.msra.mxu0 0.0
  %2605 = vmatprep.subr.mxu0 0.0
  %2606 = vmatpush1.msra.mxu0 0.0
  %2607 = vmatprep.subr.mxu0 0.0
  %2608 = vmatpush1.msra.mxu0 0.0
  %2609 = vmatprep.subr.mxu0 0.0
  %2610 = vmatpush1.msra.mxu0 0.0
  %2611 = vmatprep.subr.mxu0 0.0
  %2612 = vmatpush1.msra.mxu0 0.0
  %2613 = vmatprep.subr.mxu0 0.0
  %2614 = vmatpush1.msra.mxu0 0.0
  %2615 = vmatprep.subr.mxu0 0.0
  %2616 = vmatpush1.msra.mxu0 0.0
  %2617 = vmatprep.subr.mxu0 0.0
  %2618 = vmatpush1.msra.mxu0 0.0
  %2619 = vmatprep.subr.mxu0 0.0
  %2620 = vmatpush1.msra.mxu0 0.0
  %2621 = vmatprep.subr.mxu0 0.0
  %2622 = vmatpush1.msra.mxu0 0.0
  %2623 = vmatprep.subr.mxu0 0.0
  %2624 = vmatpush1.msra.mxu0 0.0
  %2625 = vmatprep.subr.mxu0 0.0
  %2626 = vmatpush1.msra.mxu0 0.0
  %2627 = vmatprep.subr.mxu0 0.0
  %2628 = vmatpush1.msra.mxu0 0.0
  %2629 = vmatprep.subr.mxu0 0.0
  %2630 = vmatpush1.msra.mxu0 0.0
  %2631 = vmatprep.subr.mxu0 0.0
  %2632 = vmatpush1.msra.mxu0 0.0
  %2633 = vmatprep.subr.mxu0 0.0
  %2634 = vmatpush1.msra.mxu0 0.0
  %2635 = vmatprep.subr.mxu0 0.0
  %2636 = vmatpush1.msra.mxu0 0.0
  %2637 = vmatprep.subr.mxu0 0.0
  %2638 = vmatpush1.msra.mxu0 0.0
  %2639 = vmatprep.subr.mxu0 0.0
  %2640 = vmatpush1.msra.mxu0 0.0
  %2641 = vmatprep.subr.mxu0 0.0
  %2642 = vmatpush1.msra.mxu0 0.0
  %2643 = vmatprep.subr.mxu0 0.0
  %2644 = vmatpush1.msra.mxu0 0.0
  %2645 = vmatprep.subr.mxu0 0.0
  %2646 = vmatpush1.msra.mxu0 0.0
  %2647 = vmatprep.mubr.f32.mxu0 0.0
  %v2648 = vand.u32 %v2565, 4294901760
  %v2649 = vsub.f32 %v2565, %v2648
  %v2650 = vand.u32 %v2649, 4294901760
  %v2651 = vsub.f32 %v2649, %v2650
  %v2652 = vand.u32 %v2651, 4294901760
  %2653 = vmatmul.mubr.f32.gmra.mrb[0].mxu0 %v2652
  %v2654 = vpop.f32.mrb[0].mxu0
  %v2655 = vadd.f32 %v2562, %v2654
  %v2656 = vpop.f32.mrb[0].mxu0
  %v2657 = vadd.f32 %v2563, %v2656
  %2658 = vdwg.mxu0
  %v2659 = vand.u32 %v1864, 4294901760
  %v2660 = vsub.f32 %v1864, %v2659
  %v2661 = vand.u32 %v2660, 4294901760
  %v2662 = vsub.f32 %v2660, %v2661
  %v2663 = vand.u32 %v2662, 4294901760
  %2664 = vmatprep.subr.mxu0 %v2663
  %v2665 = vand.u32 %v1863, 4294901760
  %v2666 = vsub.f32 %v1863, %v2665
  %v2667 = vand.u32 %v2666, 4294901760
  %v2668 = vsub.f32 %v2666, %v2667
  %v2669 = vand.u32 %v2668, 4294901760
  %2670 = vmatpush1.msra.mxu0 %v2669
  %v2671 = vand.u32 %v1866, 4294901760
  %v2672 = vsub.f32 %v1866, %v2671
  %v2673 = vand.u32 %v2672, 4294901760
  %v2674 = vsub.f32 %v2672, %v2673
  %v2675 = vand.u32 %v2674, 4294901760
  %2676 = vmatprep.subr.mxu0 %v2675
  %v2677 = vand.u32 %v1865, 4294901760
  %v2678 = vsub.f32 %v1865, %v2677
  %v2679 = vand.u32 %v2678, 4294901760
  %v2680 = vsub.f32 %v2678, %v2679
  %v2681 = vand.u32 %v2680, 4294901760
  %2682 = vmatpush1.msra.mxu0 %v2681
  %v2683 = vand.u32 %v1868, 4294901760
  %v2684 = vsub.f32 %v1868, %v2683
  %v2685 = vand.u32 %v2684, 4294901760
  %v2686 = vsub.f32 %v2684, %v2685
  %v2687 = vand.u32 %v2686, 4294901760
  %2688 = vmatprep.subr.mxu0 %v2687
  %v2689 = vand.u32 %v1867, 4294901760
  %v2690 = vsub.f32 %v1867, %v2689
  %v2691 = vand.u32 %v2690, 4294901760
  %v2692 = vsub.f32 %v2690, %v2691
  %v2693 = vand.u32 %v2692, 4294901760
  %2694 = vmatpush1.msra.mxu0 %v2693
  %v2695 = vand.u32 %v1870, 4294901760
  %v2696 = vsub.f32 %v1870, %v2695
  %v2697 = vand.u32 %v2696, 4294901760
  %v2698 = vsub.f32 %v2696, %v2697
  %v2699 = vand.u32 %v2698, 4294901760
  %2700 = vmatprep.subr.mxu0 %v2699
  %v2701 = vand.u32 %v1869, 4294901760
  %v2702 = vsub.f32 %v1869, %v2701
  %v2703 = vand.u32 %v2702, 4294901760
  %v2704 = vsub.f32 %v2702, %v2703
  %v2705 = vand.u32 %v2704, 4294901760
  %2706 = vmatpush1.msra.mxu0 %v2705
  %v2707 = vand.u32 %v1872, 4294901760
  %v2708 = vsub.f32 %v1872, %v2707
  %v2709 = vand.u32 %v2708, 4294901760
  %v2710 = vsub.f32 %v2708, %v2709
  %v2711 = vand.u32 %v2710, 4294901760
  %2712 = vmatprep.subr.mxu0 %v2711
  %v2713 = vand.u32 %v1871, 4294901760
  %v2714 = vsub.f32 %v1871, %v2713
  %v2715 = vand.u32 %v2714, 4294901760
  %v2716 = vsub.f32 %v2714, %v2715
  %v2717 = vand.u32 %v2716, 4294901760
  %2718 = vmatpush1.msra.mxu0 %v2717
  %v2719 = vand.u32 %v1874, 4294901760
  %v2720 = vsub.f32 %v1874, %v2719
  %v2721 = vand.u32 %v2720, 4294901760
  %v2722 = vsub.f32 %v2720, %v2721
  %v2723 = vand.u32 %v2722, 4294901760
  %2724 = vmatprep.subr.mxu0 %v2723
  %v2725 = vand.u32 %v1873, 4294901760
  %v2726 = vsub.f32 %v1873, %v2725
  %v2727 = vand.u32 %v2726, 4294901760
  %v2728 = vsub.f32 %v2726, %v2727
  %v2729 = vand.u32 %v2728, 4294901760
  %2730 = vmatpush1.msra.mxu0 %v2729
  %v2731 = vand.u32 %v1876, 4294901760
  %v2732 = vsub.f32 %v1876, %v2731
  %v2733 = vand.u32 %v2732, 4294901760
  %v2734 = vsub.f32 %v2732, %v2733
  %v2735 = vand.u32 %v2734, 4294901760
  %2736 = vmatprep.subr.mxu0 %v2735
  %v2737 = vand.u32 %v1875, 4294901760
  %v2738 = vsub.f32 %v1875, %v2737
  %v2739 = vand.u32 %v2738, 4294901760
  %v2740 = vsub.f32 %v2738, %v2739
  %v2741 = vand.u32 %v2740, 4294901760
  %2742 = vmatpush1.msra.mxu0 %v2741
  %v2743 = vand.u32 %v1878, 4294901760
  %v2744 = vsub.f32 %v1878, %v2743
  %v2745 = vand.u32 %v2744, 4294901760
  %v2746 = vsub.f32 %v2744, %v2745
  %v2747 = vand.u32 %v2746, 4294901760
  %2748 = vmatprep.subr.mxu0 %v2747
  %v2749 = vand.u32 %v1877, 4294901760
  %v2750 = vsub.f32 %v1877, %v2749
  %v2751 = vand.u32 %v2750, 4294901760
  %v2752 = vsub.f32 %v2750, %v2751
  %v2753 = vand.u32 %v2752, 4294901760
  %2754 = vmatpush1.msra.mxu0 %v2753
  %2755 = vmatprep.subr.mxu0 0.0
  %2756 = vmatpush1.msra.mxu0 0.0
  %2757 = vmatprep.subr.mxu0 0.0
  %2758 = vmatpush1.msra.mxu0 0.0
  %2759 = vmatprep.subr.mxu0 0.0
  %2760 = vmatpush1.msra.mxu0 0.0
  %2761 = vmatprep.subr.mxu0 0.0
  %2762 = vmatpush1.msra.mxu0 0.0
  %2763 = vmatprep.subr.mxu0 0.0
  %2764 = vmatpush1.msra.mxu0 0.0
  %2765 = vmatprep.subr.mxu0 0.0
  %2766 = vmatpush1.msra.mxu0 0.0
  %2767 = vmatprep.subr.mxu0 0.0
  %2768 = vmatpush1.msra.mxu0 0.0
  %2769 = vmatprep.subr.mxu0 0.0
  %2770 = vmatpush1.msra.mxu0 0.0
  %2771 = vmatprep.subr.mxu0 0.0
  %2772 = vmatpush1.msra.mxu0 0.0
  %2773 = vmatprep.subr.mxu0 0.0
  %2774 = vmatpush1.msra.mxu0 0.0
  %2775 = vmatprep.subr.mxu0 0.0
  %2776 = vmatpush1.msra.mxu0 0.0
  %2777 = vmatprep.subr.mxu0 0.0
  %2778 = vmatpush1.msra.mxu0 0.0
  %2779 = vmatprep.subr.mxu0 0.0
  %2780 = vmatpush1.msra.mxu0 0.0
  %2781 = vmatprep.subr.mxu0 0.0
  %2782 = vmatpush1.msra.mxu0 0.0
  %2783 = vmatprep.subr.mxu0 0.0
  %2784 = vmatpush1.msra.mxu0 0.0
  %2785 = vmatprep.subr.mxu0 0.0
  %2786 = vmatpush1.msra.mxu0 0.0
  %2787 = vmatprep.subr.mxu0 0.0
  %2788 = vmatpush1.msra.mxu0 0.0
  %2789 = vmatprep.subr.mxu0 0.0
  %2790 = vmatpush1.msra.mxu0 0.0
  %2791 = vmatprep.subr.mxu0 0.0
  %2792 = vmatpush1.msra.mxu0 0.0
  %2793 = vmatprep.subr.mxu0 0.0
  %2794 = vmatpush1.msra.mxu0 0.0
  %2795 = vmatprep.subr.mxu0 0.0
  %2796 = vmatpush1.msra.mxu0 0.0
  %2797 = vmatprep.subr.mxu0 0.0
  %2798 = vmatpush1.msra.mxu0 0.0
  %2799 = vmatprep.subr.mxu0 0.0
  %2800 = vmatpush1.msra.mxu0 0.0
  %2801 = vmatprep.subr.mxu0 0.0
  %2802 = vmatpush1.msra.mxu0 0.0
  %2803 = vmatprep.mubr.f32.mxu0 0.0
  %v2804 = vand.u32 %v2565, 4294901760
  %2805 = vmatmul.mubr.f32.gmra.mrb[0].mxu0 %v2804
  %v2806 = vpop.f32.mrb[0].mxu0
  %v2807 = vadd.f32 %v2655, %v2806
  %v2808 = vpop.f32.mrb[0].mxu0
  %v2809 = vadd.f32 %v2657, %v2808
  %2810 = vdwg.mxu0
  %v2811 = vand.u32 %v1864, 4294901760
  %v2812 = vsub.f32 %v1864, %v2811
  %2813 = vmatprep.subr.mxu0 %v2812
  %v2814 = vand.u32 %v1863, 4294901760
  %v2815 = vsub.f32 %v1863, %v2814
  %2816 = vmatpush1.msra.mxu0 %v2815
  %v2817 = vand.u32 %v1866, 4294901760
  %v2818 = vsub.f32 %v1866, %v2817
  %2819 = vmatprep.subr.mxu0 %v2818
  %v2820 = vand.u32 %v1865, 4294901760
  %v2821 = vsub.f32 %v1865, %v2820
  %2822 = vmatpush1.msra.mxu0 %v2821
  %v2823 = vand.u32 %v1868, 4294901760
  %v2824 = vsub.f32 %v1868, %v2823
  %2825 = vmatprep.subr.mxu0 %v2824
  %v2826 = vand.u32 %v1867, 4294901760
  %v2827 = vsub.f32 %v1867, %v2826
  %2828 = vmatpush1.msra.mxu0 %v2827
  %v2829 = vand.u32 %v1870, 4294901760
  %v2830 = vsub.f32 %v1870, %v2829
  %2831 = vmatprep.subr.mxu0 %v2830
  %v2832 = vand.u32 %v1869, 4294901760
  %v2833 = vsub.f32 %v1869, %v2832
  %2834 = vmatpush1.msra.mxu0 %v2833
  %v2835 = vand.u32 %v1872, 4294901760
  %v2836 = vsub.f32 %v1872, %v2835
  %2837 = vmatprep.subr.mxu0 %v2836
  %v2838 = vand.u32 %v1871, 4294901760
  %v2839 = vsub.f32 %v1871, %v2838
  %2840 = vmatpush1.msra.mxu0 %v2839
  %v2841 = vand.u32 %v1874, 4294901760
  %v2842 = vsub.f32 %v1874, %v2841
  %2843 = vmatprep.subr.mxu0 %v2842
  %v2844 = vand.u32 %v1873, 4294901760
  %v2845 = vsub.f32 %v1873, %v2844
  %2846 = vmatpush1.msra.mxu0 %v2845
  %v2847 = vand.u32 %v1876, 4294901760
  %v2848 = vsub.f32 %v1876, %v2847
  %2849 = vmatprep.subr.mxu0 %v2848
  %v2850 = vand.u32 %v1875, 4294901760
  %v2851 = vsub.f32 %v1875, %v2850
  %2852 = vmatpush1.msra.mxu0 %v2851
  %v2853 = vand.u32 %v1878, 4294901760
  %v2854 = vsub.f32 %v1878, %v2853
  %2855 = vmatprep.subr.mxu0 %v2854
  %v2856 = vand.u32 %v1877, 4294901760
  %v2857 = vsub.f32 %v1877, %v2856
  %2858 = vmatpush1.msra.mxu0 %v2857
  %2859 = vmatprep.subr.mxu0 0.0
  %2860 = vmatpush1.msra.mxu0 0.0
  %2861 = vmatprep.subr.mxu0 0.0
  %2862 = vmatpush1.msra.mxu0 0.0
  %2863 = vmatprep.subr.mxu0 0.0
  %2864 = vmatpush1.msra.mxu0 0.0
  %2865 = vmatprep.subr.mxu0 0.0
  %2866 = vmatpush1.msra.mxu0 0.0
  %2867 = vmatprep.subr.mxu0 0.0
  %2868 = vmatpush1.msra.mxu0 0.0
  %2869 = vmatprep.subr.mxu0 0.0
  %2870 = vmatpush1.msra.mxu0 0.0
  %2871 = vmatprep.subr.mxu0 0.0
  %2872 = vmatpush1.msra.mxu0 0.0
  %2873 = vmatprep.subr.mxu0 0.0
  %2874 = vmatpush1.msra.mxu0 0.0
  %2875 = vmatprep.subr.mxu0 0.0
  %2876 = vmatpush1.msra.mxu0 0.0
  %2877 = vmatprep.subr.mxu0 0.0
  %2878 = vmatpush1.msra.mxu0 0.0
  %2879 = vmatprep.subr.mxu0 0.0
  %2880 = vmatpush1.msra.mxu0 0.0
  %2881 = vmatprep.subr.mxu0 0.0
  %2882 = vmatpush1.msra.mxu0 0.0
  %2883 = vmatprep.subr.mxu0 0.0
  %2884 = vmatpush1.msra.mxu0 0.0
  %2885 = vmatprep.subr.mxu0 0.0
  %2886 = vmatpush1.msra.mxu0 0.0
  %2887 = vmatprep.subr.mxu0 0.0
  %2888 = vmatpush1.msra.mxu0 0.0
  %2889 = vmatprep.subr.mxu0 0.0
  %2890 = vmatpush1.msra.mxu0 0.0
  %2891 = vmatprep.subr.mxu0 0.0
  %2892 = vmatpush1.msra.mxu0 0.0
  %2893 = vmatprep.subr.mxu0 0.0
  %2894 = vmatpush1.msra.mxu0 0.0
  %2895 = vmatprep.subr.mxu0 0.0
  %2896 = vmatpush1.msra.mxu0 0.0
  %2897 = vmatprep.subr.mxu0 0.0
  %2898 = vmatpush1.msra.mxu0 0.0
  %2899 = vmatprep.subr.mxu0 0.0
  %2900 = vmatpush1.msra.mxu0 0.0
  %2901 = vmatprep.subr.mxu0 0.0
  %2902 = vmatpush1.msra.mxu0 0.0
  %2903 = vmatprep.subr.mxu0 0.0
  %2904 = vmatpush1.msra.mxu0 0.0
  %2905 = vmatprep.subr.mxu0 0.0
  %2906 = vmatpush1.msra.mxu0 0.0
  %2907 = vmatprep.mubr.f32.mxu0 0.0
  %v2908 = vand.u32 %v2565, 4294901760
  %v2909 = vsub.f32 %v2565, %v2908
  %2910 = vmatmul.mubr.f32.gmra.mrb[0].mxu0 %v2909
  %v2911 = vpop.f32.mrb[0].mxu0
  %v2912 = vadd.f32 %v2807, %v2911
  %v2913 = vpop.f32.mrb[0].mxu0
  %v2914 = vadd.f32 %v2809, %v2913
  %2915 = vdwg.mxu0
  %v2916 = vand.u32 %v1864, 4294901760
  %2917 = vmatprep.subr.mxu0 %v2916
  %v2918 = vand.u32 %v1863, 4294901760
  %2919 = vmatpush1.msra.mxu0 %v2918
  %v2920 = vand.u32 %v1866, 4294901760
  %2921 = vmatprep.subr.mxu0 %v2920
  %v2922 = vand.u32 %v1865, 4294901760
  %2923 = vmatpush1.msra.mxu0 %v2922
  %v2924 = vand.u32 %v1868, 4294901760
  %2925 = vmatprep.subr.mxu0 %v2924
  %v2926 = vand.u32 %v1867, 4294901760
  %2927 = vmatpush1.msra.mxu0 %v2926
  %v2928 = vand.u32 %v1870, 4294901760
  %2929 = vmatprep.subr.mxu0 %v2928
  %v2930 = vand.u32 %v1869, 4294901760
  %2931 = vmatpush1.msra.mxu0 %v2930
  %v2932 = vand.u32 %v1872, 4294901760
  %2933 = vmatprep.subr.mxu0 %v2932
  %v2934 = vand.u32 %v1871, 4294901760
  %2935 = vmatpush1.msra.mxu0 %v2934
  %v2936 = vand.u32 %v1874, 4294901760
  %2937 = vmatprep.subr.mxu0 %v2936
  %v2938 = vand.u32 %v1873, 4294901760
  %2939 = vmatpush1.msra.mxu0 %v2938
  %v2940 = vand.u32 %v1876, 4294901760
  %2941 = vmatprep.subr.mxu0 %v2940
  %v2942 = vand.u32 %v1875, 4294901760
  %2943 = vmatpush1.msra.mxu0 %v2942
  %v2944 = vand.u32 %v1878, 4294901760
  %2945 = vmatprep.subr.mxu0 %v2944
  %v2946 = vand.u32 %v1877, 4294901760
  %2947 = vmatpush1.msra.mxu0 %v2946
  %2948 = vmatprep.subr.mxu0 0.0
  %2949 = vmatpush1.msra.mxu0 0.0
  %2950 = vmatprep.subr.mxu0 0.0
  %2951 = vmatpush1.msra.mxu0 0.0
  %2952 = vmatprep.subr.mxu0 0.0
  %2953 = vmatpush1.msra.mxu0 0.0
  %2954 = vmatprep.subr.mxu0 0.0
  %2955 = vmatpush1.msra.mxu0 0.0
  %2956 = vmatprep.subr.mxu0 0.0
  %2957 = vmatpush1.msra.mxu0 0.0
  %2958 = vmatprep.subr.mxu0 0.0
  %2959 = vmatpush1.msra.mxu0 0.0
  %2960 = vmatprep.subr.mxu0 0.0
  %2961 = vmatpush1.msra.mxu0 0.0
  %2962 = vmatprep.subr.mxu0 0.0
  %2963 = vmatpush1.msra.mxu0 0.0
  %2964 = vmatprep.subr.mxu0 0.0
  %2965 = vmatpush1.msra.mxu0 0.0
  %2966 = vmatprep.subr.mxu0 0.0
  %2967 = vmatpush1.msra.mxu0 0.0
  %2968 = vmatprep.subr.mxu0 0.0
  %2969 = vmatpush1.msra.mxu0 0.0
  %2970 = vmatprep.subr.mxu0 0.0
  %2971 = vmatpush1.msra.mxu0 0.0
  %2972 = vmatprep.subr.mxu0 0.0
  %2973 = vmatpush1.msra.mxu0 0.0
  %2974 = vmatprep.subr.mxu0 0.0
  %2975 = vmatpush1.msra.mxu0 0.0
  %2976 = vmatprep.subr.mxu0 0.0
  %2977 = vmatpush1.msra.mxu0 0.0
  %2978 = vmatprep.subr.mxu0 0.0
  %2979 = vmatpush1.msra.mxu0 0.0
  %2980 = vmatprep.subr.mxu0 0.0
  %2981 = vmatpush1.msra.mxu0 0.0
  %2982 = vmatprep.subr.mxu0 0.0
  %2983 = vmatpush1.msra.mxu0 0.0
  %2984 = vmatprep.subr.mxu0 0.0
  %2985 = vmatpush1.msra.mxu0 0.0
  %2986 = vmatprep.subr.mxu0 0.0
  %2987 = vmatpush1.msra.mxu0 0.0
  %2988 = vmatprep.subr.mxu0 0.0
  %2989 = vmatpush1.msra.mxu0 0.0
  %2990 = vmatprep.subr.mxu0 0.0
  %2991 = vmatpush1.msra.mxu0 0.0
  %2992 = vmatprep.subr.mxu0 0.0
  %2993 = vmatpush1.msra.mxu0 0.0
  %2994 = vmatprep.subr.mxu0 0.0
  %2995 = vmatpush1.msra.mxu0 0.0
  %2996 = vmatprep.mubr.f32.mxu0 0.0
  %v2997 = vand.u32 %v2565, 4294901760
  %v2998 = vsub.f32 %v2565, %v2997
  %v2999 = vand.u32 %v2998, 4294901760
  %3000 = vmatmul.mubr.f32.gmra.mrb[0].mxu0 %v2999
  %v3001 = vpop.f32.mrb[0].mxu0
  %v3002 = vadd.f32 %v2912, %v3001
  %v3003 = vpop.f32.mrb[0].mxu0
  %v3004 = vadd.f32 %v2914, %v3003
  %3005 = vdwg.mxu0
  %v3006 = vand.u32 %v1864, 4294901760
  %v3007 = vsub.f32 %v1864, %v3006
  %v3008 = vand.u32 %v3007, 4294901760
  %3009 = vmatprep.subr.mxu0 %v3008
  %v3010 = vand.u32 %v1863, 4294901760
  %v3011 = vsub.f32 %v1863, %v3010
  %v3012 = vand.u32 %v3011, 4294901760
  %3013 = vmatpush1.msra.mxu0 %v3012
  %v3014 = vand.u32 %v1866, 4294901760
  %v3015 = vsub.f32 %v1866, %v3014
  %v3016 = vand.u32 %v3015, 4294901760
  %3017 = vmatprep.subr.mxu0 %v3016
  %v3018 = vand.u32 %v1865, 4294901760
  %v3019 = vsub.f32 %v1865, %v3018
  %v3020 = vand.u32 %v3019, 4294901760
  %3021 = vmatpush1.msra.mxu0 %v3020
  %v3022 = vand.u32 %v1868, 4294901760
  %v3023 = vsub.f32 %v1868, %v3022
  %v3024 = vand.u32 %v3023, 4294901760
  %3025 = vmatprep.subr.mxu0 %v3024
  %v3026 = vand.u32 %v1867, 4294901760
  %v3027 = vsub.f32 %v1867, %v3026
  %v3028 = vand.u32 %v3027, 4294901760
  %3029 = vmatpush1.msra.mxu0 %v3028
  %v3030 = vand.u32 %v1870, 4294901760
  %v3031 = vsub.f32 %v1870, %v3030
  %v3032 = vand.u32 %v3031, 4294901760
  %3033 = vmatprep.subr.mxu0 %v3032
  %v3034 = vand.u32 %v1869, 4294901760
  %v3035 = vsub.f32 %v1869, %v3034
  %v3036 = vand.u32 %v3035, 4294901760
  %3037 = vmatpush1.msra.mxu0 %v3036
  %v3038 = vand.u32 %v1872, 4294901760
  %v3039 = vsub.f32 %v1872, %v3038
  %v3040 = vand.u32 %v3039, 4294901760
  %3041 = vmatprep.subr.mxu0 %v3040
  %v3042 = vand.u32 %v1871, 4294901760
  %v3043 = vsub.f32 %v1871, %v3042
  %v3044 = vand.u32 %v3043, 4294901760
  %3045 = vmatpush1.msra.mxu0 %v3044
  %v3046 = vand.u32 %v1874, 4294901760
  %v3047 = vsub.f32 %v1874, %v3046
  %v3048 = vand.u32 %v3047, 4294901760
  %3049 = vmatprep.subr.mxu0 %v3048
  %v3050 = vand.u32 %v1873, 4294901760
  %v3051 = vsub.f32 %v1873, %v3050
  %v3052 = vand.u32 %v3051, 4294901760
  %3053 = vmatpush1.msra.mxu0 %v3052
  %v3054 = vand.u32 %v1876, 4294901760
  %v3055 = vsub.f32 %v1876, %v3054
  %v3056 = vand.u32 %v3055, 4294901760
  %3057 = vmatprep.subr.mxu0 %v3056
  %v3058 = vand.u32 %v1875, 4294901760
  %v3059 = vsub.f32 %v1875, %v3058
  %v3060 = vand.u32 %v3059, 4294901760
  %3061 = vmatpush1.msra.mxu0 %v3060
  %v3062 = vand.u32 %v1878, 4294901760
  %v3063 = vsub.f32 %v1878, %v3062
  %v3064 = vand.u32 %v3063, 4294901760
  %3065 = vmatprep.subr.mxu0 %v3064
  %v3066 = vand.u32 %v1877, 4294901760
  %v3067 = vsub.f32 %v1877, %v3066
  %v3068 = vand.u32 %v3067, 4294901760
  %3069 = vmatpush1.msra.mxu0 %v3068
  %3070 = vmatprep.subr.mxu0 0.0
  %3071 = vmatpush1.msra.mxu0 0.0
  %3072 = vmatprep.subr.mxu0 0.0
  %3073 = vmatpush1.msra.mxu0 0.0
  %3074 = vmatprep.subr.mxu0 0.0
  %3075 = vmatpush1.msra.mxu0 0.0
  %3076 = vmatprep.subr.mxu0 0.0
  %3077 = vmatpush1.msra.mxu0 0.0
  %3078 = vmatprep.subr.mxu0 0.0
  %3079 = vmatpush1.msra.mxu0 0.0
  %3080 = vmatprep.subr.mxu0 0.0
  %3081 = vmatpush1.msra.mxu0 0.0
  %3082 = vmatprep.subr.mxu0 0.0
  %3083 = vmatpush1.msra.mxu0 0.0
  %3084 = vmatprep.subr.mxu0 0.0
  %3085 = vmatpush1.msra.mxu0 0.0
  %3086 = vmatprep.subr.mxu0 0.0
  %3087 = vmatpush1.msra.mxu0 0.0
  %3088 = vmatprep.subr.mxu0 0.0
  %3089 = vmatpush1.msra.mxu0 0.0
  %3090 = vmatprep.subr.mxu0 0.0
  %3091 = vmatpush1.msra.mxu0 0.0
  %3092 = vmatprep.subr.mxu0 0.0
  %3093 = vmatpush1.msra.mxu0 0.0
  %3094 = vmatprep.subr.mxu0 0.0
  %3095 = vmatpush1.msra.mxu0 0.0
  %3096 = vmatprep.subr.mxu0 0.0
  %3097 = vmatpush1.msra.mxu0 0.0
  %3098 = vmatprep.subr.mxu0 0.0
  %3099 = vmatpush1.msra.mxu0 0.0
  %3100 = vmatprep.subr.mxu0 0.0
  %3101 = vmatpush1.msra.mxu0 0.0
  %3102 = vmatprep.subr.mxu0 0.0
  %3103 = vmatpush1.msra.mxu0 0.0
  %3104 = vmatprep.subr.mxu0 0.0
  %3105 = vmatpush1.msra.mxu0 0.0
  %3106 = vmatprep.subr.mxu0 0.0
  %3107 = vmatpush1.msra.mxu0 0.0
  %3108 = vmatprep.subr.mxu0 0.0
  %3109 = vmatpush1.msra.mxu0 0.0
  %3110 = vmatprep.subr.mxu0 0.0
  %3111 = vmatpush1.msra.mxu0 0.0
  %3112 = vmatprep.subr.mxu0 0.0
  %3113 = vmatpush1.msra.mxu0 0.0
  %3114 = vmatprep.subr.mxu0 0.0
  %3115 = vmatpush1.msra.mxu0 0.0
  %3116 = vmatprep.subr.mxu0 0.0
  %3117 = vmatpush1.msra.mxu0 0.0
  %3118 = vmatprep.mubr.f32.mxu0 0.0
  %v3119 = vand.u32 %v2565, 4294901760
  %3120 = vmatmul.mubr.f32.gmra.mrb[0].mxu0 %v3119
  %v3121 = vpop.f32.mrb[0].mxu0
  %v3122 = vadd.f32 %v3002, %v3121
  %v3123 = vpop.f32.mrb[0].mxu0
  %v3124 = vadd.f32 %v3004, %v3123
  %3125 = vdwg.mxu0
  %v3126 = vand.u32 %v1864, 4294901760
  %3127 = vmatprep.subr.mxu0 %v3126
  %v3128 = vand.u32 %v1863, 4294901760
  %3129 = vmatpush1.msra.mxu0 %v3128
  %v3130 = vand.u32 %v1866, 4294901760
  %3131 = vmatprep.subr.mxu0 %v3130
  %v3132 = vand.u32 %v1865, 4294901760
  %3133 = vmatpush1.msra.mxu0 %v3132
  %v3134 = vand.u32 %v1868, 4294901760
  %3135 = vmatprep.subr.mxu0 %v3134
  %v3136 = vand.u32 %v1867, 4294901760
  %3137 = vmatpush1.msra.mxu0 %v3136
  %v3138 = vand.u32 %v1870, 4294901760
  %3139 = vmatprep.subr.mxu0 %v3138
  %v3140 = vand.u32 %v1869, 4294901760
  %3141 = vmatpush1.msra.mxu0 %v3140
  %v3142 = vand.u32 %v1872, 4294901760
  %3143 = vmatprep.subr.mxu0 %v3142
  %v3144 = vand.u32 %v1871, 4294901760
  %3145 = vmatpush1.msra.mxu0 %v3144
  %v3146 = vand.u32 %v1874, 4294901760
  %3147 = vmatprep.subr.mxu0 %v3146
  %v3148 = vand.u32 %v1873, 4294901760
  %3149 = vmatpush1.msra.mxu0 %v3148
  %v3150 = vand.u32 %v1876, 4294901760
  %3151 = vmatprep.subr.mxu0 %v3150
  %v3152 = vand.u32 %v1875, 4294901760
  %3153 = vmatpush1.msra.mxu0 %v3152
  %v3154 = vand.u32 %v1878, 4294901760
  %3155 = vmatprep.subr.mxu0 %v3154
  %v3156 = vand.u32 %v1877, 4294901760
  %3157 = vmatpush1.msra.mxu0 %v3156
  %3158 = vmatprep.subr.mxu0 0.0
  %3159 = vmatpush1.msra.mxu0 0.0
  %3160 = vmatprep.subr.mxu0 0.0
  %3161 = vmatpush1.msra.mxu0 0.0
  %3162 = vmatprep.subr.mxu0 0.0
  %3163 = vmatpush1.msra.mxu0 0.0
  %3164 = vmatprep.subr.mxu0 0.0
  %3165 = vmatpush1.msra.mxu0 0.0
  %3166 = vmatprep.subr.mxu0 0.0
  %3167 = vmatpush1.msra.mxu0 0.0
  %3168 = vmatprep.subr.mxu0 0.0
  %3169 = vmatpush1.msra.mxu0 0.0
  %3170 = vmatprep.subr.mxu0 0.0
  %3171 = vmatpush1.msra.mxu0 0.0
  %3172 = vmatprep.subr.mxu0 0.0
  %3173 = vmatpush1.msra.mxu0 0.0
  %3174 = vmatprep.subr.mxu0 0.0
  %3175 = vmatpush1.msra.mxu0 0.0
  %3176 = vmatprep.subr.mxu0 0.0
  %3177 = vmatpush1.msra.mxu0 0.0
  %3178 = vmatprep.subr.mxu0 0.0
  %3179 = vmatpush1.msra.mxu0 0.0
  %3180 = vmatprep.subr.mxu0 0.0
  %3181 = vmatpush1.msra.mxu0 0.0
  %3182 = vmatprep.subr.mxu0 0.0
  %3183 = vmatpush1.msra.mxu0 0.0
  %3184 = vmatprep.subr.mxu0 0.0
  %3185 = vmatpush1.msra.mxu0 0.0
  %3186 = vmatprep.subr.mxu0 0.0
  %3187 = vmatpush1.msra.mxu0 0.0
  %3188 = vmatprep.subr.mxu0 0.0
  %3189 = vmatpush1.msra.mxu0 0.0
  %3190 = vmatprep.subr.mxu0 0.0
  %3191 = vmatpush1.msra.mxu0 0.0
  %3192 = vmatprep.subr.mxu0 0.0
  %3193 = vmatpush1.msra.mxu0 0.0
  %3194 = vmatprep.subr.mxu0 0.0
  %3195 = vmatpush1.msra.mxu0 0.0
  %3196 = vmatprep.subr.mxu0 0.0
  %3197 = vmatpush1.msra.mxu0 0.0
  %3198 = vmatprep.subr.mxu0 0.0
  %3199 = vmatpush1.msra.mxu0 0.0
  %3200 = vmatprep.subr.mxu0 0.0
  %3201 = vmatpush1.msra.mxu0 0.0
  %3202 = vmatprep.subr.mxu0 0.0
  %3203 = vmatpush1.msra.mxu0 0.0
  %3204 = vmatprep.subr.mxu0 0.0
  %3205 = vmatpush1.msra.mxu0 0.0
  %3206 = vmatprep.mubr.f32.mxu0 0.0
  %v3207 = vand.u32 %v2565, 4294901760
  %3208 = vmatmul.mubr.f32.gmra.mrb[0].mxu0 %v3207
  %v3209 = vpop.f32.mrb[0].mxu0
  %v3210 = vadd.f32 %v3122, %v3209
  %v3211 = vpop.f32.mrb[0].mxu0
  %v3212 = vadd.f32 %v3124, %v3211
  %3213 = vdwg.mxu0
  %v3214 = vmul.f32 %v3210, 0.5
  %v3215 = vmul.f32 %v3212, 0.5
  %v3216 = vtanh.pop %v3214
  %v3217 = vtanh.pop %v3215
  %v3218 = vmul.f32 %v3216, 0.5
  %v3219 = vmul.f32 %v3217, 0.5
  %v3220 = vadd.f32 %v3218, 0.5
  %v3221 = vadd.f32 %v3219, 0.5
  %v3222 = vtanh.pop %v3212
  %v3223 = vmul.f32 %v3220, %v2555
  %3225 = vrot.lane.b32.xlu0 %v3222, 64
  %v3226 = vpop.permute.xlu0 %3225
  %v3228 = vmul.f32 %v3220, %v3226
  %3230 = vrot.lane.b32.xlu0 %v3228, 64
  %v3231 = vpop.permute.xlu0 %3230
  %v3233 = vadd.f32 %v3223, %v3231
  %v3234 = vtanh.pop %v3233
  %3236 = vrot.lane.b32.xlu0 %v3234, 64
  %v3237 = vpop.permute.xlu0 %3236
  %v3239 = vmul.f32 %v3221, %v3237
  %v3240 = vld [vmem:[#allocation2 + $0x30] sm:$0xff]
  %v3241 = vld [vmem:[#allocation2 + $0x38] sm:$0xff]
  %v3243 = vsel %vm1881, %v3239, 0
  %v3245 = vand.u32 %v1864, 4294901760
  %3246 = vmatprep.subr.mxu0 %v3245
  %v3247 = vand.u32 %v1863, 4294901760
  %3248 = vmatpush1.msra.mxu0 %v3247
  %v3249 = vand.u32 %v1866, 4294901760
  %3250 = vmatprep.subr.mxu0 %v3249
  %v3251 = vand.u32 %v1865, 4294901760
  %3252 = vmatpush1.msra.mxu0 %v3251
  %v3253 = vand.u32 %v1868, 4294901760
  %3254 = vmatprep.subr.mxu0 %v3253
  %v3255 = vand.u32 %v1867, 4294901760
  %3256 = vmatpush1.msra.mxu0 %v3255
  %v3257 = vand.u32 %v1870, 4294901760
  %3258 = vmatprep.subr.mxu0 %v3257
  %v3259 = vand.u32 %v1869, 4294901760
  %3260 = vmatpush1.msra.mxu0 %v3259
  %v3261 = vand.u32 %v1872, 4294901760
  %3262 = vmatprep.subr.mxu0 %v3261
  %v3263 = vand.u32 %v1871, 4294901760
  %3264 = vmatpush1.msra.mxu0 %v3263
  %v3265 = vand.u32 %v1874, 4294901760
  %3266 = vmatprep.subr.mxu0 %v3265
  %v3267 = vand.u32 %v1873, 4294901760
  %3268 = vmatpush1.msra.mxu0 %v3267
  %v3269 = vand.u32 %v1876, 4294901760
  %3270 = vmatprep.subr.mxu0 %v3269
  %v3271 = vand.u32 %v1875, 4294901760
  %3272 = vmatpush1.msra.mxu0 %v3271
  %v3273 = vand.u32 %v1878, 4294901760
  %3274 = vmatprep.subr.mxu0 %v3273
  %v3275 = vand.u32 %v1877, 4294901760
  %3276 = vmatpush1.msra.mxu0 %v3275
  %3277 = vmatprep.subr.mxu0 0.0
  %3278 = vmatpush1.msra.mxu0 0.0
  %3279 = vmatprep.subr.mxu0 0.0
  %3280 = vmatpush1.msra.mxu0 0.0
  %3281 = vmatprep.subr.mxu0 0.0
  %3282 = vmatpush1.msra.mxu0 0.0
  %3283 = vmatprep.subr.mxu0 0.0
  %3284 = vmatpush1.msra.mxu0 0.0
  %3285 = vmatprep.subr.mxu0 0.0
  %3286 = vmatpush1.msra.mxu0 0.0
  %3287 = vmatprep.subr.mxu0 0.0
  %3288 = vmatpush1.msra.mxu0 0.0
  %3289 = vmatprep.subr.mxu0 0.0
  %3290 = vmatpush1.msra.mxu0 0.0
  %3291 = vmatprep.subr.mxu0 0.0
  %3292 = vmatpush1.msra.mxu0 0.0
  %3293 = vmatprep.subr.mxu0 0.0
  %3294 = vmatpush1.msra.mxu0 0.0
  %3295 = vmatprep.subr.mxu0 0.0
  %3296 = vmatpush1.msra.mxu0 0.0
  %3297 = vmatprep.subr.mxu0 0.0
  %3298 = vmatpush1.msra.mxu0 0.0
  %3299 = vmatprep.subr.mxu0 0.0
  %3300 = vmatpush1.msra.mxu0 0.0
  %3301 = vmatprep.subr.mxu0 0.0
  %3302 = vmatpush1.msra.mxu0 0.0
  %3303 = vmatprep.subr.mxu0 0.0
  %3304 = vmatpush1.msra.mxu0 0.0
  %3305 = vmatprep.subr.mxu0 0.0
  %3306 = vmatpush1.msra.mxu0 0.0
  %3307 = vmatprep.subr.mxu0 0.0
  %3308 = vmatpush1.msra.mxu0 0.0
  %3309 = vmatprep.subr.mxu0 0.0
  %3310 = vmatpush1.msra.mxu0 0.0
  %3311 = vmatprep.subr.mxu0 0.0
  %3312 = vmatpush1.msra.mxu0 0.0
  %3313 = vmatprep.subr.mxu0 0.0
  %3314 = vmatpush1.msra.mxu0 0.0
  %3315 = vmatprep.subr.mxu0 0.0
  %3316 = vmatpush1.msra.mxu0 0.0
  %3317 = vmatprep.subr.mxu0 0.0
  %3318 = vmatpush1.msra.mxu0 0.0
  %3319 = vmatprep.subr.mxu0 0.0
  %3320 = vmatpush1.msra.mxu0 0.0
  %3321 = vmatprep.subr.mxu0 0.0
  %3322 = vmatpush1.msra.mxu0 0.0
  %3323 = vmatprep.subr.mxu0 0.0
  %3324 = vmatpush1.msra.mxu0 0.0
  %3325 = vmatprep.mubr.f32.mxu0 0.0
  %v3326 = vand.u32 %v3243, 4294901760
  %v3327 = vsub.f32 %v3243, %v3326
  %v3328 = vand.u32 %v3327, 4294901760
  %v3329 = vsub.f32 %v3327, %v3328
  %v3330 = vand.u32 %v3329, 4294901760
  %3331 = vmatmul.mubr.f32.gmra.mrb[0].mxu0 %v3330
  %v3332 = vpop.f32.mrb[0].mxu0
  %v3333 = vadd.f32 %v3240, %v3332
  %v3334 = vpop.f32.mrb[0].mxu0
  %v3335 = vadd.f32 %v3241, %v3334
  %3336 = vdwg.mxu0
  %v3337 = vand.u32 %v1864, 4294901760
  %v3338 = vsub.f32 %v1864, %v3337
  %v3339 = vand.u32 %v3338, 4294901760
  %v3340 = vsub.f32 %v3338, %v3339
  %v3341 = vand.u32 %v3340, 4294901760
  %3342 = vmatprep.subr.mxu0 %v3341
  %v3343 = vand.u32 %v1863, 4294901760
  %v3344 = vsub.f32 %v1863, %v3343
  %v3345 = vand.u32 %v3344, 4294901760
  %v3346 = vsub.f32 %v3344, %v3345
  %v3347 = vand.u32 %v3346, 4294901760
  %3348 = vmatpush1.msra.mxu0 %v3347
  %v3349 = vand.u32 %v1866, 4294901760
  %v3350 = vsub.f32 %v1866, %v3349
  %v3351 = vand.u32 %v3350, 4294901760
  %v3352 = vsub.f32 %v3350, %v3351
  %v3353 = vand.u32 %v3352, 4294901760
  %3354 = vmatprep.subr.mxu0 %v3353
  %v3355 = vand.u32 %v1865, 4294901760
  %v3356 = vsub.f32 %v1865, %v3355
  %v3357 = vand.u32 %v3356, 4294901760
  %v3358 = vsub.f32 %v3356, %v3357
  %v3359 = vand.u32 %v3358, 4294901760
  %3360 = vmatpush1.msra.mxu0 %v3359
  %v3361 = vand.u32 %v1868, 4294901760
  %v3362 = vsub.f32 %v1868, %v3361
  %v3363 = vand.u32 %v3362, 4294901760
  %v3364 = vsub.f32 %v3362, %v3363
  %v3365 = vand.u32 %v3364, 4294901760
  %3366 = vmatprep.subr.mxu0 %v3365
  %v3367 = vand.u32 %v1867, 4294901760
  %v3368 = vsub.f32 %v1867, %v3367
  %v3369 = vand.u32 %v3368, 4294901760
  %v3370 = vsub.f32 %v3368, %v3369
  %v3371 = vand.u32 %v3370, 4294901760
  %3372 = vmatpush1.msra.mxu0 %v3371
  %v3373 = vand.u32 %v1870, 4294901760
  %v3374 = vsub.f32 %v1870, %v3373
  %v3375 = vand.u32 %v3374, 4294901760
  %v3376 = vsub.f32 %v3374, %v3375
  %v3377 = vand.u32 %v3376, 4294901760
  %3378 = vmatprep.subr.mxu0 %v3377
  %v3379 = vand.u32 %v1869, 4294901760
  %v3380 = vsub.f32 %v1869, %v3379
  %v3381 = vand.u32 %v3380, 4294901760
  %v3382 = vsub.f32 %v3380, %v3381
  %v3383 = vand.u32 %v3382, 4294901760
  %3384 = vmatpush1.msra.mxu0 %v3383
  %v3385 = vand.u32 %v1872, 4294901760
  %v3386 = vsub.f32 %v1872, %v3385
  %v3387 = vand.u32 %v3386, 4294901760
  %v3388 = vsub.f32 %v3386, %v3387
  %v3389 = vand.u32 %v3388, 4294901760
  %3390 = vmatprep.subr.mxu0 %v3389
  %v3391 = vand.u32 %v1871, 4294901760
  %v3392 = vsub.f32 %v1871, %v3391
  %v3393 = vand.u32 %v3392, 4294901760
  %v3394 = vsub.f32 %v3392, %v3393
  %v3395 = vand.u32 %v3394, 4294901760
  %3396 = vmatpush1.msra.mxu0 %v3395
  %v3397 = vand.u32 %v1874, 4294901760
  %v3398 = vsub.f32 %v1874, %v3397
  %v3399 = vand.u32 %v3398, 4294901760
  %v3400 = vsub.f32 %v3398, %v3399
  %v3401 = vand.u32 %v3400, 4294901760
  %3402 = vmatprep.subr.mxu0 %v3401
  %v3403 = vand.u32 %v1873, 4294901760
  %v3404 = vsub.f32 %v1873, %v3403
  %v3405 = vand.u32 %v3404, 4294901760
  %v3406 = vsub.f32 %v3404, %v3405
  %v3407 = vand.u32 %v3406, 4294901760
  %3408 = vmatpush1.msra.mxu0 %v3407
  %v3409 = vand.u32 %v1876, 4294901760
  %v3410 = vsub.f32 %v1876, %v3409
  %v3411 = vand.u32 %v3410, 4294901760
  %v3412 = vsub.f32 %v3410, %v3411
  %v3413 = vand.u32 %v3412, 4294901760
  %3414 = vmatprep.subr.mxu0 %v3413
  %v3415 = vand.u32 %v1875, 4294901760
  %v3416 = vsub.f32 %v1875, %v3415
  %v3417 = vand.u32 %v3416, 4294901760
  %v3418 = vsub.f32 %v3416, %v3417
  %v3419 = vand.u32 %v3418, 4294901760
  %3420 = vmatpush1.msra.mxu0 %v3419
  %v3421 = vand.u32 %v1878, 4294901760
  %v3422 = vsub.f32 %v1878, %v3421
  %v3423 = vand.u32 %v3422, 4294901760
  %v3424 = vsub.f32 %v3422, %v3423
  %v3425 = vand.u32 %v3424, 4294901760
  %3426 = vmatprep.subr.mxu0 %v3425
  %v3427 = vand.u32 %v1877, 4294901760
  %v3428 = vsub.f32 %v1877, %v3427
  %v3429 = vand.u32 %v3428, 4294901760
  %v3430 = vsub.f32 %v3428, %v3429
  %v3431 = vand.u32 %v3430, 4294901760
  %3432 = vmatpush1.msra.mxu0 %v3431
  %3433 = vmatprep.subr.mxu0 0.0
  %3434 = vmatpush1.msra.mxu0 0.0
  %3435 = vmatprep.subr.mxu0 0.0
  %3436 = vmatpush1.msra.mxu0 0.0
  %3437 = vmatprep.subr.mxu0 0.0
  %3438 = vmatpush1.msra.mxu0 0.0
  %3439 = vmatprep.subr.mxu0 0.0
  %3440 = vmatpush1.msra.mxu0 0.0
  %3441 = vmatprep.subr.mxu0 0.0
  %3442 = vmatpush1.msra.mxu0 0.0
  %3443 = vmatprep.subr.mxu0 0.0
  %3444 = vmatpush1.msra.mxu0 0.0
  %3445 = vmatprep.subr.mxu0 0.0
  %3446 = vmatpush1.msra.mxu0 0.0
  %3447 = vmatprep.subr.mxu0 0.0
  %3448 = vmatpush1.msra.mxu0 0.0
  %3449 = vmatprep.subr.mxu0 0.0
  %3450 = vmatpush1.msra.mxu0 0.0
  %3451 = vmatprep.subr.mxu0 0.0
  %3452 = vmatpush1.msra.mxu0 0.0
  %3453 = vmatprep.subr.mxu0 0.0
  %3454 = vmatpush1.msra.mxu0 0.0
  %3455 = vmatprep.subr.mxu0 0.0
  %3456 = vmatpush1.msra.mxu0 0.0
  %3457 = vmatprep.subr.mxu0 0.0
  %3458 = vmatpush1.msra.mxu0 0.0
  %3459 = vmatprep.subr.mxu0 0.0
  %3460 = vmatpush1.msra.mxu0 0.0
  %3461 = vmatprep.subr.mxu0 0.0
  %3462 = vmatpush1.msra.mxu0 0.0
  %3463 = vmatprep.subr.mxu0 0.0
  %3464 = vmatpush1.msra.mxu0 0.0
  %3465 = vmatprep.subr.mxu0 0.0
  %3466 = vmatpush1.msra.mxu0 0.0
  %3467 = vmatprep.subr.mxu0 0.0
  %3468 = vmatpush1.msra.mxu0 0.0
  %3469 = vmatprep.subr.mxu0 0.0
  %3470 = vmatpush1.msra.mxu0 0.0
  %3471 = vmatprep.subr.mxu0 0.0
  %3472 = vmatpush1.msra.mxu0 0.0
  %3473 = vmatprep.subr.mxu0 0.0
  %3474 = vmatpush1.msra.mxu0 0.0
  %3475 = vmatprep.subr.mxu0 0.0
  %3476 = vmatpush1.msra.mxu0 0.0
  %3477 = vmatprep.subr.mxu0 0.0
  %3478 = vmatpush1.msra.mxu0 0.0
  %3479 = vmatprep.subr.mxu0 0.0
  %3480 = vmatpush1.msra.mxu0 0.0
  %3481 = vmatprep.mubr.f32.mxu0 0.0
  %v3482 = vand.u32 %v3243, 4294901760
  %3483 = vmatmul.mubr.f32.gmra.mrb[0].mxu0 %v3482
  %v3484 = vpop.f32.mrb[0].mxu0
  %v3485 = vadd.f32 %v3333, %v3484
  %v3486 = vpop.f32.mrb[0].mxu0
  %v3487 = vadd.f32 %v3335, %v3486
  %3488 = vdwg.mxu0
  %v3489 = vand.u32 %v1864, 4294901760
  %v3490 = vsub.f32 %v1864, %v3489
  %3491 = vmatprep.subr.mxu0 %v3490
  %v3492 = vand.u32 %v1863, 4294901760
  %v3493 = vsub.f32 %v1863, %v3492
  %3494 = vmatpush1.msra.mxu0 %v3493
  %v3495 = vand.u32 %v1866, 4294901760
  %v3496 = vsub.f32 %v1866, %v3495
  %3497 = vmatprep.subr.mxu0 %v3496
  %v3498 = vand.u32 %v1865, 4294901760
  %v3499 = vsub.f32 %v1865, %v3498
  %3500 = vmatpush1.msra.mxu0 %v3499
  %v3501 = vand.u32 %v1868, 4294901760
  %v3502 = vsub.f32 %v1868, %v3501
  %3503 = vmatprep.subr.mxu0 %v3502
  %v3504 = vand.u32 %v1867, 4294901760
  %v3505 = vsub.f32 %v1867, %v3504
  %3506 = vmatpush1.msra.mxu0 %v3505
  %v3507 = vand.u32 %v1870, 4294901760
  %v3508 = vsub.f32 %v1870, %v3507
  %3509 = vmatprep.subr.mxu0 %v3508
  %v3510 = vand.u32 %v1869, 4294901760
  %v3511 = vsub.f32 %v1869, %v3510
  %3512 = vmatpush1.msra.mxu0 %v3511
  %v3513 = vand.u32 %v1872, 4294901760
  %v3514 = vsub.f32 %v1872, %v3513
  %3515 = vmatprep.subr.mxu0 %v3514
  %v3516 = vand.u32 %v1871, 4294901760
  %v3517 = vsub.f32 %v1871, %v3516
  %3518 = vmatpush1.msra.mxu0 %v3517
  %v3519 = vand.u32 %v1874, 4294901760
  %v3520 = vsub.f32 %v1874, %v3519
  %3521 = vmatprep.subr.mxu0 %v3520
  %v3522 = vand.u32 %v1873, 4294901760
  %v3523 = vsub.f32 %v1873, %v3522
  %3524 = vmatpush1.msra.mxu0 %v3523
  %v3525 = vand.u32 %v1876, 4294901760
  %v3526 = vsub.f32 %v1876, %v3525
  %3527 = vmatprep.subr.mxu0 %v3526
  %v3528 = vand.u32 %v1875, 4294901760
  %v3529 = vsub.f32 %v1875, %v3528
  %3530 = vmatpush1.msra.mxu0 %v3529
  %v3531 = vand.u32 %v1878, 4294901760
  %v3532 = vsub.f32 %v1878, %v3531
  %3533 = vmatprep.subr.mxu0 %v3532
  %v3534 = vand.u32 %v1877, 4294901760
  %v3535 = vsub.f32 %v1877, %v3534
  %3536 = vmatpush1.msra.mxu0 %v3535
  %3537 = vmatprep.subr.mxu0 0.0
  %3538 = vmatpush1.msra.mxu0 0.0
  %3539 = vmatprep.subr.mxu0 0.0
  %3540 = vmatpush1.msra.mxu0 0.0
  %3541 = vmatprep.subr.mxu0 0.0
  %3542 = vmatpush1.msra.mxu0 0.0
  %3543 = vmatprep.subr.mxu0 0.0
  %3544 = vmatpush1.msra.mxu0 0.0
  %3545 = vmatprep.subr.mxu0 0.0
  %3546 = vmatpush1.msra.mxu0 0.0
  %3547 = vmatprep.subr.mxu0 0.0
  %3548 = vmatpush1.msra.mxu0 0.0
  %3549 = vmatprep.subr.mxu0 0.0
  %3550 = vmatpush1.msra.mxu0 0.0
  %3551 = vmatprep.subr.mxu0 0.0
  %3552 = vmatpush1.msra.mxu0 0.0
  %3553 = vmatprep.subr.mxu0 0.0
  %3554 = vmatpush1.msra.mxu0 0.0
  %3555 = vmatprep.subr.mxu0 0.0
  %3556 = vmatpush1.msra.mxu0 0.0
  %3557 = vmatprep.subr.mxu0 0.0
  %3558 = vmatpush1.msra.mxu0 0.0
  %3559 = vmatprep.subr.mxu0 0.0
  %3560 = vmatpush1.msra.mxu0 0.0
  %3561 = vmatprep.subr.mxu0 0.0
  %3562 = vmatpush1.msra.mxu0 0.0
  %3563 = vmatprep.subr.mxu0 0.0
  %3564 = vmatpush1.msra.mxu0 0.0
  %3565 = vmatprep.subr.mxu0 0.0
  %3566 = vmatpush1.msra.mxu0 0.0
  %3567 = vmatprep.subr.mxu0 0.0
  %3568 = vmatpush1.msra.mxu0 0.0
  %3569 = vmatprep.subr.mxu0 0.0
  %3570 = vmatpush1.msra.mxu0 0.0
  %3571 = vmatprep.subr.mxu0 0.0
  %3572 = vmatpush1.msra.mxu0 0.0
  %3573 = vmatprep.subr.mxu0 0.0
  %3574 = vmatpush1.msra.mxu0 0.0
  %3575 = vmatprep.subr.mxu0 0.0
  %3576 = vmatpush1.msra.mxu0 0.0
  %3577 = vmatprep.subr.mxu0 0.0
  %3578 = vmatpush1.msra.mxu0 0.0
  %3579 = vmatprep.subr.mxu0 0.0
  %3580 = vmatpush1.msra.mxu0 0.0
  %3581 = vmatprep.subr.mxu0 0.0
  %3582 = vmatpush1.msra.mxu0 0.0
  %3583 = vmatprep.subr.mxu0 0.0
  %3584 = vmatpush1.msra.mxu0 0.0
  %3585 = vmatprep.mubr.f32.mxu0 0.0
  %v3586 = vand.u32 %v3243, 4294901760
  %v3587 = vsub.f32 %v3243, %v3586
  %3588 = vmatmul.mubr.f32.gmra.mrb[0].mxu0 %v3587
  %v3589 = vpop.f32.mrb[0].mxu0
  %v3590 = vadd.f32 %v3485, %v3589
  %v3591 = vpop.f32.mrb[0].mxu0
  %v3592 = vadd.f32 %v3487, %v3591
  %3593 = vdwg.mxu0
  %v3594 = vand.u32 %v1864, 4294901760
  %3595 = vmatprep.subr.mxu0 %v3594
  %v3596 = vand.u32 %v1863, 4294901760
  %3597 = vmatpush1.msra.mxu0 %v3596
  %v3598 = vand.u32 %v1866, 4294901760
  %3599 = vmatprep.subr.mxu0 %v3598
  %v3600 = vand.u32 %v1865, 4294901760
  %3601 = vmatpush1.msra.mxu0 %v3600
  %v3602 = vand.u32 %v1868, 4294901760
  %3603 = vmatprep.subr.mxu0 %v3602
  %v3604 = vand.u32 %v1867, 4294901760
  %3605 = vmatpush1.msra.mxu0 %v3604
  %v3606 = vand.u32 %v1870, 4294901760
  %3607 = vmatprep.subr.mxu0 %v3606
  %v3608 = vand.u32 %v1869, 4294901760
  %3609 = vmatpush1.msra.mxu0 %v3608
  %v3610 = vand.u32 %v1872, 4294901760
  %3611 = vmatprep.subr.mxu0 %v3610
  %v3612 = vand.u32 %v1871, 4294901760
  %3613 = vmatpush1.msra.mxu0 %v3612
  %v3614 = vand.u32 %v1874, 4294901760
  %3615 = vmatprep.subr.mxu0 %v3614
  %v3616 = vand.u32 %v1873, 4294901760
  %3617 = vmatpush1.msra.mxu0 %v3616
  %v3618 = vand.u32 %v1876, 4294901760
  %3619 = vmatprep.subr.mxu0 %v3618
  %v3620 = vand.u32 %v1875, 4294901760
  %3621 = vmatpush1.msra.mxu0 %v3620
  %v3622 = vand.u32 %v1878, 4294901760
  %3623 = vmatprep.subr.mxu0 %v3622
  %v3624 = vand.u32 %v1877, 4294901760
  %3625 = vmatpush1.msra.mxu0 %v3624
  %3626 = vmatprep.subr.mxu0 0.0
  %3627 = vmatpush1.msra.mxu0 0.0
  %3628 = vmatprep.subr.mxu0 0.0
  %3629 = vmatpush1.msra.mxu0 0.0
  %3630 = vmatprep.subr.mxu0 0.0
  %3631 = vmatpush1.msra.mxu0 0.0
  %3632 = vmatprep.subr.mxu0 0.0
  %3633 = vmatpush1.msra.mxu0 0.0
  %3634 = vmatprep.subr.mxu0 0.0
  %3635 = vmatpush1.msra.mxu0 0.0
  %3636 = vmatprep.subr.mxu0 0.0
  %3637 = vmatpush1.msra.mxu0 0.0
  %3638 = vmatprep.subr.mxu0 0.0
  %3639 = vmatpush1.msra.mxu0 0.0
  %3640 = vmatprep.subr.mxu0 0.0
  %3641 = vmatpush1.msra.mxu0 0.0
  %3642 = vmatprep.subr.mxu0 0.0
  %3643 = vmatpush1.msra.mxu0 0.0
  %3644 = vmatprep.subr.mxu0 0.0
  %3645 = vmatpush1.msra.mxu0 0.0
  %3646 = vmatprep.subr.mxu0 0.0
  %3647 = vmatpush1.msra.mxu0 0.0
  %3648 = vmatprep.subr.mxu0 0.0
  %3649 = vmatpush1.msra.mxu0 0.0
  %3650 = vmatprep.subr.mxu0 0.0
  %3651 = vmatpush1.msra.mxu0 0.0
  %3652 = vmatprep.subr.mxu0 0.0
  %3653 = vmatpush1.msra.mxu0 0.0
  %3654 = vmatprep.subr.mxu0 0.0
  %3655 = vmatpush1.msra.mxu0 0.0
  %3656 = vmatprep.subr.mxu0 0.0
  %3657 = vmatpush1.msra.mxu0 0.0
  %3658 = vmatprep.subr.mxu0 0.0
  %3659 = vmatpush1.msra.mxu0 0.0
  %3660 = vmatprep.subr.mxu0 0.0
  %3661 = vmatpush1.msra.mxu0 0.0
  %3662 = vmatprep.subr.mxu0 0.0
  %3663 = vmatpush1.msra.mxu0 0.0
  %3664 = vmatprep.subr.mxu0 0.0
  %3665 = vmatpush1.msra.mxu0 0.0
  %3666 = vmatprep.subr.mxu0 0.0
  %3667 = vmatpush1.msra.mxu0 0.0
  %3668 = vmatprep.subr.mxu0 0.0
  %3669 = vmatpush1.msra.mxu0 0.0
  %3670 = vmatprep.subr.mxu0 0.0
  %3671 = vmatpush1.msra.mxu0 0.0
  %3672 = vmatprep.subr.mxu0 0.0
  %3673 = vmatpush1.msra.mxu0 0.0
  %3674 = vmatprep.mubr.f32.mxu0 0.0
  %v3675 = vand.u32 %v3243, 4294901760
  %v3676 = vsub.f32 %v3243, %v3675
  %v3677 = vand.u32 %v3676, 4294901760
  %3678 = vmatmul.mubr.f32.gmra.mrb[0].mxu0 %v3677
  %v3679 = vpop.f32.mrb[0].mxu0
  %v3680 = vadd.f32 %v3590, %v3679
  %v3681 = vpop.f32.mrb[0].mxu0
  %v3682 = vadd.f32 %v3592, %v3681
  %3683 = vdwg.mxu0
  %v3684 = vand.u32 %v1864, 4294901760
  %v3685 = vsub.f32 %v1864, %v3684
  %v3686 = vand.u32 %v3685, 4294901760
  %3687 = vmatprep.subr.mxu0 %v3686
  %v3688 = vand.u32 %v1863, 4294901760
  %v3689 = vsub.f32 %v1863, %v3688
  %v3690 = vand.u32 %v3689, 4294901760
  %3691 = vmatpush1.msra.mxu0 %v3690
  %v3692 = vand.u32 %v1866, 4294901760
  %v3693 = vsub.f32 %v1866, %v3692
  %v3694 = vand.u32 %v3693, 4294901760
  %3695 = vmatprep.subr.mxu0 %v3694
  %v3696 = vand.u32 %v1865, 4294901760
  %v3697 = vsub.f32 %v1865, %v3696
  %v3698 = vand.u32 %v3697, 4294901760
  %3699 = vmatpush1.msra.mxu0 %v3698
  %v3700 = vand.u32 %v1868, 4294901760
  %v3701 = vsub.f32 %v1868, %v3700
  %v3702 = vand.u32 %v3701, 4294901760
  %3703 = vmatprep.subr.mxu0 %v3702
  %v3704 = vand.u32 %v1867, 4294901760
  %v3705 = vsub.f32 %v1867, %v3704
  %v3706 = vand.u32 %v3705, 4294901760
  %3707 = vmatpush1.msra.mxu0 %v3706
  %v3708 = vand.u32 %v1870, 4294901760
  %v3709 = vsub.f32 %v1870, %v3708
  %v3710 = vand.u32 %v3709, 4294901760
  %3711 = vmatprep.subr.mxu0 %v3710
  %v3712 = vand.u32 %v1869, 4294901760
  %v3713 = vsub.f32 %v1869, %v3712
  %v3714 = vand.u32 %v3713, 4294901760
  %3715 = vmatpush1.msra.mxu0 %v3714
  %v3716 = vand.u32 %v1872, 4294901760
  %v3717 = vsub.f32 %v1872, %v3716
  %v3718 = vand.u32 %v3717, 4294901760
  %3719 = vmatprep.subr.mxu0 %v3718
  %v3720 = vand.u32 %v1871, 4294901760
  %v3721 = vsub.f32 %v1871, %v3720
  %v3722 = vand.u32 %v3721, 4294901760
  %3723 = vmatpush1.msra.mxu0 %v3722
  %v3724 = vand.u32 %v1874, 4294901760
  %v3725 = vsub.f32 %v1874, %v3724
  %v3726 = vand.u32 %v3725, 4294901760
  %3727 = vmatprep.subr.mxu0 %v3726
  %v3728 = vand.u32 %v1873, 4294901760
  %v3729 = vsub.f32 %v1873, %v3728
  %v3730 = vand.u32 %v3729, 4294901760
  %3731 = vmatpush1.msra.mxu0 %v3730
  %v3732 = vand.u32 %v1876, 4294901760
  %v3733 = vsub.f32 %v1876, %v3732
  %v3734 = vand.u32 %v3733, 4294901760
  %3735 = vmatprep.subr.mxu0 %v3734
  %v3736 = vand.u32 %v1875, 4294901760
  %v3737 = vsub.f32 %v1875, %v3736
  %v3738 = vand.u32 %v3737, 4294901760
  %3739 = vmatpush1.msra.mxu0 %v3738
  %v3740 = vand.u32 %v1878, 4294901760
  %v3741 = vsub.f32 %v1878, %v3740
  %v3742 = vand.u32 %v3741, 4294901760
  %3743 = vmatprep.subr.mxu0 %v3742
  %v3744 = vand.u32 %v1877, 4294901760
  %v3745 = vsub.f32 %v1877, %v3744
  %v3746 = vand.u32 %v3745, 4294901760
  %3747 = vmatpush1.msra.mxu0 %v3746
  %3748 = vmatprep.subr.mxu0 0.0
  %3749 = vmatpush1.msra.mxu0 0.0
  %3750 = vmatprep.subr.mxu0 0.0
  %3751 = vmatpush1.msra.mxu0 0.0
  %3752 = vmatprep.subr.mxu0 0.0
  %3753 = vmatpush1.msra.mxu0 0.0
  %3754 = vmatprep.subr.mxu0 0.0
  %3755 = vmatpush1.msra.mxu0 0.0
  %3756 = vmatprep.subr.mxu0 0.0
  %3757 = vmatpush1.msra.mxu0 0.0
  %3758 = vmatprep.subr.mxu0 0.0
  %3759 = vmatpush1.msra.mxu0 0.0
  %3760 = vmatprep.subr.mxu0 0.0
  %3761 = vmatpush1.msra.mxu0 0.0
  %3762 = vmatprep.subr.mxu0 0.0
  %3763 = vmatpush1.msra.mxu0 0.0
  %3764 = vmatprep.subr.mxu0 0.0
  %3765 = vmatpush1.msra.mxu0 0.0
  %3766 = vmatprep.subr.mxu0 0.0
  %3767 = vmatpush1.msra.mxu0 0.0
  %3768 = vmatprep.subr.mxu0 0.0
  %3769 = vmatpush1.msra.mxu0 0.0
  %3770 = vmatprep.subr.mxu0 0.0
  %3771 = vmatpush1.msra.mxu0 0.0
  %3772 = vmatprep.subr.mxu0 0.0
  %3773 = vmatpush1.msra.mxu0 0.0
  %3774 = vmatprep.subr.mxu0 0.0
  %3775 = vmatpush1.msra.mxu0 0.0
  %3776 = vmatprep.subr.mxu0 0.0
  %3777 = vmatpush1.msra.mxu0 0.0
  %3778 = vmatprep.subr.mxu0 0.0
  %3779 = vmatpush1.msra.mxu0 0.0
  %3780 = vmatprep.subr.mxu0 0.0
  %3781 = vmatpush1.msra.mxu0 0.0
  %3782 = vmatprep.subr.mxu0 0.0
  %3783 = vmatpush1.msra.mxu0 0.0
  %3784 = vmatprep.subr.mxu0 0.0
  %3785 = vmatpush1.msra.mxu0 0.0
  %3786 = vmatprep.subr.mxu0 0.0
  %3787 = vmatpush1.msra.mxu0 0.0
  %3788 = vmatprep.subr.mxu0 0.0
  %3789 = vmatpush1.msra.mxu0 0.0
  %3790 = vmatprep.subr.mxu0 0.0
  %3791 = vmatpush1.msra.mxu0 0.0
  %3792 = vmatprep.subr.mxu0 0.0
  %3793 = vmatpush1.msra.mxu0 0.0
  %3794 = vmatprep.subr.mxu0 0.0
  %3795 = vmatpush1.msra.mxu0 0.0
  %3796 = vmatprep.mubr.f32.mxu0 0.0
  %v3797 = vand.u32 %v3243, 4294901760
  %3798 = vmatmul.mubr.f32.gmra.mrb[0].mxu0 %v3797
  %v3799 = vpop.f32.mrb[0].mxu0
  %v3800 = vadd.f32 %v3680, %v3799
  %v3801 = vpop.f32.mrb[0].mxu0
  %v3802 = vadd.f32 %v3682, %v3801
  %3803 = vdwg.mxu0
  %v3804 = vand.u32 %v1864, 4294901760
  %3805 = vmatprep.subr.mxu0 %v3804
  %v3806 = vand.u32 %v1863, 4294901760
  %3807 = vmatpush1.msra.mxu0 %v3806
  %v3808 = vand.u32 %v1866, 4294901760
  %3809 = vmatprep.subr.mxu0 %v3808
  %v3810 = vand.u32 %v1865, 4294901760
  %3811 = vmatpush1.msra.mxu0 %v3810
  %v3812 = vand.u32 %v1868, 4294901760
  %3813 = vmatprep.subr.mxu0 %v3812
  %v3814 = vand.u32 %v1867, 4294901760
  %3815 = vmatpush1.msra.mxu0 %v3814
  %v3816 = vand.u32 %v1870, 4294901760
  %3817 = vmatprep.subr.mxu0 %v3816
  %v3818 = vand.u32 %v1869, 4294901760
  %3819 = vmatpush1.msra.mxu0 %v3818
  %v3820 = vand.u32 %v1872, 4294901760
  %3821 = vmatprep.subr.mxu0 %v3820
  %v3822 = vand.u32 %v1871, 4294901760
  %3823 = vmatpush1.msra.mxu0 %v3822
  %v3824 = vand.u32 %v1874, 4294901760
  %3825 = vmatprep.subr.mxu0 %v3824
  %v3826 = vand.u32 %v1873, 4294901760
  %3827 = vmatpush1.msra.mxu0 %v3826
  %v3828 = vand.u32 %v1876, 4294901760
  %3829 = vmatprep.subr.mxu0 %v3828
  %v3830 = vand.u32 %v1875, 4294901760
  %3831 = vmatpush1.msra.mxu0 %v3830
  %v3832 = vand.u32 %v1878, 4294901760
  %3833 = vmatprep.subr.mxu0 %v3832
  %v3834 = vand.u32 %v1877, 4294901760
  %3835 = vmatpush1.msra.mxu0 %v3834
  %3836 = vmatprep.subr.mxu0 0.0
  %3837 = vmatpush1.msra.mxu0 0.0
  %3838 = vmatprep.subr.mxu0 0.0
  %3839 = vmatpush1.msra.mxu0 0.0
  %3840 = vmatprep.subr.mxu0 0.0
  %3841 = vmatpush1.msra.mxu0 0.0
  %3842 = vmatprep.subr.mxu0 0.0
  %3843 = vmatpush1.msra.mxu0 0.0
  %3844 = vmatprep.subr.mxu0 0.0
  %3845 = vmatpush1.msra.mxu0 0.0
  %3846 = vmatprep.subr.mxu0 0.0
  %3847 = vmatpush1.msra.mxu0 0.0
  %3848 = vmatprep.subr.mxu0 0.0
  %3849 = vmatpush1.msra.mxu0 0.0
  %3850 = vmatprep.subr.mxu0 0.0
  %3851 = vmatpush1.msra.mxu0 0.0
  %3852 = vmatprep.subr.mxu0 0.0
  %3853 = vmatpush1.msra.mxu0 0.0
  %3854 = vmatprep.subr.mxu0 0.0
  %3855 = vmatpush1.msra.mxu0 0.0
  %3856 = vmatprep.subr.mxu0 0.0
  %3857 = vmatpush1.msra.mxu0 0.0
  %3858 = vmatprep.subr.mxu0 0.0
  %3859 = vmatpush1.msra.mxu0 0.0
  %3860 = vmatprep.subr.mxu0 0.0
  %3861 = vmatpush1.msra.mxu0 0.0
  %3862 = vmatprep.subr.mxu0 0.0
  %3863 = vmatpush1.msra.mxu0 0.0
  %3864 = vmatprep.subr.mxu0 0.0
  %3865 = vmatpush1.msra.mxu0 0.0
  %3866 = vmatprep.subr.mxu0 0.0
  %3867 = vmatpush1.msra.mxu0 0.0
  %3868 = vmatprep.subr.mxu0 0.0
  %3869 = vmatpush1.msra.mxu0 0.0
  %3870 = vmatprep.subr.mxu0 0.0
  %3871 = vmatpush1.msra.mxu0 0.0
  %3872 = vmatprep.subr.mxu0 0.0
  %3873 = vmatpush1.msra.mxu0 0.0
  %3874 = vmatprep.subr.mxu0 0.0
  %3875 = vmatpush1.msra.mxu0 0.0
  %3876 = vmatprep.subr.mxu0 0.0
  %3877 = vmatpush1.msra.mxu0 0.0
  %3878 = vmatprep.subr.mxu0 0.0
  %3879 = vmatpush1.msra.mxu0 0.0
  %3880 = vmatprep.subr.mxu0 0.0
  %3881 = vmatpush1.msra.mxu0 0.0
  %3882 = vmatprep.subr.mxu0 0.0
  %3883 = vmatpush1.msra.mxu0 0.0
  %3884 = vmatprep.mubr.f32.mxu0 0.0
  %v3885 = vand.u32 %v3243, 4294901760
  %3886 = vmatmul.mubr.f32.gmra.mrb[0].mxu0 %v3885
  %v3887 = vpop.f32.mrb[0].mxu0
  %v3888 = vadd.f32 %v3800, %v3887
  %v3889 = vpop.f32.mrb[0].mxu0
  %v3890 = vadd.f32 %v3802, %v3889
  %3891 = vdwg.mxu0
  %v3892 = vmul.f32 %v3888, 0.5
  %v3893 = vmul.f32 %v3890, 0.5
  %v3894 = vtanh.pop %v3892
  %v3895 = vtanh.pop %v3893
  %v3896 = vmul.f32 %v3894, 0.5
  %v3897 = vmul.f32 %v3895, 0.5
  %v3898 = vadd.f32 %v3896, 0.5
  %v3899 = vadd.f32 %v3897, 0.5
  %v3900 = vtanh.pop %v3890
  %v3901 = vmul.f32 %v3898, %v3233
  %3903 = vrot.lane.b32.xlu0 %v3900, 64
  %v3904 = vpop.permute.xlu0 %3903
  %v3906 = vmul.f32 %v3898, %v3904
  %3908 = vrot.lane.b32.xlu0 %v3906, 64
  %v3909 = vpop.permute.xlu0 %3908
  %v3911 = vadd.f32 %v3901, %v3909
  %v3912 = vtanh.pop %v3911
  %3914 = vrot.lane.b32.xlu0 %v3912, 64
  %v3915 = vpop.permute.xlu0 %3914
  %v3917 = vmul.f32 %v3899, %v3915
  %v3918 = vld [vmem:[#allocation2 + $0x40] sm:$0xff]
  %v3919 = vld [vmem:[#allocation2 + $0x48] sm:$0xff]
  %v3921 = vsel %vm1881, %v3917, 0
  %v3923 = vand.u32 %v1864, 4294901760
  %3924 = vmatprep.subr.mxu0 %v3923
  %v3925 = vand.u32 %v1863, 4294901760
  %3926 = vmatpush1.msra.mxu0 %v3925
  %v3927 = vand.u32 %v1866, 4294901760
  %3928 = vmatprep.subr.mxu0 %v3927
  %v3929 = vand.u32 %v1865, 4294901760
  %3930 = vmatpush1.msra.mxu0 %v3929
  %v3931 = vand.u32 %v1868, 4294901760
  %3932 = vmatprep.subr.mxu0 %v3931
  %v3933 = vand.u32 %v1867, 4294901760
  %3934 = vmatpush1.msra.mxu0 %v3933
  %v3935 = vand.u32 %v1870, 4294901760
  %3936 = vmatprep.subr.mxu0 %v3935
  %v3937 = vand.u32 %v1869, 4294901760
  %3938 = vmatpush1.msra.mxu0 %v3937
  %v3939 = vand.u32 %v1872, 4294901760
  %3940 = vmatprep.subr.mxu0 %v3939
  %v3941 = vand.u32 %v1871, 4294901760
  %3942 = vmatpush1.msra.mxu0 %v3941
  %v3943 = vand.u32 %v1874, 4294901760
  %3944 = vmatprep.subr.mxu0 %v3943
  %v3945 = vand.u32 %v1873, 4294901760
  %3946 = vmatpush1.msra.mxu0 %v3945
  %v3947 = vand.u32 %v1876, 4294901760
  %3948 = vmatprep.subr.mxu0 %v3947
  %v3949 = vand.u32 %v1875, 4294901760
  %3950 = vmatpush1.msra.mxu0 %v3949
  %v3951 = vand.u32 %v1878, 4294901760
  %3952 = vmatprep.subr.mxu0 %v3951
  %v3953 = vand.u32 %v1877, 4294901760
  %3954 = vmatpush1.msra.mxu0 %v3953
  %3955 = vmatprep.subr.mxu0 0.0
  %3956 = vmatpush1.msra.mxu0 0.0
  %3957 = vmatprep.subr.mxu0 0.0
  %3958 = vmatpush1.msra.mxu0 0.0
  %3959 = vmatprep.subr.mxu0 0.0
  %3960 = vmatpush1.msra.mxu0 0.0
  %3961 = vmatprep.subr.mxu0 0.0
  %3962 = vmatpush1.msra.mxu0 0.0
  %3963 = vmatprep.subr.mxu0 0.0
  %3964 = vmatpush1.msra.mxu0 0.0
  %3965 = vmatprep.subr.mxu0 0.0
  %3966 = vmatpush1.msra.mxu0 0.0
  %3967 = vmatprep.subr.mxu0 0.0
  %3968 = vmatpush1.msra.mxu0 0.0
  %3969 = vmatprep.subr.mxu0 0.0
  %3970 = vmatpush1.msra.mxu0 0.0
  %3971 = vmatprep.subr.mxu0 0.0
  %3972 = vmatpush1.msra.mxu0 0.0
  %3973 = vmatprep.subr.mxu0 0.0
  %3974 = vmatpush1.msra.mxu0 0.0
  %3975 = vmatprep.subr.mxu0 0.0
  %3976 = vmatpush1.msra.mxu0 0.0
  %3977 = vmatprep.subr.mxu0 0.0
  %3978 = vmatpush1.msra.mxu0 0.0
  %3979 = vmatprep.subr.mxu0 0.0
  %3980 = vmatpush1.msra.mxu0 0.0
  %3981 = vmatprep.subr.mxu0 0.0
  %3982 = vmatpush1.msra.mxu0 0.0
  %3983 = vmatprep.subr.mxu0 0.0
  %3984 = vmatpush1.msra.mxu0 0.0
  %3985 = vmatprep.subr.mxu0 0.0
  %3986 = vmatpush1.msra.mxu0 0.0
  %3987 = vmatprep.subr.mxu0 0.0
  %3988 = vmatpush1.msra.mxu0 0.0
  %3989 = vmatprep.subr.mxu0 0.0
  %3990 = vmatpush1.msra.mxu0 0.0
  %3991 = vmatprep.subr.mxu0 0.0
  %3992 = vmatpush1.msra.mxu0 0.0
  %3993 = vmatprep.subr.mxu0 0.0
  %3994 = vmatpush1.msra.mxu0 0.0
  %3995 = vmatprep.subr.mxu0 0.0
  %3996 = vmatpush1.msra.mxu0 0.0
  %3997 = vmatprep.subr.mxu0 0.0
  %3998 = vmatpush1.msra.mxu0 0.0
  %3999 = vmatprep.subr.mxu0 0.0
  %4000 = vmatpush1.msra.mxu0 0.0
  %4001 = vmatprep.subr.mxu0 0.0
  %4002 = vmatpush1.msra.mxu0 0.0
  %4003 = vmatprep.mubr.f32.mxu0 0.0
  %v4004 = vand.u32 %v3921, 4294901760
  %v4005 = vsub.f32 %v3921, %v4004
  %v4006 = vand.u32 %v4005, 4294901760
  %v4007 = vsub.f32 %v4005, %v4006
  %v4008 = vand.u32 %v4007, 4294901760
  %4009 = vmatmul.mubr.f32.gmra.mrb[0].mxu0 %v4008
  %v4010 = vpop.f32.mrb[0].mxu0
  %v4011 = vadd.f32 %v3918, %v4010
  %v4012 = vpop.f32.mrb[0].mxu0
  %v4013 = vadd.f32 %v3919, %v4012
  %4014 = vdwg.mxu0
  %v4015 = vand.u32 %v1864, 4294901760
  %v4016 = vsub.f32 %v1864, %v4015
  %v4017 = vand.u32 %v4016, 4294901760
  %v4018 = vsub.f32 %v4016, %v4017
  %v4019 = vand.u32 %v4018, 4294901760
  %4020 = vmatprep.subr.mxu0 %v4019
  %v4021 = vand.u32 %v1863, 4294901760
  %v4022 = vsub.f32 %v1863, %v4021
  %v4023 = vand.u32 %v4022, 4294901760
  %v4024 = vsub.f32 %v4022, %v4023
  %v4025 = vand.u32 %v4024, 4294901760
  %4026 = vmatpush1.msra.mxu0 %v4025
  %v4027 = vand.u32 %v1866, 4294901760
  %v4028 = vsub.f32 %v1866, %v4027
  %v4029 = vand.u32 %v4028, 4294901760
  %v4030 = vsub.f32 %v4028, %v4029
  %v4031 = vand.u32 %v4030, 4294901760
  %4032 = vmatprep.subr.mxu0 %v4031
  %v4033 = vand.u32 %v1865, 4294901760
  %v4034 = vsub.f32 %v1865, %v4033
  %v4035 = vand.u32 %v4034, 4294901760
  %v4036 = vsub.f32 %v4034, %v4035
  %v4037 = vand.u32 %v4036, 4294901760
  %4038 = vmatpush1.msra.mxu0 %v4037
  %v4039 = vand.u32 %v1868, 4294901760
  %v4040 = vsub.f32 %v1868, %v4039
  %v4041 = vand.u32 %v4040, 4294901760
  %v4042 = vsub.f32 %v4040, %v4041
  %v4043 = vand.u32 %v4042, 4294901760
  %4044 = vmatprep.subr.mxu0 %v4043
  %v4045 = vand.u32 %v1867, 4294901760
  %v4046 = vsub.f32 %v1867, %v4045
  %v4047 = vand.u32 %v4046, 4294901760
  %v4048 = vsub.f32 %v4046, %v4047
  %v4049 = vand.u32 %v4048, 4294901760
  %4050 = vmatpush1.msra.mxu0 %v4049
  %v4051 = vand.u32 %v1870, 4294901760
  %v4052 = vsub.f32 %v1870, %v4051
  %v4053 = vand.u32 %v4052, 4294901760
  %v4054 = vsub.f32 %v4052, %v4053
  %v4055 = vand.u32 %v4054, 4294901760
  %4056 = vmatprep.subr.mxu0 %v4055
  %v4057 = vand.u32 %v1869, 4294901760
  %v4058 = vsub.f32 %v1869, %v4057
  %v4059 = vand.u32 %v4058, 4294901760
  %v4060 = vsub.f32 %v4058, %v4059
  %v4061 = vand.u32 %v4060, 4294901760
  %4062 = vmatpush1.msra.mxu0 %v4061
  %v4063 = vand.u32 %v1872, 4294901760
  %v4064 = vsub.f32 %v1872, %v4063
  %v4065 = vand.u32 %v4064, 4294901760
  %v4066 = vsub.f32 %v4064, %v4065
  %v4067 = vand.u32 %v4066, 4294901760
  %4068 = vmatprep.subr.mxu0 %v4067
  %v4069 = vand.u32 %v1871, 4294901760
  %v4070 = vsub.f32 %v1871, %v4069
  %v4071 = vand.u32 %v4070, 4294901760
  %v4072 = vsub.f32 %v4070, %v4071
  %v4073 = vand.u32 %v4072, 4294901760
  %4074 = vmatpush1.msra.mxu0 %v4073
  %v4075 = vand.u32 %v1874, 4294901760
  %v4076 = vsub.f32 %v1874, %v4075
  %v4077 = vand.u32 %v4076, 4294901760
  %v4078 = vsub.f32 %v4076, %v4077
  %v4079 = vand.u32 %v4078, 4294901760
  %4080 = vmatprep.subr.mxu0 %v4079
  %v4081 = vand.u32 %v1873, 4294901760
  %v4082 = vsub.f32 %v1873, %v4081
  %v4083 = vand.u32 %v4082, 4294901760
  %v4084 = vsub.f32 %v4082, %v4083
  %v4085 = vand.u32 %v4084, 4294901760
  %4086 = vmatpush1.msra.mxu0 %v4085
  %v4087 = vand.u32 %v1876, 4294901760
  %v4088 = vsub.f32 %v1876, %v4087
  %v4089 = vand.u32 %v4088, 4294901760
  %v4090 = vsub.f32 %v4088, %v4089
  %v4091 = vand.u32 %v4090, 4294901760
  %4092 = vmatprep.subr.mxu0 %v4091
  %v4093 = vand.u32 %v1875, 4294901760
  %v4094 = vsub.f32 %v1875, %v4093
  %v4095 = vand.u32 %v4094, 4294901760
  %v4096 = vsub.f32 %v4094, %v4095
  %v4097 = vand.u32 %v4096, 4294901760
  %4098 = vmatpush1.msra.mxu0 %v4097
  %v4099 = vand.u32 %v1878, 4294901760
  %v4100 = vsub.f32 %v1878, %v4099
  %v4101 = vand.u32 %v4100, 4294901760
  %v4102 = vsub.f32 %v4100, %v4101
  %v4103 = vand.u32 %v4102, 4294901760
  %4104 = vmatprep.subr.mxu0 %v4103
  %v4105 = vand.u32 %v1877, 4294901760
  %v4106 = vsub.f32 %v1877, %v4105
  %v4107 = vand.u32 %v4106, 4294901760
  %v4108 = vsub.f32 %v4106, %v4107
  %v4109 = vand.u32 %v4108, 4294901760
  %4110 = vmatpush1.msra.mxu0 %v4109
  %4111 = vmatprep.subr.mxu0 0.0
  %4112 = vmatpush1.msra.mxu0 0.0
  %4113 = vmatprep.subr.mxu0 0.0
  %4114 = vmatpush1.msra.mxu0 0.0
  %4115 = vmatprep.subr.mxu0 0.0
  %4116 = vmatpush1.msra.mxu0 0.0
  %4117 = vmatprep.subr.mxu0 0.0
  %4118 = vmatpush1.msra.mxu0 0.0
  %4119 = vmatprep.subr.mxu0 0.0
  %4120 = vmatpush1.msra.mxu0 0.0
  %4121 = vmatprep.subr.mxu0 0.0
  %4122 = vmatpush1.msra.mxu0 0.0
  %4123 = vmatprep.subr.mxu0 0.0
  %4124 = vmatpush1.msra.mxu0 0.0
  %4125 = vmatprep.subr.mxu0 0.0
  %4126 = vmatpush1.msra.mxu0 0.0
  %4127 = vmatprep.subr.mxu0 0.0
  %4128 = vmatpush1.msra.mxu0 0.0
  %4129 = vmatprep.subr.mxu0 0.0
  %4130 = vmatpush1.msra.mxu0 0.0
  %4131 = vmatprep.subr.mxu0 0.0
  %4132 = vmatpush1.msra.mxu0 0.0
  %4133 = vmatprep.subr.mxu0 0.0
  %4134 = vmatpush1.msra.mxu0 0.0
  %4135 = vmatprep.subr.mxu0 0.0
  %4136 = vmatpush1.msra.mxu0 0.0
  %4137 = vmatprep.subr.mxu0 0.0
  %4138 = vmatpush1.msra.mxu0 0.0
  %4139 = vmatprep.subr.mxu0 0.0
  %4140 = vmatpush1.msra.mxu0 0.0
  %4141 = vmatprep.subr.mxu0 0.0
  %4142 = vmatpush1.msra.mxu0 0.0
  %4143 = vmatprep.subr.mxu0 0.0
  %4144 = vmatpush1.msra.mxu0 0.0
  %4145 = vmatprep.subr.mxu0 0.0
  %4146 = vmatpush1.msra.mxu0 0.0
  %4147 = vmatprep.subr.mxu0 0.0
  %4148 = vmatpush1.msra.mxu0 0.0
  %4149 = vmatprep.subr.mxu0 0.0
  %4150 = vmatpush1.msra.mxu0 0.0
  %4151 = vmatprep.subr.mxu0 0.0
  %4152 = vmatpush1.msra.mxu0 0.0
  %4153 = vmatprep.subr.mxu0 0.0
  %4154 = vmatpush1.msra.mxu0 0.0
  %4155 = vmatprep.subr.mxu0 0.0
  %4156 = vmatpush1.msra.mxu0 0.0
  %4157 = vmatprep.subr.mxu0 0.0
  %4158 = vmatpush1.msra.mxu0 0.0
  %4159 = vmatprep.mubr.f32.mxu0 0.0
  %v4160 = vand.u32 %v3921, 4294901760
  %4161 = vmatmul.mubr.f32.gmra.mrb[0].mxu0 %v4160
  %v4162 = vpop.f32.mrb[0].mxu0
  %v4163 = vadd.f32 %v4011, %v4162
  %v4164 = vpop.f32.mrb[0].mxu0
  %v4165 = vadd.f32 %v4013, %v4164
  %4166 = vdwg.mxu0
  %v4167 = vand.u32 %v1864, 4294901760
  %v4168 = vsub.f32 %v1864, %v4167
  %4169 = vmatprep.subr.mxu0 %v4168
  %v4170 = vand.u32 %v1863, 4294901760
  %v4171 = vsub.f32 %v1863, %v4170
  %4172 = vmatpush1.msra.mxu0 %v4171
  %v4173 = vand.u32 %v1866, 4294901760
  %v4174 = vsub.f32 %v1866, %v4173
  %4175 = vmatprep.subr.mxu0 %v4174
  %v4176 = vand.u32 %v1865, 4294901760
  %v4177 = vsub.f32 %v1865, %v4176
  %4178 = vmatpush1.msra.mxu0 %v4177
  %v4179 = vand.u32 %v1868, 4294901760
  %v4180 = vsub.f32 %v1868, %v4179
  %4181 = vmatprep.subr.mxu0 %v4180
  %v4182 = vand.u32 %v1867, 4294901760
  %v4183 = vsub.f32 %v1867, %v4182
  %4184 = vmatpush1.msra.mxu0 %v4183
  %v4185 = vand.u32 %v1870, 4294901760
  %v4186 = vsub.f32 %v1870, %v4185
  %4187 = vmatprep.subr.mxu0 %v4186
  %v4188 = vand.u32 %v1869, 4294901760
  %v4189 = vsub.f32 %v1869, %v4188
  %4190 = vmatpush1.msra.mxu0 %v4189
  %v4191 = vand.u32 %v1872, 4294901760
  %v4192 = vsub.f32 %v1872, %v4191
  %4193 = vmatprep.subr.mxu0 %v4192
  %v4194 = vand.u32 %v1871, 4294901760
  %v4195 = vsub.f32 %v1871, %v4194
  %4196 = vmatpush1.msra.mxu0 %v4195
  %v4197 = vand.u32 %v1874, 4294901760
  %v4198 = vsub.f32 %v1874, %v4197
  %4199 = vmatprep.subr.mxu0 %v4198
  %v4200 = vand.u32 %v1873, 4294901760
  %v4201 = vsub.f32 %v1873, %v4200
  %4202 = vmatpush1.msra.mxu0 %v4201
  %v4203 = vand.u32 %v1876, 4294901760
  %v4204 = vsub.f32 %v1876, %v4203
  %4205 = vmatprep.subr.mxu0 %v4204
  %v4206 = vand.u32 %v1875, 4294901760
  %v4207 = vsub.f32 %v1875, %v4206
  %4208 = vmatpush1.msra.mxu0 %v4207
  %v4209 = vand.u32 %v1878, 4294901760
  %v4210 = vsub.f32 %v1878, %v4209
  %4211 = vmatprep.subr.mxu0 %v4210
  %v4212 = vand.u32 %v1877, 4294901760
  %v4213 = vsub.f32 %v1877, %v4212
  %4214 = vmatpush1.msra.mxu0 %v4213
  %4215 = vmatprep.subr.mxu0 0.0
  %4216 = vmatpush1.msra.mxu0 0.0
  %4217 = vmatprep.subr.mxu0 0.0
  %4218 = vmatpush1.msra.mxu0 0.0
  %4219 = vmatprep.subr.mxu0 0.0
  %4220 = vmatpush1.msra.mxu0 0.0
  %4221 = vmatprep.subr.mxu0 0.0
  %4222 = vmatpush1.msra.mxu0 0.0
  %4223 = vmatprep.subr.mxu0 0.0
  %4224 = vmatpush1.msra.mxu0 0.0
  %4225 = vmatprep.subr.mxu0 0.0
  %4226 = vmatpush1.msra.mxu0 0.0
  %4227 = vmatprep.subr.mxu0 0.0
  %4228 = vmatpush1.msra.mxu0 0.0
  %4229 = vmatprep.subr.mxu0 0.0
  %4230 = vmatpush1.msra.mxu0 0.0
  %4231 = vmatprep.subr.mxu0 0.0
  %4232 = vmatpush1.msra.mxu0 0.0
  %4233 = vmatprep.subr.mxu0 0.0
  %4234 = vmatpush1.msra.mxu0 0.0
  %4235 = vmatprep.subr.mxu0 0.0
  %4236 = vmatpush1.msra.mxu0 0.0
  %4237 = vmatprep.subr.mxu0 0.0
  %4238 = vmatpush1.msra.mxu0 0.0
  %4239 = vmatprep.subr.mxu0 0.0
  %4240 = vmatpush1.msra.mxu0 0.0
  %4241 = vmatprep.subr.mxu0 0.0
  %4242 = vmatpush1.msra.mxu0 0.0
  %4243 = vmatprep.subr.mxu0 0.0
  %4244 = vmatpush1.msra.mxu0 0.0
  %4245 = vmatprep.subr.mxu0 0.0
  %4246 = vmatpush1.msra.mxu0 0.0
  %4247 = vmatprep.subr.mxu0 0.0
  %4248 = vmatpush1.msra.mxu0 0.0
  %4249 = vmatprep.subr.mxu0 0.0
  %4250 = vmatpush1.msra.mxu0 0.0
  %4251 = vmatprep.subr.mxu0 0.0
  %4252 = vmatpush1.msra.mxu0 0.0
  %4253 = vmatprep.subr.mxu0 0.0
  %4254 = vmatpush1.msra.mxu0 0.0
  %4255 = vmatprep.subr.mxu0 0.0
  %4256 = vmatpush1.msra.mxu0 0.0
  %4257 = vmatprep.subr.mxu0 0.0
  %4258 = vmatpush1.msra.mxu0 0.0
  %4259 = vmatprep.subr.mxu0 0.0
  %4260 = vmatpush1.msra.mxu0 0.0
  %4261 = vmatprep.subr.mxu0 0.0
  %4262 = vmatpush1.msra.mxu0 0.0
  %4263 = vmatprep.mubr.f32.mxu0 0.0
  %v4264 = vand.u32 %v3921, 4294901760
  %v4265 = vsub.f32 %v3921, %v4264
  %4266 = vmatmul.mubr.f32.gmra.mrb[0].mxu0 %v4265
  %v4267 = vpop.f32.mrb[0].mxu0
  %v4268 = vadd.f32 %v4163, %v4267
  %v4269 = vpop.f32.mrb[0].mxu0
  %v4270 = vadd.f32 %v4165, %v4269
  %4271 = vdwg.mxu0
  %v4272 = vand.u32 %v1864, 4294901760
  %4273 = vmatprep.subr.mxu0 %v4272
  %v4274 = vand.u32 %v1863, 4294901760
  %4275 = vmatpush1.msra.mxu0 %v4274
  %v4276 = vand.u32 %v1866, 4294901760
  %4277 = vmatprep.subr.mxu0 %v4276
  %v4278 = vand.u32 %v1865, 4294901760
  %4279 = vmatpush1.msra.mxu0 %v4278
  %v4280 = vand.u32 %v1868, 4294901760
  %4281 = vmatprep.subr.mxu0 %v4280
  %v4282 = vand.u32 %v1867, 4294901760
  %4283 = vmatpush1.msra.mxu0 %v4282
  %v4284 = vand.u32 %v1870, 4294901760
  %4285 = vmatprep.subr.mxu0 %v4284
  %v4286 = vand.u32 %v1869, 4294901760
  %4287 = vmatpush1.msra.mxu0 %v4286
  %v4288 = vand.u32 %v1872, 4294901760
  %4289 = vmatprep.subr.mxu0 %v4288
  %v4290 = vand.u32 %v1871, 4294901760
  %4291 = vmatpush1.msra.mxu0 %v4290
  %v4292 = vand.u32 %v1874, 4294901760
  %4293 = vmatprep.subr.mxu0 %v4292
  %v4294 = vand.u32 %v1873, 4294901760
  %4295 = vmatpush1.msra.mxu0 %v4294
  %v4296 = vand.u32 %v1876, 4294901760
  %4297 = vmatprep.subr.mxu0 %v4296
  %v4298 = vand.u32 %v1875, 4294901760
  %4299 = vmatpush1.msra.mxu0 %v4298
  %v4300 = vand.u32 %v1878, 4294901760
  %4301 = vmatprep.subr.mxu0 %v4300
  %v4302 = vand.u32 %v1877, 4294901760
  %4303 = vmatpush1.msra.mxu0 %v4302
  %4304 = vmatprep.subr.mxu0 0.0
  %4305 = vmatpush1.msra.mxu0 0.0
  %4306 = vmatprep.subr.mxu0 0.0
  %4307 = vmatpush1.msra.mxu0 0.0
  %4308 = vmatprep.subr.mxu0 0.0
  %4309 = vmatpush1.msra.mxu0 0.0
  %4310 = vmatprep.subr.mxu0 0.0
  %4311 = vmatpush1.msra.mxu0 0.0
  %4312 = vmatprep.subr.mxu0 0.0
  %4313 = vmatpush1.msra.mxu0 0.0
  %4314 = vmatprep.subr.mxu0 0.0
  %4315 = vmatpush1.msra.mxu0 0.0
  %4316 = vmatprep.subr.mxu0 0.0
  %4317 = vmatpush1.msra.mxu0 0.0
  %4318 = vmatprep.subr.mxu0 0.0
  %4319 = vmatpush1.msra.mxu0 0.0
  %4320 = vmatprep.subr.mxu0 0.0
  %4321 = vmatpush1.msra.mxu0 0.0
  %4322 = vmatprep.subr.mxu0 0.0
  %4323 = vmatpush1.msra.mxu0 0.0
  %4324 = vmatprep.subr.mxu0 0.0
  %4325 = vmatpush1.msra.mxu0 0.0
  %4326 = vmatprep.subr.mxu0 0.0
  %4327 = vmatpush1.msra.mxu0 0.0
  %4328 = vmatprep.subr.mxu0 0.0
  %4329 = vmatpush1.msra.mxu0 0.0
  %4330 = vmatprep.subr.mxu0 0.0
  %4331 = vmatpush1.msra.mxu0 0.0
  %4332 = vmatprep.subr.mxu0 0.0
  %4333 = vmatpush1.msra.mxu0 0.0
  %4334 = vmatprep.subr.mxu0 0.0
  %4335 = vmatpush1.msra.mxu0 0.0
  %4336 = vmatprep.subr.mxu0 0.0
  %4337 = vmatpush1.msra.mxu0 0.0
  %4338 = vmatprep.subr.mxu0 0.0
  %4339 = vmatpush1.msra.mxu0 0.0
  %4340 = vmatprep.subr.mxu0 0.0
  %4341 = vmatpush1.msra.mxu0 0.0
  %4342 = vmatprep.subr.mxu0 0.0
  %4343 = vmatpush1.msra.mxu0 0.0
  %4344 = vmatprep.subr.mxu0 0.0
  %4345 = vmatpush1.msra.mxu0 0.0
  %4346 = vmatprep.subr.mxu0 0.0
  %4347 = vmatpush1.msra.mxu0 0.0
  %4348 = vmatprep.subr.mxu0 0.0
  %4349 = vmatpush1.msra.mxu0 0.0
  %4350 = vmatprep.subr.mxu0 0.0
  %4351 = vmatpush1.msra.mxu0 0.0
  %4352 = vmatprep.mubr.f32.mxu0 0.0
  %v4353 = vand.u32 %v3921, 4294901760
  %v4354 = vsub.f32 %v3921, %v4353
  %v4355 = vand.u32 %v4354, 4294901760
  %4356 = vmatmul.mubr.f32.gmra.mrb[0].mxu0 %v4355
  %v4357 = vpop.f32.mrb[0].mxu0
  %v4358 = vadd.f32 %v4268, %v4357
  %v4359 = vpop.f32.mrb[0].mxu0
  %v4360 = vadd.f32 %v4270, %v4359
  %4361 = vdwg.mxu0
  %v4362 = vand.u32 %v1864, 4294901760
  %v4363 = vsub.f32 %v1864, %v4362
  %v4364 = vand.u32 %v4363, 4294901760
  %4365 = vmatprep.subr.mxu0 %v4364
  %v4366 = vand.u32 %v1863, 4294901760
  %v4367 = vsub.f32 %v1863, %v4366
  %v4368 = vand.u32 %v4367, 4294901760
  %4369 = vmatpush1.msra.mxu0 %v4368
  %v4370 = vand.u32 %v1866, 4294901760
  %v4371 = vsub.f32 %v1866, %v4370
  %v4372 = vand.u32 %v4371, 4294901760
  %4373 = vmatprep.subr.mxu0 %v4372
  %v4374 = vand.u32 %v1865, 4294901760
  %v4375 = vsub.f32 %v1865, %v4374
  %v4376 = vand.u32 %v4375, 4294901760
  %4377 = vmatpush1.msra.mxu0 %v4376
  %v4378 = vand.u32 %v1868, 4294901760
  %v4379 = vsub.f32 %v1868, %v4378
  %v4380 = vand.u32 %v4379, 4294901760
  %4381 = vmatprep.subr.mxu0 %v4380
  %v4382 = vand.u32 %v1867, 4294901760
  %v4383 = vsub.f32 %v1867, %v4382
  %v4384 = vand.u32 %v4383, 4294901760
  %4385 = vmatpush1.msra.mxu0 %v4384
  %v4386 = vand.u32 %v1870, 4294901760
  %v4387 = vsub.f32 %v1870, %v4386
  %v4388 = vand.u32 %v4387, 4294901760
  %4389 = vmatprep.subr.mxu0 %v4388
  %v4390 = vand.u32 %v1869, 4294901760
  %v4391 = vsub.f32 %v1869, %v4390
  %v4392 = vand.u32 %v4391, 4294901760
  %4393 = vmatpush1.msra.mxu0 %v4392
  %v4394 = vand.u32 %v1872, 4294901760
  %v4395 = vsub.f32 %v1872, %v4394
  %v4396 = vand.u32 %v4395, 4294901760
  %4397 = vmatprep.subr.mxu0 %v4396
  %v4398 = vand.u32 %v1871, 4294901760
  %v4399 = vsub.f32 %v1871, %v4398
  %v4400 = vand.u32 %v4399, 4294901760
  %4401 = vmatpush1.msra.mxu0 %v4400
  %v4402 = vand.u32 %v1874, 4294901760
  %v4403 = vsub.f32 %v1874, %v4402
  %v4404 = vand.u32 %v4403, 4294901760
  %4405 = vmatprep.subr.mxu0 %v4404
  %v4406 = vand.u32 %v1873, 4294901760
  %v4407 = vsub.f32 %v1873, %v4406
  %v4408 = vand.u32 %v4407, 4294901760
  %4409 = vmatpush1.msra.mxu0 %v4408
  %v4410 = vand.u32 %v1876, 4294901760
  %v4411 = vsub.f32 %v1876, %v4410
  %v4412 = vand.u32 %v4411, 4294901760
  %4413 = vmatprep.subr.mxu0 %v4412
  %v4414 = vand.u32 %v1875, 4294901760
  %v4415 = vsub.f32 %v1875, %v4414
  %v4416 = vand.u32 %v4415, 4294901760
  %4417 = vmatpush1.msra.mxu0 %v4416
  %v4418 = vand.u32 %v1878, 4294901760
  %v4419 = vsub.f32 %v1878, %v4418
  %v4420 = vand.u32 %v4419, 4294901760
  %4421 = vmatprep.subr.mxu0 %v4420
  %v4422 = vand.u32 %v1877, 4294901760
  %v4423 = vsub.f32 %v1877, %v4422
  %v4424 = vand.u32 %v4423, 4294901760
  %4425 = vmatpush1.msra.mxu0 %v4424
  %4426 = vmatprep.subr.mxu0 0.0
  %4427 = vmatpush1.msra.mxu0 0.0
  %4428 = vmatprep.subr.mxu0 0.0
  %4429 = vmatpush1.msra.mxu0 0.0
  %4430 = vmatprep.subr.mxu0 0.0
  %4431 = vmatpush1.msra.mxu0 0.0
  %4432 = vmatprep.subr.mxu0 0.0
  %4433 = vmatpush1.msra.mxu0 0.0
  %4434 = vmatprep.subr.mxu0 0.0
  %4435 = vmatpush1.msra.mxu0 0.0
  %4436 = vmatprep.subr.mxu0 0.0
  %4437 = vmatpush1.msra.mxu0 0.0
  %4438 = vmatprep.subr.mxu0 0.0
  %4439 = vmatpush1.msra.mxu0 0.0
  %4440 = vmatprep.subr.mxu0 0.0
  %4441 = vmatpush1.msra.mxu0 0.0
  %4442 = vmatprep.subr.mxu0 0.0
  %4443 = vmatpush1.msra.mxu0 0.0
  %4444 = vmatprep.subr.mxu0 0.0
  %4445 = vmatpush1.msra.mxu0 0.0
  %4446 = vmatprep.subr.mxu0 0.0
  %4447 = vmatpush1.msra.mxu0 0.0
  %4448 = vmatprep.subr.mxu0 0.0
  %4449 = vmatpush1.msra.mxu0 0.0
  %4450 = vmatprep.subr.mxu0 0.0
  %4451 = vmatpush1.msra.mxu0 0.0
  %4452 = vmatprep.subr.mxu0 0.0
  %4453 = vmatpush1.msra.mxu0 0.0
  %4454 = vmatprep.subr.mxu0 0.0
  %4455 = vmatpush1.msra.mxu0 0.0
  %4456 = vmatprep.subr.mxu0 0.0
  %4457 = vmatpush1.msra.mxu0 0.0
  %4458 = vmatprep.subr.mxu0 0.0
  %4459 = vmatpush1.msra.mxu0 0.0
  %4460 = vmatprep.subr.mxu0 0.0
  %4461 = vmatpush1.msra.mxu0 0.0
  %4462 = vmatprep.subr.mxu0 0.0
  %4463 = vmatpush1.msra.mxu0 0.0
  %4464 = vmatprep.subr.mxu0 0.0
  %4465 = vmatpush1.msra.mxu0 0.0
  %4466 = vmatprep.subr.mxu0 0.0
  %4467 = vmatpush1.msra.mxu0 0.0
  %4468 = vmatprep.subr.mxu0 0.0
  %4469 = vmatpush1.msra.mxu0 0.0
  %4470 = vmatprep.subr.mxu0 0.0
  %4471 = vmatpush1.msra.mxu0 0.0
  %4472 = vmatprep.subr.mxu0 0.0
  %4473 = vmatpush1.msra.mxu0 0.0
  %4474 = vmatprep.mubr.f32.mxu0 0.0
  %v4475 = vand.u32 %v3921, 4294901760
  %4476 = vmatmul.mubr.f32.gmra.mrb[0].mxu0 %v4475
  %v4477 = vpop.f32.mrb[0].mxu0
  %v4478 = vadd.f32 %v4358, %v4477
  %v4479 = vpop.f32.mrb[0].mxu0
  %v4480 = vadd.f32 %v4360, %v4479
  %4481 = vdwg.mxu0
  %v4482 = vand.u32 %v1864, 4294901760
  %4483 = vmatprep.subr.mxu0 %v4482
  %v4484 = vand.u32 %v1863, 4294901760
  %4485 = vmatpush1.msra.mxu0 %v4484
  %v4486 = vand.u32 %v1866, 4294901760
  %4487 = vmatprep.subr.mxu0 %v4486
  %v4488 = vand.u32 %v1865, 4294901760
  %4489 = vmatpush1.msra.mxu0 %v4488
  %v4490 = vand.u32 %v1868, 4294901760
  %4491 = vmatprep.subr.mxu0 %v4490
  %v4492 = vand.u32 %v1867, 4294901760
  %4493 = vmatpush1.msra.mxu0 %v4492
  %v4494 = vand.u32 %v1870, 4294901760
  %4495 = vmatprep.subr.mxu0 %v4494
  %v4496 = vand.u32 %v1869, 4294901760
  %4497 = vmatpush1.msra.mxu0 %v4496
  %v4498 = vand.u32 %v1872, 4294901760
  %4499 = vmatprep.subr.mxu0 %v4498
  %v4500 = vand.u32 %v1871, 4294901760
  %4501 = vmatpush1.msra.mxu0 %v4500
  %v4502 = vand.u32 %v1874, 4294901760
  %4503 = vmatprep.subr.mxu0 %v4502
  %v4504 = vand.u32 %v1873, 4294901760
  %4505 = vmatpush1.msra.mxu0 %v4504
  %v4506 = vand.u32 %v1876, 4294901760
  %4507 = vmatprep.subr.mxu0 %v4506
  %v4508 = vand.u32 %v1875, 4294901760
  %4509 = vmatpush1.msra.mxu0 %v4508
  %v4510 = vand.u32 %v1878, 4294901760
  %4511 = vmatprep.subr.mxu0 %v4510
  %v4512 = vand.u32 %v1877, 4294901760
  %4513 = vmatpush1.msra.mxu0 %v4512
  %4514 = vmatprep.subr.mxu0 0.0
  %4515 = vmatpush1.msra.mxu0 0.0
  %4516 = vmatprep.subr.mxu0 0.0
  %4517 = vmatpush1.msra.mxu0 0.0
  %4518 = vmatprep.subr.mxu0 0.0
  %4519 = vmatpush1.msra.mxu0 0.0
  %4520 = vmatprep.subr.mxu0 0.0
  %4521 = vmatpush1.msra.mxu0 0.0
  %4522 = vmatprep.subr.mxu0 0.0
  %4523 = vmatpush1.msra.mxu0 0.0
  %4524 = vmatprep.subr.mxu0 0.0
  %4525 = vmatpush1.msra.mxu0 0.0
  %4526 = vmatprep.subr.mxu0 0.0
  %4527 = vmatpush1.msra.mxu0 0.0
  %4528 = vmatprep.subr.mxu0 0.0
  %4529 = vmatpush1.msra.mxu0 0.0
  %4530 = vmatprep.subr.mxu0 0.0
  %4531 = vmatpush1.msra.mxu0 0.0
  %4532 = vmatprep.subr.mxu0 0.0
  %4533 = vmatpush1.msra.mxu0 0.0
  %4534 = vmatprep.subr.mxu0 0.0
  %4535 = vmatpush1.msra.mxu0 0.0
  %4536 = vmatprep.subr.mxu0 0.0
  %4537 = vmatpush1.msra.mxu0 0.0
  %4538 = vmatprep.subr.mxu0 0.0
  %4539 = vmatpush1.msra.mxu0 0.0
  %4540 = vmatprep.subr.mxu0 0.0
  %4541 = vmatpush1.msra.mxu0 0.0
  %4542 = vmatprep.subr.mxu0 0.0
  %4543 = vmatpush1.msra.mxu0 0.0
  %4544 = vmatprep.subr.mxu0 0.0
  %4545 = vmatpush1.msra.mxu0 0.0
  %4546 = vmatprep.subr.mxu0 0.0
  %4547 = vmatpush1.msra.mxu0 0.0
  %4548 = vmatprep.subr.mxu0 0.0
  %4549 = vmatpush1.msra.mxu0 0.0
  %4550 = vmatprep.subr.mxu0 0.0
  %4551 = vmatpush1.msra.mxu0 0.0
  %4552 = vmatprep.subr.mxu0 0.0
  %4553 = vmatpush1.msra.mxu0 0.0
  %4554 = vmatprep.subr.mxu0 0.0
  %4555 = vmatpush1.msra.mxu0 0.0
  %4556 = vmatprep.subr.mxu0 0.0
  %4557 = vmatpush1.msra.mxu0 0.0
  %4558 = vmatprep.subr.mxu0 0.0
  %4559 = vmatpush1.msra.mxu0 0.0
  %4560 = vmatprep.subr.mxu0 0.0
  %4561 = vmatpush1.msra.mxu0 0.0
  %4562 = vmatprep.mubr.f32.mxu0 0.0
  %v4563 = vand.u32 %v3921, 4294901760
  %4564 = vmatmul.mubr.f32.gmra.mrb[0].mxu0 %v4563
  %v4565 = vpop.f32.mrb[0].mxu0
  %v4566 = vadd.f32 %v4478, %v4565
  %v4567 = vpop.f32.mrb[0].mxu0
  %v4568 = vadd.f32 %v4480, %v4567
  %4569 = vdwg.mxu0
  %v4570 = vmul.f32 %v4566, 0.5
  %v4571 = vmul.f32 %v4568, 0.5
  %v4572 = vtanh.pop %v4570
  %v4573 = vtanh.pop %v4571
  %v4574 = vmul.f32 %v4572, 0.5
  %v4575 = vmul.f32 %v4573, 0.5
  %v4576 = vadd.f32 %v4574, 0.5
  %v4577 = vadd.f32 %v4575, 0.5
  %v4578 = vtanh.pop %v4568
  %v4579 = vmul.f32 %v4576, %v3911
  %4581 = vrot.lane.b32.xlu0 %v4578, 64
  %v4582 = vpop.permute.xlu0 %4581
  %v4584 = vmul.f32 %v4576, %v4582
  %4586 = vrot.lane.b32.xlu0 %v4584, 64
  %v4587 = vpop.permute.xlu0 %4586
  %v4589 = vadd.f32 %v4579, %v4587
  %v4590 = vtanh.pop %v4589
  %4592 = vrot.lane.b32.xlu0 %v4590, 64
  %v4593 = vpop.permute.xlu0 %4592
  %v4595 = vmul.f32 %v4577, %v4593
  %v4596 = vld [vmem:[#allocation2 + $0x50] sm:$0xff]
  %v4597 = vld [vmem:[#allocation2 + $0x58] sm:$0xff]
  %v4599 = vsel %vm1881, %v4595, 0
  %v4601 = vand.u32 %v1864, 4294901760
  %4602 = vmatprep.subr.mxu0 %v4601
  %v4603 = vand.u32 %v1863, 4294901760
  %4604 = vmatpush1.msra.mxu0 %v4603
  %v4605 = vand.u32 %v1866, 4294901760
  %4606 = vmatprep.subr.mxu0 %v4605
  %v4607 = vand.u32 %v1865, 4294901760
  %4608 = vmatpush1.msra.mxu0 %v4607
  %v4609 = vand.u32 %v1868, 4294901760
  %4610 = vmatprep.subr.mxu0 %v4609
  %v4611 = vand.u32 %v1867, 4294901760
  %4612 = vmatpush1.msra.mxu0 %v4611
  %v4613 = vand.u32 %v1870, 4294901760
  %4614 = vmatprep.subr.mxu0 %v4613
  %v4615 = vand.u32 %v1869, 4294901760
  %4616 = vmatpush1.msra.mxu0 %v4615
  %v4617 = vand.u32 %v1872, 4294901760
  %4618 = vmatprep.subr.mxu0 %v4617
  %v4619 = vand.u32 %v1871, 4294901760
  %4620 = vmatpush1.msra.mxu0 %v4619
  %v4621 = vand.u32 %v1874, 4294901760
  %4622 = vmatprep.subr.mxu0 %v4621
  %v4623 = vand.u32 %v1873, 4294901760
  %4624 = vmatpush1.msra.mxu0 %v4623
  %v4625 = vand.u32 %v1876, 4294901760
  %4626 = vmatprep.subr.mxu0 %v4625
  %v4627 = vand.u32 %v1875, 4294901760
  %4628 = vmatpush1.msra.mxu0 %v4627
  %v4629 = vand.u32 %v1878, 4294901760
  %4630 = vmatprep.subr.mxu0 %v4629
  %v4631 = vand.u32 %v1877, 4294901760
  %4632 = vmatpush1.msra.mxu0 %v4631
  %4633 = vmatprep.subr.mxu0 0.0
  %4634 = vmatpush1.msra.mxu0 0.0
  %4635 = vmatprep.subr.mxu0 0.0
  %4636 = vmatpush1.msra.mxu0 0.0
  %4637 = vmatprep.subr.mxu0 0.0
  %4638 = vmatpush1.msra.mxu0 0.0
  %4639 = vmatprep.subr.mxu0 0.0
  %4640 = vmatpush1.msra.mxu0 0.0
  %4641 = vmatprep.subr.mxu0 0.0
  %4642 = vmatpush1.msra.mxu0 0.0
  %4643 = vmatprep.subr.mxu0 0.0
  %4644 = vmatpush1.msra.mxu0 0.0
  %4645 = vmatprep.subr.mxu0 0.0
  %4646 = vmatpush1.msra.mxu0 0.0
  %4647 = vmatprep.subr.mxu0 0.0
  %4648 = vmatpush1.msra.mxu0 0.0
  %4649 = vmatprep.subr.mxu0 0.0
  %4650 = vmatpush1.msra.mxu0 0.0
  %4651 = vmatprep.subr.mxu0 0.0
  %4652 = vmatpush1.msra.mxu0 0.0
  %4653 = vmatprep.subr.mxu0 0.0
  %4654 = vmatpush1.msra.mxu0 0.0
  %4655 = vmatprep.subr.mxu0 0.0
  %4656 = vmatpush1.msra.mxu0 0.0
  %4657 = vmatprep.subr.mxu0 0.0
  %4658 = vmatpush1.msra.mxu0 0.0
  %4659 = vmatprep.subr.mxu0 0.0
  %4660 = vmatpush1.msra.mxu0 0.0
  %4661 = vmatprep.subr.mxu0 0.0
  %4662 = vmatpush1.msra.mxu0 0.0
  %4663 = vmatprep.subr.mxu0 0.0
  %4664 = vmatpush1.msra.mxu0 0.0
  %4665 = vmatprep.subr.mxu0 0.0
  %4666 = vmatpush1.msra.mxu0 0.0
  %4667 = vmatprep.subr.mxu0 0.0
  %4668 = vmatpush1.msra.mxu0 0.0
  %4669 = vmatprep.subr.mxu0 0.0
  %4670 = vmatpush1.msra.mxu0 0.0
  %4671 = vmatprep.subr.mxu0 0.0
  %4672 = vmatpush1.msra.mxu0 0.0
  %4673 = vmatprep.subr.mxu0 0.0
  %4674 = vmatpush1.msra.mxu0 0.0
  %4675 = vmatprep.subr.mxu0 0.0
  %4676 = vmatpush1.msra.mxu0 0.0
  %4677 = vmatprep.subr.mxu0 0.0
  %4678 = vmatpush1.msra.mxu0 0.0
  %4679 = vmatprep.subr.mxu0 0.0
  %4680 = vmatpush1.msra.mxu0 0.0
  %4681 = vmatprep.mubr.f32.mxu0 0.0
  %v4682 = vand.u32 %v4599, 4294901760
  %v4683 = vsub.f32 %v4599, %v4682
  %v4684 = vand.u32 %v4683, 4294901760
  %v4685 = vsub.f32 %v4683, %v4684
  %v4686 = vand.u32 %v4685, 4294901760
  %4687 = vmatmul.mubr.f32.gmra.mrb[0].mxu0 %v4686
  %v4688 = vpop.f32.mrb[0].mxu0
  %v4689 = vadd.f32 %v4596, %v4688
  %v4690 = vpop.f32.mrb[0].mxu0
  %v4691 = vadd.f32 %v4597, %v4690
  %4692 = vdwg.mxu0
  %v4693 = vand.u32 %v1864, 4294901760
  %v4694 = vsub.f32 %v1864, %v4693
  %v4695 = vand.u32 %v4694, 4294901760
  %v4696 = vsub.f32 %v4694, %v4695
  %v4697 = vand.u32 %v4696, 4294901760
  %4698 = vmatprep.subr.mxu0 %v4697
  %v4699 = vand.u32 %v1863, 4294901760
  %v4700 = vsub.f32 %v1863, %v4699
  %v4701 = vand.u32 %v4700, 4294901760
  %v4702 = vsub.f32 %v4700, %v4701
  %v4703 = vand.u32 %v4702, 4294901760
  %4704 = vmatpush1.msra.mxu0 %v4703
  %v4705 = vand.u32 %v1866, 4294901760
  %v4706 = vsub.f32 %v1866, %v4705
  %v4707 = vand.u32 %v4706, 4294901760
  %v4708 = vsub.f32 %v4706, %v4707
  %v4709 = vand.u32 %v4708, 4294901760
  %4710 = vmatprep.subr.mxu0 %v4709
  %v4711 = vand.u32 %v1865, 4294901760
  %v4712 = vsub.f32 %v1865, %v4711
  %v4713 = vand.u32 %v4712, 4294901760
  %v4714 = vsub.f32 %v4712, %v4713
  %v4715 = vand.u32 %v4714, 4294901760
  %4716 = vmatpush1.msra.mxu0 %v4715
  %v4717 = vand.u32 %v1868, 4294901760
  %v4718 = vsub.f32 %v1868, %v4717
  %v4719 = vand.u32 %v4718, 4294901760
  %v4720 = vsub.f32 %v4718, %v4719
  %v4721 = vand.u32 %v4720, 4294901760
  %4722 = vmatprep.subr.mxu0 %v4721
  %v4723 = vand.u32 %v1867, 4294901760
  %v4724 = vsub.f32 %v1867, %v4723
  %v4725 = vand.u32 %v4724, 4294901760
  %v4726 = vsub.f32 %v4724, %v4725
  %v4727 = vand.u32 %v4726, 4294901760
  %4728 = vmatpush1.msra.mxu0 %v4727
  %v4729 = vand.u32 %v1870, 4294901760
  %v4730 = vsub.f32 %v1870, %v4729
  %v4731 = vand.u32 %v4730, 4294901760
  %v4732 = vsub.f32 %v4730, %v4731
  %v4733 = vand.u32 %v4732, 4294901760
  %4734 = vmatprep.subr.mxu0 %v4733
  %v4735 = vand.u32 %v1869, 4294901760
  %v4736 = vsub.f32 %v1869, %v4735
  %v4737 = vand.u32 %v4736, 4294901760
  %v4738 = vsub.f32 %v4736, %v4737
  %v4739 = vand.u32 %v4738, 4294901760
  %4740 = vmatpush1.msra.mxu0 %v4739
  %v4741 = vand.u32 %v1872, 4294901760
  %v4742 = vsub.f32 %v1872, %v4741
  %v4743 = vand.u32 %v4742, 4294901760
  %v4744 = vsub.f32 %v4742, %v4743
  %v4745 = vand.u32 %v4744, 4294901760
  %4746 = vmatprep.subr.mxu0 %v4745
  %v4747 = vand.u32 %v1871, 4294901760
  %v4748 = vsub.f32 %v1871, %v4747
  %v4749 = vand.u32 %v4748, 4294901760
  %v4750 = vsub.f32 %v4748, %v4749
  %v4751 = vand.u32 %v4750, 4294901760
  %4752 = vmatpush1.msra.mxu0 %v4751
  %v4753 = vand.u32 %v1874, 4294901760
  %v4754 = vsub.f32 %v1874, %v4753
  %v4755 = vand.u32 %v4754, 4294901760
  %v4756 = vsub.f32 %v4754, %v4755
  %v4757 = vand.u32 %v4756, 4294901760
  %4758 = vmatprep.subr.mxu0 %v4757
  %v4759 = vand.u32 %v1873, 4294901760
  %v4760 = vsub.f32 %v1873, %v4759
  %v4761 = vand.u32 %v4760, 4294901760
  %v4762 = vsub.f32 %v4760, %v4761
  %v4763 = vand.u32 %v4762, 4294901760
  %4764 = vmatpush1.msra.mxu0 %v4763
  %v4765 = vand.u32 %v1876, 4294901760
  %v4766 = vsub.f32 %v1876, %v4765
  %v4767 = vand.u32 %v4766, 4294901760
  %v4768 = vsub.f32 %v4766, %v4767
  %v4769 = vand.u32 %v4768, 4294901760
  %4770 = vmatprep.subr.mxu0 %v4769
  %v4771 = vand.u32 %v1875, 4294901760
  %v4772 = vsub.f32 %v1875, %v4771
  %v4773 = vand.u32 %v4772, 4294901760
  %v4774 = vsub.f32 %v4772, %v4773
  %v4775 = vand.u32 %v4774, 4294901760
  %4776 = vmatpush1.msra.mxu0 %v4775
  %v4777 = vand.u32 %v1878, 4294901760
  %v4778 = vsub.f32 %v1878, %v4777
  %v4779 = vand.u32 %v4778, 4294901760
  %v4780 = vsub.f32 %v4778, %v4779
  %v4781 = vand.u32 %v4780, 4294901760
  %4782 = vmatprep.subr.mxu0 %v4781
  %v4783 = vand.u32 %v1877, 4294901760
  %v4784 = vsub.f32 %v1877, %v4783
  %v4785 = vand.u32 %v4784, 4294901760
  %v4786 = vsub.f32 %v4784, %v4785
  %v4787 = vand.u32 %v4786, 4294901760
  %4788 = vmatpush1.msra.mxu0 %v4787
  %4789 = vmatprep.subr.mxu0 0.0
  %4790 = vmatpush1.msra.mxu0 0.0
  %4791 = vmatprep.subr.mxu0 0.0
  %4792 = vmatpush1.msra.mxu0 0.0
  %4793 = vmatprep.subr.mxu0 0.0
  %4794 = vmatpush1.msra.mxu0 0.0
  %4795 = vmatprep.subr.mxu0 0.0
  %4796 = vmatpush1.msra.mxu0 0.0
  %4797 = vmatprep.subr.mxu0 0.0
  %4798 = vmatpush1.msra.mxu0 0.0
  %4799 = vmatprep.subr.mxu0 0.0
  %4800 = vmatpush1.msra.mxu0 0.0
  %4801 = vmatprep.subr.mxu0 0.0
  %4802 = vmatpush1.msra.mxu0 0.0
  %4803 = vmatprep.subr.mxu0 0.0
  %4804 = vmatpush1.msra.mxu0 0.0
  %4805 = vmatprep.subr.mxu0 0.0
  %4806 = vmatpush1.msra.mxu0 0.0
  %4807 = vmatprep.subr.mxu0 0.0
  %4808 = vmatpush1.msra.mxu0 0.0
  %4809 = vmatprep.subr.mxu0 0.0
  %4810 = vmatpush1.msra.mxu0 0.0
  %4811 = vmatprep.subr.mxu0 0.0
  %4812 = vmatpush1.msra.mxu0 0.0
  %4813 = vmatprep.subr.mxu0 0.0
  %4814 = vmatpush1.msra.mxu0 0.0
  %4815 = vmatprep.subr.mxu0 0.0
  %4816 = vmatpush1.msra.mxu0 0.0
  %4817 = vmatprep.subr.mxu0 0.0
  %4818 = vmatpush1.msra.mxu0 0.0
  %4819 = vmatprep.subr.mxu0 0.0
  %4820 = vmatpush1.msra.mxu0 0.0
  %4821 = vmatprep.subr.mxu0 0.0
  %4822 = vmatpush1.msra.mxu0 0.0
  %4823 = vmatprep.subr.mxu0 0.0
  %4824 = vmatpush1.msra.mxu0 0.0
  %4825 = vmatprep.subr.mxu0 0.0
  %4826 = vmatpush1.msra.mxu0 0.0
  %4827 = vmatprep.subr.mxu0 0.0
  %4828 = vmatpush1.msra.mxu0 0.0
  %4829 = vmatprep.subr.mxu0 0.0
  %4830 = vmatpush1.msra.mxu0 0.0
  %4831 = vmatprep.subr.mxu0 0.0
  %4832 = vmatpush1.msra.mxu0 0.0
  %4833 = vmatprep.subr.mxu0 0.0
  %4834 = vmatpush1.msra.mxu0 0.0
  %4835 = vmatprep.subr.mxu0 0.0
  %4836 = vmatpush1.msra.mxu0 0.0
  %4837 = vmatprep.mubr.f32.mxu0 0.0
  %v4838 = vand.u32 %v4599, 4294901760
  %4839 = vmatmul.mubr.f32.gmra.mrb[0].mxu0 %v4838
  %v4840 = vpop.f32.mrb[0].mxu0
  %v4841 = vadd.f32 %v4689, %v4840
  %v4842 = vpop.f32.mrb[0].mxu0
  %v4843 = vadd.f32 %v4691, %v4842
  %4844 = vdwg.mxu0
  %v4845 = vand.u32 %v1864, 4294901760
  %v4846 = vsub.f32 %v1864, %v4845
  %4847 = vmatprep.subr.mxu0 %v4846
  %v4848 = vand.u32 %v1863, 4294901760
  %v4849 = vsub.f32 %v1863, %v4848
  %4850 = vmatpush1.msra.mxu0 %v4849
  %v4851 = vand.u32 %v1866, 4294901760
  %v4852 = vsub.f32 %v1866, %v4851
  %4853 = vmatprep.subr.mxu0 %v4852
  %v4854 = vand.u32 %v1865, 4294901760
  %v4855 = vsub.f32 %v1865, %v4854
  %4856 = vmatpush1.msra.mxu0 %v4855
  %v4857 = vand.u32 %v1868, 4294901760
  %v4858 = vsub.f32 %v1868, %v4857
  %4859 = vmatprep.subr.mxu0 %v4858
  %v4860 = vand.u32 %v1867, 4294901760
  %v4861 = vsub.f32 %v1867, %v4860
  %4862 = vmatpush1.msra.mxu0 %v4861
  %v4863 = vand.u32 %v1870, 4294901760
  %v4864 = vsub.f32 %v1870, %v4863
  %4865 = vmatprep.subr.mxu0 %v4864
  %v4866 = vand.u32 %v1869, 4294901760
  %v4867 = vsub.f32 %v1869, %v4866
  %4868 = vmatpush1.msra.mxu0 %v4867
  %v4869 = vand.u32 %v1872, 4294901760
  %v4870 = vsub.f32 %v1872, %v4869
  %4871 = vmatprep.subr.mxu0 %v4870
  %v4872 = vand.u32 %v1871, 4294901760
  %v4873 = vsub.f32 %v1871, %v4872
  %4874 = vmatpush1.msra.mxu0 %v4873
  %v4875 = vand.u32 %v1874, 4294901760
  %v4876 = vsub.f32 %v1874, %v4875
  %4877 = vmatprep.subr.mxu0 %v4876
  %v4878 = vand.u32 %v1873, 4294901760
  %v4879 = vsub.f32 %v1873, %v4878
  %4880 = vmatpush1.msra.mxu0 %v4879
  %v4881 = vand.u32 %v1876, 4294901760
  %v4882 = vsub.f32 %v1876, %v4881
  %4883 = vmatprep.subr.mxu0 %v4882
  %v4884 = vand.u32 %v1875, 4294901760
  %v4885 = vsub.f32 %v1875, %v4884
  %4886 = vmatpush1.msra.mxu0 %v4885
  %v4887 = vand.u32 %v1878, 4294901760
  %v4888 = vsub.f32 %v1878, %v4887
  %4889 = vmatprep.subr.mxu0 %v4888
  %v4890 = vand.u32 %v1877, 4294901760
  %v4891 = vsub.f32 %v1877, %v4890
  %4892 = vmatpush1.msra.mxu0 %v4891
  %4893 = vmatprep.subr.mxu0 0.0
  %4894 = vmatpush1.msra.mxu0 0.0
  %4895 = vmatprep.subr.mxu0 0.0
  %4896 = vmatpush1.msra.mxu0 0.0
  %4897 = vmatprep.subr.mxu0 0.0
  %4898 = vmatpush1.msra.mxu0 0.0
  %4899 = vmatprep.subr.mxu0 0.0
  %4900 = vmatpush1.msra.mxu0 0.0
  %4901 = vmatprep.subr.mxu0 0.0
  %4902 = vmatpush1.msra.mxu0 0.0
  %4903 = vmatprep.subr.mxu0 0.0
  %4904 = vmatpush1.msra.mxu0 0.0
  %4905 = vmatprep.subr.mxu0 0.0
  %4906 = vmatpush1.msra.mxu0 0.0
  %4907 = vmatprep.subr.mxu0 0.0
  %4908 = vmatpush1.msra.mxu0 0.0
  %4909 = vmatprep.subr.mxu0 0.0
  %4910 = vmatpush1.msra.mxu0 0.0
  %4911 = vmatprep.subr.mxu0 0.0
  %4912 = vmatpush1.msra.mxu0 0.0
  %4913 = vmatprep.subr.mxu0 0.0
  %4914 = vmatpush1.msra.mxu0 0.0
  %4915 = vmatprep.subr.mxu0 0.0
  %4916 = vmatpush1.msra.mxu0 0.0
  %4917 = vmatprep.subr.mxu0 0.0
  %4918 = vmatpush1.msra.mxu0 0.0
  %4919 = vmatprep.subr.mxu0 0.0
  %4920 = vmatpush1.msra.mxu0 0.0
  %4921 = vmatprep.subr.mxu0 0.0
  %4922 = vmatpush1.msra.mxu0 0.0
  %4923 = vmatprep.subr.mxu0 0.0
  %4924 = vmatpush1.msra.mxu0 0.0
  %4925 = vmatprep.subr.mxu0 0.0
  %4926 = vmatpush1.msra.mxu0 0.0
  %4927 = vmatprep.subr.mxu0 0.0
  %4928 = vmatpush1.msra.mxu0 0.0
  %4929 = vmatprep.subr.mxu0 0.0
  %4930 = vmatpush1.msra.mxu0 0.0
  %4931 = vmatprep.subr.mxu0 0.0
  %4932 = vmatpush1.msra.mxu0 0.0
  %4933 = vmatprep.subr.mxu0 0.0
  %4934 = vmatpush1.msra.mxu0 0.0
  %4935 = vmatprep.subr.mxu0 0.0
  %4936 = vmatpush1.msra.mxu0 0.0
  %4937 = vmatprep.subr.mxu0 0.0
  %4938 = vmatpush1.msra.mxu0 0.0
  %4939 = vmatprep.subr.mxu0 0.0
  %4940 = vmatpush1.msra.mxu0 0.0
  %4941 = vmatprep.mubr.f32.mxu0 0.0
  %v4942 = vand.u32 %v4599, 4294901760
  %v4943 = vsub.f32 %v4599, %v4942
  %4944 = vmatmul.mubr.f32.gmra.mrb[0].mxu0 %v4943
  %v4945 = vpop.f32.mrb[0].mxu0
  %v4946 = vadd.f32 %v4841, %v4945
  %v4947 = vpop.f32.mrb[0].mxu0
  %v4948 = vadd.f32 %v4843, %v4947
  %4949 = vdwg.mxu0
  %v4950 = vand.u32 %v1864, 4294901760
  %4951 = vmatprep.subr.mxu0 %v4950
  %v4952 = vand.u32 %v1863, 4294901760
  %4953 = vmatpush1.msra.mxu0 %v4952
  %v4954 = vand.u32 %v1866, 4294901760
  %4955 = vmatprep.subr.mxu0 %v4954
  %v4956 = vand.u32 %v1865, 4294901760
  %4957 = vmatpush1.msra.mxu0 %v4956
  %v4958 = vand.u32 %v1868, 4294901760
  %4959 = vmatprep.subr.mxu0 %v4958
  %v4960 = vand.u32 %v1867, 4294901760
  %4961 = vmatpush1.msra.mxu0 %v4960
  %v4962 = vand.u32 %v1870, 4294901760
  %4963 = vmatprep.subr.mxu0 %v4962
  %v4964 = vand.u32 %v1869, 4294901760
  %4965 = vmatpush1.msra.mxu0 %v4964
  %v4966 = vand.u32 %v1872, 4294901760
  %4967 = vmatprep.subr.mxu0 %v4966
  %v4968 = vand.u32 %v1871, 4294901760
  %4969 = vmatpush1.msra.mxu0 %v4968
  %v4970 = vand.u32 %v1874, 4294901760
  %4971 = vmatprep.subr.mxu0 %v4970
  %v4972 = vand.u32 %v1873, 4294901760
  %4973 = vmatpush1.msra.mxu0 %v4972
  %v4974 = vand.u32 %v1876, 4294901760
  %4975 = vmatprep.subr.mxu0 %v4974
  %v4976 = vand.u32 %v1875, 4294901760
  %4977 = vmatpush1.msra.mxu0 %v4976
  %v4978 = vand.u32 %v1878, 4294901760
  %4979 = vmatprep.subr.mxu0 %v4978
  %v4980 = vand.u32 %v1877, 4294901760
  %4981 = vmatpush1.msra.mxu0 %v4980
  %4982 = vmatprep.subr.mxu0 0.0
  %4983 = vmatpush1.msra.mxu0 0.0
  %4984 = vmatprep.subr.mxu0 0.0
  %4985 = vmatpush1.msra.mxu0 0.0
  %4986 = vmatprep.subr.mxu0 0.0
  %4987 = vmatpush1.msra.mxu0 0.0
  %4988 = vmatprep.subr.mxu0 0.0
  %4989 = vmatpush1.msra.mxu0 0.0
  %4990 = vmatprep.subr.mxu0 0.0
  %4991 = vmatpush1.msra.mxu0 0.0
  %4992 = vmatprep.subr.mxu0 0.0
  %4993 = vmatpush1.msra.mxu0 0.0
  %4994 = vmatprep.subr.mxu0 0.0
  %4995 = vmatpush1.msra.mxu0 0.0
  %4996 = vmatprep.subr.mxu0 0.0
  %4997 = vmatpush1.msra.mxu0 0.0
  %4998 = vmatprep.subr.mxu0 0.0
  %4999 = vmatpush1.msra.mxu0 0.0
  %5000 = vmatprep.subr.mxu0 0.0
  %5001 = vmatpush1.msra.mxu0 0.0
  %5002 = vmatprep.subr.mxu0 0.0
  %5003 = vmatpush1.msra.mxu0 0.0
  %5004 = vmatprep.subr.mxu0 0.0
  %5005 = vmatpush1.msra.mxu0 0.0
  %5006 = vmatprep.subr.mxu0 0.0
  %5007 = vmatpush1.msra.mxu0 0.0
  %5008 = vmatprep.subr.mxu0 0.0
  %5009 = vmatpush1.msra.mxu0 0.0
  %5010 = vmatprep.subr.mxu0 0.0
  %5011 = vmatpush1.msra.mxu0 0.0
  %5012 = vmatprep.subr.mxu0 0.0
  %5013 = vmatpush1.msra.mxu0 0.0
  %5014 = vmatprep.subr.mxu0 0.0
  %5015 = vmatpush1.msra.mxu0 0.0
  %5016 = vmatprep.subr.mxu0 0.0
  %5017 = vmatpush1.msra.mxu0 0.0
  %5018 = vmatprep.subr.mxu0 0.0
  %5019 = vmatpush1.msra.mxu0 0.0
  %5020 = vmatprep.subr.mxu0 0.0
  %5021 = vmatpush1.msra.mxu0 0.0
  %5022 = vmatprep.subr.mxu0 0.0
  %5023 = vmatpush1.msra.mxu0 0.0
  %5024 = vmatprep.subr.mxu0 0.0
  %5025 = vmatpush1.msra.mxu0 0.0
  %5026 = vmatprep.subr.mxu0 0.0
  %5027 = vmatpush1.msra.mxu0 0.0
  %5028 = vmatprep.subr.mxu0 0.0
  %5029 = vmatpush1.msra.mxu0 0.0
  %5030 = vmatprep.mubr.f32.mxu0 0.0
  %v5031 = vand.u32 %v4599, 4294901760
  %v5032 = vsub.f32 %v4599, %v5031
  %v5033 = vand.u32 %v5032, 4294901760
  %5034 = vmatmul.mubr.f32.gmra.mrb[0].mxu0 %v5033
  %v5035 = vpop.f32.mrb[0].mxu0
  %v5036 = vadd.f32 %v4946, %v5035
  %v5037 = vpop.f32.mrb[0].mxu0
  %v5038 = vadd.f32 %v4948, %v5037
  %5039 = vdwg.mxu0
  %v5040 = vand.u32 %v1864, 4294901760
  %v5041 = vsub.f32 %v1864, %v5040
  %v5042 = vand.u32 %v5041, 4294901760
  %5043 = vmatprep.subr.mxu0 %v5042
  %v5044 = vand.u32 %v1863, 4294901760
  %v5045 = vsub.f32 %v1863, %v5044
  %v5046 = vand.u32 %v5045, 4294901760
  %5047 = vmatpush1.msra.mxu0 %v5046
  %v5048 = vand.u32 %v1866, 4294901760
  %v5049 = vsub.f32 %v1866, %v5048
  %v5050 = vand.u32 %v5049, 4294901760
  %5051 = vmatprep.subr.mxu0 %v5050
  %v5052 = vand.u32 %v1865, 4294901760
  %v5053 = vsub.f32 %v1865, %v5052
  %v5054 = vand.u32 %v5053, 4294901760
  %5055 = vmatpush1.msra.mxu0 %v5054
  %v5056 = vand.u32 %v1868, 4294901760
  %v5057 = vsub.f32 %v1868, %v5056
  %v5058 = vand.u32 %v5057, 4294901760
  %5059 = vmatprep.subr.mxu0 %v5058
  %v5060 = vand.u32 %v1867, 4294901760
  %v5061 = vsub.f32 %v1867, %v5060
  %v5062 = vand.u32 %v5061, 4294901760
  %5063 = vmatpush1.msra.mxu0 %v5062
  %v5064 = vand.u32 %v1870, 4294901760
  %v5065 = vsub.f32 %v1870, %v5064
  %v5066 = vand.u32 %v5065, 4294901760
  %5067 = vmatprep.subr.mxu0 %v5066
  %v5068 = vand.u32 %v1869, 4294901760
  %v5069 = vsub.f32 %v1869, %v5068
  %v5070 = vand.u32 %v5069, 4294901760
  %5071 = vmatpush1.msra.mxu0 %v5070
  %v5072 = vand.u32 %v1872, 4294901760
  %v5073 = vsub.f32 %v1872, %v5072
  %v5074 = vand.u32 %v5073, 4294901760
  %5075 = vmatprep.subr.mxu0 %v5074
  %v5076 = vand.u32 %v1871, 4294901760
  %v5077 = vsub.f32 %v1871, %v5076
  %v5078 = vand.u32 %v5077, 4294901760
  %5079 = vmatpush1.msra.mxu0 %v5078
  %v5080 = vand.u32 %v1874, 4294901760
  %v5081 = vsub.f32 %v1874, %v5080
  %v5082 = vand.u32 %v5081, 4294901760
  %5083 = vmatprep.subr.mxu0 %v5082
  %v5084 = vand.u32 %v1873, 4294901760
  %v5085 = vsub.f32 %v1873, %v5084
  %v5086 = vand.u32 %v5085, 4294901760
  %5087 = vmatpush1.msra.mxu0 %v5086
  %v5088 = vand.u32 %v1876, 4294901760
  %v5089 = vsub.f32 %v1876, %v5088
  %v5090 = vand.u32 %v5089, 4294901760
  %5091 = vmatprep.subr.mxu0 %v5090
  %v5092 = vand.u32 %v1875, 4294901760
  %v5093 = vsub.f32 %v1875, %v5092
  %v5094 = vand.u32 %v5093, 4294901760
  %5095 = vmatpush1.msra.mxu0 %v5094
  %v5096 = vand.u32 %v1878, 4294901760
  %v5097 = vsub.f32 %v1878, %v5096
  %v5098 = vand.u32 %v5097, 4294901760
  %5099 = vmatprep.subr.mxu0 %v5098
  %v5100 = vand.u32 %v1877, 4294901760
  %v5101 = vsub.f32 %v1877, %v5100
  %v5102 = vand.u32 %v5101, 4294901760
  %5103 = vmatpush1.msra.mxu0 %v5102
  %5104 = vmatprep.subr.mxu0 0.0
  %5105 = vmatpush1.msra.mxu0 0.0
  %5106 = vmatprep.subr.mxu0 0.0
  %5107 = vmatpush1.msra.mxu0 0.0
  %5108 = vmatprep.subr.mxu0 0.0
  %5109 = vmatpush1.msra.mxu0 0.0
  %5110 = vmatprep.subr.mxu0 0.0
  %5111 = vmatpush1.msra.mxu0 0.0
  %5112 = vmatprep.subr.mxu0 0.0
  %5113 = vmatpush1.msra.mxu0 0.0
  %5114 = vmatprep.subr.mxu0 0.0
  %5115 = vmatpush1.msra.mxu0 0.0
  %5116 = vmatprep.subr.mxu0 0.0
  %5117 = vmatpush1.msra.mxu0 0.0
  %5118 = vmatprep.subr.mxu0 0.0
  %5119 = vmatpush1.msra.mxu0 0.0
  %5120 = vmatprep.subr.mxu0 0.0
  %5121 = vmatpush1.msra.mxu0 0.0
  %5122 = vmatprep.subr.mxu0 0.0
  %5123 = vmatpush1.msra.mxu0 0.0
  %5124 = vmatprep.subr.mxu0 0.0
  %5125 = vmatpush1.msra.mxu0 0.0
  %5126 = vmatprep.subr.mxu0 0.0
  %5127 = vmatpush1.msra.mxu0 0.0
  %5128 = vmatprep.subr.mxu0 0.0
  %5129 = vmatpush1.msra.mxu0 0.0
  %5130 = vmatprep.subr.mxu0 0.0
  %5131 = vmatpush1.msra.mxu0 0.0
  %5132 = vmatprep.subr.mxu0 0.0
  %5133 = vmatpush1.msra.mxu0 0.0
  %5134 = vmatprep.subr.mxu0 0.0
  %5135 = vmatpush1.msra.mxu0 0.0
  %5136 = vmatprep.subr.mxu0 0.0
  %5137 = vmatpush1.msra.mxu0 0.0
  %5138 = vmatprep.subr.mxu0 0.0
  %5139 = vmatpush1.msra.mxu0 0.0
  %5140 = vmatprep.subr.mxu0 0.0
  %5141 = vmatpush1.msra.mxu0 0.0
  %5142 = vmatprep.subr.mxu0 0.0
  %5143 = vmatpush1.msra.mxu0 0.0
  %5144 = vmatprep.subr.mxu0 0.0
  %5145 = vmatpush1.msra.mxu0 0.0
  %5146 = vmatprep.subr.mxu0 0.0
  %5147 = vmatpush1.msra.mxu0 0.0
  %5148 = vmatprep.subr.mxu0 0.0
  %5149 = vmatpush1.msra.mxu0 0.0
  %5150 = vmatprep.subr.mxu0 0.0
  %5151 = vmatpush1.msra.mxu0 0.0
  %5152 = vmatprep.mubr.f32.mxu0 0.0
  %v5153 = vand.u32 %v4599, 4294901760
  %5154 = vmatmul.mubr.f32.gmra.mrb[0].mxu0 %v5153
  %v5155 = vpop.f32.mrb[0].mxu0
  %v5156 = vadd.f32 %v5036, %v5155
  %v5157 = vpop.f32.mrb[0].mxu0
  %v5158 = vadd.f32 %v5038, %v5157
  %5159 = vdwg.mxu0
  %v5160 = vand.u32 %v1864, 4294901760
  %5161 = vmatprep.subr.mxu0 %v5160
  %v5162 = vand.u32 %v1863, 4294901760
  %5163 = vmatpush1.msra.mxu0 %v5162
  %v5164 = vand.u32 %v1866, 4294901760
  %5165 = vmatprep.subr.mxu0 %v5164
  %v5166 = vand.u32 %v1865, 4294901760
  %5167 = vmatpush1.msra.mxu0 %v5166
  %v5168 = vand.u32 %v1868, 4294901760
  %5169 = vmatprep.subr.mxu0 %v5168
  %v5170 = vand.u32 %v1867, 4294901760
  %5171 = vmatpush1.msra.mxu0 %v5170
  %v5172 = vand.u32 %v1870, 4294901760
  %5173 = vmatprep.subr.mxu0 %v5172
  %v5174 = vand.u32 %v1869, 4294901760
  %5175 = vmatpush1.msra.mxu0 %v5174
  %v5176 = vand.u32 %v1872, 4294901760
  %5177 = vmatprep.subr.mxu0 %v5176
  %v5178 = vand.u32 %v1871, 4294901760
  %5179 = vmatpush1.msra.mxu0 %v5178
  %v5180 = vand.u32 %v1874, 4294901760
  %5181 = vmatprep.subr.mxu0 %v5180
  %v5182 = vand.u32 %v1873, 4294901760
  %5183 = vmatpush1.msra.mxu0 %v5182
  %v5184 = vand.u32 %v1876, 4294901760
  %5185 = vmatprep.subr.mxu0 %v5184
  %v5186 = vand.u32 %v1875, 4294901760
  %5187 = vmatpush1.msra.mxu0 %v5186
  %v5188 = vand.u32 %v1878, 4294901760
  %5189 = vmatprep.subr.mxu0 %v5188
  %v5190 = vand.u32 %v1877, 4294901760
  %5191 = vmatpush1.msra.mxu0 %v5190
  %5192 = vmatprep.subr.mxu0 0.0
  %5193 = vmatpush1.msra.mxu0 0.0
  %5194 = vmatprep.subr.mxu0 0.0
  %5195 = vmatpush1.msra.mxu0 0.0
  %5196 = vmatprep.subr.mxu0 0.0
  %5197 = vmatpush1.msra.mxu0 0.0
  %5198 = vmatprep.subr.mxu0 0.0
  %5199 = vmatpush1.msra.mxu0 0.0
  %5200 = vmatprep.subr.mxu0 0.0
  %5201 = vmatpush1.msra.mxu0 0.0
  %5202 = vmatprep.subr.mxu0 0.0
  %5203 = vmatpush1.msra.mxu0 0.0
  %5204 = vmatprep.subr.mxu0 0.0
  %5205 = vmatpush1.msra.mxu0 0.0
  %5206 = vmatprep.subr.mxu0 0.0
  %5207 = vmatpush1.msra.mxu0 0.0
  %5208 = vmatprep.subr.mxu0 0.0
  %5209 = vmatpush1.msra.mxu0 0.0
  %5210 = vmatprep.subr.mxu0 0.0
  %5211 = vmatpush1.msra.mxu0 0.0
  %5212 = vmatprep.subr.mxu0 0.0
  %5213 = vmatpush1.msra.mxu0 0.0
  %5214 = vmatprep.subr.mxu0 0.0
  %5215 = vmatpush1.msra.mxu0 0.0
  %5216 = vmatprep.subr.mxu0 0.0
  %5217 = vmatpush1.msra.mxu0 0.0
  %5218 = vmatprep.subr.mxu0 0.0
  %5219 = vmatpush1.msra.mxu0 0.0
  %5220 = vmatprep.subr.mxu0 0.0
  %5221 = vmatpush1.msra.mxu0 0.0
  %5222 = vmatprep.subr.mxu0 0.0
  %5223 = vmatpush1.msra.mxu0 0.0
  %5224 = vmatprep.subr.mxu0 0.0
  %5225 = vmatpush1.msra.mxu0 0.0
  %5226 = vmatprep.subr.mxu0 0.0
  %5227 = vmatpush1.msra.mxu0 0.0
  %5228 = vmatprep.subr.mxu0 0.0
  %5229 = vmatpush1.msra.mxu0 0.0
  %5230 = vmatprep.subr.mxu0 0.0
  %5231 = vmatpush1.msra.mxu0 0.0
  %5232 = vmatprep.subr.mxu0 0.0
  %5233 = vmatpush1.msra.mxu0 0.0
  %5234 = vmatprep.subr.mxu0 0.0
  %5235 = vmatpush1.msra.mxu0 0.0
  %5236 = vmatprep.subr.mxu0 0.0
  %5237 = vmatpush1.msra.mxu0 0.0
  %5238 = vmatprep.subr.mxu0 0.0
  %5239 = vmatpush1.msra.mxu0 0.0
  %5240 = vmatprep.mubr.f32.mxu0 0.0
  %v5241 = vand.u32 %v4599, 4294901760
  %5242 = vmatmul.mubr.f32.gmra.mrb[0].mxu0 %v5241
  %v5243 = vpop.f32.mrb[0].mxu0
  %v5244 = vadd.f32 %v5156, %v5243
  %v5245 = vpop.f32.mrb[0].mxu0
  %v5246 = vadd.f32 %v5158, %v5245
  %5247 = vdwg.mxu0
  %v5248 = vmul.f32 %v5244, 0.5
  %v5249 = vmul.f32 %v5246, 0.5
  %v5250 = vtanh.pop %v5248
  %v5251 = vtanh.pop %v5249
  %v5252 = vmul.f32 %v5250, 0.5
  %v5253 = vmul.f32 %v5251, 0.5
  %v5254 = vadd.f32 %v5252, 0.5
  %v5255 = vadd.f32 %v5253, 0.5
  %v5256 = vtanh.pop %v5246
  %v5257 = vmul.f32 %v5254, %v4589
  %5259 = vrot.lane.b32.xlu0 %v5256, 64
  %v5260 = vpop.permute.xlu0 %5259
  %v5262 = vmul.f32 %v5254, %v5260
  %5264 = vrot.lane.b32.xlu0 %v5262, 64
  %v5265 = vpop.permute.xlu0 %5264
  %v5267 = vadd.f32 %v5257, %v5265
  %v5268 = vtanh.pop %v5267
  %5270 = vrot.lane.b32.xlu0 %v5268, 64
  %v5271 = vpop.permute.xlu0 %5270
  %v5273 = vmul.f32 %v5255, %v5271
  %v5274 = vld [vmem:[#allocation2 + $0x60] sm:$0xff]
  %v5275 = vld [vmem:[#allocation2 + $0x68] sm:$0xff]
  %v5277 = vsel %vm1881, %v5273, 0
  %v5279 = vand.u32 %v1864, 4294901760
  %5280 = vmatprep.subr.mxu0 %v5279
  %v5281 = vand.u32 %v1863, 4294901760
  %5282 = vmatpush1.msra.mxu0 %v5281
  %v5283 = vand.u32 %v1866, 4294901760
  %5284 = vmatprep.subr.mxu0 %v5283
  %v5285 = vand.u32 %v1865, 4294901760
  %5286 = vmatpush1.msra.mxu0 %v5285
  %v5287 = vand.u32 %v1868, 4294901760
  %5288 = vmatprep.subr.mxu0 %v5287
  %v5289 = vand.u32 %v1867, 4294901760
  %5290 = vmatpush1.msra.mxu0 %v5289
  %v5291 = vand.u32 %v1870, 4294901760
  %5292 = vmatprep.subr.mxu0 %v5291
  %v5293 = vand.u32 %v1869, 4294901760
  %5294 = vmatpush1.msra.mxu0 %v5293
  %v5295 = vand.u32 %v1872, 4294901760
  %5296 = vmatprep.subr.mxu0 %v5295
  %v5297 = vand.u32 %v1871, 4294901760
  %5298 = vmatpush1.msra.mxu0 %v5297
  %v5299 = vand.u32 %v1874, 4294901760
  %5300 = vmatprep.subr.mxu0 %v5299
  %v5301 = vand.u32 %v1873, 4294901760
  %5302 = vmatpush1.msra.mxu0 %v5301
  %v5303 = vand.u32 %v1876, 4294901760
  %5304 = vmatprep.subr.mxu0 %v5303
  %v5305 = vand.u32 %v1875, 4294901760
  %5306 = vmatpush1.msra.mxu0 %v5305
  %v5307 = vand.u32 %v1878, 4294901760
  %5308 = vmatprep.subr.mxu0 %v5307
  %v5309 = vand.u32 %v1877, 4294901760
  %5310 = vmatpush1.msra.mxu0 %v5309
  %5311 = vmatprep.subr.mxu0 0.0
  %5312 = vmatpush1.msra.mxu0 0.0
  %5313 = vmatprep.subr.mxu0 0.0
  %5314 = vmatpush1.msra.mxu0 0.0
  %5315 = vmatprep.subr.mxu0 0.0
  %5316 = vmatpush1.msra.mxu0 0.0
  %5317 = vmatprep.subr.mxu0 0.0
  %5318 = vmatpush1.msra.mxu0 0.0
  %5319 = vmatprep.subr.mxu0 0.0
  %5320 = vmatpush1.msra.mxu0 0.0
  %5321 = vmatprep.subr.mxu0 0.0
  %5322 = vmatpush1.msra.mxu0 0.0
  %5323 = vmatprep.subr.mxu0 0.0
  %5324 = vmatpush1.msra.mxu0 0.0
  %5325 = vmatprep.subr.mxu0 0.0
  %5326 = vmatpush1.msra.mxu0 0.0
  %5327 = vmatprep.subr.mxu0 0.0
  %5328 = vmatpush1.msra.mxu0 0.0
  %5329 = vmatprep.subr.mxu0 0.0
  %5330 = vmatpush1.msra.mxu0 0.0
  %5331 = vmatprep.subr.mxu0 0.0
  %5332 = vmatpush1.msra.mxu0 0.0
  %5333 = vmatprep.subr.mxu0 0.0
  %5334 = vmatpush1.msra.mxu0 0.0
  %5335 = vmatprep.subr.mxu0 0.0
  %5336 = vmatpush1.msra.mxu0 0.0
  %5337 = vmatprep.subr.mxu0 0.0
  %5338 = vmatpush1.msra.mxu0 0.0
  %5339 = vmatprep.subr.mxu0 0.0
  %5340 = vmatpush1.msra.mxu0 0.0
  %5341 = vmatprep.subr.mxu0 0.0
  %5342 = vmatpush1.msra.mxu0 0.0
  %5343 = vmatprep.subr.mxu0 0.0
  %5344 = vmatpush1.msra.mxu0 0.0
  %5345 = vmatprep.subr.mxu0 0.0
  %5346 = vmatpush1.msra.mxu0 0.0
  %5347 = vmatprep.subr.mxu0 0.0
  %5348 = vmatpush1.msra.mxu0 0.0
  %5349 = vmatprep.subr.mxu0 0.0
  %5350 = vmatpush1.msra.mxu0 0.0
  %5351 = vmatprep.subr.mxu0 0.0
  %5352 = vmatpush1.msra.mxu0 0.0
  %5353 = vmatprep.subr.mxu0 0.0
  %5354 = vmatpush1.msra.mxu0 0.0
  %5355 = vmatprep.subr.mxu0 0.0
  %5356 = vmatpush1.msra.mxu0 0.0
  %5357 = vmatprep.subr.mxu0 0.0
  %5358 = vmatpush1.msra.mxu0 0.0
  %5359 = vmatprep.mubr.f32.mxu0 0.0
  %v5360 = vand.u32 %v5277, 4294901760
  %v5361 = vsub.f32 %v5277, %v5360
  %v5362 = vand.u32 %v5361, 4294901760
  %v5363 = vsub.f32 %v5361, %v5362
  %v5364 = vand.u32 %v5363, 4294901760
  %5365 = vmatmul.mubr.f32.gmra.mrb[0].mxu0 %v5364
  %v5366 = vpop.f32.mrb[0].mxu0
  %v5367 = vadd.f32 %v5274, %v5366
  %v5368 = vpop.f32.mrb[0].mxu0
  %v5369 = vadd.f32 %v5275, %v5368
  %5370 = vdwg.mxu0
  %v5371 = vand.u32 %v1864, 4294901760
  %v5372 = vsub.f32 %v1864, %v5371
  %v5373 = vand.u32 %v5372, 4294901760
  %v5374 = vsub.f32 %v5372, %v5373
  %v5375 = vand.u32 %v5374, 4294901760
  %5376 = vmatprep.subr.mxu0 %v5375
  %v5377 = vand.u32 %v1863, 4294901760
  %v5378 = vsub.f32 %v1863, %v5377
  %v5379 = vand.u32 %v5378, 4294901760
  %v5380 = vsub.f32 %v5378, %v5379
  %v5381 = vand.u32 %v5380, 4294901760
  %5382 = vmatpush1.msra.mxu0 %v5381
  %v5383 = vand.u32 %v1866, 4294901760
  %v5384 = vsub.f32 %v1866, %v5383
  %v5385 = vand.u32 %v5384, 4294901760
  %v5386 = vsub.f32 %v5384, %v5385
  %v5387 = vand.u32 %v5386, 4294901760
  %5388 = vmatprep.subr.mxu0 %v5387
  %v5389 = vand.u32 %v1865, 4294901760
  %v5390 = vsub.f32 %v1865, %v5389
  %v5391 = vand.u32 %v5390, 4294901760
  %v5392 = vsub.f32 %v5390, %v5391
  %v5393 = vand.u32 %v5392, 4294901760
  %5394 = vmatpush1.msra.mxu0 %v5393
  %v5395 = vand.u32 %v1868, 4294901760
  %v5396 = vsub.f32 %v1868, %v5395
  %v5397 = vand.u32 %v5396, 4294901760
  %v5398 = vsub.f32 %v5396, %v5397
  %v5399 = vand.u32 %v5398, 4294901760
  %5400 = vmatprep.subr.mxu0 %v5399
  %v5401 = vand.u32 %v1867, 4294901760
  %v5402 = vsub.f32 %v1867, %v5401
  %v5403 = vand.u32 %v5402, 4294901760
  %v5404 = vsub.f32 %v5402, %v5403
  %v5405 = vand.u32 %v5404, 4294901760
  %5406 = vmatpush1.msra.mxu0 %v5405
  %v5407 = vand.u32 %v1870, 4294901760
  %v5408 = vsub.f32 %v1870, %v5407
  %v5409 = vand.u32 %v5408, 4294901760
  %v5410 = vsub.f32 %v5408, %v5409
  %v5411 = vand.u32 %v5410, 4294901760
  %5412 = vmatprep.subr.mxu0 %v5411
  %v5413 = vand.u32 %v1869, 4294901760
  %v5414 = vsub.f32 %v1869, %v5413
  %v5415 = vand.u32 %v5414, 4294901760
  %v5416 = vsub.f32 %v5414, %v5415
  %v5417 = vand.u32 %v5416, 4294901760
  %5418 = vmatpush1.msra.mxu0 %v5417
  %v5419 = vand.u32 %v1872, 4294901760
  %v5420 = vsub.f32 %v1872, %v5419
  %v5421 = vand.u32 %v5420, 4294901760
  %v5422 = vsub.f32 %v5420, %v5421
  %v5423 = vand.u32 %v5422, 4294901760
  %5424 = vmatprep.subr.mxu0 %v5423
  %v5425 = vand.u32 %v1871, 4294901760
  %v5426 = vsub.f32 %v1871, %v5425
  %v5427 = vand.u32 %v5426, 4294901760
  %v5428 = vsub.f32 %v5426, %v5427
  %v5429 = vand.u32 %v5428, 4294901760
  %5430 = vmatpush1.msra.mxu0 %v5429
  %v5431 = vand.u32 %v1874, 4294901760
  %v5432 = vsub.f32 %v1874, %v5431
  %v5433 = vand.u32 %v5432, 4294901760
  %v5434 = vsub.f32 %v5432, %v5433
  %v5435 = vand.u32 %v5434, 4294901760
  %5436 = vmatprep.subr.mxu0 %v5435
  %v5437 = vand.u32 %v1873, 4294901760
  %v5438 = vsub.f32 %v1873, %v5437
  %v5439 = vand.u32 %v5438, 4294901760
  %v5440 = vsub.f32 %v5438, %v5439
  %v5441 = vand.u32 %v5440, 4294901760
  %5442 = vmatpush1.msra.mxu0 %v5441
  %v5443 = vand.u32 %v1876, 4294901760
  %v5444 = vsub.f32 %v1876, %v5443
  %v5445 = vand.u32 %v5444, 4294901760
  %v5446 = vsub.f32 %v5444, %v5445
  %v5447 = vand.u32 %v5446, 4294901760
  %5448 = vmatprep.subr.mxu0 %v5447
  %v5449 = vand.u32 %v1875, 4294901760
  %v5450 = vsub.f32 %v1875, %v5449
  %v5451 = vand.u32 %v5450, 4294901760
  %v5452 = vsub.f32 %v5450, %v5451
  %v5453 = vand.u32 %v5452, 4294901760
  %5454 = vmatpush1.msra.mxu0 %v5453
  %v5455 = vand.u32 %v1878, 4294901760
  %v5456 = vsub.f32 %v1878, %v5455
  %v5457 = vand.u32 %v5456, 4294901760
  %v5458 = vsub.f32 %v5456, %v5457
  %v5459 = vand.u32 %v5458, 4294901760
  %5460 = vmatprep.subr.mxu0 %v5459
  %v5461 = vand.u32 %v1877, 4294901760
  %v5462 = vsub.f32 %v1877, %v5461
  %v5463 = vand.u32 %v5462, 4294901760
  %v5464 = vsub.f32 %v5462, %v5463
  %v5465 = vand.u32 %v5464, 4294901760
  %5466 = vmatpush1.msra.mxu0 %v5465
  %5467 = vmatprep.subr.mxu0 0.0
  %5468 = vmatpush1.msra.mxu0 0.0
  %5469 = vmatprep.subr.mxu0 0.0
  %5470 = vmatpush1.msra.mxu0 0.0
  %5471 = vmatprep.subr.mxu0 0.0
  %5472 = vmatpush1.msra.mxu0 0.0
  %5473 = vmatprep.subr.mxu0 0.0
  %5474 = vmatpush1.msra.mxu0 0.0
  %5475 = vmatprep.subr.mxu0 0.0
  %5476 = vmatpush1.msra.mxu0 0.0
  %5477 = vmatprep.subr.mxu0 0.0
  %5478 = vmatpush1.msra.mxu0 0.0
  %5479 = vmatprep.subr.mxu0 0.0
  %5480 = vmatpush1.msra.mxu0 0.0
  %5481 = vmatprep.subr.mxu0 0.0
  %5482 = vmatpush1.msra.mxu0 0.0
  %5483 = vmatprep.subr.mxu0 0.0
  %5484 = vmatpush1.msra.mxu0 0.0
  %5485 = vmatprep.subr.mxu0 0.0
  %5486 = vmatpush1.msra.mxu0 0.0
  %5487 = vmatprep.subr.mxu0 0.0
  %5488 = vmatpush1.msra.mxu0 0.0
  %5489 = vmatprep.subr.mxu0 0.0
  %5490 = vmatpush1.msra.mxu0 0.0
  %5491 = vmatprep.subr.mxu0 0.0
  %5492 = vmatpush1.msra.mxu0 0.0
  %5493 = vmatprep.subr.mxu0 0.0
  %5494 = vmatpush1.msra.mxu0 0.0
  %5495 = vmatprep.subr.mxu0 0.0
  %5496 = vmatpush1.msra.mxu0 0.0
  %5497 = vmatprep.subr.mxu0 0.0
  %5498 = vmatpush1.msra.mxu0 0.0
  %5499 = vmatprep.subr.mxu0 0.0
  %5500 = vmatpush1.msra.mxu0 0.0
  %5501 = vmatprep.subr.mxu0 0.0
  %5502 = vmatpush1.msra.mxu0 0.0
  %5503 = vmatprep.subr.mxu0 0.0
  %5504 = vmatpush1.msra.mxu0 0.0
  %5505 = vmatprep.subr.mxu0 0.0
  %5506 = vmatpush1.msra.mxu0 0.0
  %5507 = vmatprep.subr.mxu0 0.0
  %5508 = vmatpush1.msra.mxu0 0.0
  %5509 = vmatprep.subr.mxu0 0.0
  %5510 = vmatpush1.msra.mxu0 0.0
  %5511 = vmatprep.subr.mxu0 0.0
  %5512 = vmatpush1.msra.mxu0 0.0
  %5513 = vmatprep.subr.mxu0 0.0
  %5514 = vmatpush1.msra.mxu0 0.0
  %5515 = vmatprep.mubr.f32.mxu0 0.0
  %v5516 = vand.u32 %v5277, 4294901760
  %5517 = vmatmul.mubr.f32.gmra.mrb[0].mxu0 %v5516
  %v5518 = vpop.f32.mrb[0].mxu0
  %v5519 = vadd.f32 %v5367, %v5518
  %v5520 = vpop.f32.mrb[0].mxu0
  %v5521 = vadd.f32 %v5369, %v5520
  %5522 = vdwg.mxu0
  %v5523 = vand.u32 %v1864, 4294901760
  %v5524 = vsub.f32 %v1864, %v5523
  %5525 = vmatprep.subr.mxu0 %v5524
  %v5526 = vand.u32 %v1863, 4294901760
  %v5527 = vsub.f32 %v1863, %v5526
  %5528 = vmatpush1.msra.mxu0 %v5527
  %v5529 = vand.u32 %v1866, 4294901760
  %v5530 = vsub.f32 %v1866, %v5529
  %5531 = vmatprep.subr.mxu0 %v5530
  %v5532 = vand.u32 %v1865, 4294901760
  %v5533 = vsub.f32 %v1865, %v5532
  %5534 = vmatpush1.msra.mxu0 %v5533
  %v5535 = vand.u32 %v1868, 4294901760
  %v5536 = vsub.f32 %v1868, %v5535
  %5537 = vmatprep.subr.mxu0 %v5536
  %v5538 = vand.u32 %v1867, 4294901760
  %v5539 = vsub.f32 %v1867, %v5538
  %5540 = vmatpush1.msra.mxu0 %v5539
  %v5541 = vand.u32 %v1870, 4294901760
  %v5542 = vsub.f32 %v1870, %v5541
  %5543 = vmatprep.subr.mxu0 %v5542
  %v5544 = vand.u32 %v1869, 4294901760
  %v5545 = vsub.f32 %v1869, %v5544
  %5546 = vmatpush1.msra.mxu0 %v5545
  %v5547 = vand.u32 %v1872, 4294901760
  %v5548 = vsub.f32 %v1872, %v5547
  %5549 = vmatprep.subr.mxu0 %v5548
  %v5550 = vand.u32 %v1871, 4294901760
  %v5551 = vsub.f32 %v1871, %v5550
  %5552 = vmatpush1.msra.mxu0 %v5551
  %v5553 = vand.u32 %v1874, 4294901760
  %v5554 = vsub.f32 %v1874, %v5553
  %5555 = vmatprep.subr.mxu0 %v5554
  %v5556 = vand.u32 %v1873, 4294901760
  %v5557 = vsub.f32 %v1873, %v5556
  %5558 = vmatpush1.msra.mxu0 %v5557
  %v5559 = vand.u32 %v1876, 4294901760
  %v5560 = vsub.f32 %v1876, %v5559
  %5561 = vmatprep.subr.mxu0 %v5560
  %v5562 = vand.u32 %v1875, 4294901760
  %v5563 = vsub.f32 %v1875, %v5562
  %5564 = vmatpush1.msra.mxu0 %v5563
  %v5565 = vand.u32 %v1878, 4294901760
  %v5566 = vsub.f32 %v1878, %v5565
  %5567 = vmatprep.subr.mxu0 %v5566
  %v5568 = vand.u32 %v1877, 4294901760
  %v5569 = vsub.f32 %v1877, %v5568
  %5570 = vmatpush1.msra.mxu0 %v5569
  %5571 = vmatprep.subr.mxu0 0.0
  %5572 = vmatpush1.msra.mxu0 0.0
  %5573 = vmatprep.subr.mxu0 0.0
  %5574 = vmatpush1.msra.mxu0 0.0
  %5575 = vmatprep.subr.mxu0 0.0
  %5576 = vmatpush1.msra.mxu0 0.0
  %5577 = vmatprep.subr.mxu0 0.0
  %5578 = vmatpush1.msra.mxu0 0.0
  %5579 = vmatprep.subr.mxu0 0.0
  %5580 = vmatpush1.msra.mxu0 0.0
  %5581 = vmatprep.subr.mxu0 0.0
  %5582 = vmatpush1.msra.mxu0 0.0
  %5583 = vmatprep.subr.mxu0 0.0
  %5584 = vmatpush1.msra.mxu0 0.0
  %5585 = vmatprep.subr.mxu0 0.0
  %5586 = vmatpush1.msra.mxu0 0.0
  %5587 = vmatprep.subr.mxu0 0.0
  %5588 = vmatpush1.msra.mxu0 0.0
  %5589 = vmatprep.subr.mxu0 0.0
  %5590 = vmatpush1.msra.mxu0 0.0
  %5591 = vmatprep.subr.mxu0 0.0
  %5592 = vmatpush1.msra.mxu0 0.0
  %5593 = vmatprep.subr.mxu0 0.0
  %5594 = vmatpush1.msra.mxu0 0.0
  %5595 = vmatprep.subr.mxu0 0.0
  %5596 = vmatpush1.msra.mxu0 0.0
  %5597 = vmatprep.subr.mxu0 0.0
  %5598 = vmatpush1.msra.mxu0 0.0
  %5599 = vmatprep.subr.mxu0 0.0
  %5600 = vmatpush1.msra.mxu0 0.0
  %5601 = vmatprep.subr.mxu0 0.0
  %5602 = vmatpush1.msra.mxu0 0.0
  %5603 = vmatprep.subr.mxu0 0.0
  %5604 = vmatpush1.msra.mxu0 0.0
  %5605 = vmatprep.subr.mxu0 0.0
  %5606 = vmatpush1.msra.mxu0 0.0
  %5607 = vmatprep.subr.mxu0 0.0
  %5608 = vmatpush1.msra.mxu0 0.0
  %5609 = vmatprep.subr.mxu0 0.0
  %5610 = vmatpush1.msra.mxu0 0.0
  %5611 = vmatprep.subr.mxu0 0.0
  %5612 = vmatpush1.msra.mxu0 0.0
  %5613 = vmatprep.subr.mxu0 0.0
  %5614 = vmatpush1.msra.mxu0 0.0
  %5615 = vmatprep.subr.mxu0 0.0
  %5616 = vmatpush1.msra.mxu0 0.0
  %5617 = vmatprep.subr.mxu0 0.0
  %5618 = vmatpush1.msra.mxu0 0.0
  %5619 = vmatprep.mubr.f32.mxu0 0.0
  %v5620 = vand.u32 %v5277, 4294901760
  %v5621 = vsub.f32 %v5277, %v5620
  %5622 = vmatmul.mubr.f32.gmra.mrb[0].mxu0 %v5621
  %v5623 = vpop.f32.mrb[0].mxu0
  %v5624 = vadd.f32 %v5519, %v5623
  %v5625 = vpop.f32.mrb[0].mxu0
  %v5626 = vadd.f32 %v5521, %v5625
  %5627 = vdwg.mxu0
  %v5628 = vand.u32 %v1864, 4294901760
  %5629 = vmatprep.subr.mxu0 %v5628
  %v5630 = vand.u32 %v1863, 4294901760
  %5631 = vmatpush1.msra.mxu0 %v5630
  %v5632 = vand.u32 %v1866, 4294901760
  %5633 = vmatprep.subr.mxu0 %v5632
  %v5634 = vand.u32 %v1865, 4294901760
  %5635 = vmatpush1.msra.mxu0 %v5634
  %v5636 = vand.u32 %v1868, 4294901760
  %5637 = vmatprep.subr.mxu0 %v5636
  %v5638 = vand.u32 %v1867, 4294901760
  %5639 = vmatpush1.msra.mxu0 %v5638
  %v5640 = vand.u32 %v1870, 4294901760
  %5641 = vmatprep.subr.mxu0 %v5640
  %v5642 = vand.u32 %v1869, 4294901760
  %5643 = vmatpush1.msra.mxu0 %v5642
  %v5644 = vand.u32 %v1872, 4294901760
  %5645 = vmatprep.subr.mxu0 %v5644
  %v5646 = vand.u32 %v1871, 4294901760
  %5647 = vmatpush1.msra.mxu0 %v5646
  %v5648 = vand.u32 %v1874, 4294901760
  %5649 = vmatprep.subr.mxu0 %v5648
  %v5650 = vand.u32 %v1873, 4294901760
  %5651 = vmatpush1.msra.mxu0 %v5650
  %v5652 = vand.u32 %v1876, 4294901760
  %5653 = vmatprep.subr.mxu0 %v5652
  %v5654 = vand.u32 %v1875, 4294901760
  %5655 = vmatpush1.msra.mxu0 %v5654
  %v5656 = vand.u32 %v1878, 4294901760
  %5657 = vmatprep.subr.mxu0 %v5656
  %v5658 = vand.u32 %v1877, 4294901760
  %5659 = vmatpush1.msra.mxu0 %v5658
  %5660 = vmatprep.subr.mxu0 0.0
  %5661 = vmatpush1.msra.mxu0 0.0
  %5662 = vmatprep.subr.mxu0 0.0
  %5663 = vmatpush1.msra.mxu0 0.0
  %5664 = vmatprep.subr.mxu0 0.0
  %5665 = vmatpush1.msra.mxu0 0.0
  %5666 = vmatprep.subr.mxu0 0.0
  %5667 = vmatpush1.msra.mxu0 0.0
  %5668 = vmatprep.subr.mxu0 0.0
  %5669 = vmatpush1.msra.mxu0 0.0
  %5670 = vmatprep.subr.mxu0 0.0
  %5671 = vmatpush1.msra.mxu0 0.0
  %5672 = vmatprep.subr.mxu0 0.0
  %5673 = vmatpush1.msra.mxu0 0.0
  %5674 = vmatprep.subr.mxu0 0.0
  %5675 = vmatpush1.msra.mxu0 0.0
  %5676 = vmatprep.subr.mxu0 0.0
  %5677 = vmatpush1.msra.mxu0 0.0
  %5678 = vmatprep.subr.mxu0 0.0
  %5679 = vmatpush1.msra.mxu0 0.0
  %5680 = vmatprep.subr.mxu0 0.0
  %5681 = vmatpush1.msra.mxu0 0.0
  %5682 = vmatprep.subr.mxu0 0.0
  %5683 = vmatpush1.msra.mxu0 0.0
  %5684 = vmatprep.subr.mxu0 0.0
  %5685 = vmatpush1.msra.mxu0 0.0
  %5686 = vmatprep.subr.mxu0 0.0
  %5687 = vmatpush1.msra.mxu0 0.0
  %5688 = vmatprep.subr.mxu0 0.0
  %5689 = vmatpush1.msra.mxu0 0.0
  %5690 = vmatprep.subr.mxu0 0.0
  %5691 = vmatpush1.msra.mxu0 0.0
  %5692 = vmatprep.subr.mxu0 0.0
  %5693 = vmatpush1.msra.mxu0 0.0
  %5694 = vmatprep.subr.mxu0 0.0
  %5695 = vmatpush1.msra.mxu0 0.0
  %5696 = vmatprep.subr.mxu0 0.0
  %5697 = vmatpush1.msra.mxu0 0.0
  %5698 = vmatprep.subr.mxu0 0.0
  %5699 = vmatpush1.msra.mxu0 0.0
  %5700 = vmatprep.subr.mxu0 0.0
  %5701 = vmatpush1.msra.mxu0 0.0
  %5702 = vmatprep.subr.mxu0 0.0
  %5703 = vmatpush1.msra.mxu0 0.0
  %5704 = vmatprep.subr.mxu0 0.0
  %5705 = vmatpush1.msra.mxu0 0.0
  %5706 = vmatprep.subr.mxu0 0.0
  %5707 = vmatpush1.msra.mxu0 0.0
  %5708 = vmatprep.mubr.f32.mxu0 0.0
  %v5709 = vand.u32 %v5277, 4294901760
  %v5710 = vsub.f32 %v5277, %v5709
  %v5711 = vand.u32 %v5710, 4294901760
  %5712 = vmatmul.mubr.f32.gmra.mrb[0].mxu0 %v5711
  %v5713 = vpop.f32.mrb[0].mxu0
  %v5714 = vadd.f32 %v5624, %v5713
  %v5715 = vpop.f32.mrb[0].mxu0
  %v5716 = vadd.f32 %v5626, %v5715
  %5717 = vdwg.mxu0
  %v5718 = vand.u32 %v1864, 4294901760
  %v5719 = vsub.f32 %v1864, %v5718
  %v5720 = vand.u32 %v5719, 4294901760
  %5721 = vmatprep.subr.mxu0 %v5720
  %v5722 = vand.u32 %v1863, 4294901760
  %v5723 = vsub.f32 %v1863, %v5722
  %v5724 = vand.u32 %v5723, 4294901760
  %5725 = vmatpush1.msra.mxu0 %v5724
  %v5726 = vand.u32 %v1866, 4294901760
  %v5727 = vsub.f32 %v1866, %v5726
  %v5728 = vand.u32 %v5727, 4294901760
  %5729 = vmatprep.subr.mxu0 %v5728
  %v5730 = vand.u32 %v1865, 4294901760
  %v5731 = vsub.f32 %v1865, %v5730
  %v5732 = vand.u32 %v5731, 4294901760
  %5733 = vmatpush1.msra.mxu0 %v5732
  %v5734 = vand.u32 %v1868, 4294901760
  %v5735 = vsub.f32 %v1868, %v5734
  %v5736 = vand.u32 %v5735, 4294901760
  %5737 = vmatprep.subr.mxu0 %v5736
  %v5738 = vand.u32 %v1867, 4294901760
  %v5739 = vsub.f32 %v1867, %v5738
  %v5740 = vand.u32 %v5739, 4294901760
  %5741 = vmatpush1.msra.mxu0 %v5740
  %v5742 = vand.u32 %v1870, 4294901760
  %v5743 = vsub.f32 %v1870, %v5742
  %v5744 = vand.u32 %v5743, 4294901760
  %5745 = vmatprep.subr.mxu0 %v5744
  %v5746 = vand.u32 %v1869, 4294901760
  %v5747 = vsub.f32 %v1869, %v5746
  %v5748 = vand.u32 %v5747, 4294901760
  %5749 = vmatpush1.msra.mxu0 %v5748
  %v5750 = vand.u32 %v1872, 4294901760
  %v5751 = vsub.f32 %v1872, %v5750
  %v5752 = vand.u32 %v5751, 4294901760
  %5753 = vmatprep.subr.mxu0 %v5752
  %v5754 = vand.u32 %v1871, 4294901760
  %v5755 = vsub.f32 %v1871, %v5754
  %v5756 = vand.u32 %v5755, 4294901760
  %5757 = vmatpush1.msra.mxu0 %v5756
  %v5758 = vand.u32 %v1874, 4294901760
  %v5759 = vsub.f32 %v1874, %v5758
  %v5760 = vand.u32 %v5759, 4294901760
  %5761 = vmatprep.subr.mxu0 %v5760
  %v5762 = vand.u32 %v1873, 4294901760
  %v5763 = vsub.f32 %v1873, %v5762
  %v5764 = vand.u32 %v5763, 4294901760
  %5765 = vmatpush1.msra.mxu0 %v5764
  %v5766 = vand.u32 %v1876, 4294901760
  %v5767 = vsub.f32 %v1876, %v5766
  %v5768 = vand.u32 %v5767, 4294901760
  %5769 = vmatprep.subr.mxu0 %v5768
  %v5770 = vand.u32 %v1875, 4294901760
  %v5771 = vsub.f32 %v1875, %v5770
  %v5772 = vand.u32 %v5771, 4294901760
  %5773 = vmatpush1.msra.mxu0 %v5772
  %v5774 = vand.u32 %v1878, 4294901760
  %v5775 = vsub.f32 %v1878, %v5774
  %v5776 = vand.u32 %v5775, 4294901760
  %5777 = vmatprep.subr.mxu0 %v5776
  %v5778 = vand.u32 %v1877, 4294901760
  %v5779 = vsub.f32 %v1877, %v5778
  %v5780 = vand.u32 %v5779, 4294901760
  %5781 = vmatpush1.msra.mxu0 %v5780
  %5782 = vmatprep.subr.mxu0 0.0
  %5783 = vmatpush1.msra.mxu0 0.0
  %5784 = vmatprep.subr.mxu0 0.0
  %5785 = vmatpush1.msra.mxu0 0.0
  %5786 = vmatprep.subr.mxu0 0.0
  %5787 = vmatpush1.msra.mxu0 0.0
  %5788 = vmatprep.subr.mxu0 0.0
  %5789 = vmatpush1.msra.mxu0 0.0
  %5790 = vmatprep.subr.mxu0 0.0
  %5791 = vmatpush1.msra.mxu0 0.0
  %5792 = vmatprep.subr.mxu0 0.0
  %5793 = vmatpush1.msra.mxu0 0.0
  %5794 = vmatprep.subr.mxu0 0.0
  %5795 = vmatpush1.msra.mxu0 0.0
  %5796 = vmatprep.subr.mxu0 0.0
  %5797 = vmatpush1.msra.mxu0 0.0
  %5798 = vmatprep.subr.mxu0 0.0
  %5799 = vmatpush1.msra.mxu0 0.0
  %5800 = vmatprep.subr.mxu0 0.0
  %5801 = vmatpush1.msra.mxu0 0.0
  %5802 = vmatprep.subr.mxu0 0.0
  %5803 = vmatpush1.msra.mxu0 0.0
  %5804 = vmatprep.subr.mxu0 0.0
  %5805 = vmatpush1.msra.mxu0 0.0
  %5806 = vmatprep.subr.mxu0 0.0
  %5807 = vmatpush1.msra.mxu0 0.0
  %5808 = vmatprep.subr.mxu0 0.0
  %5809 = vmatpush1.msra.mxu0 0.0
  %5810 = vmatprep.subr.mxu0 0.0
  %5811 = vmatpush1.msra.mxu0 0.0
  %5812 = vmatprep.subr.mxu0 0.0
  %5813 = vmatpush1.msra.mxu0 0.0
  %5814 = vmatprep.subr.mxu0 0.0
  %5815 = vmatpush1.msra.mxu0 0.0
  %5816 = vmatprep.subr.mxu0 0.0
  %5817 = vmatpush1.msra.mxu0 0.0
  %5818 = vmatprep.subr.mxu0 0.0
  %5819 = vmatpush1.msra.mxu0 0.0
  %5820 = vmatprep.subr.mxu0 0.0
  %5821 = vmatpush1.msra.mxu0 0.0
  %5822 = vmatprep.subr.mxu0 0.0
  %5823 = vmatpush1.msra.mxu0 0.0
  %5824 = vmatprep.subr.mxu0 0.0
  %5825 = vmatpush1.msra.mxu0 0.0
  %5826 = vmatprep.subr.mxu0 0.0
  %5827 = vmatpush1.msra.mxu0 0.0
  %5828 = vmatprep.subr.mxu0 0.0
  %5829 = vmatpush1.msra.mxu0 0.0
  %5830 = vmatprep.mubr.f32.mxu0 0.0
  %v5831 = vand.u32 %v5277, 4294901760
  %5832 = vmatmul.mubr.f32.gmra.mrb[0].mxu0 %v5831
  %v5833 = vpop.f32.mrb[0].mxu0
  %v5834 = vadd.f32 %v5714, %v5833
  %v5835 = vpop.f32.mrb[0].mxu0
  %v5836 = vadd.f32 %v5716, %v5835
  %5837 = vdwg.mxu0
  %v5838 = vand.u32 %v1864, 4294901760
  %5839 = vmatprep.subr.mxu0 %v5838
  %v5840 = vand.u32 %v1863, 4294901760
  %5841 = vmatpush1.msra.mxu0 %v5840
  %v5842 = vand.u32 %v1866, 4294901760
  %5843 = vmatprep.subr.mxu0 %v5842
  %v5844 = vand.u32 %v1865, 4294901760
  %5845 = vmatpush1.msra.mxu0 %v5844
  %v5846 = vand.u32 %v1868, 4294901760
  %5847 = vmatprep.subr.mxu0 %v5846
  %v5848 = vand.u32 %v1867, 4294901760
  %5849 = vmatpush1.msra.mxu0 %v5848
  %v5850 = vand.u32 %v1870, 4294901760
  %5851 = vmatprep.subr.mxu0 %v5850
  %v5852 = vand.u32 %v1869, 4294901760
  %5853 = vmatpush1.msra.mxu0 %v5852
  %v5854 = vand.u32 %v1872, 4294901760
  %5855 = vmatprep.subr.mxu0 %v5854
  %v5856 = vand.u32 %v1871, 4294901760
  %5857 = vmatpush1.msra.mxu0 %v5856
  %v5858 = vand.u32 %v1874, 4294901760
  %5859 = vmatprep.subr.mxu0 %v5858
  %v5860 = vand.u32 %v1873, 4294901760
  %5861 = vmatpush1.msra.mxu0 %v5860
  %v5862 = vand.u32 %v1876, 4294901760
  %5863 = vmatprep.subr.mxu0 %v5862
  %v5864 = vand.u32 %v1875, 4294901760
  %5865 = vmatpush1.msra.mxu0 %v5864
  %v5866 = vand.u32 %v1878, 4294901760
  %5867 = vmatprep.subr.mxu0 %v5866
  %v5868 = vand.u32 %v1877, 4294901760
  %5869 = vmatpush1.msra.mxu0 %v5868
  %5870 = vmatprep.subr.mxu0 0.0
  %5871 = vmatpush1.msra.mxu0 0.0
  %5872 = vmatprep.subr.mxu0 0.0
  %5873 = vmatpush1.msra.mxu0 0.0
  %5874 = vmatprep.subr.mxu0 0.0
  %5875 = vmatpush1.msra.mxu0 0.0
  %5876 = vmatprep.subr.mxu0 0.0
  %5877 = vmatpush1.msra.mxu0 0.0
  %5878 = vmatprep.subr.mxu0 0.0
  %5879 = vmatpush1.msra.mxu0 0.0
  %5880 = vmatprep.subr.mxu0 0.0
  %5881 = vmatpush1.msra.mxu0 0.0
  %5882 = vmatprep.subr.mxu0 0.0
  %5883 = vmatpush1.msra.mxu0 0.0
  %5884 = vmatprep.subr.mxu0 0.0
  %5885 = vmatpush1.msra.mxu0 0.0
  %5886 = vmatprep.subr.mxu0 0.0
  %5887 = vmatpush1.msra.mxu0 0.0
  %5888 = vmatprep.subr.mxu0 0.0
  %5889 = vmatpush1.msra.mxu0 0.0
  %5890 = vmatprep.subr.mxu0 0.0
  %5891 = vmatpush1.msra.mxu0 0.0
  %5892 = vmatprep.subr.mxu0 0.0
  %5893 = vmatpush1.msra.mxu0 0.0
  %5894 = vmatprep.subr.mxu0 0.0
  %5895 = vmatpush1.msra.mxu0 0.0
  %5896 = vmatprep.subr.mxu0 0.0
  %5897 = vmatpush1.msra.mxu0 0.0
  %5898 = vmatprep.subr.mxu0 0.0
  %5899 = vmatpush1.msra.mxu0 0.0
  %5900 = vmatprep.subr.mxu0 0.0
  %5901 = vmatpush1.msra.mxu0 0.0
  %5902 = vmatprep.subr.mxu0 0.0
  %5903 = vmatpush1.msra.mxu0 0.0
  %5904 = vmatprep.subr.mxu0 0.0
  %5905 = vmatpush1.msra.mxu0 0.0
  %5906 = vmatprep.subr.mxu0 0.0
  %5907 = vmatpush1.msra.mxu0 0.0
  %5908 = vmatprep.subr.mxu0 0.0
  %5909 = vmatpush1.msra.mxu0 0.0
  %5910 = vmatprep.subr.mxu0 0.0
  %5911 = vmatpush1.msra.mxu0 0.0
  %5912 = vmatprep.subr.mxu0 0.0
  %5913 = vmatpush1.msra.mxu0 0.0
  %5914 = vmatprep.subr.mxu0 0.0
  %5915 = vmatpush1.msra.mxu0 0.0
  %5916 = vmatprep.subr.mxu0 0.0
  %5917 = vmatpush1.msra.mxu0 0.0
  %5918 = vmatprep.mubr.f32.mxu0 0.0
  %v5919 = vand.u32 %v5277, 4294901760
  %5920 = vmatmul.mubr.f32.gmra.mrb[0].mxu0 %v5919
  %v5921 = vpop.f32.mrb[0].mxu0
  %v5922 = vadd.f32 %v5834, %v5921
  %v5923 = vpop.f32.mrb[0].mxu0
  %v5924 = vadd.f32 %v5836, %v5923
  %5925 = vdwg.mxu0
  %v5926 = vmul.f32 %v5922, 0.5
  %v5927 = vmul.f32 %v5924, 0.5
  %v5928 = vtanh.pop %v5926
  %v5929 = vtanh.pop %v5927
  %v5930 = vmul.f32 %v5928, 0.5
  %v5931 = vmul.f32 %v5929, 0.5
  %v5932 = vadd.f32 %v5930, 0.5
  %v5933 = vadd.f32 %v5931, 0.5
  %v5934 = vtanh.pop %v5924
  %v5935 = vmul.f32 %v5932, %v5267
  %5937 = vrot.lane.b32.xlu0 %v5934, 64
  %v5938 = vpop.permute.xlu0 %5937
  %v5940 = vmul.f32 %v5932, %v5938
  %5942 = vrot.lane.b32.xlu0 %v5940, 64
  %v5943 = vpop.permute.xlu0 %5942
  %v5945 = vadd.f32 %v5935, %v5943
  %v5946 = vtanh.pop %v5945
  %5948 = vrot.lane.b32.xlu0 %v5946, 64
  %v5949 = vpop.permute.xlu0 %5948
  %v5951 = vmul.f32 %v5933, %v5949
  %v5952 = vld [vmem:[#allocation2 + $0x70] sm:$0xff]
  %v5953 = vld [vmem:[#allocation2 + $0x78] sm:$0xff]
  %v5955 = vsel %vm1881, %v5951, 0
  %v5957 = vand.u32 %v1864, 4294901760
  %5958 = vmatprep.subr.mxu0 %v5957
  %v5959 = vand.u32 %v1863, 4294901760
  %5960 = vmatpush1.msra.mxu0 %v5959
  %v5961 = vand.u32 %v1866, 4294901760
  %5962 = vmatprep.subr.mxu0 %v5961
  %v5963 = vand.u32 %v1865, 4294901760
  %5964 = vmatpush1.msra.mxu0 %v5963
  %v5965 = vand.u32 %v1868, 4294901760
  %5966 = vmatprep.subr.mxu0 %v5965
  %v5967 = vand.u32 %v1867, 4294901760
  %5968 = vmatpush1.msra.mxu0 %v5967
  %v5969 = vand.u32 %v1870, 4294901760
  %5970 = vmatprep.subr.mxu0 %v5969
  %v5971 = vand.u32 %v1869, 4294901760
  %5972 = vmatpush1.msra.mxu0 %v5971
  %v5973 = vand.u32 %v1872, 4294901760
  %5974 = vmatprep.subr.mxu0 %v5973
  %v5975 = vand.u32 %v1871, 4294901760
  %5976 = vmatpush1.msra.mxu0 %v5975
  %v5977 = vand.u32 %v1874, 4294901760
  %5978 = vmatprep.subr.mxu0 %v5977
  %v5979 = vand.u32 %v1873, 4294901760
  %5980 = vmatpush1.msra.mxu0 %v5979
  %v5981 = vand.u32 %v1876, 4294901760
  %5982 = vmatprep.subr.mxu0 %v5981
  %v5983 = vand.u32 %v1875, 4294901760
  %5984 = vmatpush1.msra.mxu0 %v5983
  %v5985 = vand.u32 %v1878, 4294901760
  %5986 = vmatprep.subr.mxu0 %v5985
  %v5987 = vand.u32 %v1877, 4294901760
  %5988 = vmatpush1.msra.mxu0 %v5987
  %5989 = vmatprep.subr.mxu0 0.0
  %5990 = vmatpush1.msra.mxu0 0.0
  %5991 = vmatprep.subr.mxu0 0.0
  %5992 = vmatpush1.msra.mxu0 0.0
  %5993 = vmatprep.subr.mxu0 0.0
  %5994 = vmatpush1.msra.mxu0 0.0
  %5995 = vmatprep.subr.mxu0 0.0
  %5996 = vmatpush1.msra.mxu0 0.0
  %5997 = vmatprep.subr.mxu0 0.0
  %5998 = vmatpush1.msra.mxu0 0.0
  %5999 = vmatprep.subr.mxu0 0.0
  %6000 = vmatpush1.msra.mxu0 0.0
  %6001 = vmatprep.subr.mxu0 0.0
  %6002 = vmatpush1.msra.mxu0 0.0
  %6003 = vmatprep.subr.mxu0 0.0
  %6004 = vmatpush1.msra.mxu0 0.0
  %6005 = vmatprep.subr.mxu0 0.0
  %6006 = vmatpush1.msra.mxu0 0.0
  %6007 = vmatprep.subr.mxu0 0.0
  %6008 = vmatpush1.msra.mxu0 0.0
  %6009 = vmatprep.subr.mxu0 0.0
  %6010 = vmatpush1.msra.mxu0 0.0
  %6011 = vmatprep.subr.mxu0 0.0
  %6012 = vmatpush1.msra.mxu0 0.0
  %6013 = vmatprep.subr.mxu0 0.0
  %6014 = vmatpush1.msra.mxu0 0.0
  %6015 = vmatprep.subr.mxu0 0.0
  %6016 = vmatpush1.msra.mxu0 0.0
  %6017 = vmatprep.subr.mxu0 0.0
  %6018 = vmatpush1.msra.mxu0 0.0
  %6019 = vmatprep.subr.mxu0 0.0
  %6020 = vmatpush1.msra.mxu0 0.0
  %6021 = vmatprep.subr.mxu0 0.0
  %6022 = vmatpush1.msra.mxu0 0.0
  %6023 = vmatprep.subr.mxu0 0.0
  %6024 = vmatpush1.msra.mxu0 0.0
  %6025 = vmatprep.subr.mxu0 0.0
  %6026 = vmatpush1.msra.mxu0 0.0
  %6027 = vmatprep.subr.mxu0 0.0
  %6028 = vmatpush1.msra.mxu0 0.0
  %6029 = vmatprep.subr.mxu0 0.0
  %6030 = vmatpush1.msra.mxu0 0.0
  %6031 = vmatprep.subr.mxu0 0.0
  %6032 = vmatpush1.msra.mxu0 0.0
  %6033 = vmatprep.subr.mxu0 0.0
  %6034 = vmatpush1.msra.mxu0 0.0
  %6035 = vmatprep.subr.mxu0 0.0
  %6036 = vmatpush1.msra.mxu0 0.0
  %6037 = vmatprep.mubr.f32.mxu0 0.0
  %v6038 = vand.u32 %v5955, 4294901760
  %v6039 = vsub.f32 %v5955, %v6038
  %v6040 = vand.u32 %v6039, 4294901760
  %v6041 = vsub.f32 %v6039, %v6040
  %v6042 = vand.u32 %v6041, 4294901760
  %6043 = vmatmul.mubr.f32.gmra.mrb[0].mxu0 %v6042
  %v6044 = vpop.f32.mrb[0].mxu0
  %v6045 = vadd.f32 %v5952, %v6044
  %v6046 = vpop.f32.mrb[0].mxu0
  %v6047 = vadd.f32 %v5953, %v6046
  %6048 = vdwg.mxu0
  %v6049 = vand.u32 %v1864, 4294901760
  %v6050 = vsub.f32 %v1864, %v6049
  %v6051 = vand.u32 %v6050, 4294901760
  %v6052 = vsub.f32 %v6050, %v6051
  %v6053 = vand.u32 %v6052, 4294901760
  %6054 = vmatprep.subr.mxu0 %v6053
  %v6055 = vand.u32 %v1863, 4294901760
  %v6056 = vsub.f32 %v1863, %v6055
  %v6057 = vand.u32 %v6056, 4294901760
  %v6058 = vsub.f32 %v6056, %v6057
  %v6059 = vand.u32 %v6058, 4294901760
  %6060 = vmatpush1.msra.mxu0 %v6059
  %v6061 = vand.u32 %v1866, 4294901760
  %v6062 = vsub.f32 %v1866, %v6061
  %v6063 = vand.u32 %v6062, 4294901760
  %v6064 = vsub.f32 %v6062, %v6063
  %v6065 = vand.u32 %v6064, 4294901760
  %6066 = vmatprep.subr.mxu0 %v6065
  %v6067 = vand.u32 %v1865, 4294901760
  %v6068 = vsub.f32 %v1865, %v6067
  %v6069 = vand.u32 %v6068, 4294901760
  %v6070 = vsub.f32 %v6068, %v6069
  %v6071 = vand.u32 %v6070, 4294901760
  %6072 = vmatpush1.msra.mxu0 %v6071
  %v6073 = vand.u32 %v1868, 4294901760
  %v6074 = vsub.f32 %v1868, %v6073
  %v6075 = vand.u32 %v6074, 4294901760
  %v6076 = vsub.f32 %v6074, %v6075
  %v6077 = vand.u32 %v6076, 4294901760
  %6078 = vmatprep.subr.mxu0 %v6077
  %v6079 = vand.u32 %v1867, 4294901760
  %v6080 = vsub.f32 %v1867, %v6079
  %v6081 = vand.u32 %v6080, 4294901760
  %v6082 = vsub.f32 %v6080, %v6081
  %v6083 = vand.u32 %v6082, 4294901760
  %6084 = vmatpush1.msra.mxu0 %v6083
  %v6085 = vand.u32 %v1870, 4294901760
  %v6086 = vsub.f32 %v1870, %v6085
  %v6087 = vand.u32 %v6086, 4294901760
  %v6088 = vsub.f32 %v6086, %v6087
  %v6089 = vand.u32 %v6088, 4294901760
  %6090 = vmatprep.subr.mxu0 %v6089
  %v6091 = vand.u32 %v1869, 4294901760
  %v6092 = vsub.f32 %v1869, %v6091
  %v6093 = vand.u32 %v6092, 4294901760
  %v6094 = vsub.f32 %v6092, %v6093
  %v6095 = vand.u32 %v6094, 4294901760
  %6096 = vmatpush1.msra.mxu0 %v6095
  %v6097 = vand.u32 %v1872, 4294901760
  %v6098 = vsub.f32 %v1872, %v6097
  %v6099 = vand.u32 %v6098, 4294901760
  %v6100 = vsub.f32 %v6098, %v6099
  %v6101 = vand.u32 %v6100, 4294901760
  %6102 = vmatprep.subr.mxu0 %v6101
  %v6103 = vand.u32 %v1871, 4294901760
  %v6104 = vsub.f32 %v1871, %v6103
  %v6105 = vand.u32 %v6104, 4294901760
  %v6106 = vsub.f32 %v6104, %v6105
  %v6107 = vand.u32 %v6106, 4294901760
  %6108 = vmatpush1.msra.mxu0 %v6107
  %v6109 = vand.u32 %v1874, 4294901760
  %v6110 = vsub.f32 %v1874, %v6109
  %v6111 = vand.u32 %v6110, 4294901760
  %v6112 = vsub.f32 %v6110, %v6111
  %v6113 = vand.u32 %v6112, 4294901760
  %6114 = vmatprep.subr.mxu0 %v6113
  %v6115 = vand.u32 %v1873, 4294901760
  %v6116 = vsub.f32 %v1873, %v6115
  %v6117 = vand.u32 %v6116, 4294901760
  %v6118 = vsub.f32 %v6116, %v6117
  %v6119 = vand.u32 %v6118, 4294901760
  %6120 = vmatpush1.msra.mxu0 %v6119
  %v6121 = vand.u32 %v1876, 4294901760
  %v6122 = vsub.f32 %v1876, %v6121
  %v6123 = vand.u32 %v6122, 4294901760
  %v6124 = vsub.f32 %v6122, %v6123
  %v6125 = vand.u32 %v6124, 4294901760
  %6126 = vmatprep.subr.mxu0 %v6125
  %v6127 = vand.u32 %v1875, 4294901760
  %v6128 = vsub.f32 %v1875, %v6127
  %v6129 = vand.u32 %v6128, 4294901760
  %v6130 = vsub.f32 %v6128, %v6129
  %v6131 = vand.u32 %v6130, 4294901760
  %6132 = vmatpush1.msra.mxu0 %v6131
  %v6133 = vand.u32 %v1878, 4294901760
  %v6134 = vsub.f32 %v1878, %v6133
  %v6135 = vand.u32 %v6134, 4294901760
  %v6136 = vsub.f32 %v6134, %v6135
  %v6137 = vand.u32 %v6136, 4294901760
  %6138 = vmatprep.subr.mxu0 %v6137
  %v6139 = vand.u32 %v1877, 4294901760
  %v6140 = vsub.f32 %v1877, %v6139
  %v6141 = vand.u32 %v6140, 4294901760
  %v6142 = vsub.f32 %v6140, %v6141
  %v6143 = vand.u32 %v6142, 4294901760
  %6144 = vmatpush1.msra.mxu0 %v6143
  %6145 = vmatprep.subr.mxu0 0.0
  %6146 = vmatpush1.msra.mxu0 0.0
  %6147 = vmatprep.subr.mxu0 0.0
  %6148 = vmatpush1.msra.mxu0 0.0
  %6149 = vmatprep.subr.mxu0 0.0
  %6150 = vmatpush1.msra.mxu0 0.0
  %6151 = vmatprep.subr.mxu0 0.0
  %6152 = vmatpush1.msra.mxu0 0.0
  %6153 = vmatprep.subr.mxu0 0.0
  %6154 = vmatpush1.msra.mxu0 0.0
  %6155 = vmatprep.subr.mxu0 0.0
  %6156 = vmatpush1.msra.mxu0 0.0
  %6157 = vmatprep.subr.mxu0 0.0
  %6158 = vmatpush1.msra.mxu0 0.0
  %6159 = vmatprep.subr.mxu0 0.0
  %6160 = vmatpush1.msra.mxu0 0.0
  %6161 = vmatprep.subr.mxu0 0.0
  %6162 = vmatpush1.msra.mxu0 0.0
  %6163 = vmatprep.subr.mxu0 0.0
  %6164 = vmatpush1.msra.mxu0 0.0
  %6165 = vmatprep.subr.mxu0 0.0
  %6166 = vmatpush1.msra.mxu0 0.0
  %6167 = vmatprep.subr.mxu0 0.0
  %6168 = vmatpush1.msra.mxu0 0.0
  %6169 = vmatprep.subr.mxu0 0.0
  %6170 = vmatpush1.msra.mxu0 0.0
  %6171 = vmatprep.subr.mxu0 0.0
  %6172 = vmatpush1.msra.mxu0 0.0
  %6173 = vmatprep.subr.mxu0 0.0
  %6174 = vmatpush1.msra.mxu0 0.0
  %6175 = vmatprep.subr.mxu0 0.0
  %6176 = vmatpush1.msra.mxu0 0.0
  %6177 = vmatprep.subr.mxu0 0.0
  %6178 = vmatpush1.msra.mxu0 0.0
  %6179 = vmatprep.subr.mxu0 0.0
  %6180 = vmatpush1.msra.mxu0 0.0
  %6181 = vmatprep.subr.mxu0 0.0
  %6182 = vmatpush1.msra.mxu0 0.0
  %6183 = vmatprep.subr.mxu0 0.0
  %6184 = vmatpush1.msra.mxu0 0.0
  %6185 = vmatprep.subr.mxu0 0.0
  %6186 = vmatpush1.msra.mxu0 0.0
  %6187 = vmatprep.subr.mxu0 0.0
  %6188 = vmatpush1.msra.mxu0 0.0
  %6189 = vmatprep.subr.mxu0 0.0
  %6190 = vmatpush1.msra.mxu0 0.0
  %6191 = vmatprep.subr.mxu0 0.0
  %6192 = vmatpush1.msra.mxu0 0.0
  %6193 = vmatprep.mubr.f32.mxu0 0.0
  %v6194 = vand.u32 %v5955, 4294901760
  %6195 = vmatmul.mubr.f32.gmra.mrb[0].mxu0 %v6194
  %v6196 = vpop.f32.mrb[0].mxu0
  %v6197 = vadd.f32 %v6045, %v6196
  %v6198 = vpop.f32.mrb[0].mxu0
  %v6199 = vadd.f32 %v6047, %v6198
  %6200 = vdwg.mxu0
  %v6201 = vand.u32 %v1864, 4294901760
  %v6202 = vsub.f32 %v1864, %v6201
  %6203 = vmatprep.subr.mxu0 %v6202
  %v6204 = vand.u32 %v1863, 4294901760
  %v6205 = vsub.f32 %v1863, %v6204
  %6206 = vmatpush1.msra.mxu0 %v6205
  %v6207 = vand.u32 %v1866, 4294901760
  %v6208 = vsub.f32 %v1866, %v6207
  %6209 = vmatprep.subr.mxu0 %v6208
  %v6210 = vand.u32 %v1865, 4294901760
  %v6211 = vsub.f32 %v1865, %v6210
  %6212 = vmatpush1.msra.mxu0 %v6211
  %v6213 = vand.u32 %v1868, 4294901760
  %v6214 = vsub.f32 %v1868, %v6213
  %6215 = vmatprep.subr.mxu0 %v6214
  %v6216 = vand.u32 %v1867, 4294901760
  %v6217 = vsub.f32 %v1867, %v6216
  %6218 = vmatpush1.msra.mxu0 %v6217
  %v6219 = vand.u32 %v1870, 4294901760
  %v6220 = vsub.f32 %v1870, %v6219
  %6221 = vmatprep.subr.mxu0 %v6220
  %v6222 = vand.u32 %v1869, 4294901760
  %v6223 = vsub.f32 %v1869, %v6222
  %6224 = vmatpush1.msra.mxu0 %v6223
  %v6225 = vand.u32 %v1872, 4294901760
  %v6226 = vsub.f32 %v1872, %v6225
  %6227 = vmatprep.subr.mxu0 %v6226
  %v6228 = vand.u32 %v1871, 4294901760
  %v6229 = vsub.f32 %v1871, %v6228
  %6230 = vmatpush1.msra.mxu0 %v6229
  %v6231 = vand.u32 %v1874, 4294901760
  %v6232 = vsub.f32 %v1874, %v6231
  %6233 = vmatprep.subr.mxu0 %v6232
  %v6234 = vand.u32 %v1873, 4294901760
  %v6235 = vsub.f32 %v1873, %v6234
  %6236 = vmatpush1.msra.mxu0 %v6235
  %v6237 = vand.u32 %v1876, 4294901760
  %v6238 = vsub.f32 %v1876, %v6237
  %6239 = vmatprep.subr.mxu0 %v6238
  %v6240 = vand.u32 %v1875, 4294901760
  %v6241 = vsub.f32 %v1875, %v6240
  %6242 = vmatpush1.msra.mxu0 %v6241
  %v6243 = vand.u32 %v1878, 4294901760
  %v6244 = vsub.f32 %v1878, %v6243
  %6245 = vmatprep.subr.mxu0 %v6244
  %v6246 = vand.u32 %v1877, 4294901760
  %v6247 = vsub.f32 %v1877, %v6246
  %6248 = vmatpush1.msra.mxu0 %v6247
  %6249 = vmatprep.subr.mxu0 0.0
  %6250 = vmatpush1.msra.mxu0 0.0
  %6251 = vmatprep.subr.mxu0 0.0
  %6252 = vmatpush1.msra.mxu0 0.0
  %6253 = vmatprep.subr.mxu0 0.0
  %6254 = vmatpush1.msra.mxu0 0.0
  %6255 = vmatprep.subr.mxu0 0.0
  %6256 = vmatpush1.msra.mxu0 0.0
  %6257 = vmatprep.subr.mxu0 0.0
  %6258 = vmatpush1.msra.mxu0 0.0
  %6259 = vmatprep.subr.mxu0 0.0
  %6260 = vmatpush1.msra.mxu0 0.0
  %6261 = vmatprep.subr.mxu0 0.0
  %6262 = vmatpush1.msra.mxu0 0.0
  %6263 = vmatprep.subr.mxu0 0.0
  %6264 = vmatpush1.msra.mxu0 0.0
  %6265 = vmatprep.subr.mxu0 0.0
  %6266 = vmatpush1.msra.mxu0 0.0
  %6267 = vmatprep.subr.mxu0 0.0
  %6268 = vmatpush1.msra.mxu0 0.0
  %6269 = vmatprep.subr.mxu0 0.0
  %6270 = vmatpush1.msra.mxu0 0.0
  %6271 = vmatprep.subr.mxu0 0.0
  %6272 = vmatpush1.msra.mxu0 0.0
  %6273 = vmatprep.subr.mxu0 0.0
  %6274 = vmatpush1.msra.mxu0 0.0
  %6275 = vmatprep.subr.mxu0 0.0
  %6276 = vmatpush1.msra.mxu0 0.0
  %6277 = vmatprep.subr.mxu0 0.0
  %6278 = vmatpush1.msra.mxu0 0.0
  %6279 = vmatprep.subr.mxu0 0.0
  %6280 = vmatpush1.msra.mxu0 0.0
  %6281 = vmatprep.subr.mxu0 0.0
  %6282 = vmatpush1.msra.mxu0 0.0
  %6283 = vmatprep.subr.mxu0 0.0
  %6284 = vmatpush1.msra.mxu0 0.0
  %6285 = vmatprep.subr.mxu0 0.0
  %6286 = vmatpush1.msra.mxu0 0.0
  %6287 = vmatprep.subr.mxu0 0.0
  %6288 = vmatpush1.msra.mxu0 0.0
  %6289 = vmatprep.subr.mxu0 0.0
  %6290 = vmatpush1.msra.mxu0 0.0
  %6291 = vmatprep.subr.mxu0 0.0
  %6292 = vmatpush1.msra.mxu0 0.0
  %6293 = vmatprep.subr.mxu0 0.0
  %6294 = vmatpush1.msra.mxu0 0.0
  %6295 = vmatprep.subr.mxu0 0.0
  %6296 = vmatpush1.msra.mxu0 0.0
  %6297 = vmatprep.mubr.f32.mxu0 0.0
  %v6298 = vand.u32 %v5955, 4294901760
  %v6299 = vsub.f32 %v5955, %v6298
  %6300 = vmatmul.mubr.f32.gmra.mrb[0].mxu0 %v6299
  %v6301 = vpop.f32.mrb[0].mxu0
  %v6302 = vadd.f32 %v6197, %v6301
  %v6303 = vpop.f32.mrb[0].mxu0
  %v6304 = vadd.f32 %v6199, %v6303
  %6305 = vdwg.mxu0
  %v6306 = vand.u32 %v1864, 4294901760
  %6307 = vmatprep.subr.mxu0 %v6306
  %v6308 = vand.u32 %v1863, 4294901760
  %6309 = vmatpush1.msra.mxu0 %v6308
  %v6310 = vand.u32 %v1866, 4294901760
  %6311 = vmatprep.subr.mxu0 %v6310
  %v6312 = vand.u32 %v1865, 4294901760
  %6313 = vmatpush1.msra.mxu0 %v6312
  %v6314 = vand.u32 %v1868, 4294901760
  %6315 = vmatprep.subr.mxu0 %v6314
  %v6316 = vand.u32 %v1867, 4294901760
  %6317 = vmatpush1.msra.mxu0 %v6316
  %v6318 = vand.u32 %v1870, 4294901760
  %6319 = vmatprep.subr.mxu0 %v6318
  %v6320 = vand.u32 %v1869, 4294901760
  %6321 = vmatpush1.msra.mxu0 %v6320
  %v6322 = vand.u32 %v1872, 4294901760
  %6323 = vmatprep.subr.mxu0 %v6322
  %v6324 = vand.u32 %v1871, 4294901760
  %6325 = vmatpush1.msra.mxu0 %v6324
  %v6326 = vand.u32 %v1874, 4294901760
  %6327 = vmatprep.subr.mxu0 %v6326
  %v6328 = vand.u32 %v1873, 4294901760
  %6329 = vmatpush1.msra.mxu0 %v6328
  %v6330 = vand.u32 %v1876, 4294901760
  %6331 = vmatprep.subr.mxu0 %v6330
  %v6332 = vand.u32 %v1875, 4294901760
  %6333 = vmatpush1.msra.mxu0 %v6332
  %v6334 = vand.u32 %v1878, 4294901760
  %6335 = vmatprep.subr.mxu0 %v6334
  %v6336 = vand.u32 %v1877, 4294901760
  %6337 = vmatpush1.msra.mxu0 %v6336
  %6338 = vmatprep.subr.mxu0 0.0
  %6339 = vmatpush1.msra.mxu0 0.0
  %6340 = vmatprep.subr.mxu0 0.0
  %6341 = vmatpush1.msra.mxu0 0.0
  %6342 = vmatprep.subr.mxu0 0.0
  %6343 = vmatpush1.msra.mxu0 0.0
  %6344 = vmatprep.subr.mxu0 0.0
  %6345 = vmatpush1.msra.mxu0 0.0
  %6346 = vmatprep.subr.mxu0 0.0
  %6347 = vmatpush1.msra.mxu0 0.0
  %6348 = vmatprep.subr.mxu0 0.0
  %6349 = vmatpush1.msra.mxu0 0.0
  %6350 = vmatprep.subr.mxu0 0.0
  %6351 = vmatpush1.msra.mxu0 0.0
  %6352 = vmatprep.subr.mxu0 0.0
  %6353 = vmatpush1.msra.mxu0 0.0
  %6354 = vmatprep.subr.mxu0 0.0
  %6355 = vmatpush1.msra.mxu0 0.0
  %6356 = vmatprep.subr.mxu0 0.0
  %6357 = vmatpush1.msra.mxu0 0.0
  %6358 = vmatprep.subr.mxu0 0.0
  %6359 = vmatpush1.msra.mxu0 0.0
  %6360 = vmatprep.subr.mxu0 0.0
  %6361 = vmatpush1.msra.mxu0 0.0
  %6362 = vmatprep.subr.mxu0 0.0
  %6363 = vmatpush1.msra.mxu0 0.0
  %6364 = vmatprep.subr.mxu0 0.0
  %6365 = vmatpush1.msra.mxu0 0.0
  %6366 = vmatprep.subr.mxu0 0.0
  %6367 = vmatpush1.msra.mxu0 0.0
  %6368 = vmatprep.subr.mxu0 0.0
  %6369 = vmatpush1.msra.mxu0 0.0
  %6370 = vmatprep.subr.mxu0 0.0
  %6371 = vmatpush1.msra.mxu0 0.0
  %6372 = vmatprep.subr.mxu0 0.0
  %6373 = vmatpush1.msra.mxu0 0.0
  %6374 = vmatprep.subr.mxu0 0.0
  %6375 = vmatpush1.msra.mxu0 0.0
  %6376 = vmatprep.subr.mxu0 0.0
  %6377 = vmatpush1.msra.mxu0 0.0
  %6378 = vmatprep.subr.mxu0 0.0
  %6379 = vmatpush1.msra.mxu0 0.0
  %6380 = vmatprep.subr.mxu0 0.0
  %6381 = vmatpush1.msra.mxu0 0.0
  %6382 = vmatprep.subr.mxu0 0.0
  %6383 = vmatpush1.msra.mxu0 0.0
  %6384 = vmatprep.subr.mxu0 0.0
  %6385 = vmatpush1.msra.mxu0 0.0
  %6386 = vmatprep.mubr.f32.mxu0 0.0
  %v6387 = vand.u32 %v5955, 4294901760
  %v6388 = vsub.f32 %v5955, %v6387
  %v6389 = vand.u32 %v6388, 4294901760
  %6390 = vmatmul.mubr.f32.gmra.mrb[0].mxu0 %v6389
  %v6391 = vpop.f32.mrb[0].mxu0
  %v6392 = vadd.f32 %v6302, %v6391
  %v6393 = vpop.f32.mrb[0].mxu0
  %v6394 = vadd.f32 %v6304, %v6393
  %6395 = vdwg.mxu0
  %v6396 = vand.u32 %v1864, 4294901760
  %v6397 = vsub.f32 %v1864, %v6396
  %v6398 = vand.u32 %v6397, 4294901760
  %6399 = vmatprep.subr.mxu0 %v6398
  %v6400 = vand.u32 %v1863, 4294901760
  %v6401 = vsub.f32 %v1863, %v6400
  %v6402 = vand.u32 %v6401, 4294901760
  %6403 = vmatpush1.msra.mxu0 %v6402
  %v6404 = vand.u32 %v1866, 4294901760
  %v6405 = vsub.f32 %v1866, %v6404
  %v6406 = vand.u32 %v6405, 4294901760
  %6407 = vmatprep.subr.mxu0 %v6406
  %v6408 = vand.u32 %v1865, 4294901760
  %v6409 = vsub.f32 %v1865, %v6408
  %v6410 = vand.u32 %v6409, 4294901760
  %6411 = vmatpush1.msra.mxu0 %v6410
  %v6412 = vand.u32 %v1868, 4294901760
  %v6413 = vsub.f32 %v1868, %v6412
  %v6414 = vand.u32 %v6413, 4294901760
  %6415 = vmatprep.subr.mxu0 %v6414
  %v6416 = vand.u32 %v1867, 4294901760
  %v6417 = vsub.f32 %v1867, %v6416
  %v6418 = vand.u32 %v6417, 4294901760
  %6419 = vmatpush1.msra.mxu0 %v6418
  %v6420 = vand.u32 %v1870, 4294901760
  %v6421 = vsub.f32 %v1870, %v6420
  %v6422 = vand.u32 %v6421, 4294901760
  %6423 = vmatprep.subr.mxu0 %v6422
  %v6424 = vand.u32 %v1869, 4294901760
  %v6425 = vsub.f32 %v1869, %v6424
  %v6426 = vand.u32 %v6425, 4294901760
  %6427 = vmatpush1.msra.mxu0 %v6426
  %v6428 = vand.u32 %v1872, 4294901760
  %v6429 = vsub.f32 %v1872, %v6428
  %v6430 = vand.u32 %v6429, 4294901760
  %6431 = vmatprep.subr.mxu0 %v6430
  %v6432 = vand.u32 %v1871, 4294901760
  %v6433 = vsub.f32 %v1871, %v6432
  %v6434 = vand.u32 %v6433, 4294901760
  %6435 = vmatpush1.msra.mxu0 %v6434
  %v6436 = vand.u32 %v1874, 4294901760
  %v6437 = vsub.f32 %v1874, %v6436
  %v6438 = vand.u32 %v6437, 4294901760
  %6439 = vmatprep.subr.mxu0 %v6438
  %v6440 = vand.u32 %v1873, 4294901760
  %v6441 = vsub.f32 %v1873, %v6440
  %v6442 = vand.u32 %v6441, 4294901760
  %6443 = vmatpush1.msra.mxu0 %v6442
  %v6444 = vand.u32 %v1876, 4294901760
  %v6445 = vsub.f32 %v1876, %v6444
  %v6446 = vand.u32 %v6445, 4294901760
  %6447 = vmatprep.subr.mxu0 %v6446
  %v6448 = vand.u32 %v1875, 4294901760
  %v6449 = vsub.f32 %v1875, %v6448
  %v6450 = vand.u32 %v6449, 4294901760
  %6451 = vmatpush1.msra.mxu0 %v6450
  %v6452 = vand.u32 %v1878, 4294901760
  %v6453 = vsub.f32 %v1878, %v6452
  %v6454 = vand.u32 %v6453, 4294901760
  %6455 = vmatprep.subr.mxu0 %v6454
  %v6456 = vand.u32 %v1877, 4294901760
  %v6457 = vsub.f32 %v1877, %v6456
  %v6458 = vand.u32 %v6457, 4294901760
  %6459 = vmatpush1.msra.mxu0 %v6458
  %6460 = vmatprep.subr.mxu0 0.0
  %6461 = vmatpush1.msra.mxu0 0.0
  %6462 = vmatprep.subr.mxu0 0.0
  %6463 = vmatpush1.msra.mxu0 0.0
  %6464 = vmatprep.subr.mxu0 0.0
  %6465 = vmatpush1.msra.mxu0 0.0
  %6466 = vmatprep.subr.mxu0 0.0
  %6467 = vmatpush1.msra.mxu0 0.0
  %6468 = vmatprep.subr.mxu0 0.0
  %6469 = vmatpush1.msra.mxu0 0.0
  %6470 = vmatprep.subr.mxu0 0.0
  %6471 = vmatpush1.msra.mxu0 0.0
  %6472 = vmatprep.subr.mxu0 0.0
  %6473 = vmatpush1.msra.mxu0 0.0
  %6474 = vmatprep.subr.mxu0 0.0
  %6475 = vmatpush1.msra.mxu0 0.0
  %6476 = vmatprep.subr.mxu0 0.0
  %6477 = vmatpush1.msra.mxu0 0.0
  %6478 = vmatprep.subr.mxu0 0.0
  %6479 = vmatpush1.msra.mxu0 0.0
  %6480 = vmatprep.subr.mxu0 0.0
  %6481 = vmatpush1.msra.mxu0 0.0
  %6482 = vmatprep.subr.mxu0 0.0
  %6483 = vmatpush1.msra.mxu0 0.0
  %6484 = vmatprep.subr.mxu0 0.0
  %6485 = vmatpush1.msra.mxu0 0.0
  %6486 = vmatprep.subr.mxu0 0.0
  %6487 = vmatpush1.msra.mxu0 0.0
  %6488 = vmatprep.subr.mxu0 0.0
  %6489 = vmatpush1.msra.mxu0 0.0
  %6490 = vmatprep.subr.mxu0 0.0
  %6491 = vmatpush1.msra.mxu0 0.0
  %6492 = vmatprep.subr.mxu0 0.0
  %6493 = vmatpush1.msra.mxu0 0.0
  %6494 = vmatprep.subr.mxu0 0.0
  %6495 = vmatpush1.msra.mxu0 0.0
  %6496 = vmatprep.subr.mxu0 0.0
  %6497 = vmatpush1.msra.mxu0 0.0
  %6498 = vmatprep.subr.mxu0 0.0
  %6499 = vmatpush1.msra.mxu0 0.0
  %6500 = vmatprep.subr.mxu0 0.0
  %6501 = vmatpush1.msra.mxu0 0.0
  %6502 = vmatprep.subr.mxu0 0.0
  %6503 = vmatpush1.msra.mxu0 0.0
  %6504 = vmatprep.subr.mxu0 0.0
  %6505 = vmatpush1.msra.mxu0 0.0
  %6506 = vmatprep.subr.mxu0 0.0
  %6507 = vmatpush1.msra.mxu0 0.0
  %6508 = vmatprep.mubr.f32.mxu0 0.0
  %v6509 = vand.u32 %v5955, 4294901760
  %6510 = vmatmul.mubr.f32.gmra.mrb[0].mxu0 %v6509
  %v6511 = vpop.f32.mrb[0].mxu0
  %v6512 = vadd.f32 %v6392, %v6511
  %v6513 = vpop.f32.mrb[0].mxu0
  %v6514 = vadd.f32 %v6394, %v6513
  %6515 = vdwg.mxu0
  %v6516 = vand.u32 %v1864, 4294901760
  %6517 = vmatprep.subr.mxu0 %v6516
  %v6518 = vand.u32 %v1863, 4294901760
  %6519 = vmatpush1.msra.mxu0 %v6518
  %v6520 = vand.u32 %v1866, 4294901760
  %6521 = vmatprep.subr.mxu0 %v6520
  %v6522 = vand.u32 %v1865, 4294901760
  %6523 = vmatpush1.msra.mxu0 %v6522
  %v6524 = vand.u32 %v1868, 4294901760
  %6525 = vmatprep.subr.mxu0 %v6524
  %v6526 = vand.u32 %v1867, 4294901760
  %6527 = vmatpush1.msra.mxu0 %v6526
  %v6528 = vand.u32 %v1870, 4294901760
  %6529 = vmatprep.subr.mxu0 %v6528
  %v6530 = vand.u32 %v1869, 4294901760
  %6531 = vmatpush1.msra.mxu0 %v6530
  %v6532 = vand.u32 %v1872, 4294901760
  %6533 = vmatprep.subr.mxu0 %v6532
  %v6534 = vand.u32 %v1871, 4294901760
  %6535 = vmatpush1.msra.mxu0 %v6534
  %v6536 = vand.u32 %v1874, 4294901760
  %6537 = vmatprep.subr.mxu0 %v6536
  %v6538 = vand.u32 %v1873, 4294901760
  %6539 = vmatpush1.msra.mxu0 %v6538
  %v6540 = vand.u32 %v1876, 4294901760
  %6541 = vmatprep.subr.mxu0 %v6540
  %v6542 = vand.u32 %v1875, 4294901760
  %6543 = vmatpush1.msra.mxu0 %v6542
  %v6544 = vand.u32 %v1878, 4294901760
  %6545 = vmatprep.subr.mxu0 %v6544
  %v6546 = vand.u32 %v1877, 4294901760
  %6547 = vmatpush1.msra.mxu0 %v6546
  %6548 = vmatprep.subr.mxu0 0.0
  %6549 = vmatpush1.msra.mxu0 0.0
  %6550 = vmatprep.subr.mxu0 0.0
  %6551 = vmatpush1.msra.mxu0 0.0
  %6552 = vmatprep.subr.mxu0 0.0
  %6553 = vmatpush1.msra.mxu0 0.0
  %6554 = vmatprep.subr.mxu0 0.0
  %6555 = vmatpush1.msra.mxu0 0.0
  %6556 = vmatprep.subr.mxu0 0.0
  %6557 = vmatpush1.msra.mxu0 0.0
  %6558 = vmatprep.subr.mxu0 0.0
  %6559 = vmatpush1.msra.mxu0 0.0
  %6560 = vmatprep.subr.mxu0 0.0
  %6561 = vmatpush1.msra.mxu0 0.0
  %6562 = vmatprep.subr.mxu0 0.0
  %6563 = vmatpush1.msra.mxu0 0.0
  %6564 = vmatprep.subr.mxu0 0.0
  %6565 = vmatpush1.msra.mxu0 0.0
  %6566 = vmatprep.subr.mxu0 0.0
  %6567 = vmatpush1.msra.mxu0 0.0
  %6568 = vmatprep.subr.mxu0 0.0
  %6569 = vmatpush1.msra.mxu0 0.0
  %6570 = vmatprep.subr.mxu0 0.0
  %6571 = vmatpush1.msra.mxu0 0.0
  %6572 = vmatprep.subr.mxu0 0.0
  %6573 = vmatpush1.msra.mxu0 0.0
  %6574 = vmatprep.subr.mxu0 0.0
  %6575 = vmatpush1.msra.mxu0 0.0
  %6576 = vmatprep.subr.mxu0 0.0
  %6577 = vmatpush1.msra.mxu0 0.0
  %6578 = vmatprep.subr.mxu0 0.0
  %6579 = vmatpush1.msra.mxu0 0.0
  %6580 = vmatprep.subr.mxu0 0.0
  %6581 = vmatpush1.msra.mxu0 0.0
  %6582 = vmatprep.subr.mxu0 0.0
  %6583 = vmatpush1.msra.mxu0 0.0
  %6584 = vmatprep.subr.mxu0 0.0
  %6585 = vmatpush1.msra.mxu0 0.0
  %6586 = vmatprep.subr.mxu0 0.0
  %6587 = vmatpush1.msra.mxu0 0.0
  %6588 = vmatprep.subr.mxu0 0.0
  %6589 = vmatpush1.msra.mxu0 0.0
  %6590 = vmatprep.subr.mxu0 0.0
  %6591 = vmatpush1.msra.mxu0 0.0
  %6592 = vmatprep.subr.mxu0 0.0
  %6593 = vmatpush1.msra.mxu0 0.0
  %6594 = vmatprep.subr.mxu0 0.0
  %6595 = vmatpush1.msra.mxu0 0.0
  %6596 = vmatprep.mubr.f32.mxu0 0.0
  %v6597 = vand.u32 %v5955, 4294901760
  %6598 = vmatmul.mubr.f32.gmra.mrb[0].mxu0 %v6597
  %v6599 = vpop.f32.mrb[0].mxu0
  %v6600 = vadd.f32 %v6512, %v6599
  %v6601 = vpop.f32.mrb[0].mxu0
  %v6602 = vadd.f32 %v6514, %v6601
  %6603 = vdwg.mxu0
  %v6604 = vmul.f32 %v6600, 0.5
  %v6605 = vmul.f32 %v6602, 0.5
  %v6606 = vtanh.pop %v6604
  %v6607 = vtanh.pop %v6605
  %v6608 = vmul.f32 %v6606, 0.5
  %v6609 = vmul.f32 %v6607, 0.5
  %v6610 = vadd.f32 %v6608, 0.5
  %v6611 = vadd.f32 %v6609, 0.5
  %v6612 = vtanh.pop %v6602
  %v6613 = vmul.f32 %v6610, %v5945
  %6615 = vrot.lane.b32.xlu0 %v6612, 64
  %v6616 = vpop.permute.xlu0 %6615
  %v6618 = vmul.f32 %v6610, %v6616
  %6620 = vrot.lane.b32.xlu0 %v6618, 64
  %v6621 = vpop.permute.xlu0 %6620
  %v6623 = vadd.f32 %v6613, %v6621
  %v6624 = vtanh.pop %v6623
  %6626 = vrot.lane.b32.xlu0 %v6624, 64
  %v6627 = vpop.permute.xlu0 %6626
  %v6629 = vmul.f32 %v6611, %v6627
  %v6631 = vsel %vm1881, %v6629, 0
  %v6633 = vand.u32 %v1864, 4294901760
  %6634 = vmatprep.subr.mxu0 %v6633
  %v6635 = vand.u32 %v1863, 4294901760
  %6636 = vmatpush1.msra.mxu0 %v6635
  %v6637 = vand.u32 %v1866, 4294901760
  %6638 = vmatprep.subr.mxu0 %v6637
  %v6639 = vand.u32 %v1865, 4294901760
  %6640 = vmatpush1.msra.mxu0 %v6639
  %v6641 = vand.u32 %v1868, 4294901760
  %6642 = vmatprep.subr.mxu0 %v6641
  %v6643 = vand.u32 %v1867, 4294901760
  %6644 = vmatpush1.msra.mxu0 %v6643
  %v6645 = vand.u32 %v1870, 4294901760
  %6646 = vmatprep.subr.mxu0 %v6645
  %v6647 = vand.u32 %v1869, 4294901760
  %6648 = vmatpush1.msra.mxu0 %v6647
  %v6649 = vand.u32 %v1872, 4294901760
  %6650 = vmatprep.subr.mxu0 %v6649
  %v6651 = vand.u32 %v1871, 4294901760
  %6652 = vmatpush1.msra.mxu0 %v6651
  %v6653 = vand.u32 %v1874, 4294901760
  %6654 = vmatprep.subr.mxu0 %v6653
  %v6655 = vand.u32 %v1873, 4294901760
  %6656 = vmatpush1.msra.mxu0 %v6655
  %v6657 = vand.u32 %v1876, 4294901760
  %6658 = vmatprep.subr.mxu0 %v6657
  %v6659 = vand.u32 %v1875, 4294901760
  %6660 = vmatpush1.msra.mxu0 %v6659
  %v6661 = vand.u32 %v1878, 4294901760
  %6662 = vmatprep.subr.mxu0 %v6661
  %v6663 = vand.u32 %v1877, 4294901760
  %6664 = vmatpush1.msra.mxu0 %v6663
  %6665 = vmatprep.subr.mxu0 0.0
  %6666 = vmatpush1.msra.mxu0 0.0
  %6667 = vmatprep.subr.mxu0 0.0
  %6668 = vmatpush1.msra.mxu0 0.0
  %6669 = vmatprep.subr.mxu0 0.0
  %6670 = vmatpush1.msra.mxu0 0.0
  %6671 = vmatprep.subr.mxu0 0.0
  %6672 = vmatpush1.msra.mxu0 0.0
  %6673 = vmatprep.subr.mxu0 0.0
  %6674 = vmatpush1.msra.mxu0 0.0
  %6675 = vmatprep.subr.mxu0 0.0
  %6676 = vmatpush1.msra.mxu0 0.0
  %6677 = vmatprep.subr.mxu0 0.0
  %6678 = vmatpush1.msra.mxu0 0.0
  %6679 = vmatprep.subr.mxu0 0.0
  %6680 = vmatpush1.msra.mxu0 0.0
  %6681 = vmatprep.subr.mxu0 0.0
  %6682 = vmatpush1.msra.mxu0 0.0
  %6683 = vmatprep.subr.mxu0 0.0
  %6684 = vmatpush1.msra.mxu0 0.0
  %6685 = vmatprep.subr.mxu0 0.0
  %6686 = vmatpush1.msra.mxu0 0.0
  %6687 = vmatprep.subr.mxu0 0.0
  %6688 = vmatpush1.msra.mxu0 0.0
  %6689 = vmatprep.subr.mxu0 0.0
  %6690 = vmatpush1.msra.mxu0 0.0
  %6691 = vmatprep.subr.mxu0 0.0
  %6692 = vmatpush1.msra.mxu0 0.0
  %6693 = vmatprep.subr.mxu0 0.0
  %6694 = vmatpush1.msra.mxu0 0.0
  %6695 = vmatprep.subr.mxu0 0.0
  %6696 = vmatpush1.msra.mxu0 0.0
  %6697 = vmatprep.subr.mxu0 0.0
  %6698 = vmatpush1.msra.mxu0 0.0
  %6699 = vmatprep.subr.mxu0 0.0
  %6700 = vmatpush1.msra.mxu0 0.0
  %6701 = vmatprep.subr.mxu0 0.0
  %6702 = vmatpush1.msra.mxu0 0.0
  %6703 = vmatprep.subr.mxu0 0.0
  %6704 = vmatpush1.msra.mxu0 0.0
  %6705 = vmatprep.subr.mxu0 0.0
  %6706 = vmatpush1.msra.mxu0 0.0
  %6707 = vmatprep.subr.mxu0 0.0
  %6708 = vmatpush1.msra.mxu0 0.0
  %6709 = vmatprep.subr.mxu0 0.0
  %6710 = vmatpush1.msra.mxu0 0.0
  %6711 = vmatprep.subr.mxu0 0.0
  %6712 = vmatpush1.msra.mxu0 0.0
  %6713 = vmatprep.mubr.f32.mxu0 0.0
  %v6714 = vand.u32 %v6631, 4294901760
  %v6715 = vsub.f32 %v6631, %v6714
  %v6716 = vand.u32 %v6715, 4294901760
  %v6717 = vsub.f32 %v6715, %v6716
  %v6718 = vand.u32 %v6717, 4294901760
  %6719 = vmatmul.mubr.f32.gmra.mrb[0].mxu0 %v6718
  %v6720 = vpop.f32.mrb[0].mxu0
  %v6721 = vadd.f32 %v5952, %v6720
  %v6722 = vpop.f32.mrb[0].mxu0
  %v6723 = vadd.f32 %v5953, %v6722
  %6724 = vdwg.mxu0
  %v6725 = vand.u32 %v1864, 4294901760
  %v6726 = vsub.f32 %v1864, %v6725
  %v6727 = vand.u32 %v6726, 4294901760
  %v6728 = vsub.f32 %v6726, %v6727
  %v6729 = vand.u32 %v6728, 4294901760
  %6730 = vmatprep.subr.mxu0 %v6729
  %v6731 = vand.u32 %v1863, 4294901760
  %v6732 = vsub.f32 %v1863, %v6731
  %v6733 = vand.u32 %v6732, 4294901760
  %v6734 = vsub.f32 %v6732, %v6733
  %v6735 = vand.u32 %v6734, 4294901760
  %6736 = vmatpush1.msra.mxu0 %v6735
  %v6737 = vand.u32 %v1866, 4294901760
  %v6738 = vsub.f32 %v1866, %v6737
  %v6739 = vand.u32 %v6738, 4294901760
  %v6740 = vsub.f32 %v6738, %v6739
  %v6741 = vand.u32 %v6740, 4294901760
  %6742 = vmatprep.subr.mxu0 %v6741
  %v6743 = vand.u32 %v1865, 4294901760
  %v6744 = vsub.f32 %v1865, %v6743
  %v6745 = vand.u32 %v6744, 4294901760
  %v6746 = vsub.f32 %v6744, %v6745
  %v6747 = vand.u32 %v6746, 4294901760
  %6748 = vmatpush1.msra.mxu0 %v6747
  %v6749 = vand.u32 %v1868, 4294901760
  %v6750 = vsub.f32 %v1868, %v6749
  %v6751 = vand.u32 %v6750, 4294901760
  %v6752 = vsub.f32 %v6750, %v6751
  %v6753 = vand.u32 %v6752, 4294901760
  %6754 = vmatprep.subr.mxu0 %v6753
  %v6755 = vand.u32 %v1867, 4294901760
  %v6756 = vsub.f32 %v1867, %v6755
  %v6757 = vand.u32 %v6756, 4294901760
  %v6758 = vsub.f32 %v6756, %v6757
  %v6759 = vand.u32 %v6758, 4294901760
  %6760 = vmatpush1.msra.mxu0 %v6759
  %v6761 = vand.u32 %v1870, 4294901760
  %v6762 = vsub.f32 %v1870, %v6761
  %v6763 = vand.u32 %v6762, 4294901760
  %v6764 = vsub.f32 %v6762, %v6763
  %v6765 = vand.u32 %v6764, 4294901760
  %6766 = vmatprep.subr.mxu0 %v6765
  %v6767 = vand.u32 %v1869, 4294901760
  %v6768 = vsub.f32 %v1869, %v6767
  %v6769 = vand.u32 %v6768, 4294901760
  %v6770 = vsub.f32 %v6768, %v6769
  %v6771 = vand.u32 %v6770, 4294901760
  %6772 = vmatpush1.msra.mxu0 %v6771
  %v6773 = vand.u32 %v1872, 4294901760
  %v6774 = vsub.f32 %v1872, %v6773
  %v6775 = vand.u32 %v6774, 4294901760
  %v6776 = vsub.f32 %v6774, %v6775
  %v6777 = vand.u32 %v6776, 4294901760
  %6778 = vmatprep.subr.mxu0 %v6777
  %v6779 = vand.u32 %v1871, 4294901760
  %v6780 = vsub.f32 %v1871, %v6779
  %v6781 = vand.u32 %v6780, 4294901760
  %v6782 = vsub.f32 %v6780, %v6781
  %v6783 = vand.u32 %v6782, 4294901760
  %6784 = vmatpush1.msra.mxu0 %v6783
  %v6785 = vand.u32 %v1874, 4294901760
  %v6786 = vsub.f32 %v1874, %v6785
  %v6787 = vand.u32 %v6786, 4294901760
  %v6788 = vsub.f32 %v6786, %v6787
  %v6789 = vand.u32 %v6788, 4294901760
  %6790 = vmatprep.subr.mxu0 %v6789
  %v6791 = vand.u32 %v1873, 4294901760
  %v6792 = vsub.f32 %v1873, %v6791
  %v6793 = vand.u32 %v6792, 4294901760
  %v6794 = vsub.f32 %v6792, %v6793
  %v6795 = vand.u32 %v6794, 4294901760
  %6796 = vmatpush1.msra.mxu0 %v6795
  %v6797 = vand.u32 %v1876, 4294901760
  %v6798 = vsub.f32 %v1876, %v6797
  %v6799 = vand.u32 %v6798, 4294901760
  %v6800 = vsub.f32 %v6798, %v6799
  %v6801 = vand.u32 %v6800, 4294901760
  %6802 = vmatprep.subr.mxu0 %v6801
  %v6803 = vand.u32 %v1875, 4294901760
  %v6804 = vsub.f32 %v1875, %v6803
  %v6805 = vand.u32 %v6804, 4294901760
  %v6806 = vsub.f32 %v6804, %v6805
  %v6807 = vand.u32 %v6806, 4294901760
  %6808 = vmatpush1.msra.mxu0 %v6807
  %v6809 = vand.u32 %v1878, 4294901760
  %v6810 = vsub.f32 %v1878, %v6809
  %v6811 = vand.u32 %v6810, 4294901760
  %v6812 = vsub.f32 %v6810, %v6811
  %v6813 = vand.u32 %v6812, 4294901760
  %6814 = vmatprep.subr.mxu0 %v6813
  %v6815 = vand.u32 %v1877, 4294901760
  %v6816 = vsub.f32 %v1877, %v6815
  %v6817 = vand.u32 %v6816, 4294901760
  %v6818 = vsub.f32 %v6816, %v6817
  %v6819 = vand.u32 %v6818, 4294901760
  %6820 = vmatpush1.msra.mxu0 %v6819
  %6821 = vmatprep.subr.mxu0 0.0
  %6822 = vmatpush1.msra.mxu0 0.0
  %6823 = vmatprep.subr.mxu0 0.0
  %6824 = vmatpush1.msra.mxu0 0.0
  %6825 = vmatprep.subr.mxu0 0.0
  %6826 = vmatpush1.msra.mxu0 0.0
  %6827 = vmatprep.subr.mxu0 0.0
  %6828 = vmatpush1.msra.mxu0 0.0
  %6829 = vmatprep.subr.mxu0 0.0
  %6830 = vmatpush1.msra.mxu0 0.0
  %6831 = vmatprep.subr.mxu0 0.0
  %6832 = vmatpush1.msra.mxu0 0.0
  %6833 = vmatprep.subr.mxu0 0.0
  %6834 = vmatpush1.msra.mxu0 0.0
  %6835 = vmatprep.subr.mxu0 0.0
  %6836 = vmatpush1.msra.mxu0 0.0
  %6837 = vmatprep.subr.mxu0 0.0
  %6838 = vmatpush1.msra.mxu0 0.0
  %6839 = vmatprep.subr.mxu0 0.0
  %6840 = vmatpush1.msra.mxu0 0.0
  %6841 = vmatprep.subr.mxu0 0.0
  %6842 = vmatpush1.msra.mxu0 0.0
  %6843 = vmatprep.subr.mxu0 0.0
  %6844 = vmatpush1.msra.mxu0 0.0
  %6845 = vmatprep.subr.mxu0 0.0
  %6846 = vmatpush1.msra.mxu0 0.0
  %6847 = vmatprep.subr.mxu0 0.0
  %6848 = vmatpush1.msra.mxu0 0.0
  %6849 = vmatprep.subr.mxu0 0.0
  %6850 = vmatpush1.msra.mxu0 0.0
  %6851 = vmatprep.subr.mxu0 0.0
  %6852 = vmatpush1.msra.mxu0 0.0
  %6853 = vmatprep.subr.mxu0 0.0
  %6854 = vmatpush1.msra.mxu0 0.0
  %6855 = vmatprep.subr.mxu0 0.0
  %6856 = vmatpush1.msra.mxu0 0.0
  %6857 = vmatprep.subr.mxu0 0.0
  %6858 = vmatpush1.msra.mxu0 0.0
  %6859 = vmatprep.subr.mxu0 0.0
  %6860 = vmatpush1.msra.mxu0 0.0
  %6861 = vmatprep.subr.mxu0 0.0
  %6862 = vmatpush1.msra.mxu0 0.0
  %6863 = vmatprep.subr.mxu0 0.0
  %6864 = vmatpush1.msra.mxu0 0.0
  %6865 = vmatprep.subr.mxu0 0.0
  %6866 = vmatpush1.msra.mxu0 0.0
  %6867 = vmatprep.subr.mxu0 0.0
  %6868 = vmatpush1.msra.mxu0 0.0
  %6869 = vmatprep.mubr.f32.mxu0 0.0
  %v6870 = vand.u32 %v6631, 4294901760
  %6871 = vmatmul.mubr.f32.gmra.mrb[0].mxu0 %v6870
  %v6872 = vpop.f32.mrb[0].mxu0
  %v6873 = vadd.f32 %v6721, %v6872
  %v6874 = vpop.f32.mrb[0].mxu0
  %v6875 = vadd.f32 %v6723, %v6874
  %6876 = vdwg.mxu0
  %v6877 = vand.u32 %v1864, 4294901760
  %v6878 = vsub.f32 %v1864, %v6877
  %6879 = vmatprep.subr.mxu0 %v6878
  %v6880 = vand.u32 %v1863, 4294901760
  %v6881 = vsub.f32 %v1863, %v6880
  %6882 = vmatpush1.msra.mxu0 %v6881
  %v6883 = vand.u32 %v1866, 4294901760
  %v6884 = vsub.f32 %v1866, %v6883
  %6885 = vmatprep.subr.mxu0 %v6884
  %v6886 = vand.u32 %v1865, 4294901760
  %v6887 = vsub.f32 %v1865, %v6886
  %6888 = vmatpush1.msra.mxu0 %v6887
  %v6889 = vand.u32 %v1868, 4294901760
  %v6890 = vsub.f32 %v1868, %v6889
  %6891 = vmatprep.subr.mxu0 %v6890
  %v6892 = vand.u32 %v1867, 4294901760
  %v6893 = vsub.f32 %v1867, %v6892
  %6894 = vmatpush1.msra.mxu0 %v6893
  %v6895 = vand.u32 %v1870, 4294901760
  %v6896 = vsub.f32 %v1870, %v6895
  %6897 = vmatprep.subr.mxu0 %v6896
  %v6898 = vand.u32 %v1869, 4294901760
  %v6899 = vsub.f32 %v1869, %v6898
  %6900 = vmatpush1.msra.mxu0 %v6899
  %v6901 = vand.u32 %v1872, 4294901760
  %v6902 = vsub.f32 %v1872, %v6901
  %6903 = vmatprep.subr.mxu0 %v6902
  %v6904 = vand.u32 %v1871, 4294901760
  %v6905 = vsub.f32 %v1871, %v6904
  %6906 = vmatpush1.msra.mxu0 %v6905
  %v6907 = vand.u32 %v1874, 4294901760
  %v6908 = vsub.f32 %v1874, %v6907
  %6909 = vmatprep.subr.mxu0 %v6908
  %v6910 = vand.u32 %v1873, 4294901760
  %v6911 = vsub.f32 %v1873, %v6910
  %6912 = vmatpush1.msra.mxu0 %v6911
  %v6913 = vand.u32 %v1876, 4294901760
  %v6914 = vsub.f32 %v1876, %v6913
  %6915 = vmatprep.subr.mxu0 %v6914
  %v6916 = vand.u32 %v1875, 4294901760
  %v6917 = vsub.f32 %v1875, %v6916
  %6918 = vmatpush1.msra.mxu0 %v6917
  %v6919 = vand.u32 %v1878, 4294901760
  %v6920 = vsub.f32 %v1878, %v6919
  %6921 = vmatprep.subr.mxu0 %v6920
  %v6922 = vand.u32 %v1877, 4294901760
  %v6923 = vsub.f32 %v1877, %v6922
  %6924 = vmatpush1.msra.mxu0 %v6923
  %6925 = vmatprep.subr.mxu0 0.0
  %6926 = vmatpush1.msra.mxu0 0.0
  %6927 = vmatprep.subr.mxu0 0.0
  %6928 = vmatpush1.msra.mxu0 0.0
  %6929 = vmatprep.subr.mxu0 0.0
  %6930 = vmatpush1.msra.mxu0 0.0
  %6931 = vmatprep.subr.mxu0 0.0
  %6932 = vmatpush1.msra.mxu0 0.0
  %6933 = vmatprep.subr.mxu0 0.0
  %6934 = vmatpush1.msra.mxu0 0.0
  %6935 = vmatprep.subr.mxu0 0.0
  %6936 = vmatpush1.msra.mxu0 0.0
  %6937 = vmatprep.subr.mxu0 0.0
  %6938 = vmatpush1.msra.mxu0 0.0
  %6939 = vmatprep.subr.mxu0 0.0
  %6940 = vmatpush1.msra.mxu0 0.0
  %6941 = vmatprep.subr.mxu0 0.0
  %6942 = vmatpush1.msra.mxu0 0.0
  %6943 = vmatprep.subr.mxu0 0.0
  %6944 = vmatpush1.msra.mxu0 0.0
  %6945 = vmatprep.subr.mxu0 0.0
  %6946 = vmatpush1.msra.mxu0 0.0
  %6947 = vmatprep.subr.mxu0 0.0
  %6948 = vmatpush1.msra.mxu0 0.0
  %6949 = vmatprep.subr.mxu0 0.0
  %6950 = vmatpush1.msra.mxu0 0.0
  %6951 = vmatprep.subr.mxu0 0.0
  %6952 = vmatpush1.msra.mxu0 0.0
  %6953 = vmatprep.subr.mxu0 0.0
  %6954 = vmatpush1.msra.mxu0 0.0
  %6955 = vmatprep.subr.mxu0 0.0
  %6956 = vmatpush1.msra.mxu0 0.0
  %6957 = vmatprep.subr.mxu0 0.0
  %6958 = vmatpush1.msra.mxu0 0.0
  %6959 = vmatprep.subr.mxu0 0.0
  %6960 = vmatpush1.msra.mxu0 0.0
  %6961 = vmatprep.subr.mxu0 0.0
  %6962 = vmatpush1.msra.mxu0 0.0
  %6963 = vmatprep.subr.mxu0 0.0
  %6964 = vmatpush1.msra.mxu0 0.0
  %6965 = vmatprep.subr.mxu0 0.0
  %6966 = vmatpush1.msra.mxu0 0.0
  %6967 = vmatprep.subr.mxu0 0.0
  %6968 = vmatpush1.msra.mxu0 0.0
  %6969 = vmatprep.subr.mxu0 0.0
  %6970 = vmatpush1.msra.mxu0 0.0
  %6971 = vmatprep.subr.mxu0 0.0
  %6972 = vmatpush1.msra.mxu0 0.0
  %6973 = vmatprep.mubr.f32.mxu0 0.0
  %v6974 = vand.u32 %v6631, 4294901760
  %v6975 = vsub.f32 %v6631, %v6974
  %6976 = vmatmul.mubr.f32.gmra.mrb[0].mxu0 %v6975
  %v6977 = vpop.f32.mrb[0].mxu0
  %v6978 = vadd.f32 %v6873, %v6977
  %v6979 = vpop.f32.mrb[0].mxu0
  %v6980 = vadd.f32 %v6875, %v6979
  %6981 = vdwg.mxu0
  %v6982 = vand.u32 %v1864, 4294901760
  %6983 = vmatprep.subr.mxu0 %v6982
  %v6984 = vand.u32 %v1863, 4294901760
  %6985 = vmatpush1.msra.mxu0 %v6984
  %v6986 = vand.u32 %v1866, 4294901760
  %6987 = vmatprep.subr.mxu0 %v6986
  %v6988 = vand.u32 %v1865, 4294901760
  %6989 = vmatpush1.msra.mxu0 %v6988
  %v6990 = vand.u32 %v1868, 4294901760
  %6991 = vmatprep.subr.mxu0 %v6990
  %v6992 = vand.u32 %v1867, 4294901760
  %6993 = vmatpush1.msra.mxu0 %v6992
  %v6994 = vand.u32 %v1870, 4294901760
  %6995 = vmatprep.subr.mxu0 %v6994
  %v6996 = vand.u32 %v1869, 4294901760
  %6997 = vmatpush1.msra.mxu0 %v6996
  %v6998 = vand.u32 %v1872, 4294901760
  %6999 = vmatprep.subr.mxu0 %v6998
  %v7000 = vand.u32 %v1871, 4294901760
  %7001 = vmatpush1.msra.mxu0 %v7000
  %v7002 = vand.u32 %v1874, 4294901760
  %7003 = vmatprep.subr.mxu0 %v7002
  %v7004 = vand.u32 %v1873, 4294901760
  %7005 = vmatpush1.msra.mxu0 %v7004
  %v7006 = vand.u32 %v1876, 4294901760
  %7007 = vmatprep.subr.mxu0 %v7006
  %v7008 = vand.u32 %v1875, 4294901760
  %7009 = vmatpush1.msra.mxu0 %v7008
  %v7010 = vand.u32 %v1878, 4294901760
  %7011 = vmatprep.subr.mxu0 %v7010
  %v7012 = vand.u32 %v1877, 4294901760
  %7013 = vmatpush1.msra.mxu0 %v7012
  %7014 = vmatprep.subr.mxu0 0.0
  %7015 = vmatpush1.msra.mxu0 0.0
  %7016 = vmatprep.subr.mxu0 0.0
  %7017 = vmatpush1.msra.mxu0 0.0
  %7018 = vmatprep.subr.mxu0 0.0
  %7019 = vmatpush1.msra.mxu0 0.0
  %7020 = vmatprep.subr.mxu0 0.0
  %7021 = vmatpush1.msra.mxu0 0.0
  %7022 = vmatprep.subr.mxu0 0.0
  %7023 = vmatpush1.msra.mxu0 0.0
  %7024 = vmatprep.subr.mxu0 0.0
  %7025 = vmatpush1.msra.mxu0 0.0
  %7026 = vmatprep.subr.mxu0 0.0
  %7027 = vmatpush1.msra.mxu0 0.0
  %7028 = vmatprep.subr.mxu0 0.0
  %7029 = vmatpush1.msra.mxu0 0.0
  %7030 = vmatprep.subr.mxu0 0.0
  %7031 = vmatpush1.msra.mxu0 0.0
  %7032 = vmatprep.subr.mxu0 0.0
  %7033 = vmatpush1.msra.mxu0 0.0
  %7034 = vmatprep.subr.mxu0 0.0
  %7035 = vmatpush1.msra.mxu0 0.0
  %7036 = vmatprep.subr.mxu0 0.0
  %7037 = vmatpush1.msra.mxu0 0.0
  %7038 = vmatprep.subr.mxu0 0.0
  %7039 = vmatpush1.msra.mxu0 0.0
  %7040 = vmatprep.subr.mxu0 0.0
  %7041 = vmatpush1.msra.mxu0 0.0
  %7042 = vmatprep.subr.mxu0 0.0
  %7043 = vmatpush1.msra.mxu0 0.0
  %7044 = vmatprep.subr.mxu0 0.0
  %7045 = vmatpush1.msra.mxu0 0.0
  %7046 = vmatprep.subr.mxu0 0.0
  %7047 = vmatpush1.msra.mxu0 0.0
  %7048 = vmatprep.subr.mxu0 0.0
  %7049 = vmatpush1.msra.mxu0 0.0
  %7050 = vmatprep.subr.mxu0 0.0
  %7051 = vmatpush1.msra.mxu0 0.0
  %7052 = vmatprep.subr.mxu0 0.0
  %7053 = vmatpush1.msra.mxu0 0.0
  %7054 = vmatprep.subr.mxu0 0.0
  %7055 = vmatpush1.msra.mxu0 0.0
  %7056 = vmatprep.subr.mxu0 0.0
  %7057 = vmatpush1.msra.mxu0 0.0
  %7058 = vmatprep.subr.mxu0 0.0
  %7059 = vmatpush1.msra.mxu0 0.0
  %7060 = vmatprep.subr.mxu0 0.0
  %7061 = vmatpush1.msra.mxu0 0.0
  %7062 = vmatprep.mubr.f32.mxu0 0.0
  %v7063 = vand.u32 %v6631, 4294901760
  %v7064 = vsub.f32 %v6631, %v7063
  %v7065 = vand.u32 %v7064, 4294901760
  %7066 = vmatmul.mubr.f32.gmra.mrb[0].mxu0 %v7065
  %v7067 = vpop.f32.mrb[0].mxu0
  %v7068 = vadd.f32 %v6978, %v7067
  %v7069 = vpop.f32.mrb[0].mxu0
  %v7070 = vadd.f32 %v6980, %v7069
  %7071 = vdwg.mxu0
  %v7072 = vand.u32 %v1864, 4294901760
  %v7073 = vsub.f32 %v1864, %v7072
  %v7074 = vand.u32 %v7073, 4294901760
  %7075 = vmatprep.subr.mxu0 %v7074
  %v7076 = vand.u32 %v1863, 4294901760
  %v7077 = vsub.f32 %v1863, %v7076
  %v7078 = vand.u32 %v7077, 4294901760
  %7079 = vmatpush1.msra.mxu0 %v7078
  %v7080 = vand.u32 %v1866, 4294901760
  %v7081 = vsub.f32 %v1866, %v7080
  %v7082 = vand.u32 %v7081, 4294901760
  %7083 = vmatprep.subr.mxu0 %v7082
  %v7084 = vand.u32 %v1865, 4294901760
  %v7085 = vsub.f32 %v1865, %v7084
  %v7086 = vand.u32 %v7085, 4294901760
  %7087 = vmatpush1.msra.mxu0 %v7086
  %v7088 = vand.u32 %v1868, 4294901760
  %v7089 = vsub.f32 %v1868, %v7088
  %v7090 = vand.u32 %v7089, 4294901760
  %7091 = vmatprep.subr.mxu0 %v7090
  %v7092 = vand.u32 %v1867, 4294901760
  %v7093 = vsub.f32 %v1867, %v7092
  %v7094 = vand.u32 %v7093, 4294901760
  %7095 = vmatpush1.msra.mxu0 %v7094
  %v7096 = vand.u32 %v1870, 4294901760
  %v7097 = vsub.f32 %v1870, %v7096
  %v7098 = vand.u32 %v7097, 4294901760
  %7099 = vmatprep.subr.mxu0 %v7098
  %v7100 = vand.u32 %v1869, 4294901760
  %v7101 = vsub.f32 %v1869, %v7100
  %v7102 = vand.u32 %v7101, 4294901760
  %7103 = vmatpush1.msra.mxu0 %v7102
  %v7104 = vand.u32 %v1872, 4294901760
  %v7105 = vsub.f32 %v1872, %v7104
  %v7106 = vand.u32 %v7105, 4294901760
  %7107 = vmatprep.subr.mxu0 %v7106
  %v7108 = vand.u32 %v1871, 4294901760
  %v7109 = vsub.f32 %v1871, %v7108
  %v7110 = vand.u32 %v7109, 4294901760
  %7111 = vmatpush1.msra.mxu0 %v7110
  %v7112 = vand.u32 %v1874, 4294901760
  %v7113 = vsub.f32 %v1874, %v7112
  %v7114 = vand.u32 %v7113, 4294901760
  %7115 = vmatprep.subr.mxu0 %v7114
  %v7116 = vand.u32 %v1873, 4294901760
  %v7117 = vsub.f32 %v1873, %v7116
  %v7118 = vand.u32 %v7117, 4294901760
  %7119 = vmatpush1.msra.mxu0 %v7118
  %v7120 = vand.u32 %v1876, 4294901760
  %v7121 = vsub.f32 %v1876, %v7120
  %v7122 = vand.u32 %v7121, 4294901760
  %7123 = vmatprep.subr.mxu0 %v7122
  %v7124 = vand.u32 %v1875, 4294901760
  %v7125 = vsub.f32 %v1875, %v7124
  %v7126 = vand.u32 %v7125, 4294901760
  %7127 = vmatpush1.msra.mxu0 %v7126
  %v7128 = vand.u32 %v1878, 4294901760
  %v7129 = vsub.f32 %v1878, %v7128
  %v7130 = vand.u32 %v7129, 4294901760
  %7131 = vmatprep.subr.mxu0 %v7130
  %v7132 = vand.u32 %v1877, 4294901760
  %v7133 = vsub.f32 %v1877, %v7132
  %v7134 = vand.u32 %v7133, 4294901760
  %7135 = vmatpush1.msra.mxu0 %v7134
  %7136 = vmatprep.subr.mxu0 0.0
  %7137 = vmatpush1.msra.mxu0 0.0
  %7138 = vmatprep.subr.mxu0 0.0
  %7139 = vmatpush1.msra.mxu0 0.0
  %7140 = vmatprep.subr.mxu0 0.0
  %7141 = vmatpush1.msra.mxu0 0.0
  %7142 = vmatprep.subr.mxu0 0.0
  %7143 = vmatpush1.msra.mxu0 0.0
  %7144 = vmatprep.subr.mxu0 0.0
  %7145 = vmatpush1.msra.mxu0 0.0
  %7146 = vmatprep.subr.mxu0 0.0
  %7147 = vmatpush1.msra.mxu0 0.0
  %7148 = vmatprep.subr.mxu0 0.0
  %7149 = vmatpush1.msra.mxu0 0.0
  %7150 = vmatprep.subr.mxu0 0.0
  %7151 = vmatpush1.msra.mxu0 0.0
  %7152 = vmatprep.subr.mxu0 0.0
  %7153 = vmatpush1.msra.mxu0 0.0
  %7154 = vmatprep.subr.mxu0 0.0
  %7155 = vmatpush1.msra.mxu0 0.0
  %7156 = vmatprep.subr.mxu0 0.0
  %7157 = vmatpush1.msra.mxu0 0.0
  %7158 = vmatprep.subr.mxu0 0.0
  %7159 = vmatpush1.msra.mxu0 0.0
  %7160 = vmatprep.subr.mxu0 0.0
  %7161 = vmatpush1.msra.mxu0 0.0
  %7162 = vmatprep.subr.mxu0 0.0
  %7163 = vmatpush1.msra.mxu0 0.0
  %7164 = vmatprep.subr.mxu0 0.0
  %7165 = vmatpush1.msra.mxu0 0.0
  %7166 = vmatprep.subr.mxu0 0.0
  %7167 = vmatpush1.msra.mxu0 0.0
  %7168 = vmatprep.subr.mxu0 0.0
  %7169 = vmatpush1.msra.mxu0 0.0
  %7170 = vmatprep.subr.mxu0 0.0
  %7171 = vmatpush1.msra.mxu0 0.0
  %7172 = vmatprep.subr.mxu0 0.0
  %7173 = vmatpush1.msra.mxu0 0.0
  %7174 = vmatprep.subr.mxu0 0.0
  %7175 = vmatpush1.msra.mxu0 0.0
  %7176 = vmatprep.subr.mxu0 0.0
  %7177 = vmatpush1.msra.mxu0 0.0
  %7178 = vmatprep.subr.mxu0 0.0
  %7179 = vmatpush1.msra.mxu0 0.0
  %7180 = vmatprep.subr.mxu0 0.0
  %7181 = vmatpush1.msra.mxu0 0.0
  %7182 = vmatprep.subr.mxu0 0.0
  %7183 = vmatpush1.msra.mxu0 0.0
  %7184 = vmatprep.mubr.f32.mxu0 0.0
  %v7185 = vand.u32 %v6631, 4294901760
  %7186 = vmatmul.mubr.f32.gmra.mrb[0].mxu0 %v7185
  %v7187 = vpop.f32.mrb[0].mxu0
  %v7188 = vadd.f32 %v7068, %v7187
  %v7189 = vpop.f32.mrb[0].mxu0
  %v7190 = vadd.f32 %v7070, %v7189
  %7191 = vdwg.mxu0
  %v7192 = vand.u32 %v1864, 4294901760
  %7193 = vmatprep.subr.mxu0 %v7192
  %v7194 = vand.u32 %v1863, 4294901760
  %7195 = vmatpush1.msra.mxu0 %v7194
  %v7196 = vand.u32 %v1866, 4294901760
  %7197 = vmatprep.subr.mxu0 %v7196
  %v7198 = vand.u32 %v1865, 4294901760
  %7199 = vmatpush1.msra.mxu0 %v7198
  %v7200 = vand.u32 %v1868, 4294901760
  %7201 = vmatprep.subr.mxu0 %v7200
  %v7202 = vand.u32 %v1867, 4294901760
  %7203 = vmatpush1.msra.mxu0 %v7202
  %v7204 = vand.u32 %v1870, 4294901760
  %7205 = vmatprep.subr.mxu0 %v7204
  %v7206 = vand.u32 %v1869, 4294901760
  %7207 = vmatpush1.msra.mxu0 %v7206
  %v7208 = vand.u32 %v1872, 4294901760
  %7209 = vmatprep.subr.mxu0 %v7208
  %v7210 = vand.u32 %v1871, 4294901760
  %7211 = vmatpush1.msra.mxu0 %v7210
  %v7212 = vand.u32 %v1874, 4294901760
  %7213 = vmatprep.subr.mxu0 %v7212
  %v7214 = vand.u32 %v1873, 4294901760
  %7215 = vmatpush1.msra.mxu0 %v7214
  %v7216 = vand.u32 %v1876, 4294901760
  %7217 = vmatprep.subr.mxu0 %v7216
  %v7218 = vand.u32 %v1875, 4294901760
  %7219 = vmatpush1.msra.mxu0 %v7218
  %v7220 = vand.u32 %v1878, 4294901760
  %7221 = vmatprep.subr.mxu0 %v7220
  %v7222 = vand.u32 %v1877, 4294901760
  %7223 = vmatpush1.msra.mxu0 %v7222
  %7224 = vmatprep.subr.mxu0 0.0
  %7225 = vmatpush1.msra.mxu0 0.0
  %7226 = vmatprep.subr.mxu0 0.0
  %7227 = vmatpush1.msra.mxu0 0.0
  %7228 = vmatprep.subr.mxu0 0.0
  %7229 = vmatpush1.msra.mxu0 0.0
  %7230 = vmatprep.subr.mxu0 0.0
  %7231 = vmatpush1.msra.mxu0 0.0
  %7232 = vmatprep.subr.mxu0 0.0
  %7233 = vmatpush1.msra.mxu0 0.0
  %7234 = vmatprep.subr.mxu0 0.0
  %7235 = vmatpush1.msra.mxu0 0.0
  %7236 = vmatprep.subr.mxu0 0.0
  %7237 = vmatpush1.msra.mxu0 0.0
  %7238 = vmatprep.subr.mxu0 0.0
  %7239 = vmatpush1.msra.mxu0 0.0
  %7240 = vmatprep.subr.mxu0 0.0
  %7241 = vmatpush1.msra.mxu0 0.0
  %7242 = vmatprep.subr.mxu0 0.0
  %7243 = vmatpush1.msra.mxu0 0.0
  %7244 = vmatprep.subr.mxu0 0.0
  %7245 = vmatpush1.msra.mxu0 0.0
  %7246 = vmatprep.subr.mxu0 0.0
  %7247 = vmatpush1.msra.mxu0 0.0
  %7248 = vmatprep.subr.mxu0 0.0
  %7249 = vmatpush1.msra.mxu0 0.0
  %7250 = vmatprep.subr.mxu0 0.0
  %7251 = vmatpush1.msra.mxu0 0.0
  %7252 = vmatprep.subr.mxu0 0.0
  %7253 = vmatpush1.msra.mxu0 0.0
  %7254 = vmatprep.subr.mxu0 0.0
  %7255 = vmatpush1.msra.mxu0 0.0
  %7256 = vmatprep.subr.mxu0 0.0
  %7257 = vmatpush1.msra.mxu0 0.0
  %7258 = vmatprep.subr.mxu0 0.0
  %7259 = vmatpush1.msra.mxu0 0.0
  %7260 = vmatprep.subr.mxu0 0.0
  %7261 = vmatpush1.msra.mxu0 0.0
  %7262 = vmatprep.subr.mxu0 0.0
  %7263 = vmatpush1.msra.mxu0 0.0
  %7264 = vmatprep.subr.mxu0 0.0
  %7265 = vmatpush1.msra.mxu0 0.0
  %7266 = vmatprep.subr.mxu0 0.0
  %7267 = vmatpush1.msra.mxu0 0.0
  %7268 = vmatprep.subr.mxu0 0.0
  %7269 = vmatpush1.msra.mxu0 0.0
  %7270 = vmatprep.subr.mxu0 0.0
  %7271 = vmatpush1.msra.mxu0 0.0
  %7272 = vmatprep.mubr.f32.mxu0 0.0
  %v7273 = vand.u32 %v6631, 4294901760
  %7274 = vmatmul.mubr.f32.gmra.mrb[0].mxu0 %v7273
  %v7275 = vpop.f32.mrb[0].mxu0
  %v7276 = vadd.f32 %v7188, %v7275
  %v7277 = vpop.f32.mrb[0].mxu0
  %v7278 = vadd.f32 %v7190, %v7277
  %7279 = vdwg.mxu0
  %v7280 = vmul.f32 %v7276, 0.5
  %v7281 = vmul.f32 %v7278, 0.5
  %v7282 = vtanh.pop %v7280
  %v7283 = vtanh.pop %v7281
  %v7284 = vmul.f32 %v7282, 0.5
  %v7285 = vmul.f32 %v7283, 0.5
  %v7286 = vadd.f32 %v7284, 0.5
  %v7287 = vadd.f32 %v7285, 0.5
  %v7288 = vtanh.pop %v7278
  %v7289 = vmul.f32 %v7286, %v6623
  %7291 = vrot.lane.b32.xlu0 %v7288, 64
  %v7292 = vpop.permute.xlu0 %7291
  %v7294 = vmul.f32 %v7286, %v7292
  %7296 = vrot.lane.b32.xlu0 %v7294, 64
  %v7297 = vpop.permute.xlu0 %7296
  %v7299 = vadd.f32 %v7289, %v7297
  %v7300 = vtanh.pop %v7299
  %7302 = vrot.lane.b32.xlu0 %v7300, 64
  %v7303 = vpop.permute.xlu0 %7302
  %v7305 = vmul.f32 %v7287, %v7303
  %v7306 = vsel %vm1828, %v6629, %v7305
  %v7307 = vld [vmem:[%s5] sm:$0xff]
  %v7308 = vld [vmem:[%s5 + $0x8] sm:$0xff]
  %v7309 = vld [vmem:[%s5 + $0x10] sm:$0xff]
  %v7310 = vld [vmem:[%s5 + $0x18] sm:$0xff]
  %v7311 = vld [vmem:[%s5 + $0x20] sm:$0xff]
  %v7312 = vld [vmem:[%s5 + $0x28] sm:$0xff]
  %v7313 = vld [vmem:[%s5 + $0x30] sm:$0xff]
  %v7314 = vld [vmem:[%s5 + $0x38] sm:$0xff]
  %v7315 = vld [vmem:[%s6] sm:$0x1]
  %v7317 = vlaneseq
  %v7318 = vshrl.u32 %v7317, 7
  %v7319 = vsub.s32 0, %v7318
  %v7320 = vrot.slane %v7315, %v7319
  %v7323 = vsel %vm1881, %v7306, 0
  %7325 = vmatprep.subr.mxu0 0.0
  %v7326 = vand.u32 %v7307, 4294901760
  %7327 = vmatpush1.msra.mxu0 %v7326
  %7328 = vmatprep.subr.mxu0 0.0
  %v7329 = vand.u32 %v7308, 4294901760
  %7330 = vmatpush1.msra.mxu0 %v7329
  %7331 = vmatprep.subr.mxu0 0.0
  %v7332 = vand.u32 %v7309, 4294901760
  %7333 = vmatpush1.msra.mxu0 %v7332
  %7334 = vmatprep.subr.mxu0 0.0
  %v7335 = vand.u32 %v7310, 4294901760
  %7336 = vmatpush1.msra.mxu0 %v7335
  %7337 = vmatprep.subr.mxu0 0.0
  %v7338 = vand.u32 %v7311, 4294901760
  %7339 = vmatpush1.msra.mxu0 %v7338
  %7340 = vmatprep.subr.mxu0 0.0
  %v7341 = vand.u32 %v7312, 4294901760
  %7342 = vmatpush1.msra.mxu0 %v7341
  %7343 = vmatprep.subr.mxu0 0.0
  %v7344 = vand.u32 %v7313, 4294901760
  %7345 = vmatpush1.msra.mxu0 %v7344
  %7346 = vmatprep.subr.mxu0 0.0
  %v7347 = vand.u32 %v7314, 4294901760
  %7348 = vmatpush1.msra.mxu0 %v7347
  %7349 = vmatprep.subr.mxu0 0.0
  %7350 = vmatpush1.msra.mxu0 0.0
  %7351 = vmatprep.subr.mxu0 0.0
  %7352 = vmatpush1.msra.mxu0 0.0
  %7353 = vmatprep.subr.mxu0 0.0
  %7354 = vmatpush1.msra.mxu0 0.0
  %7355 = vmatprep.subr.mxu0 0.0
  %7356 = vmatpush1.msra.mxu0 0.0
  %7357 = vmatprep.subr.mxu0 0.0
  %7358 = vmatpush1.msra.mxu0 0.0
  %7359 = vmatprep.subr.mxu0 0.0
  %7360 = vmatpush1.msra.mxu0 0.0
  %7361 = vmatprep.subr.mxu0 0.0
  %7362 = vmatpush1.msra.mxu0 0.0
  %7363 = vmatprep.subr.mxu0 0.0
  %7364 = vmatpush1.msra.mxu0 0.0
  %7365 = vmatprep.subr.mxu0 0.0
  %7366 = vmatpush1.msra.mxu0 0.0
  %7367 = vmatprep.subr.mxu0 0.0
  %7368 = vmatpush1.msra.mxu0 0.0
  %7369 = vmatprep.subr.mxu0 0.0
  %7370 = vmatpush1.msra.mxu0 0.0
  %7371 = vmatprep.subr.mxu0 0.0
  %7372 = vmatpush1.msra.mxu0 0.0
  %7373 = vmatprep.subr.mxu0 0.0
  %7374 = vmatpush1.msra.mxu0 0.0
  %7375 = vmatprep.subr.mxu0 0.0
  %7376 = vmatpush1.msra.mxu0 0.0
  %7377 = vmatprep.subr.mxu0 0.0
  %7378 = vmatpush1.msra.mxu0 0.0
  %7379 = vmatprep.subr.mxu0 0.0
  %7380 = vmatpush1.msra.mxu0 0.0
  %7381 = vmatprep.subr.mxu0 0.0
  %7382 = vmatpush1.msra.mxu0 0.0
  %7383 = vmatprep.subr.mxu0 0.0
  %7384 = vmatpush1.msra.mxu0 0.0
  %7385 = vmatprep.subr.mxu0 0.0
  %7386 = vmatpush1.msra.mxu0 0.0
  %7387 = vmatprep.subr.mxu0 0.0
  %7388 = vmatpush1.msra.mxu0 0.0
  %7389 = vmatprep.subr.mxu0 0.0
  %7390 = vmatpush1.msra.mxu0 0.0
  %7391 = vmatprep.subr.mxu0 0.0
  %7392 = vmatpush1.msra.mxu0 0.0
  %7393 = vmatprep.subr.mxu0 0.0
  %7394 = vmatpush1.msra.mxu0 0.0
  %7395 = vmatprep.subr.mxu0 0.0
  %7396 = vmatpush1.msra.mxu0 0.0
  %7397 = vmatprep.mubr.f32.mxu0 0.0
  %v7398 = vand.u32 %v7323, 4294901760
  %v7399 = vsub.f32 %v7323, %v7398
  %v7400 = vand.u32 %v7399, 4294901760
  %v7401 = vsub.f32 %v7399, %v7400
  %v7402 = vand.u32 %v7401, 4294901760
  %7403 = vmatmul.mubr.f32.gmra.mrb[0].mxu0 %v7402
  %v7404 = vpop.f32.mrb[0].mxu0
  %v7405 = vadd.f32 %v7320, %v7404
  %v7406 = vpop.f32.mrb[0].mxu0
  %7407 = vdwg.mxu0
  %7408 = vmatprep.subr.mxu0 0.0
  %v7409 = vand.u32 %v7307, 4294901760
  %v7410 = vsub.f32 %v7307, %v7409
  %v7411 = vand.u32 %v7410, 4294901760
  %v7412 = vsub.f32 %v7410, %v7411
  %v7413 = vand.u32 %v7412, 4294901760
  %7414 = vmatpush1.msra.mxu0 %v7413
  %7415 = vmatprep.subr.mxu0 0.0
  %v7416 = vand.u32 %v7308, 4294901760
  %v7417 = vsub.f32 %v7308, %v7416
  %v7418 = vand.u32 %v7417, 4294901760
  %v7419 = vsub.f32 %v7417, %v7418
  %v7420 = vand.u32 %v7419, 4294901760
  %7421 = vmatpush1.msra.mxu0 %v7420
  %7422 = vmatprep.subr.mxu0 0.0
  %v7423 = vand.u32 %v7309, 4294901760
  %v7424 = vsub.f32 %v7309, %v7423
  %v7425 = vand.u32 %v7424, 4294901760
  %v7426 = vsub.f32 %v7424, %v7425
  %v7427 = vand.u32 %v7426, 4294901760
  %7428 = vmatpush1.msra.mxu0 %v7427
  %7429 = vmatprep.subr.mxu0 0.0
  %v7430 = vand.u32 %v7310, 4294901760
  %v7431 = vsub.f32 %v7310, %v7430
  %v7432 = vand.u32 %v7431, 4294901760
  %v7433 = vsub.f32 %v7431, %v7432
  %v7434 = vand.u32 %v7433, 4294901760
  %7435 = vmatpush1.msra.mxu0 %v7434
  %7436 = vmatprep.subr.mxu0 0.0
  %v7437 = vand.u32 %v7311, 4294901760
  %v7438 = vsub.f32 %v7311, %v7437
  %v7439 = vand.u32 %v7438, 4294901760
  %v7440 = vsub.f32 %v7438, %v7439
  %v7441 = vand.u32 %v7440, 4294901760
  %7442 = vmatpush1.msra.mxu0 %v7441
  %7443 = vmatprep.subr.mxu0 0.0
  %v7444 = vand.u32 %v7312, 4294901760
  %v7445 = vsub.f32 %v7312, %v7444
  %v7446 = vand.u32 %v7445, 4294901760
  %v7447 = vsub.f32 %v7445, %v7446
  %v7448 = vand.u32 %v7447, 4294901760
  %7449 = vmatpush1.msra.mxu0 %v7448
  %7450 = vmatprep.subr.mxu0 0.0
  %v7451 = vand.u32 %v7313, 4294901760
  %v7452 = vsub.f32 %v7313, %v7451
  %v7453 = vand.u32 %v7452, 4294901760
  %v7454 = vsub.f32 %v7452, %v7453
  %v7455 = vand.u32 %v7454, 4294901760
  %7456 = vmatpush1.msra.mxu0 %v7455
  %7457 = vmatprep.subr.mxu0 0.0
  %v7458 = vand.u32 %v7314, 4294901760
  %v7459 = vsub.f32 %v7314, %v7458
  %v7460 = vand.u32 %v7459, 4294901760
  %v7461 = vsub.f32 %v7459, %v7460
  %v7462 = vand.u32 %v7461, 4294901760
  %7463 = vmatpush1.msra.mxu0 %v7462
  %7464 = vmatprep.subr.mxu0 0.0
  %7465 = vmatpush1.msra.mxu0 0.0
  %7466 = vmatprep.subr.mxu0 0.0
  %7467 = vmatpush1.msra.mxu0 0.0
  %7468 = vmatprep.subr.mxu0 0.0
  %7469 = vmatpush1.msra.mxu0 0.0
  %7470 = vmatprep.subr.mxu0 0.0
  %7471 = vmatpush1.msra.mxu0 0.0
  %7472 = vmatprep.subr.mxu0 0.0
  %7473 = vmatpush1.msra.mxu0 0.0
  %7474 = vmatprep.subr.mxu0 0.0
  %7475 = vmatpush1.msra.mxu0 0.0
  %7476 = vmatprep.subr.mxu0 0.0
  %7477 = vmatpush1.msra.mxu0 0.0
  %7478 = vmatprep.subr.mxu0 0.0
  %7479 = vmatpush1.msra.mxu0 0.0
  %7480 = vmatprep.subr.mxu0 0.0
  %7481 = vmatpush1.msra.mxu0 0.0
  %7482 = vmatprep.subr.mxu0 0.0
  %7483 = vmatpush1.msra.mxu0 0.0
  %7484 = vmatprep.subr.mxu0 0.0
  %7485 = vmatpush1.msra.mxu0 0.0
  %7486 = vmatprep.subr.mxu0 0.0
  %7487 = vmatpush1.msra.mxu0 0.0
  %7488 = vmatprep.subr.mxu0 0.0
  %7489 = vmatpush1.msra.mxu0 0.0
  %7490 = vmatprep.subr.mxu0 0.0
  %7491 = vmatpush1.msra.mxu0 0.0
  %7492 = vmatprep.subr.mxu0 0.0
  %7493 = vmatpush1.msra.mxu0 0.0
  %7494 = vmatprep.subr.mxu0 0.0
  %7495 = vmatpush1.msra.mxu0 0.0
  %7496 = vmatprep.subr.mxu0 0.0
  %7497 = vmatpush1.msra.mxu0 0.0
  %7498 = vmatprep.subr.mxu0 0.0
  %7499 = vmatpush1.msra.mxu0 0.0
  %7500 = vmatprep.subr.mxu0 0.0
  %7501 = vmatpush1.msra.mxu0 0.0
  %7502 = vmatprep.subr.mxu0 0.0
  %7503 = vmatpush1.msra.mxu0 0.0
  %7504 = vmatprep.subr.mxu0 0.0
  %7505 = vmatpush1.msra.mxu0 0.0
  %7506 = vmatprep.subr.mxu0 0.0
  %7507 = vmatpush1.msra.mxu0 0.0
  %7508 = vmatprep.subr.mxu0 0.0
  %7509 = vmatpush1.msra.mxu0 0.0
  %7510 = vmatprep.subr.mxu0 0.0
  %7511 = vmatpush1.msra.mxu0 0.0
  %7512 = vmatprep.mubr.f32.mxu0 0.0
  %v7513 = vand.u32 %v7323, 4294901760
  %7514 = vmatmul.mubr.f32.gmra.mrb[0].mxu0 %v7513
  %v7515 = vpop.f32.mrb[0].mxu0
  %v7516 = vadd.f32 %v7405, %v7515
  %v7517 = vpop.f32.mrb[0].mxu0
  %7518 = vdwg.mxu0
  %7519 = vmatprep.subr.mxu0 0.0
  %v7520 = vand.u32 %v7307, 4294901760
  %v7521 = vsub.f32 %v7307, %v7520
  %7522 = vmatpush1.msra.mxu0 %v7521
  %7523 = vmatprep.subr.mxu0 0.0
  %v7524 = vand.u32 %v7308, 4294901760
  %v7525 = vsub.f32 %v7308, %v7524
  %7526 = vmatpush1.msra.mxu0 %v7525
  %7527 = vmatprep.subr.mxu0 0.0
  %v7528 = vand.u32 %v7309, 4294901760
  %v7529 = vsub.f32 %v7309, %v7528
  %7530 = vmatpush1.msra.mxu0 %v7529
  %7531 = vmatprep.subr.mxu0 0.0
  %v7532 = vand.u32 %v7310, 4294901760
  %v7533 = vsub.f32 %v7310, %v7532
  %7534 = vmatpush1.msra.mxu0 %v7533
  %7535 = vmatprep.subr.mxu0 0.0
  %v7536 = vand.u32 %v7311, 4294901760
  %v7537 = vsub.f32 %v7311, %v7536
  %7538 = vmatpush1.msra.mxu0 %v7537
  %7539 = vmatprep.subr.mxu0 0.0
  %v7540 = vand.u32 %v7312, 4294901760
  %v7541 = vsub.f32 %v7312, %v7540
  %7542 = vmatpush1.msra.mxu0 %v7541
  %7543 = vmatprep.subr.mxu0 0.0
  %v7544 = vand.u32 %v7313, 4294901760
  %v7545 = vsub.f32 %v7313, %v7544
  %7546 = vmatpush1.msra.mxu0 %v7545
  %7547 = vmatprep.subr.mxu0 0.0
  %v7548 = vand.u32 %v7314, 4294901760
  %v7549 = vsub.f32 %v7314, %v7548
  %7550 = vmatpush1.msra.mxu0 %v7549
  %7551 = vmatprep.subr.mxu0 0.0
  %7552 = vmatpush1.msra.mxu0 0.0
  %7553 = vmatprep.subr.mxu0 0.0
  %7554 = vmatpush1.msra.mxu0 0.0
  %7555 = vmatprep.subr.mxu0 0.0
  %7556 = vmatpush1.msra.mxu0 0.0
  %7557 = vmatprep.subr.mxu0 0.0
  %7558 = vmatpush1.msra.mxu0 0.0
  %7559 = vmatprep.subr.mxu0 0.0
  %7560 = vmatpush1.msra.mxu0 0.0
  %7561 = vmatprep.subr.mxu0 0.0
  %7562 = vmatpush1.msra.mxu0 0.0
  %7563 = vmatprep.subr.mxu0 0.0
  %7564 = vmatpush1.msra.mxu0 0.0
  %7565 = vmatprep.subr.mxu0 0.0
  %7566 = vmatpush1.msra.mxu0 0.0
  %7567 = vmatprep.subr.mxu0 0.0
  %7568 = vmatpush1.msra.mxu0 0.0
  %7569 = vmatprep.subr.mxu0 0.0
  %7570 = vmatpush1.msra.mxu0 0.0
  %7571 = vmatprep.subr.mxu0 0.0
  %7572 = vmatpush1.msra.mxu0 0.0
  %7573 = vmatprep.subr.mxu0 0.0
  %7574 = vmatpush1.msra.mxu0 0.0
  %7575 = vmatprep.subr.mxu0 0.0
  %7576 = vmatpush1.msra.mxu0 0.0
  %7577 = vmatprep.subr.mxu0 0.0
  %7578 = vmatpush1.msra.mxu0 0.0
  %7579 = vmatprep.subr.mxu0 0.0
  %7580 = vmatpush1.msra.mxu0 0.0
  %7581 = vmatprep.subr.mxu0 0.0
  %7582 = vmatpush1.msra.mxu0 0.0
  %7583 = vmatprep.subr.mxu0 0.0
  %7584 = vmatpush1.msra.mxu0 0.0
  %7585 = vmatprep.subr.mxu0 0.0
  %7586 = vmatpush1.msra.mxu0 0.0
  %7587 = vmatprep.subr.mxu0 0.0
  %7588 = vmatpush1.msra.mxu0 0.0
  %7589 = vmatprep.subr.mxu0 0.0
  %7590 = vmatpush1.msra.mxu0 0.0
  %7591 = vmatprep.subr.mxu0 0.0
  %7592 = vmatpush1.msra.mxu0 0.0
  %7593 = vmatprep.subr.mxu0 0.0
  %7594 = vmatpush1.msra.mxu0 0.0
  %7595 = vmatprep.subr.mxu0 0.0
  %7596 = vmatpush1.msra.mxu0 0.0
  %7597 = vmatprep.subr.mxu0 0.0
  %7598 = vmatpush1.msra.mxu0 0.0
  %7599 = vmatprep.mubr.f32.mxu0 0.0
  %v7600 = vand.u32 %v7323, 4294901760
  %v7601 = vsub.f32 %v7323, %v7600
  %7602 = vmatmul.mubr.f32.gmra.mrb[0].mxu0 %v7601
  %v7603 = vpop.f32.mrb[0].mxu0
  %v7604 = vadd.f32 %v7516, %v7603
  %v7605 = vpop.f32.mrb[0].mxu0
  %7606 = vdwg.mxu0
  %7607 = vmatprep.subr.mxu0 0.0
  %v7608 = vand.u32 %v7307, 4294901760
  %7609 = vmatpush1.msra.mxu0 %v7608
  %7610 = vmatprep.subr.mxu0 0.0
  %v7611 = vand.u32 %v7308, 4294901760
  %7612 = vmatpush1.msra.mxu0 %v7611
  %7613 = vmatprep.subr.mxu0 0.0
  %v7614 = vand.u32 %v7309, 4294901760
  %7615 = vmatpush1.msra.mxu0 %v7614
  %7616 = vmatprep.subr.mxu0 0.0
  %v7617 = vand.u32 %v7310, 4294901760
  %7618 = vmatpush1.msra.mxu0 %v7617
  %7619 = vmatprep.subr.mxu0 0.0
  %v7620 = vand.u32 %v7311, 4294901760
  %7621 = vmatpush1.msra.mxu0 %v7620
  %7622 = vmatprep.subr.mxu0 0.0
  %v7623 = vand.u32 %v7312, 4294901760
  %7624 = vmatpush1.msra.mxu0 %v7623
  %7625 = vmatprep.subr.mxu0 0.0
  %v7626 = vand.u32 %v7313, 4294901760
  %7627 = vmatpush1.msra.mxu0 %v7626
  %7628 = vmatprep.subr.mxu0 0.0
  %v7629 = vand.u32 %v7314, 4294901760
  %7630 = vmatpush1.msra.mxu0 %v7629
  %7631 = vmatprep.subr.mxu0 0.0
  %7632 = vmatpush1.msra.mxu0 0.0
  %7633 = vmatprep.subr.mxu0 0.0
  %7634 = vmatpush1.msra.mxu0 0.0
  %7635 = vmatprep.subr.mxu0 0.0
  %7636 = vmatpush1.msra.mxu0 0.0
  %7637 = vmatprep.subr.mxu0 0.0
  %7638 = vmatpush1.msra.mxu0 0.0
  %7639 = vmatprep.subr.mxu0 0.0
  %7640 = vmatpush1.msra.mxu0 0.0
  %7641 = vmatprep.subr.mxu0 0.0
  %7642 = vmatpush1.msra.mxu0 0.0
  %7643 = vmatprep.subr.mxu0 0.0
  %7644 = vmatpush1.msra.mxu0 0.0
  %7645 = vmatprep.subr.mxu0 0.0
  %7646 = vmatpush1.msra.mxu0 0.0
  %7647 = vmatprep.subr.mxu0 0.0
  %7648 = vmatpush1.msra.mxu0 0.0
  %7649 = vmatprep.subr.mxu0 0.0
  %7650 = vmatpush1.msra.mxu0 0.0
  %7651 = vmatprep.subr.mxu0 0.0
  %7652 = vmatpush1.msra.mxu0 0.0
  %7653 = vmatprep.subr.mxu0 0.0
  %7654 = vmatpush1.msra.mxu0 0.0
  %7655 = vmatprep.subr.mxu0 0.0
  %7656 = vmatpush1.msra.mxu0 0.0
  %7657 = vmatprep.subr.mxu0 0.0
  %7658 = vmatpush1.msra.mxu0 0.0
  %7659 = vmatprep.subr.mxu0 0.0
  %7660 = vmatpush1.msra.mxu0 0.0
  %7661 = vmatprep.subr.mxu0 0.0
  %7662 = vmatpush1.msra.mxu0 0.0
  %7663 = vmatprep.subr.mxu0 0.0
  %7664 = vmatpush1.msra.mxu0 0.0
  %7665 = vmatprep.subr.mxu0 0.0
  %7666 = vmatpush1.msra.mxu0 0.0
  %7667 = vmatprep.subr.mxu0 0.0
  %7668 = vmatpush1.msra.mxu0 0.0
  %7669 = vmatprep.subr.mxu0 0.0
  %7670 = vmatpush1.msra.mxu0 0.0
  %7671 = vmatprep.subr.mxu0 0.0
  %7672 = vmatpush1.msra.mxu0 0.0
  %7673 = vmatprep.subr.mxu0 0.0
  %7674 = vmatpush1.msra.mxu0 0.0
  %7675 = vmatprep.subr.mxu0 0.0
  %7676 = vmatpush1.msra.mxu0 0.0
  %7677 = vmatprep.subr.mxu0 0.0
  %7678 = vmatpush1.msra.mxu0 0.0
  %7679 = vmatprep.mubr.f32.mxu0 0.0
  %v7680 = vand.u32 %v7323, 4294901760
  %v7681 = vsub.f32 %v7323, %v7680
  %v7682 = vand.u32 %v7681, 4294901760
  %7683 = vmatmul.mubr.f32.gmra.mrb[0].mxu0 %v7682
  %v7684 = vpop.f32.mrb[0].mxu0
  %v7685 = vadd.f32 %v7604, %v7684
  %v7686 = vpop.f32.mrb[0].mxu0
  %7687 = vdwg.mxu0
  %7688 = vmatprep.subr.mxu0 0.0
  %v7689 = vand.u32 %v7307, 4294901760
  %v7690 = vsub.f32 %v7307, %v7689
  %v7691 = vand.u32 %v7690, 4294901760
  %7692 = vmatpush1.msra.mxu0 %v7691
  %7693 = vmatprep.subr.mxu0 0.0
  %v7694 = vand.u32 %v7308, 4294901760
  %v7695 = vsub.f32 %v7308, %v7694
  %v7696 = vand.u32 %v7695, 4294901760
  %7697 = vmatpush1.msra.mxu0 %v7696
  %7698 = vmatprep.subr.mxu0 0.0
  %v7699 = vand.u32 %v7309, 4294901760
  %v7700 = vsub.f32 %v7309, %v7699
  %v7701 = vand.u32 %v7700, 4294901760
  %7702 = vmatpush1.msra.mxu0 %v7701
  %7703 = vmatprep.subr.mxu0 0.0
  %v7704 = vand.u32 %v7310, 4294901760
  %v7705 = vsub.f32 %v7310, %v7704
  %v7706 = vand.u32 %v7705, 4294901760
  %7707 = vmatpush1.msra.mxu0 %v7706
  %7708 = vmatprep.subr.mxu0 0.0
  %v7709 = vand.u32 %v7311, 4294901760
  %v7710 = vsub.f32 %v7311, %v7709
  %v7711 = vand.u32 %v7710, 4294901760
  %7712 = vmatpush1.msra.mxu0 %v7711
  %7713 = vmatprep.subr.mxu0 0.0
  %v7714 = vand.u32 %v7312, 4294901760
  %v7715 = vsub.f32 %v7312, %v7714
  %v7716 = vand.u32 %v7715, 4294901760
  %7717 = vmatpush1.msra.mxu0 %v7716
  %7718 = vmatprep.subr.mxu0 0.0
  %v7719 = vand.u32 %v7313, 4294901760
  %v7720 = vsub.f32 %v7313, %v7719
  %v7721 = vand.u32 %v7720, 4294901760
  %7722 = vmatpush1.msra.mxu0 %v7721
  %7723 = vmatprep.subr.mxu0 0.0
  %v7724 = vand.u32 %v7314, 4294901760
  %v7725 = vsub.f32 %v7314, %v7724
  %v7726 = vand.u32 %v7725, 4294901760
  %7727 = vmatpush1.msra.mxu0 %v7726
  %7728 = vmatprep.subr.mxu0 0.0
  %7729 = vmatpush1.msra.mxu0 0.0
  %7730 = vmatprep.subr.mxu0 0.0
  %7731 = vmatpush1.msra.mxu0 0.0
  %7732 = vmatprep.subr.mxu0 0.0
  %7733 = vmatpush1.msra.mxu0 0.0
  %7734 = vmatprep.subr.mxu0 0.0
  %7735 = vmatpush1.msra.mxu0 0.0
  %7736 = vmatprep.subr.mxu0 0.0
  %7737 = vmatpush1.msra.mxu0 0.0
  %7738 = vmatprep.subr.mxu0 0.0
  %7739 = vmatpush1.msra.mxu0 0.0
  %7740 = vmatprep.subr.mxu0 0.0
  %7741 = vmatpush1.msra.mxu0 0.0
  %7742 = vmatprep.subr.mxu0 0.0
  %7743 = vmatpush1.msra.mxu0 0.0
  %7744 = vmatprep.subr.mxu0 0.0
  %7745 = vmatpush1.msra.mxu0 0.0
  %7746 = vmatprep.subr.mxu0 0.0
  %7747 = vmatpush1.msra.mxu0 0.0
  %7748 = vmatprep.subr.mxu0 0.0
  %7749 = vmatpush1.msra.mxu0 0.0
  %7750 = vmatprep.subr.mxu0 0.0
  %7751 = vmatpush1.msra.mxu0 0.0
  %7752 = vmatprep.subr.mxu0 0.0
  %7753 = vmatpush1.msra.mxu0 0.0
  %7754 = vmatprep.subr.mxu0 0.0
  %7755 = vmatpush1.msra.mxu0 0.0
  %7756 = vmatprep.subr.mxu0 0.0
  %7757 = vmatpush1.msra.mxu0 0.0
  %7758 = vmatprep.subr.mxu0 0.0
  %7759 = vmatpush1.msra.mxu0 0.0
  %7760 = vmatprep.subr.mxu0 0.0
  %7761 = vmatpush1.msra.mxu0 0.0
  %7762 = vmatprep.subr.mxu0 0.0
  %7763 = vmatpush1.msra.mxu0 0.0
  %7764 = vmatprep.subr.mxu0 0.0
  %7765 = vmatpush1.msra.mxu0 0.0
  %7766 = vmatprep.subr.mxu0 0.0
  %7767 = vmatpush1.msra.mxu0 0.0
  %7768 = vmatprep.subr.mxu0 0.0
  %7769 = vmatpush1.msra.mxu0 0.0
  %7770 = vmatprep.subr.mxu0 0.0
  %7771 = vmatpush1.msra.mxu0 0.0
  %7772 = vmatprep.subr.mxu0 0.0
  %7773 = vmatpush1.msra.mxu0 0.0
  %7774 = vmatprep.subr.mxu0 0.0
  %7775 = vmatpush1.msra.mxu0 0.0
  %7776 = vmatprep.mubr.f32.mxu0 0.0
  %v7777 = vand.u32 %v7323, 4294901760
  %7778 = vmatmul.mubr.f32.gmra.mrb[0].mxu0 %v7777
  %v7779 = vpop.f32.mrb[0].mxu0
  %v7780 = vadd.f32 %v7685, %v7779
  %v7781 = vpop.f32.mrb[0].mxu0
  %7782 = vdwg.mxu0
  %7783 = vmatprep.subr.mxu0 0.0
  %v7784 = vand.u32 %v7307, 4294901760
  %7785 = vmatpush1.msra.mxu0 %v7784
  %7786 = vmatprep.subr.mxu0 0.0
  %v7787 = vand.u32 %v7308, 4294901760
  %7788 = vmatpush1.msra.mxu0 %v7787
  %7789 = vmatprep.subr.mxu0 0.0
  %v7790 = vand.u32 %v7309, 4294901760
  %7791 = vmatpush1.msra.mxu0 %v7790
  %7792 = vmatprep.subr.mxu0 0.0
  %v7793 = vand.u32 %v7310, 4294901760
  %7794 = vmatpush1.msra.mxu0 %v7793
  %7795 = vmatprep.subr.mxu0 0.0
  %v7796 = vand.u32 %v7311, 4294901760
  %7797 = vmatpush1.msra.mxu0 %v7796
  %7798 = vmatprep.subr.mxu0 0.0
  %v7799 = vand.u32 %v7312, 4294901760
  %7800 = vmatpush1.msra.mxu0 %v7799
  %7801 = vmatprep.subr.mxu0 0.0
  %v7802 = vand.u32 %v7313, 4294901760
  %7803 = vmatpush1.msra.mxu0 %v7802
  %7804 = vmatprep.subr.mxu0 0.0
  %v7805 = vand.u32 %v7314, 4294901760
  %7806 = vmatpush1.msra.mxu0 %v7805
  %7807 = vmatprep.subr.mxu0 0.0
  %7808 = vmatpush1.msra.mxu0 0.0
  %7809 = vmatprep.subr.mxu0 0.0
  %7810 = vmatpush1.msra.mxu0 0.0
  %7811 = vmatprep.subr.mxu0 0.0
  %7812 = vmatpush1.msra.mxu0 0.0
  %7813 = vmatprep.subr.mxu0 0.0
  %7814 = vmatpush1.msra.mxu0 0.0
  %7815 = vmatprep.subr.mxu0 0.0
  %7816 = vmatpush1.msra.mxu0 0.0
  %7817 = vmatprep.subr.mxu0 0.0
  %7818 = vmatpush1.msra.mxu0 0.0
  %7819 = vmatprep.subr.mxu0 0.0
  %7820 = vmatpush1.msra.mxu0 0.0
  %7821 = vmatprep.subr.mxu0 0.0
  %7822 = vmatpush1.msra.mxu0 0.0
  %7823 = vmatprep.subr.mxu0 0.0
  %7824 = vmatpush1.msra.mxu0 0.0
  %7825 = vmatprep.subr.mxu0 0.0
  %7826 = vmatpush1.msra.mxu0 0.0
  %7827 = vmatprep.subr.mxu0 0.0
  %7828 = vmatpush1.msra.mxu0 0.0
  %7829 = vmatprep.subr.mxu0 0.0
  %7830 = vmatpush1.msra.mxu0 0.0
  %7831 = vmatprep.subr.mxu0 0.0
  %7832 = vmatpush1.msra.mxu0 0.0
  %7833 = vmatprep.subr.mxu0 0.0
  %7834 = vmatpush1.msra.mxu0 0.0
  %7835 = vmatprep.subr.mxu0 0.0
  %7836 = vmatpush1.msra.mxu0 0.0
  %7837 = vmatprep.subr.mxu0 0.0
  %7838 = vmatpush1.msra.mxu0 0.0
  %7839 = vmatprep.subr.mxu0 0.0
  %7840 = vmatpush1.msra.mxu0 0.0
  %7841 = vmatprep.subr.mxu0 0.0
  %7842 = vmatpush1.msra.mxu0 0.0
  %7843 = vmatprep.subr.mxu0 0.0
  %7844 = vmatpush1.msra.mxu0 0.0
  %7845 = vmatprep.subr.mxu0 0.0
  %7846 = vmatpush1.msra.mxu0 0.0
  %7847 = vmatprep.subr.mxu0 0.0
  %7848 = vmatpush1.msra.mxu0 0.0
  %7849 = vmatprep.subr.mxu0 0.0
  %7850 = vmatpush1.msra.mxu0 0.0
  %7851 = vmatprep.subr.mxu0 0.0
  %7852 = vmatpush1.msra.mxu0 0.0
  %7853 = vmatprep.subr.mxu0 0.0
  %7854 = vmatpush1.msra.mxu0 0.0
  %7855 = vmatprep.mubr.f32.mxu0 0.0
  %v7856 = vand.u32 %v7323, 4294901760
  %7857 = vmatmul.mubr.f32.gmra.mrb[0].mxu0 %v7856
  %v7858 = vpop.f32.mrb[0].mxu0
  %v7859 = vadd.f32 %v7780, %v7858
  %v7860 = vpop.f32.mrb[0].mxu0
  %7861 = vdwg.mxu0
  %vm7862 = vcmask 31744
  %7863 = vst.msk [vmem:[%s7] sm:$0xff] %vm7862, %v7859
  // Predicated region
  $region30: #{lstm_model_forward.1} parent=0 // pred_check
    _
  $region31: #{lstm_model_forward.1} parent=0 // pred_check_branch
    %7865 = sbr.rel (0) target = $region33
  $region32: #{lstm_model_forward.1} parent=0 // pred_region
    _
  $region33: #{lstm_model_forward.1} parent=0 // pred_fallthru
    _
  // Predicated region
  $region34: #{lstm_model_forward.1} parent=0 // pred_check
    _
  $region35: #{lstm_model_forward.1} parent=0 // pred_check_branch
    %7867 = sbr.rel (0) target = $region37
  $region36: #{lstm_model_forward.1} parent=0 // pred_region
    _
  $region37: #{lstm_model_forward.1} parent=0 // pred_fallthru
    _

</llo_original>
